<compile_context>
chip_gen: v6e
topology: v6e:2x2x1
jax: 0.10.0
libtpu: 0.0.40
codegen_flags: <defaults>
</compile_context>

<pallas_src>
import functools

import jax
import jax.numpy as jnp
from jax import lax
from jax.experimental import pallas as pl
from jax.experimental.pallas import tpu as pltpu


# ----------------------------------------------------------------------------
# Per-generation VMEM limit (v5e/v6e: 128 MiB phys -> 64 MiB; v7x: 64 -> 32)
# ----------------------------------------------------------------------------

def _compute_vmem_limit():
    cap = 128 * 1024 * 1024
    try:
        info = pltpu.get_tpu_info()
        cap = int(getattr(info, "vmem_capacity_bytes", cap) or cap)
    except Exception:
        pass
    return int(max(32 * 1024 * 1024, min(cap // 2, 96 * 1024 * 1024)))


_VMEM_LIMIT = _compute_vmem_limit()

_MASK_VALUE = -1e30  # finite (bf16-representable) mask for padded key columns


def _cparams(*dims):
    return pltpu.CompilerParams(
        dimension_semantics=dims,
        vmem_limit_bytes=_VMEM_LIMIT,
    )


def _round_up(x, m):
    return ((x + m - 1) // m) * m


def _pick_tile(n_pad):
    """Largest 128-multiple tile that still leaves >=2 tiles (megacore)."""
    for t in (512, 256):
        if n_pad % t == 0 and n_pad // t >= 2:
            return t
    return 128


def _mb_spec(shape, index_map, multibuffer):
    """BlockSpec with optional 3-deep buffering (falls back if unsupported)."""
    if multibuffer:
        try:
            return pl.BlockSpec(shape, index_map, pipeline_mode=pl.Buffered(3))
        except TypeError:
            pass
    return pl.BlockSpec(shape, index_map)


# ----------------------------------------------------------------------------
# Linear kernels (row-tiled, bf16 MXU, f32 accumulation)
# ----------------------------------------------------------------------------

def _linear_add_kernel(x_ref, w_ref, b_ref, add_ref, o_ref):
    # o = x @ w + b + add   (node_in_lin fused with centrality encoding)
    o_ref[...] = (
        jnp.dot(x_ref[...].astype(jnp.bfloat16), w_ref[...],
                preferred_element_type=jnp.float32)
        + b_ref[...] + add_ref[...]
    )


def linear_add(x, w_bf, b, add, tr):
    n, f = x.shape
    d = w_bf.shape[1]
    return pl.pallas_call(
        _linear_add_kernel,
        out_shape=jax.ShapeDtypeStruct((n, d), jnp.float32),
        grid=(n // tr,),
        in_specs=[
            pl.BlockSpec((tr, f), lambda i: (i, 0)),
            pl.BlockSpec((f, d), lambda i: (0, 0)),
            pl.BlockSpec((1, d), lambda i: (0, 0)),
            pl.BlockSpec((tr, d), lambda i: (i, 0)),
        ],
        out_specs=pl.BlockSpec((tr, d), lambda i: (i, 0)),
        compiler_params=_cparams("parallel"),
    )(x, w_bf, b, add)


def _linear_kernel(x_ref, w_ref, b_ref, o_ref):
    # o = x @ w + b   (node_out_lin)
    o_ref[...] = (
        jnp.dot(x_ref[...].astype(jnp.bfloat16), w_ref[...],
                preferred_element_type=jnp.float32)
        + b_ref[...]
    )


def linear(x, w_bf, b, tr):
    n, f = x.shape
    d = w_bf.shape[1]
    return pl.pallas_call(
        _linear_kernel,
        out_shape=jax.ShapeDtypeStruct((n, d), jnp.float32),
        grid=(n // tr,),
        in_specs=[
            pl.BlockSpec((tr, f), lambda i: (i, 0)),
            pl.BlockSpec((f, d), lambda i: (0, 0)),
            pl.BlockSpec((1, d), lambda i: (0, 0)),
        ],
        out_specs=pl.BlockSpec((tr, d), lambda i: (i, 0)),
        compiler_params=_cparams("parallel"),
    )(x, w_bf, b)


# ----------------------------------------------------------------------------
# Fused RW spatial encoding + signed-adjacency attention bias (row+col tiled)
# ----------------------------------------------------------------------------

def _attn_bias_kernel(num_walks, n_real, tc, feat_ref, adj_ref, rw_w_ref,
                      rw_b_ref, o_ref):
    # Reproduces (walk channel leading):
    #   feature_reciprocal = 1 / (feature + 1e-10)
    #   row_sum            = feature.sum(over walk channel, keepdim)
    #   normalized_feature = feature_reciprocal / row_sum
    #   spatial            = RWEncoding(normalized_feature)   Linear(num, 1)
    #   bias               = adj + spatial    (masked -1e30 on padded columns)
    eps = 1e-10
    cj = pl.program_id(1)
    f0 = feat_ref[0]                                   # (tr, tc) lane-dense
    row_sum = f0
    weighted = rw_w_ref[0, 0] * (1.0 / (f0 + eps))     # exact recip
    for w in range(1, num_walks):                      # static VPU adds
        fw = feat_ref[w]
        row_sum = row_sum + fw
        weighted = weighted + rw_w_ref[0, w] * (1.0 / (fw + eps))
    spatial = weighted * pl.reciprocal(row_sum, approx=True) + rw_b_ref[0, 0]
    bias = adj_ref[...].astype(jnp.float32) + spatial
    col = lax.broadcasted_iota(jnp.int32, bias.shape, 1) + cj * tc
    bias = jnp.where(col < n_real, bias, _MASK_VALUE)
    o_ref[...] = bias.astype(jnp.bfloat16)


def build_attn_bias(feature_wnn, adj_i8, rw_w, rw_b, tr, tc, n_real):
    w, n, _ = feature_wnn.shape
    return pl.pallas_call(
        functools.partial(_attn_bias_kernel, w, n_real, tc),
        out_shape=jax.ShapeDtypeStruct((n, n), jnp.bfloat16),
        grid=(n // tr, n // tc),
        in_specs=[
            pl.BlockSpec((w, tr, tc), lambda i, j: (0, i, j)),
            pl.BlockSpec((tr, tc), lambda i, j: (i, j)),
            pl.BlockSpec(memory_space=pltpu.MemorySpace.SMEM),   # rw_w (1, W)
            pl.BlockSpec(memory_space=pltpu.MemorySpace.SMEM),   # rw_b (1, 1)
        ],
        out_specs=pl.BlockSpec((tr, tc), lambda i, j: (i, j)),
        compiler_params=_cparams("parallel", "parallel"),
    )(feature_wnn, adj_i8, rw_w, rw_b)


# ----------------------------------------------------------------------------
# Encoder layer part 1: LN1 + Q/K/V projection  (bf16 outputs, separate Q/K/V)
# ----------------------------------------------------------------------------

def _ln_qkv_kernel(h_ref, g1_ref, b1_ref, wq_ref, bq_ref, wk_ref, bk_ref,
                   wv_ref, bv_ref, q_ref, k_ref, v_ref):
    h = h_ref[...]
    mu = jnp.mean(h, axis=-1, keepdims=True)
    var = jnp.mean((h - mu) ** 2, axis=-1, keepdims=True)
    hn = (h - mu) * lax.rsqrt(var + 1e-5) * g1_ref[...] + b1_ref[...]
    hb = hn.astype(jnp.bfloat16)
    q_ref[...] = (jnp.dot(hb, wq_ref[...], preferred_element_type=jnp.float32)
                  + bq_ref[...]).astype(jnp.bfloat16)
    k_ref[...] = (jnp.dot(hb, wk_ref[...], preferred_element_type=jnp.float32)
                  + bk_ref[...]).astype(jnp.bfloat16)
    v_ref[...] = (jnp.dot(hb, wv_ref[...], preferred_element_type=jnp.float32)
                  + bv_ref[...]).astype(jnp.bfloat16)


def ln_qkv(h, g1, b1, wq, bq, wk, bk, wv, bv, tr):
    n, d = h.shape
    qkv = jax.ShapeDtypeStruct((n, d), jnp.bfloat16)
    return pl.pallas_call(
        _ln_qkv_kernel,
        out_shape=(qkv, qkv, qkv),
        grid=(n // tr,),
        in_specs=[
            pl.BlockSpec((tr, d), lambda i: (i, 0)),
            pl.BlockSpec((1, d), lambda i: (0, 0)),
            pl.BlockSpec((1, d), lambda i: (0, 0)),
            pl.BlockSpec((d, d), lambda i: (0, 0)),
            pl.BlockSpec((1, d), lambda i: (0, 0)),
            pl.BlockSpec((d, d), lambda i: (0, 0)),
            pl.BlockSpec((1, d), lambda i: (0, 0)),
            pl.BlockSpec((d, d), lambda i: (0, 0)),
            pl.BlockSpec((1, d), lambda i: (0, 0)),
        ],
        out_specs=(
            pl.BlockSpec((tr, d), lambda i: (i, 0)),
            pl.BlockSpec((tr, d), lambda i: (i, 0)),
            pl.BlockSpec((tr, d), lambda i: (i, 0)),
        ),
        compiler_params=_cparams("parallel"),
    )(h, g1, b1, wq, bq, wk, bk, wv, bv)


# ----------------------------------------------------------------------------
# Encoder layer part 2: flash attention (online softmax, bf16 streams)
# ----------------------------------------------------------------------------

def _flash_attn_kernel(num_heads, q_ref, k_ref, v_ref, bias_ref, o_ref,
                       m_sc, l_sc, acc_sc):
    ki = pl.program_id(1)
    tq, d = q_ref.shape
    hd = d // num_heads
    scale = 1.0 / (hd ** 0.5)

    @pl.when(ki == 0)
    def _init():
        m_sc[...] = jnp.full(m_sc.shape, -jnp.inf, jnp.float32)
        l_sc[...] = jnp.zeros(l_sc.shape, jnp.float32)
        acc_sc[...] = jnp.zeros(acc_sc.shape, jnp.float32)

    bias = bias_ref[...].astype(jnp.float32)           # (tq, tk)
    qb = q_ref[...]                                    # (tq, d) bf16
    kb = k_ref[...]                                    # (tk, d) bf16
    vb = v_ref[...]                                    # (tk, d) bf16

    # Static per-head loop writing head-indexed scratch slices; lane slices
    # are free when hd is a multiple of 128.
    for h in range(num_heads):
        sl = slice(h * hd, (h + 1) * hd)
        s = lax.dot_general(qb[:, sl], kb[:, sl],
                            (((1,), (1,)), ((), ())),
                            preferred_element_type=jnp.float32)   # (tq, tk)
        s = s * scale + bias
        m_prev = m_sc[h]
        m_new = jnp.maximum(m_prev, jnp.max(s, axis=-1, keepdims=True))
        alpha = jnp.exp(m_prev - m_new)
        p = jnp.exp(s - m_new)
        l_sc[h] = alpha * l_sc[h] + jnp.sum(p, axis=-1, keepdims=True)
        acc_sc[h] = alpha * acc_sc[h] + jnp.dot(
            p.astype(jnp.bfloat16), vb[:, sl],
            preferred_element_type=jnp.float32)
        m_sc[h] = m_new

    @pl.when(ki == pl.num_programs(1) - 1)
    def _finalize():
        for h in range(num_heads):
            sl = slice(h * hd, (h + 1) * hd)
            o_ref[:, sl] = (acc_sc[h] * pl.reciprocal(l_sc[h], approx=True)
                            ).astype(jnp.bfloat16)


def flash_attention(q, k, v, bias, num_heads, tq, tk, multibuf):
    n, d = q.shape
    hd = d // num_heads
    return pl.pallas_call(
        functools.partial(_flash_attn_kernel, num_heads),
        out_shape=jax.ShapeDtypeStruct((n, d), jnp.bfloat16),
        grid=(n // tq, n // tk),
        in_specs=[
            pl.BlockSpec((tq, d), lambda qi, ki: (qi, 0)),           # Q tile
            _mb_spec((tk, d), lambda qi, ki: (ki, 0), multibuf),     # K tile
            _mb_spec((tk, d), lambda qi, ki: (ki, 0), multibuf),     # V tile
            _mb_spec((tq, tk), lambda qi, ki: (qi, ki), multibuf),   # bias
        ],
        out_specs=pl.BlockSpec((tq, d), lambda qi, ki: (qi, 0)),
        scratch_shapes=[
            pltpu.VMEM((num_heads, tq, 1), jnp.float32),   # running max m
            pltpu.VMEM((num_heads, tq, 1), jnp.float32),   # running sum l
            pltpu.VMEM((num_heads, tq, hd), jnp.float32),  # acc
        ],
        compiler_params=_cparams("parallel", "arbitrary"),
    )(q, k, v, bias)


# ----------------------------------------------------------------------------
# Encoder layer part 3: out-projection + residual + LN2 + FFN + residual
# (separate row-tiled kernel -> Wo/FFN weights are not resident during the
#  (qi,ki) attention loop; one full d-deep Wo matmul instead of H small ones)
# ----------------------------------------------------------------------------

def _out_ffn_kernel(attn_ref, x_ref, wo_ref, bo_ref, g2_ref, b2_ref,
                    wf1_ref, bf1_ref, wf2_ref, bf2_ref, o_ref):
    proj = (jnp.dot(attn_ref[...], wo_ref[...],
                    preferred_element_type=jnp.float32) + bo_ref[...])
    xp = proj + x_ref[...]                           # residual 1
    mu = jnp.mean(xp, axis=-1, keepdims=True)
    var = jnp.mean((xp - mu) ** 2, axis=-1, keepdims=True)
    h2 = (xp - mu) * lax.rsqrt(var + 1e-5) * g2_ref[...] + b2_ref[...]
    f1 = (jnp.dot(h2.astype(jnp.bfloat16), wf1_ref[...],
                  preferred_element_type=jnp.float32) + bf1_ref[...])
    f1 = jax.nn.gelu(f1, approximate=True)
    f2 = (jnp.dot(f1.astype(jnp.bfloat16), wf2_ref[...],
                  preferred_element_type=jnp.float32) + bf2_ref[...])
    o_ref[...] = f2 + xp                             # residual 2


def out_proj_ffn(attn, x, wo, bo, g2, b2, wf1, bf1, wf2, bf2, tr):
    n, d = x.shape
    dff = wf1.shape[1]
    return pl.pallas_call(
        _out_ffn_kernel,
        out_shape=jax.ShapeDtypeStruct((n, d), jnp.float32),
        grid=(n // tr,),
        in_specs=[
            pl.BlockSpec((tr, d), lambda i: (i, 0)),     # attn (bf16)
            pl.BlockSpec((tr, d), lambda i: (i, 0)),     # residual x (f32)
            pl.BlockSpec((d, d), lambda i: (0, 0)),      # Wo
            pl.BlockSpec((1, d), lambda i: (0, 0)),      # bo
            pl.BlockSpec((1, d), lambda i: (0, 0)),      # LN2 gamma
            pl.BlockSpec((1, d), lambda i: (0, 0)),      # LN2 beta
            pl.BlockSpec((d, dff), lambda i: (0, 0)),    # FFN W1
            pl.BlockSpec((1, dff), lambda i: (0, 0)),    # FFN b1
            pl.BlockSpec((dff, d), lambda i: (0, 0)),    # FFN W2
            pl.BlockSpec((1, d), lambda i: (0, 0)),      # FFN b2
        ],
        out_specs=pl.BlockSpec((tr, d), lambda i: (i, 0)),
        compiler_params=_cparams("parallel"),
    )(attn, x, wo, bo, g2, b2, wf1, bf1, wf2, bf2)


# ----------------------------------------------------------------------------
# JAX glue (degrees / adjacency / padding / orchestration)
# ----------------------------------------------------------------------------

def _degree(idx, n):
    return jnp.zeros((n,), jnp.int32).at[idx].add(1)


def prepare_params(params):
    """One-time weight prep: bf16 casts hoisted out of the forward pass."""
    prep = {
        "w_in_bf": params["w_in"].astype(jnp.bfloat16),
        "b_in": params["b_in"],
        "z_pos": params["z_pos"],
        "z_neg": params["z_neg"],
        "rw_w": params["rw_w"],
        "rw_b": params["rw_b"],
        "w_out_bf": params["w_out"].astype(jnp.bfloat16),
        "b_out": params["b_out"],
        "layers_bf": [],
    }
    for lp in params["layers"]:
        (g1, b1, wq, bq, wk, bk, wv, bv,
         wo, bo, g2, b2, wf1, bf1, wf2, bf2) = lp
        prep["layers_bf"].append((
            g1, b1,
            wq.astype(jnp.bfloat16), bq,
            wk.astype(jnp.bfloat16), bk,
            wv.astype(jnp.bfloat16), bv,
            wo.astype(jnp.bfloat16), bo,
            g2, b2,
            wf1.astype(jnp.bfloat16), bf1,
            wf2.astype(jnp.bfloat16), bf2,
        ))
    return prep


def se_sgformer_forward(prep, x, pos_edge_index, neg_edge_index, feature_wnn,
                        num_heads, max_degree):
    n = x.shape[0]
    d = prep["w_in_bf"].shape[1]
    assert d % num_heads == 0, "node_dim must be divisible by num_heads"

    n_pad = _round_up(n, 128)
    tile = _pick_tile(n_pad)
    tq = tk = tile

    # Pad node features / RW features (padded key columns get masked bias).
    x_p = jnp.pad(x, ((0, n_pad - n), (0, 0)))
    feat_p = jnp.pad(feature_wnn, ((0, 0), (0, n_pad - n), (0, n_pad - n)),
                     constant_values=1.0)

    # CentralityEncoding: x += z_pos[deg_pos] + z_neg[deg_neg]  (gather = glue)
    deg_p = jnp.clip(_degree(pos_edge_index[1], n_pad), 0, max_degree - 1)
    deg_n = jnp.clip(_degree(neg_edge_index[1], n_pad), 0, max_degree - 1)
    cent = prep["z_pos"][deg_p] + prep["z_neg"][deg_n]          # (N_pad, D)

    # node_in_lin + centrality add (fused, row-tiled)
    h = linear_add(x_p, prep["w_in_bf"], prep["b_in"], cent, tq)

    # ADJEncoding: signed adjacency (+1 pos, -1 neg), int8  (scatter = glue)
    adj = (
        jnp.zeros((n_pad, n_pad), jnp.int8)
        .at[pos_edge_index[0], pos_edge_index[1]].set(1)
        .at[neg_edge_index[0], neg_edge_index[1]].set(-1)
    )
    # adj + RW-spatial bias: computed ONCE (bf16, column-masked), reused by
    # every encoder layer.
    bias = build_attn_bias(feat_p, adj, prep["rw_w"], prep["rw_b"],
                           tile, tile, n)

    multibuf = (n_pad // tk) >= 3
    for lp in prep["layers_bf"]:
        (g1, b1, wq, bq, wk, bk, wv, bv,
         wo, bo, g2, b2, wf1, bf1, wf2, bf2) = lp
        q, k, v = ln_qkv(h, g1, b1, wq, bq, wk, bk, wv, bv, tq)
        attn = flash_attention(q, k, v, bias, num_heads, tq, tk, multibuf)
        h = out_proj_ffn(attn, h, wo, bo, g2, b2, wf1, bf1, wf2, bf2, tq)

    # node_out_lin, then drop padded rows
    out = linear(h, prep["w_out_bf"], prep["b_out"], tq)
    return out[:n]


def init_params(key, f_in, d, d_out, num_heads, num_layers, max_degree,
                num_walks):
    keys = jax.random.split(key, 8 + num_layers)

    def dense(k, shape, scale=0.1):
        return jax.random.normal(k, shape, jnp.float32) * scale

    params = {
        "w_in": dense(keys[0], (f_in, d)),
        "b_in": dense(keys[1], (1, d)),
        "z_pos": dense(keys[2], (max_degree, d)),
        "z_neg": dense(keys[3], (max_degree, d)),
        "rw_w": dense(keys[4], (1, num_walks)),
        "rw_b": dense(keys[5], (1, 1)),
        "w_out": dense(keys[6], (d, d_out)),
        "b_out": dense(keys[7], (1, d_out)),
        "layers": [],
    }
    for i in range(num_layers):
        lk = jax.random.split(keys[8 + i], 16)
        params["layers"].append((
            jnp.ones((1, d), jnp.float32), jnp.zeros((1, d), jnp.float32),  # LN1
            dense(lk[2], (d, d)), dense(lk[3], (1, d)),    # Wq, bq
            dense(lk[4], (d, d)), dense(lk[5], (1, d)),    # Wk, bk
            dense(lk[6], (d, d)), dense(lk[7], (1, d)),    # Wv, bv
            dense(lk[8], (d, d)), dense(lk[9], (1, d)),    # Wo, bo
            jnp.ones((1, d), jnp.float32), jnp.zeros((1, d), jnp.float32),  # LN2
            dense(lk[12], (d, d)), dense(lk[13], (1, d)),  # FFN W1, b1
            dense(lk[14], (d, d)), dense(lk[15], (1, d)),  # FFN W2, b2
        ))
    return params


if __name__ == "__main__":
    # Small, self-consistent, lane-friendly configuration
    # (D, D_OUT multiples of 128; head dim = D/num_heads = 128).
    N, F_IN, D, D_OUT = 16, 8, 256, 128
    NUM_HEADS, NUM_LAYERS = 2, 2
    MAX_DEGREE, NUM_WALKS = 8, 4
    E_POS, E_NEG = 24, 16

    key = jax.random.PRNGKey(0)
    kx, kp_e, kn_e, kf, kparam = jax.random.split(key, 5)

    x = jax.random.normal(kx, (N, F_IN), jnp.float32)
    pos_edge_index = jax.random.randint(kp_e, (2, E_POS), 0, N)
    neg_edge_index = jax.random.randint(kn_e, (2, E_NEG), 0, N)
    # Synthetic random-walk features (replaces the file-loaded tensor), stored
    # walk-channel-major (num_walks, N, N) so the (N, N) planes are lane-dense.
    rw_feature = jax.random.uniform(kf, (NUM_WALKS, N, N), jnp.float32, 0.1, 1.0)

    params = init_params(kparam, F_IN, D, D_OUT, NUM_HEADS, NUM_LAYERS,
                         MAX_DEGREE, NUM_WALKS)
    prep = prepare_params(params)

    fwd = jax.jit(lambda p, xx, pe, ne, ff: se_sgformer_forward(
        p, xx, pe, ne, ff, NUM_HEADS, MAX_DEGREE))

    out = fwd(prep, x, pos_edge_index, neg_edge_index, rw_feature)
    out = jax.block_until_ready(out)
    assert out.shape == (N, D_OUT) and out.dtype == jnp.float32
    print("KERNEL_OK")
</pallas_src>

<mosaic_0001>
module attributes {stable_mosaic.version = 11 : i64} {
  func.func private @main(%arg0: i32) attributes {dimension_semantics = [#tpu.dimension_semantics<core_parallel>], iteration_bounds = array<i64: 2>, tpu.core_type = #tpu.core_type<sc_scalar_subcore>, window_params = []} {
    return
  }
}

module attributes {stable_mosaic.version = 11 : i64} {
  func.func private @main(%arg0: i32) attributes {dimension_semantics = [#tpu.dimension_semantics<core_parallel>], iteration_bounds = array<i64: 2>, tpu.core_type = #tpu.core_type<sc_scalar_subcore>, window_params = []} {
    return
  }
}

module attributes {stable_mosaic.version = 11 : i64} {
  func.func @_attn_bias_kernel(%arg0: i32, %arg1: i32, %arg2: memref<4x128x128xf32, #tpu.memory_space<vmem>>, %arg3: memref<128x128xi8, #tpu.memory_space<vmem>>, %arg4: memref<1x4xf32, #tpu.memory_space<smem>>, %arg5: memref<1x1xf32, #tpu.memory_space<smem>>, %arg6: memref<128x128xbf16, #tpu.memory_space<vmem>>) attributes {dimension_semantics = [#tpu.dimension_semantics<parallel>, #tpu.dimension_semantics<parallel>], iteration_bounds = array<i64: 1, 1>, scalar_prefetch = 0 : i64, scratch_operands = 0 : i64, tpu.core_type = #tpu.core_type<tc>, window_params = [{transform_indices = @transform_0, window_bounds = array<i64: 4, 128, 128>}, {transform_indices = @transform_1, window_bounds = array<i64: 128, 128>}, {transform_indices = @transform_2, window_bounds = array<i64: 1, 4>}, {transform_indices = @transform_3, window_bounds = array<i64: 1, 1>}, {transform_indices = @transform_4, window_bounds = array<i64: 128, 128>}]} {
    %c0 = arith.constant 0 : index
    %c0_0 = arith.constant 0 : index
    %c0_1 = arith.constant 0 : index
    %0 = vector.load %arg2[%c0, %c0_0, %c0_1] : memref<4x128x128xf32, #tpu.memory_space<vmem>>, vector<1x128x128xf32>
    %1 = vector.shape_cast %0 : vector<1x128x128xf32> to vector<128x128xf32>
    %c0_2 = arith.constant 0 : index
    %c0_3 = arith.constant 0 : index
    %2 = memref.load %arg4[%c0_2, %c0_3] : memref<1x4xf32, #tpu.memory_space<smem>>
    %cst = arith.constant 1.000000e-10 : f32
    %3 = vector.broadcast %cst : f32 to vector<128x128xf32>
    %4 = arith.addf %1, %3 : vector<128x128xf32>
    %cst_4 = arith.constant 1.000000e+00 : f32
    %5 = vector.broadcast %cst_4 : f32 to vector<128x128xf32>
    %6 = arith.divf %5, %4 : vector<128x128xf32>
    %7 = vector.broadcast %2 : f32 to vector<128x128xf32>
    %8 = arith.mulf %7, %6 : vector<128x128xf32>
    %c1 = arith.constant 1 : index
    %c0_5 = arith.constant 0 : index
    %c0_6 = arith.constant 0 : index
    %9 = vector.load %arg2[%c1, %c0_5, %c0_6] : memref<4x128x128xf32, #tpu.memory_space<vmem>>, vector<1x128x128xf32>
    %10 = vector.shape_cast %9 : vector<1x128x128xf32> to vector<128x128xf32>
    %11 = arith.addf %1, %10 : vector<128x128xf32>
    %c0_7 = arith.constant 0 : index
    %c1_8 = arith.constant 1 : index
    %12 = memref.load %arg4[%c0_7, %c1_8] : memref<1x4xf32, #tpu.memory_space<smem>>
    %cst_9 = arith.constant 1.000000e-10 : f32
    %13 = vector.broadcast %cst_9 : f32 to vector<128x128xf32>
    %14 = arith.addf %10, %13 : vector<128x128xf32>
    %cst_10 = arith.constant 1.000000e+00 : f32
    %15 = vector.broadcast %cst_10 : f32 to vector<128x128xf32>
    %16 = arith.divf %15, %14 : vector<128x128xf32>
    %17 = vector.broadcast %12 : f32 to vector<128x128xf32>
    %18 = arith.mulf %17, %16 : vector<128x128xf32>
    %19 = arith.addf %8, %18 : vector<128x128xf32>
    %c2 = arith.constant 2 : index
    %c0_11 = arith.constant 0 : index
    %c0_12 = arith.constant 0 : index
    %20 = vector.load %arg2[%c2, %c0_11, %c0_12] : memref<4x128x128xf32, #tpu.memory_space<vmem>>, vector<1x128x128xf32>
    %21 = vector.shape_cast %20 : vector<1x128x128xf32> to vector<128x128xf32>
    %22 = arith.addf %11, %21 : vector<128x128xf32>
    %c0_13 = arith.constant 0 : index
    %c2_14 = arith.constant 2 : index
    %23 = memref.load %arg4[%c0_13, %c2_14] : memref<1x4xf32, #tpu.memory_space<smem>>
    %cst_15 = arith.constant 1.000000e-10 : f32
    %24 = vector.broadcast %cst_15 : f32 to vector<128x128xf32>
    %25 = arith.addf %21, %24 : vector<128x128xf32>
    %cst_16 = arith.constant 1.000000e+00 : f32
    %26 = vector.broadcast %cst_16 : f32 to vector<128x128xf32>
    %27 = arith.divf %26, %25 : vector<128x128xf32>
    %28 = vector.broadcast %23 : f32 to vector<128x128xf32>
    %29 = arith.mulf %28, %27 : vector<128x128xf32>
    %30 = arith.addf %19, %29 : vector<128x128xf32>
    %c3 = arith.constant 3 : index
    %c0_17 = arith.constant 0 : index
    %c0_18 = arith.constant 0 : index
    %31 = vector.load %arg2[%c3, %c0_17, %c0_18] : memref<4x128x128xf32, #tpu.memory_space<vmem>>, vector<1x128x128xf32>
    %32 = vector.shape_cast %31 : vector<1x128x128xf32> to vector<128x128xf32>
    %33 = arith.addf %22, %32 : vector<128x128xf32>
    %c0_19 = arith.constant 0 : index
    %c3_20 = arith.constant 3 : index
    %34 = memref.load %arg4[%c0_19, %c3_20] : memref<1x4xf32, #tpu.memory_space<smem>>
    %cst_21 = arith.constant 1.000000e-10 : f32
    %35 = vector.broadcast %cst_21 : f32 to vector<128x128xf32>
    %36 = arith.addf %32, %35 : vector<128x128xf32>
    %cst_22 = arith.constant 1.000000e+00 : f32
    %37 = vector.broadcast %cst_22 : f32 to vector<128x128xf32>
    %38 = arith.divf %37, %36 : vector<128x128xf32>
    %39 = vector.broadcast %34 : f32 to vector<128x128xf32>
    %40 = arith.mulf %39, %38 : vector<128x128xf32>
    %41 = arith.addf %30, %40 : vector<128x128xf32>
    %42 = tpu.reciprocal %33 {approx = true} : vector<128x128xf32> -> vector<128x128xf32>
    %43 = arith.mulf %41, %42 : vector<128x128xf32>
    %c0_23 = arith.constant 0 : index
    %c0_24 = arith.constant 0 : index
    %44 = memref.load %arg5[%c0_23, %c0_24] : memref<1x1xf32, #tpu.memory_space<smem>>
    %45 = vector.broadcast %44 : f32 to vector<128x128xf32>
    %46 = arith.addf %43, %45 : vector<128x128xf32>
    %c0_25 = arith.constant 0 : index
    %c0_26 = arith.constant 0 : index
    %47 = vector.load %arg3[%c0_25, %c0_26] : memref<128x128xi8, #tpu.memory_space<vmem>>, vector<128x128xi8>
    %48 = arith.sitofp %47 : vector<128x128xi8> to vector<128x128xf32>
    %49 = arith.addf %48, %46 : vector<128x128xf32>
    %50 = tpu.iota {dimensions = array<i32: 1>} : vector<128x128xi32>
    %c128_i32 = arith.constant 128 : i32
    %51 = arith.muli %arg1, %c128_i32 : i32
    %52 = vector.broadcast %51 : i32 to vector<128x128xi32>
    %53 = arith.addi %50, %52 : vector<128x128xi32>
    %c16_i32 = arith.constant 16 : i32
    %54 = vector.broadcast %c16_i32 : i32 to vector<128x128xi32>
    %55 = arith.cmpi slt, %53, %54 : vector<128x128xi32>
    %cst_27 = arith.constant -1.000000e+30 : f32
    %56 = vector.broadcast %cst_27 : f32 to vector<128x128xf32>
    %57 = arith.select %55, %49, %56 : vector<128x128xi1>, vector<128x128xf32>
    %58 = arith.truncf %57 : vector<128x128xf32> to vector<128x128xbf16>
    %c0_28 = arith.constant 0 : index
    %c0_29 = arith.constant 0 : index
    %59 = vector.load %arg6[%c0_28, %c0_29] : memref<128x128xbf16, #tpu.memory_space<vmem>>, vector<128x128xbf16>
    tpu.vector_store %arg6[%c0_28, %c0_29], %58 {strides = array<i32>} : memref<128x128xbf16, #tpu.memory_space<vmem>>, vector<128x128xbf16>,
    return
  }
  func.func @transform_0(%arg0: i32, %arg1: i32) -> (i32, i32, i32) {
    %c0_i32 = arith.constant 0 : i32
    %c0_i32_0 = arith.constant 0 : i32
    return %c0_i32, %arg0, %arg1 : i32, i32, i32
  }
  func.func @transform_1(%arg0: i32, %arg1: i32) -> (i32, i32) {
    %c0_i32 = arith.constant 0 : i32
    return %arg0, %arg1 : i32, i32
  }
  func.func @transform_2(%arg0: i32, %arg1: i32) -> (i32, i32) {
    %c0_i32 = arith.constant 0 : i32
    %c0_i32_0 = arith.constant 0 : i32
    %c0_i32_1 = arith.constant 0 : i32
    return %c0_i32, %c0_i32_0 : i32, i32
  }
  func.func @transform_3(%arg0: i32, %arg1: i32) -> (i32, i32) {
    %c0_i32 = arith.constant 0 : i32
    %c0_i32_0 = arith.constant 0 : i32
    %c0_i32_1 = arith.constant 0 : i32
    return %c0_i32, %c0_i32_0 : i32, i32
  }
  func.func @transform_4(%arg0: i32, %arg1: i32) -> (i32, i32) {
    %c0_i32 = arith.constant 0 : i32
    return %arg0, %arg1 : i32, i32
  }
}

module attributes {stable_mosaic.version = 11 : i64} {
  func.func @_linear_add_kernel(%arg0: i32, %arg1: memref<128x8xf32, #tpu.memory_space<vmem>>, %arg2: memref<8x256xbf16, #tpu.memory_space<vmem>>, %arg3: memref<1x256xf32, #tpu.memory_space<vmem>>, %arg4: memref<128x256xf32, #tpu.memory_space<vmem>>, %arg5: memref<128x256xf32, #tpu.memory_space<vmem>>) attributes {dimension_semantics = [#tpu.dimension_semantics<parallel>], iteration_bounds = array<i64: 1>, scalar_prefetch = 0 : i64, scratch_operands = 0 : i64, tpu.core_type = #tpu.core_type<tc>, window_params = [{transform_indices = @transform_0, window_bounds = array<i64: 128, 8>}, {pipeline_mode = #tpu.pipeline_mode<synchronous>, transform_indices = @transform_1, window_bounds = array<i64: 8, 256>}, {pipeline_mode = #tpu.pipeline_mode<synchronous>, transform_indices = @transform_2, window_bounds = array<i64: 1, 256>}, {transform_indices = @transform_3, window_bounds = array<i64: 128, 256>}, {transform_indices = @transform_4, window_bounds = array<i64: 128, 256>}]} {
    %c0 = arith.constant 0 : index
    %c0_0 = arith.constant 0 : index
    %0 = vector.load %arg1[%c0, %c0_0] : memref<128x8xf32, #tpu.memory_space<vmem>>, vector<128x8xf32>
    %1 = arith.truncf %0 : vector<128x8xf32> to vector<128x8xbf16>
    %c0_1 = arith.constant 0 : index
    %c0_2 = arith.constant 0 : index
    %2 = vector.load %arg2[%c0_1, %c0_2] : memref<8x256xbf16, #tpu.memory_space<vmem>>, vector<8x256xbf16>
    %cst = arith.constant dense<0.000000e+00> : vector<128x256xf32>
    %3 = tpu.matmul %1, %2, %cst {dimension_numbers = #tpu.dot_dimension_numbers<[1], [0], [0], [1], [0, 0, 1, 1], [], []>} : vector<128x8xbf16>, vector<8x256xbf16>, vector<128x256xf32> -> vector<128x256xf32>
    %c0_3 = arith.constant 0 : index
    %c0_4 = arith.constant 0 : index
    %4 = vector.load %arg3[%c0_3, %c0_4] : memref<1x256xf32, #tpu.memory_space<vmem>>, vector<1x256xf32>
    %5 = vector.broadcast %4 : vector<1x256xf32> to vector<128x256xf32>
    %6 = arith.addf %3, %5 : vector<128x256xf32>
    %c0_5 = arith.constant 0 : index
    %c0_6 = arith.constant 0 : index
    %7 = vector.load %arg4[%c0_5, %c0_6] : memref<128x256xf32, #tpu.memory_space<vmem>>, vector<128x256xf32>
    %8 = arith.addf %6, %7 : vector<128x256xf32>
    %c0_7 = arith.constant 0 : index
    %c0_8 = arith.constant 0 : index
    %9 = vector.load %arg5[%c0_7, %c0_8] : memref<128x256xf32, #tpu.memory_space<vmem>>, vector<128x256xf32>
    tpu.vector_store %arg5[%c0_7, %c0_8], %8 {strides = array<i32>} : memref<128x256xf32, #tpu.memory_space<vmem>>, vector<128x256xf32>,
    return
  }
  func.func @transform_0(%arg0: i32) -> (i32, i32) {
    %c0_i32 = arith.constant 0 : i32
    %c0_i32_0 = arith.constant 0 : i32
    return %arg0, %c0_i32 : i32, i32
  }
  func.func @transform_1(%arg0: i32) -> (i32, i32) {
    %c0_i32 = arith.constant 0 : i32
    %c0_i32_0 = arith.constant 0 : i32
    %c0_i32_1 = arith.constant 0 : i32
    return %c0_i32, %c0_i32_0 : i32, i32
  }
  func.func @transform_2(%arg0: i32) -> (i32, i32) {
    %c0_i32 = arith.constant 0 : i32
    %c0_i32_0 = arith.constant 0 : i32
    %c0_i32_1 = arith.constant 0 : i32
    return %c0_i32, %c0_i32_0 : i32, i32
  }
  func.func @transform_3(%arg0: i32) -> (i32, i32) {
    %c0_i32 = arith.constant 0 : i32
    %c0_i32_0 = arith.constant 0 : i32
    return %arg0, %c0_i32 : i32, i32
  }
  func.func @transform_4(%arg0: i32) -> (i32, i32) {
    %c0_i32 = arith.constant 0 : i32
    %c0_i32_0 = arith.constant 0 : i32
    return %arg0, %c0_i32 : i32, i32
  }
}

module attributes {stable_mosaic.version = 11 : i64} {
  func.func @_flash_attn_kernel(%arg0: i32, %arg1: i32, %arg2: memref<128x256xbf16, #tpu.memory_space<vmem>>, %arg3: memref<128x256xbf16, #tpu.memory_space<vmem>>, %arg4: memref<128x256xbf16, #tpu.memory_space<vmem>>, %arg5: memref<128x128xbf16, #tpu.memory_space<vmem>>, %arg6: memref<128x256xbf16, #tpu.memory_space<vmem>>, %arg7: memref<2x128x1xf32, #tpu.memory_space<vmem>>, %arg8: memref<2x128x1xf32, #tpu.memory_space<vmem>>, %arg9: memref<2x128x128xf32, #tpu.memory_space<vmem>>) attributes {dimension_semantics = [#tpu.dimension_semantics<parallel>, #tpu.dimension_semantics<arbitrary>], iteration_bounds = array<i64: 1, 1>, scalar_prefetch = 0 : i64, scratch_operands = 3 : i64, tpu.core_type = #tpu.core_type<tc>, window_params = [{transform_indices = @transform_0, window_bounds = array<i64: 128, 256>}, {transform_indices = @transform_1, window_bounds = array<i64: 128, 256>}, {transform_indices = @transform_2, window_bounds = array<i64: 128, 256>}, {transform_indices = @transform_3, window_bounds = array<i64: 128, 128>}, {transform_indices = @transform_4, window_bounds = array<i64: 128, 256>}]} {
    %c0_i32 = arith.constant 0 : i32
    %0 = arith.cmpi eq, %arg1, %c0_i32 : i32
    %1 = arith.extui %0 : i1 to i32
    %c0_i32_0 = arith.constant 0 : i32
    %2 = arith.cmpi ne, %1, %c0_i32_0 : i32
    scf.if %2 {
      %cst_54 = arith.constant 0xFF800000 : f32
      %89 = vector.broadcast %cst_54 : f32 to vector<2x128x1xf32>
      %c0_55 = arith.constant 0 : index
      %c0_56 = arith.constant 0 : index
      %c0_57 = arith.constant 0 : index
      %90 = vector.load %arg7[%c0_55, %c0_56, %c0_57] : memref<2x128x1xf32, #tpu.memory_space<vmem>>, vector<2x128x1xf32>
      tpu.vector_store %arg7[%c0_55, %c0_56, %c0_57], %89 {strides = array<i32>} : memref<2x128x1xf32, #tpu.memory_space<vmem>>, vector<2x128x1xf32>,
      %cst_58 = arith.constant 0.000000e+00 : f32
      %91 = vector.broadcast %cst_58 : f32 to vector<2x128x1xf32>
      %c0_59 = arith.constant 0 : index
      %c0_60 = arith.constant 0 : index
      %c0_61 = arith.constant 0 : index
      %92 = vector.load %arg8[%c0_59, %c0_60, %c0_61] : memref<2x128x1xf32, #tpu.memory_space<vmem>>, vector<2x128x1xf32>
      tpu.vector_store %arg8[%c0_59, %c0_60, %c0_61], %91 {strides = array<i32>} : memref<2x128x1xf32, #tpu.memory_space<vmem>>, vector<2x128x1xf32>,
      %cst_62 = arith.constant 0.000000e+00 : f32
      %93 = vector.broadcast %cst_62 : f32 to vector<2x128x128xf32>
      %c0_63 = arith.constant 0 : index
      %c0_64 = arith.constant 0 : index
      %c0_65 = arith.constant 0 : index
      %94 = vector.load %arg9[%c0_63, %c0_64, %c0_65] : memref<2x128x128xf32, #tpu.memory_space<vmem>>, vector<2x128x128xf32>
      tpu.vector_store %arg9[%c0_63, %c0_64, %c0_65], %93 {strides = array<i32>} : memref<2x128x128xf32, #tpu.memory_space<vmem>>, vector<2x128x128xf32>,
    } else {
    }
    %c0 = arith.constant 0 : index
    %c0_1 = arith.constant 0 : index
    %3 = vector.load %arg5[%c0, %c0_1] : memref<128x128xbf16, #tpu.memory_space<vmem>>, vector<128x128xbf16>
    %4 = arith.extf %3 : vector<128x128xbf16> to vector<128x128xf32>
    %c0_2 = arith.constant 0 : index
    %c0_3 = arith.constant 0 : index
    %5 = vector.load %arg2[%c0_2, %c0_3] : memref<128x256xbf16, #tpu.memory_space<vmem>>, vector<128x256xbf16>
    %c0_4 = arith.constant 0 : index
    %c0_5 = arith.constant 0 : index
    %6 = vector.load %arg3[%c0_4, %c0_5] : memref<128x256xbf16, #tpu.memory_space<vmem>>, vector<128x256xbf16>
    %c0_6 = arith.constant 0 : index
    %c0_7 = arith.constant 0 : index
    %7 = vector.load %arg4[%c0_6, %c0_7] : memref<128x256xbf16, #tpu.memory_space<vmem>>, vector<128x256xbf16>
    %8 = vector.extract_strided_slice %5 {offsets = [0, 0], sizes = [128, 128], strides = [1, 1]} : vector<128x256xbf16> to vector<128x128xbf16>
    %9 = vector.extract_strided_slice %6 {offsets = [0, 0], sizes = [128, 128], strides = [1, 1]} : vector<128x256xbf16> to vector<128x128xbf16>
    %cst = arith.constant dense<0.000000e+00> : vector<128x128xf32>
    %10 = tpu.matmul %8, %9, %cst {dimension_numbers = #tpu.dot_dimension_numbers<[1], [1], [0], [0], [0, 0, 1, 0], [], []>} : vector<128x128xbf16>, vector<128x128xbf16>, vector<128x128xf32> -> vector<128x128xf32>
    %cst_8 = arith.constant 0.0883883461 : f32
    %11 = vector.broadcast %cst_8 : f32 to vector<128x128xf32>
    %12 = arith.mulf %10, %11 : vector<128x128xf32>
    %13 = arith.addf %12, %4 : vector<128x128xf32>
    %c0_9 = arith.constant 0 : index
    %c0_10 = arith.constant 0 : index
    %c0_11 = arith.constant 0 : index
    %14 = vector.load %arg7[%c0_9, %c0_10, %c0_11] : memref<2x128x1xf32, #tpu.memory_space<vmem>>, vector<1x128x1xf32>
    %15 = vector.shape_cast %14 : vector<1x128x1xf32> to vector<128x1xf32>
    %cst_12 = arith.constant dense<0xFF800000> : vector<128xf32>
    %16 = vector.multi_reduction <maximumf>, %13, %cst_12 [1] : vector<128x128xf32> to vector<128xf32>
    %17 = vector.shape_cast %16 : vector<128xf32> to vector<128x1xf32>
    %18 = arith.maximumf %15, %17 : vector<128x1xf32>
    %19 = arith.subf %15, %18 : vector<128x1xf32>
    %20 = math.exp %19 : vector<128x1xf32>
    %21 = vector.broadcast %18 : vector<128x1xf32> to vector<128x128xf32>
    %22 = arith.subf %13, %21 : vector<128x128xf32>
    %23 = math.exp %22 : vector<128x128xf32>
    %c0_13 = arith.constant 0 : index
    %c0_14 = arith.constant 0 : index
    %c0_15 = arith.constant 0 : index
    %24 = vector.load %arg8[%c0_13, %c0_14, %c0_15] : memref<2x128x1xf32, #tpu.memory_space<vmem>>, vector<1x128x1xf32>
    %25 = vector.shape_cast %24 : vector<1x128x1xf32> to vector<128x1xf32>
    %26 = arith.mulf %20, %25 : vector<128x1xf32>
    %cst_16 = arith.constant dense<0.000000e+00> : vector<128xf32>
    %27 = vector.multi_reduction <add>, %23, %cst_16 [1] : vector<128x128xf32> to vector<128xf32>
    %28 = vector.shape_cast %27 : vector<128xf32> to vector<128x1xf32>
    %29 = arith.addf %26, %28 : vector<128x1xf32>
    %c0_17 = arith.constant 0 : index
    %c0_18 = arith.constant 0 : index
    %c0_19 = arith.constant 0 : index
    %30 = vector.load %arg8[%c0_17, %c0_18, %c0_19] : memref<2x128x1xf32, #tpu.memory_space<vmem>>, vector<1x128x1xf32>
    %31 = vector.shape_cast %30 : vector<1x128x1xf32> to vector<128x1xf32>
    %32 = vector.shape_cast %29 : vector<128x1xf32> to vector<1x128x1xf32>
    tpu.vector_store %arg8[%c0_17, %c0_18, %c0_19], %32 {strides = array<i32>} : memref<2x128x1xf32, #tpu.memory_space<vmem>>, vector<1x128x1xf32>,
    %c0_20 = arith.constant 0 : index
    %c0_21 = arith.constant 0 : index
    %c0_22 = arith.constant 0 : index
    %33 = vector.load %arg9[%c0_20, %c0_21, %c0_22] : memref<2x128x128xf32, #tpu.memory_space<vmem>>, vector<1x128x128xf32>
    %34 = vector.shape_cast %33 : vector<1x128x128xf32> to vector<128x128xf32>
    %35 = vector.broadcast %20 : vector<128x1xf32> to vector<128x128xf32>
    %36 = arith.mulf %35, %34 : vector<128x128xf32>
    %37 = arith.truncf %23 : vector<128x128xf32> to vector<128x128xbf16>
    %38 = vector.extract_strided_slice %7 {offsets = [0, 0], sizes = [128, 128], strides = [1, 1]} : vector<128x256xbf16> to vector<128x128xbf16>
    %cst_23 = arith.constant dense<0.000000e+00> : vector<128x128xf32>
    %39 = tpu.matmul %37, %38, %cst_23 {dimension_numbers = #tpu.dot_dimension_numbers<[1], [0], [0], [1], [0, 0, 1, 1], [], []>} : vector<128x128xbf16>, vector<128x128xbf16>, vector<128x128xf32> -> vector<128x128xf32>
    %40 = arith.addf %36, %39 : vector<128x128xf32>
    %c0_24 = arith.constant 0 : index
    %c0_25 = arith.constant 0 : index
    %c0_26 = arith.constant 0 : index
    %41 = vector.load %arg9[%c0_24, %c0_25, %c0_26] : memref<2x128x128xf32, #tpu.memory_space<vmem>>, vector<1x128x128xf32>
    %42 = vector.shape_cast %41 : vector<1x128x128xf32> to vector<128x128xf32>
    %43 = vector.shape_cast %40 : vector<128x128xf32> to vector<1x128x128xf32>
    tpu.vector_store %arg9[%c0_24, %c0_25, %c0_26], %43 {strides = array<i32>} : memref<2x128x128xf32, #tpu.memory_space<vmem>>, vector<1x128x128xf32>,
    %c0_27 = arith.constant 0 : index
    %c0_28 = arith.constant 0 : index
    %c0_29 = arith.constant 0 : index
    %44 = vector.load %arg7[%c0_27, %c0_28, %c0_29] : memref<2x128x1xf32, #tpu.memory_space<vmem>>, vector<1x128x1xf32>
    %45 = vector.shape_cast %44 : vector<1x128x1xf32> to vector<128x1xf32>
    %46 = vector.shape_cast %18 : vector<128x1xf32> to vector<1x128x1xf32>
    tpu.vector_store %arg7[%c0_27, %c0_28, %c0_29], %46 {strides = array<i32>} : memref<2x128x1xf32, #tpu.memory_space<vmem>>, vector<1x128x1xf32>,
    %47 = vector.extract_strided_slice %5 {offsets = [0, 128], sizes = [128, 128], strides = [1, 1]} : vector<128x256xbf16> to vector<128x128xbf16>
    %48 = vector.extract_strided_slice %6 {offsets = [0, 128], sizes = [128, 128], strides = [1, 1]} : vector<128x256xbf16> to vector<128x128xbf16>
    %cst_30 = arith.constant dense<0.000000e+00> : vector<128x128xf32>
    %49 = tpu.matmul %47, %48, %cst_30 {dimension_numbers = #tpu.dot_dimension_numbers<[1], [1], [0], [0], [0, 0, 1, 0], [], []>} : vector<128x128xbf16>, vector<128x128xbf16>, vector<128x128xf32> -> vector<128x128xf32>
    %cst_31 = arith.constant 0.0883883461 : f32
    %50 = vector.broadcast %cst_31 : f32 to vector<128x128xf32>
    %51 = arith.mulf %49, %50 : vector<128x128xf32>
    %52 = arith.addf %51, %4 : vector<128x128xf32>
    %c1 = arith.constant 1 : index
    %c0_32 = arith.constant 0 : index
    %c0_33 = arith.constant 0 : index
    %53 = vector.load %arg7[%c1, %c0_32, %c0_33] : memref<2x128x1xf32, #tpu.memory_space<vmem>>, vector<1x128x1xf32>
    %54 = vector.shape_cast %53 : vector<1x128x1xf32> to vector<128x1xf32>
    %cst_34 = arith.constant dense<0xFF800000> : vector<128xf32>
    %55 = vector.multi_reduction <maximumf>, %52, %cst_34 [1] : vector<128x128xf32> to vector<128xf32>
    %56 = vector.shape_cast %55 : vector<128xf32> to vector<128x1xf32>
    %57 = arith.maximumf %54, %56 : vector<128x1xf32>
    %58 = arith.subf %54, %57 : vector<128x1xf32>
    %59 = math.exp %58 : vector<128x1xf32>
    %60 = vector.broadcast %57 : vector<128x1xf32> to vector<128x128xf32>
    %61 = arith.subf %52, %60 : vector<128x128xf32>
    %62 = math.exp %61 : vector<128x128xf32>
    %c1_35 = arith.constant 1 : index
    %c0_36 = arith.constant 0 : index
    %c0_37 = arith.constant 0 : index
    %63 = vector.load %arg8[%c1_35, %c0_36, %c0_37] : memref<2x128x1xf32, #tpu.memory_space<vmem>>, vector<1x128x1xf32>
    %64 = vector.shape_cast %63 : vector<1x128x1xf32> to vector<128x1xf32>
    %65 = arith.mulf %59, %64 : vector<128x1xf32>
    %cst_38 = arith.constant dense<0.000000e+00> : vector<128xf32>
    %66 = vector.multi_reduction <add>, %62, %cst_38 [1] : vector<128x128xf32> to vector<128xf32>
    %67 = vector.shape_cast %66 : vector<128xf32> to vector<128x1xf32>
    %68 = arith.addf %65, %67 : vector<128x1xf32>
    %c1_39 = arith.constant 1 : index
    %c0_40 = arith.constant 0 : index
    %c0_41 = arith.constant 0 : index
    %69 = vector.load %arg8[%c1_39, %c0_40, %c0_41] : memref<2x128x1xf32, #tpu.memory_space<vmem>>, vector<1x128x1xf32>
    %70 = vector.shape_cast %69 : vector<1x128x1xf32> to vector<128x1xf32>
    %71 = vector.shape_cast %68 : vector<128x1xf32> to vector<1x128x1xf32>
    tpu.vector_store %arg8[%c1_39, %c0_40, %c0_41], %71 {strides = array<i32>} : memref<2x128x1xf32, #tpu.memory_space<vmem>>, vector<1x128x1xf32>,
    %c1_42 = arith.constant 1 : index
    %c0_43 = arith.constant 0 : index
    %c0_44 = arith.constant 0 : index
    %72 = vector.load %arg9[%c1_42, %c0_43, %c0_44] : memref<2x128x128xf32, #tpu.memory_space<vmem>>, vector<1x128x128xf32>
    %73 = vector.shape_cast %72 : vector<1x128x128xf32> to vector<128x128xf32>
    %74 = vector.broadcast %59 : vector<128x1xf32> to vector<128x128xf32>
    %75 = arith.mulf %74, %73 : vector<128x128xf32>
    %76 = arith.truncf %62 : vector<128x128xf32> to vector<128x128xbf16>
    %77 = vector.extract_strided_slice %7 {offsets = [0, 128], sizes = [128, 128], strides = [1, 1]} : vector<128x256xbf16> to vector<128x128xbf16>
    %cst_45 = arith.constant dense<0.000000e+00> : vector<128x128xf32>
    %78 = tpu.matmul %76, %77, %cst_45 {dimension_numbers = #tpu.dot_dimension_numbers<[1], [0], [0], [1], [0, 0, 1, 1], [], []>} : vector<128x128xbf16>, vector<128x128xbf16>, vector<128x128xf32> -> vector<128x128xf32>
    %79 = arith.addf %75, %78 : vector<128x128xf32>
    %c1_46 = arith.constant 1 : index
    %c0_47 = arith.constant 0 : index
    %c0_48 = arith.constant 0 : index
    %80 = vector.load %arg9[%c1_46, %c0_47, %c0_48] : memref<2x128x128xf32, #tpu.memory_space<vmem>>, vector<1x128x128xf32>
    %81 = vector.shape_cast %80 : vector<1x128x128xf32> to vector<128x128xf32>
    %82 = vector.shape_cast %79 : vector<128x128xf32> to vector<1x128x128xf32>
    tpu.vector_store %arg9[%c1_46, %c0_47, %c0_48], %82 {strides = array<i32>} : memref<2x128x128xf32, #tpu.memory_space<vmem>>, vector<1x128x128xf32>,
    %c1_49 = arith.constant 1 : index
    %c0_50 = arith.constant 0 : index
    %c0_51 = arith.constant 0 : index
    %83 = vector.load %arg7[%c1_49, %c0_50, %c0_51] : memref<2x128x1xf32, #tpu.memory_space<vmem>>, vector<1x128x1xf32>
    %84 = vector.shape_cast %83 : vector<1x128x1xf32> to vector<128x1xf32>
    %85 = vector.shape_cast %57 : vector<128x1xf32> to vector<1x128x1xf32>
    tpu.vector_store %arg7[%c1_49, %c0_50, %c0_51], %85 {strides = array<i32>} : memref<2x128x1xf32, #tpu.memory_space<vmem>>, vector<1x128x1xf32>,
    %c0_i32_52 = arith.constant 0 : i32
    %86 = arith.cmpi eq, %arg1, %c0_i32_52 : i32
    %87 = arith.extui %86 : i1 to i32
    %c0_i32_53 = arith.constant 0 : i32
    %88 = arith.cmpi ne, %87, %c0_i32_53 : i32
    scf.if %88 {
      %c0_54 = arith.constant 0 : index
      %c0_55 = arith.constant 0 : index
      %c0_56 = arith.constant 0 : index
      %89 = vector.load %arg9[%c0_54, %c0_55, %c0_56] : memref<2x128x128xf32, #tpu.memory_space<vmem>>, vector<1x128x128xf32>
      %90 = vector.shape_cast %89 : vector<1x128x128xf32> to vector<128x128xf32>
      %c0_57 = arith.constant 0 : index
      %c0_58 = arith.constant 0 : index
      %c0_59 = arith.constant 0 : index
      %91 = vector.load %arg8[%c0_57, %c0_58, %c0_59] : memref<2x128x1xf32, #tpu.memory_space<vmem>>, vector<1x128x1xf32>
      %92 = vector.shape_cast %91 : vector<1x128x1xf32> to vector<128x1xf32>
      %93 = tpu.reciprocal %92 {approx = true} : vector<128x1xf32> -> vector<128x1xf32>
      %94 = vector.broadcast %93 : vector<128x1xf32> to vector<128x128xf32>
      %95 = arith.mulf %90, %94 : vector<128x128xf32>
      %96 = arith.truncf %95 : vector<128x128xf32> to vector<128x128xbf16>
      %c0_60 = arith.constant 0 : index
      %c0_61 = arith.constant 0 : index
      %97 = vector.load %arg6[%c0_60, %c0_61] : memref<128x256xbf16, #tpu.memory_space<vmem>>, vector<128x128xbf16>
      tpu.vector_store %arg6[%c0_60, %c0_61], %96 {strides = array<i32>} : memref<128x256xbf16, #tpu.memory_space<vmem>>, vector<128x128xbf16>,
      %c1_62 = arith.constant 1 : index
      %c0_63 = arith.constant 0 : index
      %c0_64 = arith.constant 0 : index
      %98 = vector.load %arg9[%c1_62, %c0_63, %c0_64] : memref<2x128x128xf32, #tpu.memory_space<vmem>>, vector<1x128x128xf32>
      %99 = vector.shape_cast %98 : vector<1x128x128xf32> to vector<128x128xf32>
      %c1_65 = arith.constant 1 : index
      %c0_66 = arith.constant 0 : index
      %c0_67 = arith.constant 0 : index
      %100 = vector.load %arg8[%c1_65, %c0_66, %c0_67] : memref<2x128x1xf32, #tpu.memory_space<vmem>>, vector<1x128x1xf32>
      %101 = vector.shape_cast %100 : vector<1x128x1xf32> to vector<128x1xf32>
      %102 = tpu.reciprocal %101 {approx = true} : vector<128x1xf32> -> vector<128x1xf32>
      %103 = vector.broadcast %102 : vector<128x1xf32> to vector<128x128xf32>
      %104 = arith.mulf %99, %103 : vector<128x128xf32>
      %105 = arith.truncf %104 : vector<128x128xf32> to vector<128x128xbf16>
      %c0_68 = arith.constant 0 : index
      %c128 = arith.constant 128 : index
      %106 = vector.load %arg6[%c0_68, %c128] : memref<128x256xbf16, #tpu.memory_space<vmem>>, vector<128x128xbf16>
      tpu.vector_store %arg6[%c0_68, %c128], %105 {strides = array<i32>} : memref<128x256xbf16, #tpu.memory_space<vmem>>, vector<128x128xbf16>,
    } else {
    }
    return
  }
  func.func @transform_0(%arg0: i32, %arg1: i32) -> (i32, i32) {
    %c0_i32 = arith.constant 0 : i32
    %c0_i32_0 = arith.constant 0 : i32
    return %arg0, %c0_i32 : i32, i32
  }
  func.func @transform_1(%arg0: i32, %arg1: i32) -> (i32, i32) {
    %c0_i32 = arith.constant 0 : i32
    %c0_i32_0 = arith.constant 0 : i32
    return %arg1, %c0_i32 : i32, i32
  }
  func.func @transform_2(%arg0: i32, %arg1: i32) -> (i32, i32) {
    %c0_i32 = arith.constant 0 : i32
    %c0_i32_0 = arith.constant 0 : i32
    return %arg1, %c0_i32 : i32, i32
  }
  func.func @transform_3(%arg0: i32, %arg1: i32) -> (i32, i32) {
    %c0_i32 = arith.constant 0 : i32
    return %arg0, %arg1 : i32, i32
  }
  func.func @transform_4(%arg0: i32, %arg1: i32) -> (i32, i32) {
    %c0_i32 = arith.constant 0 : i32
    %c0_i32_0 = arith.constant 0 : i32
    return %arg0, %c0_i32 : i32, i32
  }
}

module attributes {stable_mosaic.version = 11 : i64} {
  func.func @_ln_qkv_kernel(%arg0: i32, %arg1: memref<128x256xf32, #tpu.memory_space<vmem>>, %arg2: memref<1x256xf32, #tpu.memory_space<vmem>>, %arg3: memref<1x256xf32, #tpu.memory_space<vmem>>, %arg4: memref<256x256xbf16, #tpu.memory_space<vmem>>, %arg5: memref<1x256xf32, #tpu.memory_space<vmem>>, %arg6: memref<256x256xbf16, #tpu.memory_space<vmem>>, %arg7: memref<1x256xf32, #tpu.memory_space<vmem>>, %arg8: memref<256x256xbf16, #tpu.memory_space<vmem>>, %arg9: memref<1x256xf32, #tpu.memory_space<vmem>>, %arg10: memref<128x256xbf16, #tpu.memory_space<vmem>>, %arg11: memref<128x256xbf16, #tpu.memory_space<vmem>>, %arg12: memref<128x256xbf16, #tpu.memory_space<vmem>>) attributes {dimension_semantics = [#tpu.dimension_semantics<parallel>], iteration_bounds = array<i64: 1>, scalar_prefetch = 0 : i64, scratch_operands = 0 : i64, tpu.core_type = #tpu.core_type<tc>, window_params = [{transform_indices = @transform_0, window_bounds = array<i64: 128, 256>}, {pipeline_mode = #tpu.pipeline_mode<synchronous>, transform_indices = @transform_1, window_bounds = array<i64: 1, 256>}, {pipeline_mode = #tpu.pipeline_mode<synchronous>, transform_indices = @transform_2, window_bounds = array<i64: 1, 256>}, {pipeline_mode = #tpu.pipeline_mode<synchronous>, transform_indices = @transform_3, window_bounds = array<i64: 256, 256>}, {pipeline_mode = #tpu.pipeline_mode<synchronous>, transform_indices = @transform_4, window_bounds = array<i64: 1, 256>}, {pipeline_mode = #tpu.pipeline_mode<synchronous>, transform_indices = @transform_5, window_bounds = array<i64: 256, 256>}, {pipeline_mode = #tpu.pipeline_mode<synchronous>, transform_indices = @transform_6, window_bounds = array<i64: 1, 256>}, {pipeline_mode = #tpu.pipeline_mode<synchronous>, transform_indices = @transform_7, window_bounds = array<i64: 256, 256>}, {pipeline_mode = #tpu.pipeline_mode<synchronous>, transform_indices = @transform_8, window_bounds = array<i64: 1, 256>}, {transform_indices = @transform_9, window_bounds = array<i64: 128, 256>}, {transform_indices = @transform_10, window_bounds = array<i64: 128, 256>}, {transform_indices = @transform_11, window_bounds = array<i64: 128, 256>}]} {
    %c0 = arith.constant 0 : index
    %c0_0 = arith.constant 0 : index
    %0 = vector.load %arg1[%c0, %c0_0] : memref<128x256xf32, #tpu.memory_space<vmem>>, vector<128x256xf32>
    %cst = arith.constant dense<0.000000e+00> : vector<128xf32>
    %1 = vector.multi_reduction <add>, %0, %cst [1] : vector<128x256xf32> to vector<128xf32>
    %2 = vector.shape_cast %1 : vector<128xf32> to vector<128x1xf32>
    %cst_1 = arith.constant 2.560000e+02 : f32
    %3 = vector.broadcast %cst_1 : f32 to vector<128x1xf32>
    %4 = arith.divf %2, %3 : vector<128x1xf32>
    %5 = vector.broadcast %4 : vector<128x1xf32> to vector<128x256xf32>
    %6 = arith.subf %0, %5 : vector<128x256xf32>
    %7 = arith.mulf %6, %6 : vector<128x256xf32>
    %cst_2 = arith.constant dense<0.000000e+00> : vector<128xf32>
    %8 = vector.multi_reduction <add>, %7, %cst_2 [1] : vector<128x256xf32> to vector<128xf32>
    %9 = vector.shape_cast %8 : vector<128xf32> to vector<128x1xf32>
    %cst_3 = arith.constant 2.560000e+02 : f32
    %10 = vector.broadcast %cst_3 : f32 to vector<128x1xf32>
    %11 = arith.divf %9, %10 : vector<128x1xf32>
    %12 = vector.broadcast %4 : vector<128x1xf32> to vector<128x256xf32>
    %13 = arith.subf %0, %12 : vector<128x256xf32>
    %cst_4 = arith.constant 9.99999974E-6 : f32
    %14 = vector.broadcast %cst_4 : f32 to vector<128x1xf32>
    %15 = arith.addf %11, %14 : vector<128x1xf32>
    %16 = math.rsqrt %15 : vector<128x1xf32>
    %17 = vector.broadcast %16 : vector<128x1xf32> to vector<128x256xf32>
    %18 = arith.mulf %13, %17 : vector<128x256xf32>
    %c0_5 = arith.constant 0 : index
    %c0_6 = arith.constant 0 : index
    %19 = vector.load %arg2[%c0_5, %c0_6] : memref<1x256xf32, #tpu.memory_space<vmem>>, vector<1x256xf32>
    %20 = vector.broadcast %19 : vector<1x256xf32> to vector<128x256xf32>
    %21 = arith.mulf %18, %20 : vector<128x256xf32>
    %c0_7 = arith.constant 0 : index
    %c0_8 = arith.constant 0 : index
    %22 = vector.load %arg3[%c0_7, %c0_8] : memref<1x256xf32, #tpu.memory_space<vmem>>, vector<1x256xf32>
    %23 = vector.broadcast %22 : vector<1x256xf32> to vector<128x256xf32>
    %24 = arith.addf %21, %23 : vector<128x256xf32>
    %25 = arith.truncf %24 : vector<128x256xf32> to vector<128x256xbf16>
    %c0_9 = arith.constant 0 : index
    %c0_10 = arith.constant 0 : index
    %26 = vector.load %arg4[%c0_9, %c0_10] : memref<256x256xbf16, #tpu.memory_space<vmem>>, vector<256x256xbf16>
    %cst_11 = arith.constant dense<0.000000e+00> : vector<128x256xf32>
    %27 = tpu.matmul %25, %26, %cst_11 {dimension_numbers = #tpu.dot_dimension_numbers<[1], [0], [0], [1], [0, 0, 1, 1], [], []>} : vector<128x256xbf16>, vector<256x256xbf16>, vector<128x256xf32> -> vector<128x256xf32>
    %c0_12 = arith.constant 0 : index
    %c0_13 = arith.constant 0 : index
    %28 = vector.load %arg5[%c0_12, %c0_13] : memref<1x256xf32, #tpu.memory_space<vmem>>, vector<1x256xf32>
    %29 = vector.broadcast %28 : vector<1x256xf32> to vector<128x256xf32>
    %30 = arith.addf %27, %29 : vector<128x256xf32>
    %31 = arith.truncf %30 : vector<128x256xf32> to vector<128x256xbf16>
    %c0_14 = arith.constant 0 : index
    %c0_15 = arith.constant 0 : index
    %32 = vector.load %arg10[%c0_14, %c0_15] : memref<128x256xbf16, #tpu.memory_space<vmem>>, vector<128x256xbf16>
    tpu.vector_store %arg10[%c0_14, %c0_15], %31 {strides = array<i32>} : memref<128x256xbf16, #tpu.memory_space<vmem>>, vector<128x256xbf16>,
    %c0_16 = arith.constant 0 : index
    %c0_17 = arith.constant 0 : index
    %33 = vector.load %arg6[%c0_16, %c0_17] : memref<256x256xbf16, #tpu.memory_space<vmem>>, vector<256x256xbf16>
    %cst_18 = arith.constant dense<0.000000e+00> : vector<128x256xf32>
    %34 = tpu.matmul %25, %33, %cst_18 {dimension_numbers = #tpu.dot_dimension_numbers<[1], [0], [0], [1], [0, 0, 1, 1], [], []>} : vector<128x256xbf16>, vector<256x256xbf16>, vector<128x256xf32> -> vector<128x256xf32>
    %c0_19 = arith.constant 0 : index
    %c0_20 = arith.constant 0 : index
    %35 = vector.load %arg7[%c0_19, %c0_20] : memref<1x256xf32, #tpu.memory_space<vmem>>, vector<1x256xf32>
    %36 = vector.broadcast %35 : vector<1x256xf32> to vector<128x256xf32>
    %37 = arith.addf %34, %36 : vector<128x256xf32>
    %38 = arith.truncf %37 : vector<128x256xf32> to vector<128x256xbf16>
    %c0_21 = arith.constant 0 : index
    %c0_22 = arith.constant 0 : index
    %39 = vector.load %arg11[%c0_21, %c0_22] : memref<128x256xbf16, #tpu.memory_space<vmem>>, vector<128x256xbf16>
    tpu.vector_store %arg11[%c0_21, %c0_22], %38 {strides = array<i32>} : memref<128x256xbf16, #tpu.memory_space<vmem>>, vector<128x256xbf16>,
    %c0_23 = arith.constant 0 : index
    %c0_24 = arith.constant 0 : index
    %40 = vector.load %arg8[%c0_23, %c0_24] : memref<256x256xbf16, #tpu.memory_space<vmem>>, vector<256x256xbf16>
    %cst_25 = arith.constant dense<0.000000e+00> : vector<128x256xf32>
    %41 = tpu.matmul %25, %40, %cst_25 {dimension_numbers = #tpu.dot_dimension_numbers<[1], [0], [0], [1], [0, 0, 1, 1], [], []>} : vector<128x256xbf16>, vector<256x256xbf16>, vector<128x256xf32> -> vector<128x256xf32>
    %c0_26 = arith.constant 0 : index
    %c0_27 = arith.constant 0 : index
    %42 = vector.load %arg9[%c0_26, %c0_27] : memref<1x256xf32, #tpu.memory_space<vmem>>, vector<1x256xf32>
    %43 = vector.broadcast %42 : vector<1x256xf32> to vector<128x256xf32>
    %44 = arith.addf %41, %43 : vector<128x256xf32>
    %45 = arith.truncf %44 : vector<128x256xf32> to vector<128x256xbf16>
    %c0_28 = arith.constant 0 : index
    %c0_29 = arith.constant 0 : index
    %46 = vector.load %arg12[%c0_28, %c0_29] : memref<128x256xbf16, #tpu.memory_space<vmem>>, vector<128x256xbf16>
    tpu.vector_store %arg12[%c0_28, %c0_29], %45 {strides = array<i32>} : memref<128x256xbf16, #tpu.memory_space<vmem>>, vector<128x256xbf16>,
    return
  }
  func.func @transform_0(%arg0: i32) -> (i32, i32) {
    %c0_i32 = arith.constant 0 : i32
    %c0_i32_0 = arith.constant 0 : i32
    return %arg0, %c0_i32 : i32, i32
  }
  func.func @transform_1(%arg0: i32) -> (i32, i32) {
    %c0_i32 = arith.constant 0 : i32
    %c0_i32_0 = arith.constant 0 : i32
    %c0_i32_1 = arith.constant 0 : i32
    return %c0_i32, %c0_i32_0 : i32, i32
  }
  func.func @transform_2(%arg0: i32) -> (i32, i32) {
    %c0_i32 = arith.constant 0 : i32
    %c0_i32_0 = arith.constant 0 : i32
    %c0_i32_1 = arith.constant 0 : i32
    return %c0_i32, %c0_i32_0 : i32, i32
  }
  func.func @transform_3(%arg0: i32) -> (i32, i32) {
    %c0_i32 = arith.constant 0 : i32
    %c0_i32_0 = arith.constant 0 : i32
    %c0_i32_1 = arith.constant 0 : i32
    return %c0_i32, %c0_i32_0 : i32, i32
  }
  func.func @transform_4(%arg0: i32) -> (i32, i32) {
    %c0_i32 = arith.constant 0 : i32
    %c0_i32_0 = arith.constant 0 : i32
    %c0_i32_1 = arith.constant 0 : i32
    return %c0_i32, %c0_i32_0 : i32, i32
  }
  func.func @transform_5(%arg0: i32) -> (i32, i32) {
    %c0_i32 = arith.constant 0 : i32
    %c0_i32_0 = arith.constant 0 : i32
    %c0_i32_1 = arith.constant 0 : i32
    return %c0_i32, %c0_i32_0 : i32, i32
  }
  func.func @transform_6(%arg0: i32) -> (i32, i32) {
    %c0_i32 = arith.constant 0 : i32
    %c0_i32_0 = arith.constant 0 : i32
    %c0_i32_1 = arith.constant 0 : i32
    return %c0_i32, %c0_i32_0 : i32, i32
  }
  func.func @transform_7(%arg0: i32) -> (i32, i32) {
    %c0_i32 = arith.constant 0 : i32
    %c0_i32_0 = arith.constant 0 : i32
    %c0_i32_1 = arith.constant 0 : i32
    return %c0_i32, %c0_i32_0 : i32, i32
  }
  func.func @transform_8(%arg0: i32) -> (i32, i32) {
    %c0_i32 = arith.constant 0 : i32
    %c0_i32_0 = arith.constant 0 : i32
    %c0_i32_1 = arith.constant 0 : i32
    return %c0_i32, %c0_i32_0 : i32, i32
  }
  func.func @transform_9(%arg0: i32) -> (i32, i32) {
    %c0_i32 = arith.constant 0 : i32
    %c0_i32_0 = arith.constant 0 : i32
    return %arg0, %c0_i32 : i32, i32
  }
  func.func @transform_10(%arg0: i32) -> (i32, i32) {
    %c0_i32 = arith.constant 0 : i32
    %c0_i32_0 = arith.constant 0 : i32
    return %arg0, %c0_i32 : i32, i32
  }
  func.func @transform_11(%arg0: i32) -> (i32, i32) {
    %c0_i32 = arith.constant 0 : i32
    %c0_i32_0 = arith.constant 0 : i32
    return %arg0, %c0_i32 : i32, i32
  }
}

module attributes {stable_mosaic.version = 11 : i64} {
  func.func @_out_ffn_kernel(%arg0: i32, %arg1: memref<128x256xbf16, #tpu.memory_space<vmem>>, %arg2: memref<128x256xf32, #tpu.memory_space<vmem>>, %arg3: memref<256x256xbf16, #tpu.memory_space<vmem>>, %arg4: memref<1x256xf32, #tpu.memory_space<vmem>>, %arg5: memref<1x256xf32, #tpu.memory_space<vmem>>, %arg6: memref<1x256xf32, #tpu.memory_space<vmem>>, %arg7: memref<256x256xbf16, #tpu.memory_space<vmem>>, %arg8: memref<1x256xf32, #tpu.memory_space<vmem>>, %arg9: memref<256x256xbf16, #tpu.memory_space<vmem>>, %arg10: memref<1x256xf32, #tpu.memory_space<vmem>>, %arg11: memref<128x256xf32, #tpu.memory_space<vmem>>) attributes {dimension_semantics = [#tpu.dimension_semantics<parallel>], iteration_bounds = array<i64: 1>, scalar_prefetch = 0 : i64, scratch_operands = 0 : i64, tpu.core_type = #tpu.core_type<tc>, window_params = [{transform_indices = @transform_0, window_bounds = array<i64: 128, 256>}, {transform_indices = @transform_1, window_bounds = array<i64: 128, 256>}, {pipeline_mode = #tpu.pipeline_mode<synchronous>, transform_indices = @transform_2, window_bounds = array<i64: 256, 256>}, {pipeline_mode = #tpu.pipeline_mode<synchronous>, transform_indices = @transform_3, window_bounds = array<i64: 1, 256>}, {pipeline_mode = #tpu.pipeline_mode<synchronous>, transform_indices = @transform_4, window_bounds = array<i64: 1, 256>}, {pipeline_mode = #tpu.pipeline_mode<synchronous>, transform_indices = @transform_5, window_bounds = array<i64: 1, 256>}, {pipeline_mode = #tpu.pipeline_mode<synchronous>, transform_indices = @transform_6, window_bounds = array<i64: 256, 256>}, {pipeline_mode = #tpu.pipeline_mode<synchronous>, transform_indices = @transform_7, window_bounds = array<i64: 1, 256>}, {pipeline_mode = #tpu.pipeline_mode<synchronous>, transform_indices = @transform_8, window_bounds = array<i64: 256, 256>}, {pipeline_mode = #tpu.pipeline_mode<synchronous>, transform_indices = @transform_9, window_bounds = array<i64: 1, 256>}, {transform_indices = @transform_10, window_bounds = array<i64: 128, 256>}]} {
    %c0 = arith.constant 0 : index
    %c0_0 = arith.constant 0 : index
    %0 = vector.load %arg1[%c0, %c0_0] : memref<128x256xbf16, #tpu.memory_space<vmem>>, vector<128x256xbf16>
    %c0_1 = arith.constant 0 : index
    %c0_2 = arith.constant 0 : index
    %1 = vector.load %arg3[%c0_1, %c0_2] : memref<256x256xbf16, #tpu.memory_space<vmem>>, vector<256x256xbf16>
    %cst = arith.constant dense<0.000000e+00> : vector<128x256xf32>
    %2 = tpu.matmul %0, %1, %cst {dimension_numbers = #tpu.dot_dimension_numbers<[1], [0], [0], [1], [0, 0, 1, 1], [], []>} : vector<128x256xbf16>, vector<256x256xbf16>, vector<128x256xf32> -> vector<128x256xf32>
    %c0_3 = arith.constant 0 : index
    %c0_4 = arith.constant 0 : index
    %3 = vector.load %arg4[%c0_3, %c0_4] : memref<1x256xf32, #tpu.memory_space<vmem>>, vector<1x256xf32>
    %4 = vector.broadcast %3 : vector<1x256xf32> to vector<128x256xf32>
    %5 = arith.addf %2, %4 : vector<128x256xf32>
    %c0_5 = arith.constant 0 : index
    %c0_6 = arith.constant 0 : index
    %6 = vector.load %arg2[%c0_5, %c0_6] : memref<128x256xf32, #tpu.memory_space<vmem>>, vector<128x256xf32>
    %7 = arith.addf %5, %6 : vector<128x256xf32>
    %cst_7 = arith.constant dense<0.000000e+00> : vector<128xf32>
    %8 = vector.multi_reduction <add>, %7, %cst_7 [1] : vector<128x256xf32> to vector<128xf32>
    %9 = vector.shape_cast %8 : vector<128xf32> to vector<128x1xf32>
    %cst_8 = arith.constant 2.560000e+02 : f32
    %10 = vector.broadcast %cst_8 : f32 to vector<128x1xf32>
    %11 = arith.divf %9, %10 : vector<128x1xf32>
    %12 = vector.broadcast %11 : vector<128x1xf32> to vector<128x256xf32>
    %13 = arith.subf %7, %12 : vector<128x256xf32>
    %14 = arith.mulf %13, %13 : vector<128x256xf32>
    %cst_9 = arith.constant dense<0.000000e+00> : vector<128xf32>
    %15 = vector.multi_reduction <add>, %14, %cst_9 [1] : vector<128x256xf32> to vector<128xf32>
    %16 = vector.shape_cast %15 : vector<128xf32> to vector<128x1xf32>
    %cst_10 = arith.constant 2.560000e+02 : f32
    %17 = vector.broadcast %cst_10 : f32 to vector<128x1xf32>
    %18 = arith.divf %16, %17 : vector<128x1xf32>
    %19 = vector.broadcast %11 : vector<128x1xf32> to vector<128x256xf32>
    %20 = arith.subf %7, %19 : vector<128x256xf32>
    %cst_11 = arith.constant 9.99999974E-6 : f32
    %21 = vector.broadcast %cst_11 : f32 to vector<128x1xf32>
    %22 = arith.addf %18, %21 : vector<128x1xf32>
    %23 = math.rsqrt %22 : vector<128x1xf32>
    %24 = vector.broadcast %23 : vector<128x1xf32> to vector<128x256xf32>
    %25 = arith.mulf %20, %24 : vector<128x256xf32>
    %c0_12 = arith.constant 0 : index
    %c0_13 = arith.constant 0 : index
    %26 = vector.load %arg5[%c0_12, %c0_13] : memref<1x256xf32, #tpu.memory_space<vmem>>, vector<1x256xf32>
    %27 = vector.broadcast %26 : vector<1x256xf32> to vector<128x256xf32>
    %28 = arith.mulf %25, %27 : vector<128x256xf32>
    %c0_14 = arith.constant 0 : index
    %c0_15 = arith.constant 0 : index
    %29 = vector.load %arg6[%c0_14, %c0_15] : memref<1x256xf32, #tpu.memory_space<vmem>>, vector<1x256xf32>
    %30 = vector.broadcast %29 : vector<1x256xf32> to vector<128x256xf32>
    %31 = arith.addf %28, %30 : vector<128x256xf32>
    %32 = arith.truncf %31 : vector<128x256xf32> to vector<128x256xbf16>
    %c0_16 = arith.constant 0 : index
    %c0_17 = arith.constant 0 : index
    %33 = vector.load %arg7[%c0_16, %c0_17] : memref<256x256xbf16, #tpu.memory_space<vmem>>, vector<256x256xbf16>
    %cst_18 = arith.constant dense<0.000000e+00> : vector<128x256xf32>
    %34 = tpu.matmul %32, %33, %cst_18 {dimension_numbers = #tpu.dot_dimension_numbers<[1], [0], [0], [1], [0, 0, 1, 1], [], []>} : vector<128x256xbf16>, vector<256x256xbf16>, vector<128x256xf32> -> vector<128x256xf32>
    %c0_19 = arith.constant 0 : index
    %c0_20 = arith.constant 0 : index
    %35 = vector.load %arg8[%c0_19, %c0_20] : memref<1x256xf32, #tpu.memory_space<vmem>>, vector<1x256xf32>
    %36 = vector.broadcast %35 : vector<1x256xf32> to vector<128x256xf32>
    %37 = arith.addf %34, %36 : vector<128x256xf32>
    %38 = arith.mulf %37, %37 : vector<128x256xf32>
    %39 = arith.mulf %37, %38 : vector<128x256xf32>
    %cst_21 = arith.constant 4.471500e-02 : f32
    %40 = vector.broadcast %cst_21 : f32 to vector<128x256xf32>
    %41 = arith.mulf %40, %39 : vector<128x256xf32>
    %42 = arith.addf %37, %41 : vector<128x256xf32>
    %cst_22 = arith.constant 0.797884583 : f32
    %43 = vector.broadcast %cst_22 : f32 to vector<128x256xf32>
    %44 = arith.mulf %43, %42 : vector<128x256xf32>
    %45 = math.tanh %44 : vector<128x256xf32>
    %cst_23 = arith.constant 1.000000e+00 : f32
    %46 = vector.broadcast %cst_23 : f32 to vector<128x256xf32>
    %47 = arith.addf %46, %45 : vector<128x256xf32>
    %cst_24 = arith.constant 5.000000e-01 : f32
    %48 = vector.broadcast %cst_24 : f32 to vector<128x256xf32>
    %49 = arith.mulf %48, %47 : vector<128x256xf32>
    %50 = arith.mulf %37, %49 : vector<128x256xf32>
    %51 = arith.truncf %50 : vector<128x256xf32> to vector<128x256xbf16>
    %c0_25 = arith.constant 0 : index
    %c0_26 = arith.constant 0 : index
    %52 = vector.load %arg9[%c0_25, %c0_26] : memref<256x256xbf16, #tpu.memory_space<vmem>>, vector<256x256xbf16>
    %cst_27 = arith.constant dense<0.000000e+00> : vector<128x256xf32>
    %53 = tpu.matmul %51, %52, %cst_27 {dimension_numbers = #tpu.dot_dimension_numbers<[1], [0], [0], [1], [0, 0, 1, 1], [], []>} : vector<128x256xbf16>, vector<256x256xbf16>, vector<128x256xf32> -> vector<128x256xf32>
    %c0_28 = arith.constant 0 : index
    %c0_29 = arith.constant 0 : index
    %54 = vector.load %arg10[%c0_28, %c0_29] : memref<1x256xf32, #tpu.memory_space<vmem>>, vector<1x256xf32>
    %55 = vector.broadcast %54 : vector<1x256xf32> to vector<128x256xf32>
    %56 = arith.addf %53, %55 : vector<128x256xf32>
    %57 = arith.addf %56, %7 : vector<128x256xf32>
    %c0_30 = arith.constant 0 : index
    %c0_31 = arith.constant 0 : index
    %58 = vector.load %arg11[%c0_30, %c0_31] : memref<128x256xf32, #tpu.memory_space<vmem>>, vector<128x256xf32>
    tpu.vector_store %arg11[%c0_30, %c0_31], %57 {strides = array<i32>} : memref<128x256xf32, #tpu.memory_space<vmem>>, vector<128x256xf32>,
    return
  }
  func.func @transform_0(%arg0: i32) -> (i32, i32) {
    %c0_i32 = arith.constant 0 : i32
    %c0_i32_0 = arith.constant 0 : i32
    return %arg0, %c0_i32 : i32, i32
  }
  func.func @transform_1(%arg0: i32) -> (i32, i32) {
    %c0_i32 = arith.constant 0 : i32
    %c0_i32_0 = arith.constant 0 : i32
    return %arg0, %c0_i32 : i32, i32
  }
  func.func @transform_2(%arg0: i32) -> (i32, i32) {
    %c0_i32 = arith.constant 0 : i32
    %c0_i32_0 = arith.constant 0 : i32
    %c0_i32_1 = arith.constant 0 : i32
    return %c0_i32, %c0_i32_0 : i32, i32
  }
  func.func @transform_3(%arg0: i32) -> (i32, i32) {
    %c0_i32 = arith.constant 0 : i32
    %c0_i32_0 = arith.constant 0 : i32
    %c0_i32_1 = arith.constant 0 : i32
    return %c0_i32, %c0_i32_0 : i32, i32
  }
  func.func @transform_4(%arg0: i32) -> (i32, i32) {
    %c0_i32 = arith.constant 0 : i32
    %c0_i32_0 = arith.constant 0 : i32
    %c0_i32_1 = arith.constant 0 : i32
    return %c0_i32, %c0_i32_0 : i32, i32
  }
  func.func @transform_5(%arg0: i32) -> (i32, i32) {
    %c0_i32 = arith.constant 0 : i32
    %c0_i32_0 = arith.constant 0 : i32
    %c0_i32_1 = arith.constant 0 : i32
    return %c0_i32, %c0_i32_0 : i32, i32
  }
  func.func @transform_6(%arg0: i32) -> (i32, i32) {
    %c0_i32 = arith.constant 0 : i32
    %c0_i32_0 = arith.constant 0 : i32
    %c0_i32_1 = arith.constant 0 : i32
    return %c0_i32, %c0_i32_0 : i32, i32
  }
  func.func @transform_7(%arg0: i32) -> (i32, i32) {
    %c0_i32 = arith.constant 0 : i32
    %c0_i32_0 = arith.constant 0 : i32
    %c0_i32_1 = arith.constant 0 : i32
    return %c0_i32, %c0_i32_0 : i32, i32
  }
  func.func @transform_8(%arg0: i32) -> (i32, i32) {
    %c0_i32 = arith.constant 0 : i32
    %c0_i32_0 = arith.constant 0 : i32
    %c0_i32_1 = arith.constant 0 : i32
    return %c0_i32, %c0_i32_0 : i32, i32
  }
  func.func @transform_9(%arg0: i32) -> (i32, i32) {
    %c0_i32 = arith.constant 0 : i32
    %c0_i32_0 = arith.constant 0 : i32
    %c0_i32_1 = arith.constant 0 : i32
    return %c0_i32, %c0_i32_0 : i32, i32
  }
  func.func @transform_10(%arg0: i32) -> (i32, i32) {
    %c0_i32 = arith.constant 0 : i32
    %c0_i32_0 = arith.constant 0 : i32
    return %arg0, %c0_i32 : i32, i32
  }
}

module attributes {stable_mosaic.version = 11 : i64} {
  func.func @_linear_kernel(%arg0: i32, %arg1: memref<128x256xf32, #tpu.memory_space<vmem>>, %arg2: memref<256x128xbf16, #tpu.memory_space<vmem>>, %arg3: memref<1x128xf32, #tpu.memory_space<vmem>>, %arg4: memref<128x128xf32, #tpu.memory_space<vmem>>) attributes {dimension_semantics = [#tpu.dimension_semantics<parallel>], iteration_bounds = array<i64: 1>, scalar_prefetch = 0 : i64, scratch_operands = 0 : i64, tpu.core_type = #tpu.core_type<tc>, window_params = [{transform_indices = @transform_0, window_bounds = array<i64: 128, 256>}, {pipeline_mode = #tpu.pipeline_mode<synchronous>, transform_indices = @transform_1, window_bounds = array<i64: 256, 128>}, {pipeline_mode = #tpu.pipeline_mode<synchronous>, transform_indices = @transform_2, window_bounds = array<i64: 1, 128>}, {transform_indices = @transform_3, window_bounds = array<i64: 128, 128>}]} {
    %c0 = arith.constant 0 : index
    %c0_0 = arith.constant 0 : index
    %0 = vector.load %arg1[%c0, %c0_0] : memref<128x256xf32, #tpu.memory_space<vmem>>, vector<128x256xf32>
    %1 = arith.truncf %0 : vector<128x256xf32> to vector<128x256xbf16>
    %c0_1 = arith.constant 0 : index
    %c0_2 = arith.constant 0 : index
    %2 = vector.load %arg2[%c0_1, %c0_2] : memref<256x128xbf16, #tpu.memory_space<vmem>>, vector<256x128xbf16>
    %cst = arith.constant dense<0.000000e+00> : vector<128x128xf32>
    %3 = tpu.matmul %1, %2, %cst {dimension_numbers = #tpu.dot_dimension_numbers<[1], [0], [0], [1], [0, 0, 1, 1], [], []>} : vector<128x256xbf16>, vector<256x128xbf16>, vector<128x128xf32> -> vector<128x128xf32>
    %c0_3 = arith.constant 0 : index
    %c0_4 = arith.constant 0 : index
    %4 = vector.load %arg3[%c0_3, %c0_4] : memref<1x128xf32, #tpu.memory_space<vmem>>, vector<1x128xf32>
    %5 = vector.broadcast %4 : vector<1x128xf32> to vector<128x128xf32>
    %6 = arith.addf %3, %5 : vector<128x128xf32>
    %c0_5 = arith.constant 0 : index
    %c0_6 = arith.constant 0 : index
    %7 = vector.load %arg4[%c0_5, %c0_6] : memref<128x128xf32, #tpu.memory_space<vmem>>, vector<128x128xf32>
    tpu.vector_store %arg4[%c0_5, %c0_6], %6 {strides = array<i32>} : memref<128x128xf32, #tpu.memory_space<vmem>>, vector<128x128xf32>,
    return
  }
  func.func @transform_0(%arg0: i32) -> (i32, i32) {
    %c0_i32 = arith.constant 0 : i32
    %c0_i32_0 = arith.constant 0 : i32
    return %arg0, %c0_i32 : i32, i32
  }
  func.func @transform_1(%arg0: i32) -> (i32, i32) {
    %c0_i32 = arith.constant 0 : i32
    %c0_i32_0 = arith.constant 0 : i32
    %c0_i32_1 = arith.constant 0 : i32
    return %c0_i32, %c0_i32_0 : i32, i32
  }
  func.func @transform_2(%arg0: i32) -> (i32, i32) {
    %c0_i32 = arith.constant 0 : i32
    %c0_i32_0 = arith.constant 0 : i32
    %c0_i32_1 = arith.constant 0 : i32
    return %c0_i32, %c0_i32_0 : i32, i32
  }
  func.func @transform_3(%arg0: i32) -> (i32, i32) {
    %c0_i32 = arith.constant 0 : i32
    %c0_i32_0 = arith.constant 0 : i32
    return %arg0, %c0_i32 : i32, i32
  }
}

</mosaic_0001>

<llo_original>
// kernel: _lambda_.10
$region0: #{_lambda_.10}
  #allocation0 [shape = 'u32[]', space=smem, size = 0x4, offset = 0x4, fixed_abs, tag = 'smem constant byte address 0x4 - core index']
  #allocation1 [shape = 'u32[144,128]{1,0:T(1,128)}', space=vmem, size = 0x12000, scoped, tag = 'internal scratch']
  #allocation2 [shape = 'f32[1,1]{1,0:T(1,128)S(6)}', space=smem, size = 0x200, scoped, tag = 'scoped memory for _lambda_.10']
  %s0 = inlined_call_operand.vmem [shape: f32[4,128,128], index: 0, kind: input, shape index: {}]
  %s1 = inlined_call_operand.vmem [shape: s8[128,128], index: 1, kind: input, shape index: {}]
  %s2 = inlined_call_operand.vmem [shape: f32[1,4], index: 2, kind: input, shape index: {}]
  %s3 = inlined_call_operand.<no memory space> [shape: f32[1,1], index: 3, kind: input, shape index: {}]
  %s4 = inlined_call_operand.vmem [shape: bf16[128,128], index: 4, kind: output, shape index: {}]
  %s5 = sld [smem:[#allocation0]]
  $region30: #{_lambda_.10} parent=0
    _
  %s7 = ssub.s32 1, %s5
  %s8 = scalar_select 0, %s7, %s5
  %9 = sst [smem:[#allocation2]] %s3
  $region1: #{_lambda_.10} parent=0
    #allocation3 [shape = 'u8[512]{0}', space=smem, size = 0x200, scoped, tag = 'input window, operand 2, single buffered']
    #allocation4 [shape = 's32[1]{0}', space=sflag, size = 0x4, scoped, tag = 'scoped memory for _lambda_.10']
    %10 = vsyncpa [#allocation4], 0
    // Predicated region
    $region2: #{_lambda_.10} parent=1 // pred_check
      _
    $region3: #{_lambda_.10} parent=1 // pred_check_branch
      %12 = sbr.rel (0) target = $region5
    $region4: #{_lambda_.10} parent=1 // pred_region
      _
    $region5: #{_lambda_.10} parent=1 // pred_fallthru
      _
    // Predicated region
    $region6: #{_lambda_.10} parent=1 // pred_check
      _
    $region7: #{_lambda_.10} parent=1 // pred_check_branch
      %14 = sbr.rel (0) target = $region9
    $region8: #{_lambda_.10} parent=1 // pred_region
      _
    $region9: #{_lambda_.10} parent=1 // pred_fallthru
      _
    // Predicated region
    $region10: #{_lambda_.10} parent=1 // pred_check
      _
    $region11: #{_lambda_.10} parent=1 // pred_check_branch
      %16 = sbr.rel (0) target = $region13
    $region12: #{_lambda_.10} parent=1 // pred_region
      %s18 = ssub.s32 16, 16
      %19 = vsyncadd [#allocation4], %s18
      %s21 = sshll.u32 %s2, 4
      %s22 = int_to_ptr.vmem [resolvable:$true] %s21
      %24 = dma.vmem_to_smem %s22, 16, [#allocation3], [#allocation4]
    $region13: #{_lambda_.10} parent=1 // pred_fallthru
      _
    // Predicated region
    $region14: #{_lambda_.10} parent=1 // pred_check
      _
    $region15: #{_lambda_.10} parent=1 // pred_check_branch
      %26 = sbr.rel (0) target = $region17
    $region16: #{_lambda_.10} parent=1 // pred_region
      _
    $region17: #{_lambda_.10} parent=1 // pred_fallthru
      _
    // Predicated region
    $region18: #{_lambda_.10} parent=1 // pred_check
      _
    $region19: #{_lambda_.10} parent=1 // pred_check_branch
      %28 = sbr.rel (0) target = $region21
    $region20: #{_lambda_.10} parent=1 // pred_region
      %29 = dma.done [#allocation4], 16
    $region21: #{_lambda_.10} parent=1 // pred_fallthru
      _
    %30 = sfence
    %v31 = vld [vmem:[%s0] sm:$0xff]
    %v32 = vld [vmem:[%s0 + $0x8] sm:$0xff]
    %v33 = vld [vmem:[%s0 + $0x10] sm:$0xff]
    %v34 = vld [vmem:[%s0 + $0x18] sm:$0xff]
    %v35 = vld [vmem:[%s0 + $0x20] sm:$0xff]
    %v36 = vld [vmem:[%s0 + $0x28] sm:$0xff]
    %v37 = vld [vmem:[%s0 + $0x30] sm:$0xff]
    %v38 = vld [vmem:[%s0 + $0x38] sm:$0xff]
    %v39 = vld [vmem:[%s0 + $0x40] sm:$0xff]
    %v40 = vld [vmem:[%s0 + $0x48] sm:$0xff]
    %v41 = vld [vmem:[%s0 + $0x50] sm:$0xff]
    %v42 = vld [vmem:[%s0 + $0x58] sm:$0xff]
    %v43 = vld [vmem:[%s0 + $0x60] sm:$0xff]
    %v44 = vld [vmem:[%s0 + $0x68] sm:$0xff]
    %v45 = vld [vmem:[%s0 + $0x70] sm:$0xff]
    %v46 = vld [vmem:[%s0 + $0x78] sm:$0xff]
    %s47 = sld [smem:[#allocation3]]
    %v48 = vadd.f32 %v31, 1e-10
    %v49 = vadd.f32 %v32, 1e-10
    %v50 = vadd.f32 %v33, 1e-10
    %v51 = vadd.f32 %v34, 1e-10
    %v52 = vadd.f32 %v35, 1e-10
    %v53 = vadd.f32 %v36, 1e-10
    %v54 = vadd.f32 %v37, 1e-10
    %v55 = vadd.f32 %v38, 1e-10
    %v56 = vadd.f32 %v39, 1e-10
    %v57 = vadd.f32 %v40, 1e-10
    %v58 = vadd.f32 %v41, 1e-10
    %v59 = vadd.f32 %v42, 1e-10
    %v60 = vadd.f32 %v43, 1e-10
    %v61 = vadd.f32 %v44, 1e-10
    %v62 = vadd.f32 %v45, 1e-10
    %v63 = vadd.f32 %v46, 1e-10
    %v64 = vrcp.pop %v48
    %v65 = vmul.f32 1.0, %v64
    %v66 = vrcp.pop %v49
    %v67 = vmul.f32 1.0, %v66
    %v68 = vrcp.pop %v50
    %v69 = vmul.f32 1.0, %v68
    %v70 = vrcp.pop %v51
    %v71 = vmul.f32 1.0, %v70
    %v72 = vrcp.pop %v52
    %v73 = vmul.f32 1.0, %v72
    %v74 = vrcp.pop %v53
    %v75 = vmul.f32 1.0, %v74
    %v76 = vrcp.pop %v54
    %v77 = vmul.f32 1.0, %v76
    %v78 = vrcp.pop %v55
    %v79 = vmul.f32 1.0, %v78
    %v80 = vrcp.pop %v56
    %v81 = vmul.f32 1.0, %v80
    %v82 = vrcp.pop %v57
    %v83 = vmul.f32 1.0, %v82
    %v84 = vrcp.pop %v58
    %v85 = vmul.f32 1.0, %v84
    %v86 = vrcp.pop %v59
    %v87 = vmul.f32 1.0, %v86
    %v88 = vrcp.pop %v60
    %v89 = vmul.f32 1.0, %v88
    %v90 = vrcp.pop %v61
    %v91 = vmul.f32 1.0, %v90
    %v92 = vrcp.pop %v62
    %v93 = vmul.f32 1.0, %v92
    %v94 = vrcp.pop %v63
    %v95 = vmul.f32 1.0, %v94
    %v96 = vstv %s47
    %v97 = vmul.f32 %v96, %v65
    %v98 = vmul.f32 %v96, %v67
    %v99 = vmul.f32 %v96, %v69
    %v100 = vmul.f32 %v96, %v71
    %v101 = vmul.f32 %v96, %v73
    %v102 = vmul.f32 %v96, %v75
    %v103 = vmul.f32 %v96, %v77
    %v104 = vmul.f32 %v96, %v79
    %v105 = vmul.f32 %v96, %v81
    %v106 = vmul.f32 %v96, %v83
    %v107 = vmul.f32 %v96, %v85
    %v108 = vmul.f32 %v96, %v87
    %v109 = vmul.f32 %v96, %v89
    %v110 = vmul.f32 %v96, %v91
    %v111 = vmul.f32 %v96, %v93
    %v112 = vmul.f32 %v96, %v95
    %s113 = scalar_lea.vmem %s0, 128
    %v114 = vld [vmem:[%s113] sm:$0xff]
    %v115 = vld [vmem:[%s113 + $0x8] sm:$0xff]
    %v116 = vld [vmem:[%s113 + $0x10] sm:$0xff]
    %v117 = vld [vmem:[%s113 + $0x18] sm:$0xff]
    %v118 = vld [vmem:[%s113 + $0x20] sm:$0xff]
    %v119 = vld [vmem:[%s113 + $0x28] sm:$0xff]
    %v120 = vld [vmem:[%s113 + $0x30] sm:$0xff]
    %v121 = vld [vmem:[%s113 + $0x38] sm:$0xff]
    %v122 = vld [vmem:[%s113 + $0x40] sm:$0xff]
    %v123 = vld [vmem:[%s113 + $0x48] sm:$0xff]
    %v124 = vld [vmem:[%s113 + $0x50] sm:$0xff]
    %v125 = vld [vmem:[%s113 + $0x58] sm:$0xff]
    %v126 = vld [vmem:[%s113 + $0x60] sm:$0xff]
    %v127 = vld [vmem:[%s113 + $0x68] sm:$0xff]
    %v128 = vld [vmem:[%s113 + $0x70] sm:$0xff]
    %v129 = vld [vmem:[%s113 + $0x78] sm:$0xff]
    %v130 = vadd.f32 %v31, %v114
    %v131 = vadd.f32 %v32, %v115
    %v132 = vadd.f32 %v33, %v116
    %v133 = vadd.f32 %v34, %v117
    %v134 = vadd.f32 %v35, %v118
    %v135 = vadd.f32 %v36, %v119
    %v136 = vadd.f32 %v37, %v120
    %v137 = vadd.f32 %v38, %v121
    %v138 = vadd.f32 %v39, %v122
    %v139 = vadd.f32 %v40, %v123
    %v140 = vadd.f32 %v41, %v124
    %v141 = vadd.f32 %v42, %v125
    %v142 = vadd.f32 %v43, %v126
    %v143 = vadd.f32 %v44, %v127
    %v144 = vadd.f32 %v45, %v128
    %v145 = vadd.f32 %v46, %v129
    %s146 = sld [smem:[#allocation3 + $0x1]]
    %v147 = vadd.f32 %v114, 1e-10
    %v148 = vadd.f32 %v115, 1e-10
    %v149 = vadd.f32 %v116, 1e-10
    %v150 = vadd.f32 %v117, 1e-10
    %v151 = vadd.f32 %v118, 1e-10
    %v152 = vadd.f32 %v119, 1e-10
    %v153 = vadd.f32 %v120, 1e-10
    %v154 = vadd.f32 %v121, 1e-10
    %v155 = vadd.f32 %v122, 1e-10
    %v156 = vadd.f32 %v123, 1e-10
    %v157 = vadd.f32 %v124, 1e-10
    %v158 = vadd.f32 %v125, 1e-10
    %v159 = vadd.f32 %v126, 1e-10
    %v160 = vadd.f32 %v127, 1e-10
    %v161 = vadd.f32 %v128, 1e-10
    %v162 = vadd.f32 %v129, 1e-10
    %v163 = vrcp.pop %v147
    %v164 = vmul.f32 1.0, %v163
    %v165 = vrcp.pop %v148
    %v166 = vmul.f32 1.0, %v165
    %v167 = vrcp.pop %v149
    %v168 = vmul.f32 1.0, %v167
    %v169 = vrcp.pop %v150
    %v170 = vmul.f32 1.0, %v169
    %v171 = vrcp.pop %v151
    %v172 = vmul.f32 1.0, %v171
    %v173 = vrcp.pop %v152
    %v174 = vmul.f32 1.0, %v173
    %v175 = vrcp.pop %v153
    %v176 = vmul.f32 1.0, %v175
    %v177 = vrcp.pop %v154
    %v178 = vmul.f32 1.0, %v177
    %v179 = vrcp.pop %v155
    %v180 = vmul.f32 1.0, %v179
    %v181 = vrcp.pop %v156
    %v182 = vmul.f32 1.0, %v181
    %v183 = vrcp.pop %v157
    %v184 = vmul.f32 1.0, %v183
    %v185 = vrcp.pop %v158
    %v186 = vmul.f32 1.0, %v185
    %v187 = vrcp.pop %v159
    %v188 = vmul.f32 1.0, %v187
    %v189 = vrcp.pop %v160
    %v190 = vmul.f32 1.0, %v189
    %v191 = vrcp.pop %v161
    %v192 = vmul.f32 1.0, %v191
    %v193 = vrcp.pop %v162
    %v194 = vmul.f32 1.0, %v193
    %v195 = vstv %s146
    %v196 = vmul.f32 %v195, %v164
    %v197 = vmul.f32 %v195, %v166
    %v198 = vmul.f32 %v195, %v168
    %v199 = vmul.f32 %v195, %v170
    %v200 = vmul.f32 %v195, %v172
    %v201 = vmul.f32 %v195, %v174
    %v202 = vmul.f32 %v195, %v176
    %v203 = vmul.f32 %v195, %v178
    %v204 = vmul.f32 %v195, %v180
    %v205 = vmul.f32 %v195, %v182
    %v206 = vmul.f32 %v195, %v184
    %v207 = vmul.f32 %v195, %v186
    %v208 = vmul.f32 %v195, %v188
    %v209 = vmul.f32 %v195, %v190
    %v210 = vmul.f32 %v195, %v192
    %v211 = vmul.f32 %v195, %v194
    %v212 = vadd.f32 %v97, %v196
    %v213 = vadd.f32 %v98, %v197
    %v214 = vadd.f32 %v99, %v198
    %v215 = vadd.f32 %v100, %v199
    %v216 = vadd.f32 %v101, %v200
    %v217 = vadd.f32 %v102, %v201
    %v218 = vadd.f32 %v103, %v202
    %v219 = vadd.f32 %v104, %v203
    %v220 = vadd.f32 %v105, %v204
    %v221 = vadd.f32 %v106, %v205
    %v222 = vadd.f32 %v107, %v206
    %v223 = vadd.f32 %v108, %v207
    %v224 = vadd.f32 %v109, %v208
    %v225 = vadd.f32 %v110, %v209
    %v226 = vadd.f32 %v111, %v210
    %v227 = vadd.f32 %v112, %v211
    %s228 = scalar_lea.vmem %s0, 256
    %v229 = vld [vmem:[%s228] sm:$0xff]
    %v230 = vld [vmem:[%s228 + $0x8] sm:$0xff]
    %v231 = vld [vmem:[%s228 + $0x10] sm:$0xff]
    %v232 = vld [vmem:[%s228 + $0x18] sm:$0xff]
    %v233 = vld [vmem:[%s228 + $0x20] sm:$0xff]
    %v234 = vld [vmem:[%s228 + $0x28] sm:$0xff]
    %v235 = vld [vmem:[%s228 + $0x30] sm:$0xff]
    %v236 = vld [vmem:[%s228 + $0x38] sm:$0xff]
    %v237 = vld [vmem:[%s228 + $0x40] sm:$0xff]
    %v238 = vld [vmem:[%s228 + $0x48] sm:$0xff]
    %v239 = vld [vmem:[%s228 + $0x50] sm:$0xff]
    %v240 = vld [vmem:[%s228 + $0x58] sm:$0xff]
    %v241 = vld [vmem:[%s228 + $0x60] sm:$0xff]
    %v242 = vld [vmem:[%s228 + $0x68] sm:$0xff]
    %v243 = vld [vmem:[%s228 + $0x70] sm:$0xff]
    %v244 = vld [vmem:[%s228 + $0x78] sm:$0xff]
    %v245 = vadd.f32 %v130, %v229
    %v246 = vadd.f32 %v131, %v230
    %v247 = vadd.f32 %v132, %v231
    %v248 = vadd.f32 %v133, %v232
    %v249 = vadd.f32 %v134, %v233
    %v250 = vadd.f32 %v135, %v234
    %v251 = vadd.f32 %v136, %v235
    %v252 = vadd.f32 %v137, %v236
    %v253 = vadd.f32 %v138, %v237
    %v254 = vadd.f32 %v139, %v238
    %v255 = vadd.f32 %v140, %v239
    %v256 = vadd.f32 %v141, %v240
    %v257 = vadd.f32 %v142, %v241
    %v258 = vadd.f32 %v143, %v242
    %v259 = vadd.f32 %v144, %v243
    %v260 = vadd.f32 %v145, %v244
    %s261 = sld [smem:[#allocation3 + $0x2]]
    %v262 = vadd.f32 %v229, 1e-10
    %v263 = vadd.f32 %v230, 1e-10
    %v264 = vadd.f32 %v231, 1e-10
    %v265 = vadd.f32 %v232, 1e-10
    %v266 = vadd.f32 %v233, 1e-10
    %v267 = vadd.f32 %v234, 1e-10
    %v268 = vadd.f32 %v235, 1e-10
    %v269 = vadd.f32 %v236, 1e-10
    %v270 = vadd.f32 %v237, 1e-10
    %v271 = vadd.f32 %v238, 1e-10
    %v272 = vadd.f32 %v239, 1e-10
    %v273 = vadd.f32 %v240, 1e-10
    %v274 = vadd.f32 %v241, 1e-10
    %v275 = vadd.f32 %v242, 1e-10
    %v276 = vadd.f32 %v243, 1e-10
    %v277 = vadd.f32 %v244, 1e-10
    %v278 = vrcp.pop %v262
    %v279 = vmul.f32 1.0, %v278
    %v280 = vrcp.pop %v263
    %v281 = vmul.f32 1.0, %v280
    %v282 = vrcp.pop %v264
    %v283 = vmul.f32 1.0, %v282
    %v284 = vrcp.pop %v265
    %v285 = vmul.f32 1.0, %v284
    %v286 = vrcp.pop %v266
    %v287 = vmul.f32 1.0, %v286
    %v288 = vrcp.pop %v267
    %v289 = vmul.f32 1.0, %v288
    %v290 = vrcp.pop %v268
    %v291 = vmul.f32 1.0, %v290
    %v292 = vrcp.pop %v269
    %v293 = vmul.f32 1.0, %v292
    %v294 = vrcp.pop %v270
    %v295 = vmul.f32 1.0, %v294
    %v296 = vrcp.pop %v271
    %v297 = vmul.f32 1.0, %v296
    %v298 = vrcp.pop %v272
    %v299 = vmul.f32 1.0, %v298
    %v300 = vrcp.pop %v273
    %v301 = vmul.f32 1.0, %v300
    %v302 = vrcp.pop %v274
    %v303 = vmul.f32 1.0, %v302
    %v304 = vrcp.pop %v275
    %v305 = vmul.f32 1.0, %v304
    %v306 = vrcp.pop %v276
    %v307 = vmul.f32 1.0, %v306
    %v308 = vrcp.pop %v277
    %v309 = vmul.f32 1.0, %v308
    %v310 = vstv %s261
    %v311 = vmul.f32 %v310, %v279
    %v312 = vmul.f32 %v310, %v281
    %v313 = vmul.f32 %v310, %v283
    %v314 = vmul.f32 %v310, %v285
    %v315 = vmul.f32 %v310, %v287
    %v316 = vmul.f32 %v310, %v289
    %v317 = vmul.f32 %v310, %v291
    %v318 = vmul.f32 %v310, %v293
    %v319 = vmul.f32 %v310, %v295
    %v320 = vmul.f32 %v310, %v297
    %v321 = vmul.f32 %v310, %v299
    %v322 = vmul.f32 %v310, %v301
    %v323 = vmul.f32 %v310, %v303
    %v324 = vmul.f32 %v310, %v305
    %v325 = vmul.f32 %v310, %v307
    %v326 = vmul.f32 %v310, %v309
    %v327 = vadd.f32 %v212, %v311
    %v328 = vadd.f32 %v213, %v312
    %v329 = vadd.f32 %v214, %v313
    %v330 = vadd.f32 %v215, %v314
    %v331 = vadd.f32 %v216, %v315
    %v332 = vadd.f32 %v217, %v316
    %v333 = vadd.f32 %v218, %v317
    %v334 = vadd.f32 %v219, %v318
    %v335 = vadd.f32 %v220, %v319
    %v336 = vadd.f32 %v221, %v320
    %v337 = vadd.f32 %v222, %v321
    %v338 = vadd.f32 %v223, %v322
    %v339 = vadd.f32 %v224, %v323
    %v340 = vadd.f32 %v225, %v324
    %v341 = vadd.f32 %v226, %v325
    %v342 = vadd.f32 %v227, %v326
    %s343 = scalar_lea.vmem %s0, 384
    %v344 = vld [vmem:[%s343] sm:$0xff]
    %v345 = vld [vmem:[%s343 + $0x8] sm:$0xff]
    %v346 = vld [vmem:[%s343 + $0x10] sm:$0xff]
    %v347 = vld [vmem:[%s343 + $0x18] sm:$0xff]
    %v348 = vld [vmem:[%s343 + $0x20] sm:$0xff]
    %v349 = vld [vmem:[%s343 + $0x28] sm:$0xff]
    %v350 = vld [vmem:[%s343 + $0x30] sm:$0xff]
    %v351 = vld [vmem:[%s343 + $0x38] sm:$0xff]
    %v352 = vld [vmem:[%s343 + $0x40] sm:$0xff]
    %v353 = vld [vmem:[%s343 + $0x48] sm:$0xff]
    %v354 = vld [vmem:[%s343 + $0x50] sm:$0xff]
    %v355 = vld [vmem:[%s343 + $0x58] sm:$0xff]
    %v356 = vld [vmem:[%s343 + $0x60] sm:$0xff]
    %v357 = vld [vmem:[%s343 + $0x68] sm:$0xff]
    %v358 = vld [vmem:[%s343 + $0x70] sm:$0xff]
    %v359 = vld [vmem:[%s343 + $0x78] sm:$0xff]
    %v360 = vadd.f32 %v245, %v344
    %v361 = vadd.f32 %v246, %v345
    %v362 = vadd.f32 %v247, %v346
    %v363 = vadd.f32 %v248, %v347
    %v364 = vadd.f32 %v249, %v348
    %v365 = vadd.f32 %v250, %v349
    %v366 = vadd.f32 %v251, %v350
    %v367 = vadd.f32 %v252, %v351
    %v368 = vadd.f32 %v253, %v352
    %v369 = vadd.f32 %v254, %v353
    %v370 = vadd.f32 %v255, %v354
    %v371 = vadd.f32 %v256, %v355
    %v372 = vadd.f32 %v257, %v356
    %v373 = vadd.f32 %v258, %v357
    %v374 = vadd.f32 %v259, %v358
    %v375 = vadd.f32 %v260, %v359
    %s376 = sld [smem:[#allocation3 + $0x3]]
    %v377 = vadd.f32 %v344, 1e-10
    %v378 = vadd.f32 %v345, 1e-10
    %v379 = vadd.f32 %v346, 1e-10
    %v380 = vadd.f32 %v347, 1e-10
    %v381 = vadd.f32 %v348, 1e-10
    %v382 = vadd.f32 %v349, 1e-10
    %v383 = vadd.f32 %v350, 1e-10
    %v384 = vadd.f32 %v351, 1e-10
    %v385 = vadd.f32 %v352, 1e-10
    %v386 = vadd.f32 %v353, 1e-10
    %v387 = vadd.f32 %v354, 1e-10
    %v388 = vadd.f32 %v355, 1e-10
    %v389 = vadd.f32 %v356, 1e-10
    %v390 = vadd.f32 %v357, 1e-10
    %v391 = vadd.f32 %v358, 1e-10
    %v392 = vadd.f32 %v359, 1e-10
    %v393 = vrcp.pop %v377
    %v394 = vmul.f32 1.0, %v393
    %v395 = vrcp.pop %v378
    %v396 = vmul.f32 1.0, %v395
    %v397 = vrcp.pop %v379
    %v398 = vmul.f32 1.0, %v397
    %v399 = vrcp.pop %v380
    %v400 = vmul.f32 1.0, %v399
    %v401 = vrcp.pop %v381
    %v402 = vmul.f32 1.0, %v401
    %v403 = vrcp.pop %v382
    %v404 = vmul.f32 1.0, %v403
    %v405 = vrcp.pop %v383
    %v406 = vmul.f32 1.0, %v405
    %v407 = vrcp.pop %v384
    %v408 = vmul.f32 1.0, %v407
    %v409 = vrcp.pop %v385
    %v410 = vmul.f32 1.0, %v409
    %v411 = vrcp.pop %v386
    %v412 = vmul.f32 1.0, %v411
    %v413 = vrcp.pop %v387
    %v414 = vmul.f32 1.0, %v413
    %v415 = vrcp.pop %v388
    %v416 = vmul.f32 1.0, %v415
    %v417 = vrcp.pop %v389
    %v418 = vmul.f32 1.0, %v417
    %v419 = vrcp.pop %v390
    %v420 = vmul.f32 1.0, %v419
    %v421 = vrcp.pop %v391
    %v422 = vmul.f32 1.0, %v421
    %v423 = vrcp.pop %v392
    %v424 = vmul.f32 1.0, %v423
    %v425 = vstv %s376
    %v426 = vmul.f32 %v425, %v394
    %v427 = vmul.f32 %v425, %v396
    %v428 = vmul.f32 %v425, %v398
    %v429 = vmul.f32 %v425, %v400
    %v430 = vmul.f32 %v425, %v402
    %v431 = vmul.f32 %v425, %v404
    %v432 = vmul.f32 %v425, %v406
    %v433 = vmul.f32 %v425, %v408
    %v434 = vmul.f32 %v425, %v410
    %v435 = vmul.f32 %v425, %v412
    %v436 = vmul.f32 %v425, %v414
    %v437 = vmul.f32 %v425, %v416
    %v438 = vmul.f32 %v425, %v418
    %v439 = vmul.f32 %v425, %v420
    %v440 = vmul.f32 %v425, %v422
    %v441 = vmul.f32 %v425, %v424
    %v442 = vadd.f32 %v327, %v426
    %v443 = vadd.f32 %v328, %v427
    %v444 = vadd.f32 %v329, %v428
    %v445 = vadd.f32 %v330, %v429
    %v446 = vadd.f32 %v331, %v430
    %v447 = vadd.f32 %v332, %v431
    %v448 = vadd.f32 %v333, %v432
    %v449 = vadd.f32 %v334, %v433
    %v450 = vadd.f32 %v335, %v434
    %v451 = vadd.f32 %v336, %v435
    %v452 = vadd.f32 %v337, %v436
    %v453 = vadd.f32 %v338, %v437
    %v454 = vadd.f32 %v339, %v438
    %v455 = vadd.f32 %v340, %v439
    %v456 = vadd.f32 %v341, %v440
    %v457 = vadd.f32 %v342, %v441
    %v458 = vrcp.pop %v360
    %v459 = vrcp.pop %v361
    %v460 = vrcp.pop %v362
    %v461 = vrcp.pop %v363
    %v462 = vrcp.pop %v364
    %v463 = vrcp.pop %v365
    %v464 = vrcp.pop %v366
    %v465 = vrcp.pop %v367
    %v466 = vrcp.pop %v368
    %v467 = vrcp.pop %v369
    %v468 = vrcp.pop %v370
    %v469 = vrcp.pop %v371
    %v470 = vrcp.pop %v372
    %v471 = vrcp.pop %v373
    %v472 = vrcp.pop %v374
    %v473 = vrcp.pop %v375
    %v474 = vmul.f32 %v442, %v458
    %v475 = vmul.f32 %v443, %v459
    %v476 = vmul.f32 %v444, %v460
    %v477 = vmul.f32 %v445, %v461
    %v478 = vmul.f32 %v446, %v462
    %v479 = vmul.f32 %v447, %v463
    %v480 = vmul.f32 %v448, %v464
    %v481 = vmul.f32 %v449, %v465
    %v482 = vmul.f32 %v450, %v466
    %v483 = vmul.f32 %v451, %v467
    %v484 = vmul.f32 %v452, %v468
    %v485 = vmul.f32 %v453, %v469
    %v486 = vmul.f32 %v454, %v470
    %v487 = vmul.f32 %v455, %v471
    %v488 = vmul.f32 %v456, %v472
    %v489 = vmul.f32 %v457, %v473
    %s490 = sld [smem:[#allocation2]]
    %v491 = vstv %s490
    %v492 = vadd.f32 %v474, %v491
    %v493 = vadd.f32 %v475, %v491
    %v494 = vadd.f32 %v476, %v491
    %v495 = vadd.f32 %v477, %v491
    %v496 = vadd.f32 %v478, %v491
    %v497 = vadd.f32 %v479, %v491
    %v498 = vadd.f32 %v480, %v491
    %v499 = vadd.f32 %v481, %v491
    %v500 = vadd.f32 %v482, %v491
    %v501 = vadd.f32 %v483, %v491
    %v502 = vadd.f32 %v484, %v491
    %v503 = vadd.f32 %v485, %v491
    %v504 = vadd.f32 %v486, %v491
    %v505 = vadd.f32 %v487, %v491
    %v506 = vadd.f32 %v488, %v491
    %v507 = vadd.f32 %v489, %v491
    %v508 = vld [vmem:[%s1] sm:$0x3]
    %v509 = vld [vmem:[%s1 + $0x2] sm:$0x3]
    %v510 = vld [vmem:[%s1 + $0x4] sm:$0x3]
    %v511 = vld [vmem:[%s1 + $0x6] sm:$0x3]
    %v512 = vld [vmem:[%s1 + $0x8] sm:$0x3]
    %v513 = vld [vmem:[%s1 + $0xa] sm:$0x3]
    %v514 = vld [vmem:[%s1 + $0xc] sm:$0x3]
    %v515 = vld [vmem:[%s1 + $0xe] sm:$0x3]
    %v516 = vld [vmem:[%s1 + $0x10] sm:$0x3]
    %v517 = vld [vmem:[%s1 + $0x12] sm:$0x3]
    %v518 = vld [vmem:[%s1 + $0x14] sm:$0x3]
    %v519 = vld [vmem:[%s1 + $0x16] sm:$0x3]
    %v520 = vld [vmem:[%s1 + $0x18] sm:$0x3]
    %v521 = vld [vmem:[%s1 + $0x1a] sm:$0x3]
    %v522 = vld [vmem:[%s1 + $0x1c] sm:$0x3]
    %v523 = vld [vmem:[%s1 + $0x1e] sm:$0x3]
    %v524 = vunpack.c.0.s8 %v508
    %v525 = vunpack.c.0.s8 %v509
    %v526 = vunpack.c.0.s8 %v510
    %v527 = vunpack.c.0.s8 %v511
    %v528 = vunpack.c.0.s8 %v512
    %v529 = vunpack.c.0.s8 %v513
    %v530 = vunpack.c.0.s8 %v514
    %v531 = vunpack.c.0.s8 %v515
    %v532 = vunpack.c.0.s8 %v516
    %v533 = vunpack.c.0.s8 %v517
    %v534 = vunpack.c.0.s8 %v518
    %v535 = vunpack.c.0.s8 %v519
    %v536 = vunpack.c.0.s8 %v520
    %v537 = vunpack.c.0.s8 %v521
    %v538 = vunpack.c.0.s8 %v522
    %v539 = vunpack.c.0.s8 %v523
    %v540 = vcvt.s32.f32 %v524
    %v541 = vcvt.s32.f32 %v525
    %v542 = vcvt.s32.f32 %v526
    %v543 = vcvt.s32.f32 %v527
    %v544 = vcvt.s32.f32 %v528
    %v545 = vcvt.s32.f32 %v529
    %v546 = vcvt.s32.f32 %v530
    %v547 = vcvt.s32.f32 %v531
    %v548 = vcvt.s32.f32 %v532
    %v549 = vcvt.s32.f32 %v533
    %v550 = vcvt.s32.f32 %v534
    %v551 = vcvt.s32.f32 %v535
    %v552 = vcvt.s32.f32 %v536
    %v553 = vcvt.s32.f32 %v537
    %v554 = vcvt.s32.f32 %v538
    %v555 = vcvt.s32.f32 %v539
    %v556 = vadd.f32 %v540, %v492
    %v557 = vadd.f32 %v541, %v493
    %v558 = vadd.f32 %v542, %v494
    %v559 = vadd.f32 %v543, %v495
    %v560 = vadd.f32 %v544, %v496
    %v561 = vadd.f32 %v545, %v497
    %v562 = vadd.f32 %v546, %v498
    %v563 = vadd.f32 %v547, %v499
    %v564 = vadd.f32 %v548, %v500
    %v565 = vadd.f32 %v549, %v501
    %v566 = vadd.f32 %v550, %v502
    %v567 = vadd.f32 %v551, %v503
    %v568 = vadd.f32 %v552, %v504
    %v569 = vadd.f32 %v553, %v505
    %v570 = vadd.f32 %v554, %v506
    %v571 = vadd.f32 %v555, %v507
    %v572 = vlaneseq
    %v573 = vand.u32 %v572, 127
    %s574 = smul.u32 0, 128
    %v575 = vstv %s574
    %v576 = vadd.s32 %v573, %v575
    %vm577 = vcmp.lt.s32.totalorder %v576, 16
    %v578 = vsel %vm577, %v556, -1e+30
    %v579 = vsel %vm577, %v557, -1e+30
    %v580 = vsel %vm577, %v558, -1e+30
    %v581 = vsel %vm577, %v559, -1e+30
    %v582 = vsel %vm577, %v560, -1e+30
    %v583 = vsel %vm577, %v561, -1e+30
    %v584 = vsel %vm577, %v562, -1e+30
    %v585 = vsel %vm577, %v563, -1e+30
    %v586 = vsel %vm577, %v564, -1e+30
    %v587 = vsel %vm577, %v565, -1e+30
    %v588 = vsel %vm577, %v566, -1e+30
    %v589 = vsel %vm577, %v567, -1e+30
    %v590 = vsel %vm577, %v568, -1e+30
    %v591 = vsel %vm577, %v569, -1e+30
    %v592 = vsel %vm577, %v570, -1e+30
    %v593 = vsel %vm577, %v571, -1e+30
    %v594 = vpack.c.bf16 %v579, %v578
    %v595 = vpack.c.bf16 %v581, %v580
    %v596 = vpack.c.bf16 %v583, %v582
    %v597 = vpack.c.bf16 %v585, %v584
    %v598 = vpack.c.bf16 %v587, %v586
    %v599 = vpack.c.bf16 %v589, %v588
    %v600 = vpack.c.bf16 %v591, %v590
    %v601 = vpack.c.bf16 %v593, %v592
    %v610 = vunpack.c.l.b16 %v594
    %v611 = vunpack.c.h.b16 %v594
    %v612 = vunpack.c.l.b16 %v595
    %v613 = vunpack.c.h.b16 %v595
    %v614 = vunpack.c.l.b16 %v596
    %v615 = vunpack.c.h.b16 %v596
    %v616 = vunpack.c.l.b16 %v597
    %v617 = vunpack.c.h.b16 %v597
    %v618 = vunpack.c.l.b16 %v598
    %v619 = vunpack.c.h.b16 %v598
    %v620 = vunpack.c.l.b16 %v599
    %v621 = vunpack.c.h.b16 %v599
    %v622 = vunpack.c.l.b16 %v600
    %v623 = vunpack.c.h.b16 %v600
    %v624 = vunpack.c.l.b16 %v601
    %v625 = vunpack.c.h.b16 %v601
    %v626 = vpack.c.b16 %v610, %v610
    %v627 = vpack.c.b16 %v611, %v611
    %v628 = vpack.c.b16 %v612, %v612
    %v629 = vpack.c.b16 %v613, %v613
    %v630 = vpack.c.b16 %v614, %v614
    %v631 = vpack.c.b16 %v615, %v615
    %v632 = vpack.c.b16 %v616, %v616
    %v633 = vpack.c.b16 %v617, %v617
    %v634 = vpack.c.b16 %v618, %v618
    %v635 = vpack.c.b16 %v619, %v619
    %v636 = vpack.c.b16 %v620, %v620
    %v637 = vpack.c.b16 %v621, %v621
    %v638 = vpack.c.b16 %v622, %v622
    %v639 = vpack.c.b16 %v623, %v623
    %v640 = vpack.c.b16 %v624, %v624
    %v641 = vpack.c.b16 %v625, %v625
    %658 = vst [vmem:[%s4] sm:$0xf] %v626
    %659 = vst [vmem:[%s4 + $0x4] sm:$0xf] %v627
    %660 = vst [vmem:[%s4 + $0x8] sm:$0xf] %v628
    %661 = vst [vmem:[%s4 + $0xc] sm:$0xf] %v629
    %662 = vst [vmem:[%s4 + $0x10] sm:$0xf] %v630
    %663 = vst [vmem:[%s4 + $0x14] sm:$0xf] %v631
    %664 = vst [vmem:[%s4 + $0x18] sm:$0xf] %v632
    %665 = vst [vmem:[%s4 + $0x1c] sm:$0xf] %v633
    %666 = vst [vmem:[%s4 + $0x20] sm:$0xf] %v634
    %667 = vst [vmem:[%s4 + $0x24] sm:$0xf] %v635
    %668 = vst [vmem:[%s4 + $0x28] sm:$0xf] %v636
    %669 = vst [vmem:[%s4 + $0x2c] sm:$0xf] %v637
    %670 = vst [vmem:[%s4 + $0x30] sm:$0xf] %v638
    %671 = vst [vmem:[%s4 + $0x34] sm:$0xf] %v639
    %672 = vst [vmem:[%s4 + $0x38] sm:$0xf] %v640
    %673 = vst [vmem:[%s4 + $0x3c] sm:$0xf] %v641
    // Predicated region
    $region22: #{_lambda_.10} parent=1 // pred_check
      _
    $region23: #{_lambda_.10} parent=1 // pred_check_branch
      %675 = sbr.rel (0) target = $region25
    $region24: #{_lambda_.10} parent=1 // pred_region
      _
    $region25: #{_lambda_.10} parent=1 // pred_fallthru
      _
    // Predicated region
    $region26: #{_lambda_.10} parent=1 // pred_check
      _
    $region27: #{_lambda_.10} parent=1 // pred_check_branch
      %677 = sbr.rel (0) target = $region29
    $region28: #{_lambda_.10} parent=1 // pred_region
      _
    $region29: #{_lambda_.10} parent=1 // pred_fallthru
      _
    %678 = vsyncpa [#allocation4], 1

// kernel: _lambda_.9
$region0: #{_lambda_.9}
  #allocation0 [shape = 'u32[]', space=smem, size = 0x4, offset = 0x4, fixed_abs, tag = 'smem constant byte address 0x4 - core index']
  #allocation1 [shape = 'u32[144,128]{1,0:T(1,128)}', space=vmem, size = 0x12000, scoped, tag = 'internal scratch']
  %s0 = inlined_call_operand.vmem [shape: f32[128,8], index: 0, kind: input, shape index: {}]
  %s1 = inlined_call_operand.vmem [shape: bf16[8,256], index: 1, kind: input, shape index: {}]
  %s2 = inlined_call_operand.vmem [shape: f32[1,256], index: 2, kind: input, shape index: {}]
  %s3 = inlined_call_operand.vmem [shape: f32[128,256], index: 3, kind: input, shape index: {}]
  %s4 = inlined_call_operand.vmem [shape: f32[128,256], index: 4, kind: output, shape index: {}]
  %s5 = sld [smem:[#allocation0]]
  $region26: #{_lambda_.9} parent=0
    _
  %s7 = ssub.s32 1, %s5
  %s8 = scalar_select 0, %s7, %s5
  // Predicated region
  $region2: #{_lambda_.9} parent=0 // pred_check
    _
  $region3: #{_lambda_.9} parent=0 // pred_check_branch
    %10 = sbr.rel (0) target = $region5
  $region4: #{_lambda_.9} parent=0 // pred_region
    _
  $region5: #{_lambda_.9} parent=0 // pred_fallthru
    _
  // Predicated region
  $region6: #{_lambda_.9} parent=0 // pred_check
    _
  $region7: #{_lambda_.9} parent=0 // pred_check_branch
    %12 = sbr.rel (0) target = $region9
  $region8: #{_lambda_.9} parent=0 // pred_region
    _
  $region9: #{_lambda_.9} parent=0 // pred_fallthru
    _
  // Predicated region
  $region10: #{_lambda_.9} parent=0 // pred_check
    _
  $region11: #{_lambda_.9} parent=0 // pred_check_branch
    %14 = sbr.rel (0) target = $region13
  $region12: #{_lambda_.9} parent=0 // pred_region
    _
  $region13: #{_lambda_.9} parent=0 // pred_fallthru
    _
  // Predicated region
  $region14: #{_lambda_.9} parent=0 // pred_check
    _
  $region15: #{_lambda_.9} parent=0 // pred_check_branch
    %16 = sbr.rel (0) target = $region17
  $region16: #{_lambda_.9} parent=0 // pred_region
    _
  $region17: #{_lambda_.9} parent=0 // pred_fallthru
    _
  %v18 = vld [vmem:[%s0] sm:$0xff]
  %v19 = vld [vmem:[%s0 + $0x8] sm:$0xff]
  %v20 = vld [vmem:[%s0 + $0x10] sm:$0xff]
  %v21 = vld [vmem:[%s0 + $0x18] sm:$0xff]
  %v22 = vld [vmem:[%s0 + $0x20] sm:$0xff]
  %v23 = vld [vmem:[%s0 + $0x28] sm:$0xff]
  %v24 = vld [vmem:[%s0 + $0x30] sm:$0xff]
  %v25 = vld [vmem:[%s0 + $0x38] sm:$0xff]
  %v26 = vld [vmem:[%s0 + $0x40] sm:$0xff]
  %v27 = vld [vmem:[%s0 + $0x48] sm:$0xff]
  %v28 = vld [vmem:[%s0 + $0x50] sm:$0xff]
  %v29 = vld [vmem:[%s0 + $0x58] sm:$0xff]
  %v30 = vld [vmem:[%s0 + $0x60] sm:$0xff]
  %v31 = vld [vmem:[%s0 + $0x68] sm:$0xff]
  %v32 = vld [vmem:[%s0 + $0x70] sm:$0xff]
  %v33 = vld [vmem:[%s0 + $0x78] sm:$0xff]
  %v34 = vpack.c.bf16 %v19, %v18
  %v35 = vpack.c.bf16 %v21, %v20
  %v36 = vpack.c.bf16 %v23, %v22
  %v37 = vpack.c.bf16 %v25, %v24
  %v38 = vpack.c.bf16 %v27, %v26
  %v39 = vpack.c.bf16 %v29, %v28
  %v40 = vpack.c.bf16 %v31, %v30
  %v41 = vpack.c.bf16 %v33, %v32
  %v42 = vld [vmem:[%s1] sm:$0xff]
  %v43 = vld [vmem:[%s2] sm:$0x3]
  %v45 = vlaneseq
  %v46 = vshrl.u32 %v45, 7
  %v47 = vsub.s32 0, %v46
  %v48 = vrot.slane %v43, %v47
  %v49 = vlaneseq
  %v50 = vshrl.u32 %v49, 7
  %v51 = vsub.s32 1, %v50
  %v52 = vrot.slane %v43, %v51
  %v56 = vunpack.c.l.b16 %v42
  %v57 = vunpack.c.h.b16 %v42
  %v58 = vpack.c.b16 %v56, %v56
  %v59 = vpack.c.b16 %v57, %v57
  %vm60 = vcmask 64512
  %v62 = vsel %vm60, %v34, 0
  %v65 = vsel %vm60, %v35, 0
  %v68 = vsel %vm60, %v36, 0
  %v71 = vsel %vm60, %v37, 0
  %v74 = vsel %vm60, %v38, 0
  %v77 = vsel %vm60, %v39, 0
  %v80 = vsel %vm60, %v40, 0
  %v83 = vsel %vm60, %v41, 0
  %vm85 = vcmask 1043456
  %v87 = vsel %vm85, %v58, 0
  %v90 = vsel %vm85, %v59, 0
  %92 = vmatprep.subr.bf16.mxu0 0
  %93 = vmatpush1.bf16.msra.mxu0 0
  %94 = vmatprep.subr.bf16.mxu0 0
  %95 = vmatpush1.bf16.msra.mxu0 0
  %96 = vmatprep.subr.bf16.mxu0 0
  %97 = vmatpush1.bf16.msra.mxu0 0
  %98 = vmatprep.subr.bf16.mxu0 0
  %99 = vmatpush1.bf16.msra.mxu0 0
  %100 = vmatprep.subr.bf16.mxu0 0
  %101 = vmatpush1.bf16.msra.mxu0 0
  %102 = vmatprep.subr.bf16.mxu0 0
  %103 = vmatpush1.bf16.msra.mxu0 0
  %104 = vmatprep.subr.bf16.mxu0 0
  %105 = vmatpush1.bf16.msra.mxu0 0
  %106 = vmatprep.subr.bf16.mxu0 %v90
  %107 = vmatpush1.bf16.msra.mxu0 %v87
  %108 = vmatprep.subr.bf16.mxu0 0
  %109 = vmatpush2.bf16.msra.mxu0 0
  %110 = vmatprep.subr.bf16.mxu0 0
  %111 = vmatpush2.bf16.msra.mxu0 0
  %112 = vmatprep.subr.bf16.mxu0 0
  %113 = vmatpush2.bf16.msra.mxu0 0
  %114 = vmatprep.subr.bf16.mxu0 0
  %115 = vmatpush2.bf16.msra.mxu0 0
  %116 = vmatprep.subr.bf16.mxu0 0
  %117 = vmatpush2.bf16.msra.mxu0 0
  %118 = vmatprep.subr.bf16.mxu0 0
  %119 = vmatpush2.bf16.msra.mxu0 0
  %120 = vmatprep.subr.bf16.mxu0 0
  %121 = vmatpush2.bf16.msra.mxu0 0
  %122 = vmatprep.subr.bf16.mxu0 0
  %123 = vmatpush2.bf16.msra.mxu0 0
  %124 = vmatprep.mubr.bf16.mxu0 0
  %125 = vmatmul.mubr.bf16.gmra.mxu0 %v62
  %v126 = vpop.f32.mrf.mxu0
  %v127 = vadd.f32 %v48, %v126
  %v128 = vpop.f32.mrf.mxu0
  %v129 = vadd.f32 %v52, %v128
  %v130 = vpop.f32.mrf.mxu0
  %v131 = vadd.f32 %v48, %v130
  %v132 = vpop.f32.mrf.mxu0
  %v133 = vadd.f32 %v52, %v132
  %134 = vmatprep.mubr.bf16.mxu0 0
  %135 = vmatmul.mubr.bf16.gmra.mxu0 %v65
  %v136 = vpop.f32.mrf.mxu0
  %v137 = vadd.f32 %v48, %v136
  %v138 = vpop.f32.mrf.mxu0
  %v139 = vadd.f32 %v52, %v138
  %v140 = vpop.f32.mrf.mxu0
  %v141 = vadd.f32 %v48, %v140
  %v142 = vpop.f32.mrf.mxu0
  %v143 = vadd.f32 %v52, %v142
  %144 = vmatprep.mubr.bf16.mxu0 0
  %145 = vmatmul.mubr.bf16.gmra.mxu0 %v68
  %v146 = vpop.f32.mrf.mxu0
  %v147 = vadd.f32 %v48, %v146
  %v148 = vpop.f32.mrf.mxu0
  %v149 = vadd.f32 %v52, %v148
  %v150 = vpop.f32.mrf.mxu0
  %v151 = vadd.f32 %v48, %v150
  %v152 = vpop.f32.mrf.mxu0
  %v153 = vadd.f32 %v52, %v152
  %154 = vmatprep.mubr.bf16.mxu0 0
  %155 = vmatmul.mubr.bf16.gmra.mxu0 %v71
  %v156 = vpop.f32.mrf.mxu0
  %v157 = vadd.f32 %v48, %v156
  %v158 = vpop.f32.mrf.mxu0
  %v159 = vadd.f32 %v52, %v158
  %v160 = vpop.f32.mrf.mxu0
  %v161 = vadd.f32 %v48, %v160
  %v162 = vpop.f32.mrf.mxu0
  %v163 = vadd.f32 %v52, %v162
  %164 = vmatprep.mubr.bf16.mxu0 0
  %165 = vmatmul.mubr.bf16.gmra.mxu0 %v74
  %v166 = vpop.f32.mrf.mxu0
  %v167 = vadd.f32 %v48, %v166
  %v168 = vpop.f32.mrf.mxu0
  %v169 = vadd.f32 %v52, %v168
  %v170 = vpop.f32.mrf.mxu0
  %v171 = vadd.f32 %v48, %v170
  %v172 = vpop.f32.mrf.mxu0
  %v173 = vadd.f32 %v52, %v172
  %174 = vmatprep.mubr.bf16.mxu0 0
  %175 = vmatmul.mubr.bf16.gmra.mxu0 %v77
  %v176 = vpop.f32.mrf.mxu0
  %v177 = vadd.f32 %v48, %v176
  %v178 = vpop.f32.mrf.mxu0
  %v179 = vadd.f32 %v52, %v178
  %v180 = vpop.f32.mrf.mxu0
  %v181 = vadd.f32 %v48, %v180
  %v182 = vpop.f32.mrf.mxu0
  %v183 = vadd.f32 %v52, %v182
  %184 = vmatprep.mubr.bf16.mxu0 0
  %185 = vmatmul.mubr.bf16.gmra.mxu0 %v80
  %v186 = vpop.f32.mrf.mxu0
  %v187 = vadd.f32 %v48, %v186
  %v188 = vpop.f32.mrf.mxu0
  %v189 = vadd.f32 %v52, %v188
  %v190 = vpop.f32.mrf.mxu0
  %v191 = vadd.f32 %v48, %v190
  %v192 = vpop.f32.mrf.mxu0
  %v193 = vadd.f32 %v52, %v192
  %194 = vmatprep.mubr.bf16.mxu0 0
  %195 = vmatmul.mubr.bf16.gmra.mxu0 %v83
  %v196 = vpop.f32.mrf.mxu0
  %v197 = vadd.f32 %v48, %v196
  %v198 = vpop.f32.mrf.mxu0
  %v199 = vadd.f32 %v52, %v198
  %v200 = vpop.f32.mrf.mxu0
  %v201 = vadd.f32 %v48, %v200
  %v202 = vpop.f32.mrf.mxu0
  %v203 = vadd.f32 %v52, %v202
  %204 = vdwg.mxu0
  %v205 = vld [vmem:[%s3] sm:$0xff]
  %v206 = vld [vmem:[%s3 + $0x8] sm:$0xff]
  %v207 = vld [vmem:[%s3 + $0x10] sm:$0xff]
  %v208 = vld [vmem:[%s3 + $0x18] sm:$0xff]
  %v209 = vld [vmem:[%s3 + $0x20] sm:$0xff]
  %v210 = vld [vmem:[%s3 + $0x28] sm:$0xff]
  %v211 = vld [vmem:[%s3 + $0x30] sm:$0xff]
  %v212 = vld [vmem:[%s3 + $0x38] sm:$0xff]
  %v213 = vld [vmem:[%s3 + $0x40] sm:$0xff]
  %v214 = vld [vmem:[%s3 + $0x48] sm:$0xff]
  %v215 = vld [vmem:[%s3 + $0x50] sm:$0xff]
  %v216 = vld [vmem:[%s3 + $0x58] sm:$0xff]
  %v217 = vld [vmem:[%s3 + $0x60] sm:$0xff]
  %v218 = vld [vmem:[%s3 + $0x68] sm:$0xff]
  %v219 = vld [vmem:[%s3 + $0x70] sm:$0xff]
  %v220 = vld [vmem:[%s3 + $0x78] sm:$0xff]
  %v221 = vld [vmem:[%s3 + $0x80] sm:$0xff]
  %v222 = vld [vmem:[%s3 + $0x88] sm:$0xff]
  %v223 = vld [vmem:[%s3 + $0x90] sm:$0xff]
  %v224 = vld [vmem:[%s3 + $0x98] sm:$0xff]
  %v225 = vld [vmem:[%s3 + $0xa0] sm:$0xff]
  %v226 = vld [vmem:[%s3 + $0xa8] sm:$0xff]
  %v227 = vld [vmem:[%s3 + $0xb0] sm:$0xff]
  %v228 = vld [vmem:[%s3 + $0xb8] sm:$0xff]
  %v229 = vld [vmem:[%s3 + $0xc0] sm:$0xff]
  %v230 = vld [vmem:[%s3 + $0xc8] sm:$0xff]
  %v231 = vld [vmem:[%s3 + $0xd0] sm:$0xff]
  %v232 = vld [vmem:[%s3 + $0xd8] sm:$0xff]
  %v233 = vld [vmem:[%s3 + $0xe0] sm:$0xff]
  %v234 = vld [vmem:[%s3 + $0xe8] sm:$0xff]
  %v235 = vld [vmem:[%s3 + $0xf0] sm:$0xff]
  %v236 = vld [vmem:[%s3 + $0xf8] sm:$0xff]
  %v237 = vadd.f32 %v127, %v205
  %v238 = vadd.f32 %v129, %v206
  %v239 = vadd.f32 %v131, %v207
  %v240 = vadd.f32 %v133, %v208
  %v241 = vadd.f32 %v137, %v209
  %v242 = vadd.f32 %v139, %v210
  %v243 = vadd.f32 %v141, %v211
  %v244 = vadd.f32 %v143, %v212
  %v245 = vadd.f32 %v147, %v213
  %v246 = vadd.f32 %v149, %v214
  %v247 = vadd.f32 %v151, %v215
  %v248 = vadd.f32 %v153, %v216
  %v249 = vadd.f32 %v157, %v217
  %v250 = vadd.f32 %v159, %v218
  %v251 = vadd.f32 %v161, %v219
  %v252 = vadd.f32 %v163, %v220
  %v253 = vadd.f32 %v167, %v221
  %v254 = vadd.f32 %v169, %v222
  %v255 = vadd.f32 %v171, %v223
  %v256 = vadd.f32 %v173, %v224
  %v257 = vadd.f32 %v177, %v225
  %v258 = vadd.f32 %v179, %v226
  %v259 = vadd.f32 %v181, %v227
  %v260 = vadd.f32 %v183, %v228
  %v261 = vadd.f32 %v187, %v229
  %v262 = vadd.f32 %v189, %v230
  %v263 = vadd.f32 %v191, %v231
  %v264 = vadd.f32 %v193, %v232
  %v265 = vadd.f32 %v197, %v233
  %v266 = vadd.f32 %v199, %v234
  %v267 = vadd.f32 %v201, %v235
  %v268 = vadd.f32 %v203, %v236
  %269 = vst [vmem:[%s4] sm:$0xff] %v237
  %270 = vst [vmem:[%s4 + $0x8] sm:$0xff] %v238
  %271 = vst [vmem:[%s4 + $0x10] sm:$0xff] %v239
  %272 = vst [vmem:[%s4 + $0x18] sm:$0xff] %v240
  %273 = vst [vmem:[%s4 + $0x20] sm:$0xff] %v241
  %274 = vst [vmem:[%s4 + $0x28] sm:$0xff] %v242
  %275 = vst [vmem:[%s4 + $0x30] sm:$0xff] %v243
  %276 = vst [vmem:[%s4 + $0x38] sm:$0xff] %v244
  %277 = vst [vmem:[%s4 + $0x40] sm:$0xff] %v245
  %278 = vst [vmem:[%s4 + $0x48] sm:$0xff] %v246
  %279 = vst [vmem:[%s4 + $0x50] sm:$0xff] %v247
  %280 = vst [vmem:[%s4 + $0x58] sm:$0xff] %v248
  %281 = vst [vmem:[%s4 + $0x60] sm:$0xff] %v249
  %282 = vst [vmem:[%s4 + $0x68] sm:$0xff] %v250
  %283 = vst [vmem:[%s4 + $0x70] sm:$0xff] %v251
  %284 = vst [vmem:[%s4 + $0x78] sm:$0xff] %v252
  %285 = vst [vmem:[%s4 + $0x80] sm:$0xff] %v253
  %286 = vst [vmem:[%s4 + $0x88] sm:$0xff] %v254
  %287 = vst [vmem:[%s4 + $0x90] sm:$0xff] %v255
  %288 = vst [vmem:[%s4 + $0x98] sm:$0xff] %v256
  %289 = vst [vmem:[%s4 + $0xa0] sm:$0xff] %v257
  %290 = vst [vmem:[%s4 + $0xa8] sm:$0xff] %v258
  %291 = vst [vmem:[%s4 + $0xb0] sm:$0xff] %v259
  %292 = vst [vmem:[%s4 + $0xb8] sm:$0xff] %v260
  %293 = vst [vmem:[%s4 + $0xc0] sm:$0xff] %v261
  %294 = vst [vmem:[%s4 + $0xc8] sm:$0xff] %v262
  %295 = vst [vmem:[%s4 + $0xd0] sm:$0xff] %v263
  %296 = vst [vmem:[%s4 + $0xd8] sm:$0xff] %v264
  %297 = vst [vmem:[%s4 + $0xe0] sm:$0xff] %v265
  %298 = vst [vmem:[%s4 + $0xe8] sm:$0xff] %v266
  %299 = vst [vmem:[%s4 + $0xf0] sm:$0xff] %v267
  %300 = vst [vmem:[%s4 + $0xf8] sm:$0xff] %v268
  // Predicated region
  $region18: #{_lambda_.9} parent=0 // pred_check
    _
  $region19: #{_lambda_.9} parent=0 // pred_check_branch
    %302 = sbr.rel (0) target = $region21
  $region20: #{_lambda_.9} parent=0 // pred_region
    _
  $region21: #{_lambda_.9} parent=0 // pred_fallthru
    _
  // Predicated region
  $region22: #{_lambda_.9} parent=0 // pred_check
    _
  $region23: #{_lambda_.9} parent=0 // pred_check_branch
    %304 = sbr.rel (0) target = $region25
  $region24: #{_lambda_.9} parent=0 // pred_region
    _
  $region25: #{_lambda_.9} parent=0 // pred_fallthru
    _

// kernel: _lambda_.17
$region0: #{_lambda_.17}
  #allocation0 [shape = 'u32[]', space=smem, size = 0x4, offset = 0x4, fixed_abs, tag = 'smem constant byte address 0x4 - core index']
  #allocation1 [shape = 'u32[144,128]{1,0:T(1,128)}', space=vmem, size = 0x12000, scoped, tag = 'internal scratch']
  %s0 = inlined_call_operand.vmem [shape: f32[128,256], index: 0, kind: input, shape index: {}]
  %s1 = inlined_call_operand.vmem [shape: bf16[256,128], index: 1, kind: input, shape index: {}]
  %s2 = inlined_call_operand.vmem [shape: f32[1,128], index: 2, kind: input, shape index: {}]
  %s3 = inlined_call_operand.vmem [shape: f32[128,128], index: 3, kind: output, shape index: {}]
  %s4 = sld [smem:[#allocation0]]
  $region22: #{_lambda_.17} parent=0
    _
  %s6 = ssub.s32 1, %s4
  %s7 = scalar_select 0, %s6, %s4
  // Predicated region
  $region2: #{_lambda_.17} parent=0 // pred_check
    _
  $region3: #{_lambda_.17} parent=0 // pred_check_branch
    %9 = sbr.rel (0) target = $region5
  $region4: #{_lambda_.17} parent=0 // pred_region
    _
  $region5: #{_lambda_.17} parent=0 // pred_fallthru
    _
  // Predicated region
  $region6: #{_lambda_.17} parent=0 // pred_check
    _
  $region7: #{_lambda_.17} parent=0 // pred_check_branch
    %11 = sbr.rel (0) target = $region9
  $region8: #{_lambda_.17} parent=0 // pred_region
    _
  $region9: #{_lambda_.17} parent=0 // pred_fallthru
    _
  // Predicated region
  $region10: #{_lambda_.17} parent=0 // pred_check
    _
  $region11: #{_lambda_.17} parent=0 // pred_check_branch
    %13 = sbr.rel (0) target = $region13
  $region12: #{_lambda_.17} parent=0 // pred_region
    _
  $region13: #{_lambda_.17} parent=0 // pred_fallthru
    _
  %v15 = vld [vmem:[%s0] sm:$0xff]
  %v16 = vld [vmem:[%s0 + $0x8] sm:$0xff]
  %v17 = vld [vmem:[%s0 + $0x10] sm:$0xff]
  %v18 = vld [vmem:[%s0 + $0x18] sm:$0xff]
  %v19 = vld [vmem:[%s0 + $0x20] sm:$0xff]
  %v20 = vld [vmem:[%s0 + $0x28] sm:$0xff]
  %v21 = vld [vmem:[%s0 + $0x30] sm:$0xff]
  %v22 = vld [vmem:[%s0 + $0x38] sm:$0xff]
  %v23 = vld [vmem:[%s0 + $0x40] sm:$0xff]
  %v24 = vld [vmem:[%s0 + $0x48] sm:$0xff]
  %v25 = vld [vmem:[%s0 + $0x50] sm:$0xff]
  %v26 = vld [vmem:[%s0 + $0x58] sm:$0xff]
  %v27 = vld [vmem:[%s0 + $0x60] sm:$0xff]
  %v28 = vld [vmem:[%s0 + $0x68] sm:$0xff]
  %v29 = vld [vmem:[%s0 + $0x70] sm:$0xff]
  %v30 = vld [vmem:[%s0 + $0x78] sm:$0xff]
  %v31 = vld [vmem:[%s0 + $0x80] sm:$0xff]
  %v32 = vld [vmem:[%s0 + $0x88] sm:$0xff]
  %v33 = vld [vmem:[%s0 + $0x90] sm:$0xff]
  %v34 = vld [vmem:[%s0 + $0x98] sm:$0xff]
  %v35 = vld [vmem:[%s0 + $0xa0] sm:$0xff]
  %v36 = vld [vmem:[%s0 + $0xa8] sm:$0xff]
  %v37 = vld [vmem:[%s0 + $0xb0] sm:$0xff]
  %v38 = vld [vmem:[%s0 + $0xb8] sm:$0xff]
  %v39 = vld [vmem:[%s0 + $0xc0] sm:$0xff]
  %v40 = vld [vmem:[%s0 + $0xc8] sm:$0xff]
  %v41 = vld [vmem:[%s0 + $0xd0] sm:$0xff]
  %v42 = vld [vmem:[%s0 + $0xd8] sm:$0xff]
  %v43 = vld [vmem:[%s0 + $0xe0] sm:$0xff]
  %v44 = vld [vmem:[%s0 + $0xe8] sm:$0xff]
  %v45 = vld [vmem:[%s0 + $0xf0] sm:$0xff]
  %v46 = vld [vmem:[%s0 + $0xf8] sm:$0xff]
  %v47 = vpack.c.bf16 %v17, %v15
  %v48 = vpack.c.bf16 %v18, %v16
  %v49 = vpack.c.bf16 %v21, %v19
  %v50 = vpack.c.bf16 %v22, %v20
  %v51 = vpack.c.bf16 %v25, %v23
  %v52 = vpack.c.bf16 %v26, %v24
  %v53 = vpack.c.bf16 %v29, %v27
  %v54 = vpack.c.bf16 %v30, %v28
  %v55 = vpack.c.bf16 %v33, %v31
  %v56 = vpack.c.bf16 %v34, %v32
  %v57 = vpack.c.bf16 %v37, %v35
  %v58 = vpack.c.bf16 %v38, %v36
  %v59 = vpack.c.bf16 %v41, %v39
  %v60 = vpack.c.bf16 %v42, %v40
  %v61 = vpack.c.bf16 %v45, %v43
  %v62 = vpack.c.bf16 %v46, %v44
  %v63 = vld [vmem:[%s1] sm:$0xf]
  %v64 = vld [vmem:[%s1 + $0x4] sm:$0xf]
  %v65 = vld [vmem:[%s1 + $0x8] sm:$0xf]
  %v66 = vld [vmem:[%s1 + $0xc] sm:$0xf]
  %v67 = vld [vmem:[%s1 + $0x10] sm:$0xf]
  %v68 = vld [vmem:[%s1 + $0x14] sm:$0xf]
  %v69 = vld [vmem:[%s1 + $0x18] sm:$0xf]
  %v70 = vld [vmem:[%s1 + $0x1c] sm:$0xf]
  %v71 = vld [vmem:[%s1 + $0x20] sm:$0xf]
  %v72 = vld [vmem:[%s1 + $0x24] sm:$0xf]
  %v73 = vld [vmem:[%s1 + $0x28] sm:$0xf]
  %v74 = vld [vmem:[%s1 + $0x2c] sm:$0xf]
  %v75 = vld [vmem:[%s1 + $0x30] sm:$0xf]
  %v76 = vld [vmem:[%s1 + $0x34] sm:$0xf]
  %v77 = vld [vmem:[%s1 + $0x38] sm:$0xf]
  %v78 = vld [vmem:[%s1 + $0x3c] sm:$0xf]
  %v79 = vld [vmem:[%s1 + $0x40] sm:$0xf]
  %v80 = vld [vmem:[%s1 + $0x44] sm:$0xf]
  %v81 = vld [vmem:[%s1 + $0x48] sm:$0xf]
  %v82 = vld [vmem:[%s1 + $0x4c] sm:$0xf]
  %v83 = vld [vmem:[%s1 + $0x50] sm:$0xf]
  %v84 = vld [vmem:[%s1 + $0x54] sm:$0xf]
  %v85 = vld [vmem:[%s1 + $0x58] sm:$0xf]
  %v86 = vld [vmem:[%s1 + $0x5c] sm:$0xf]
  %v87 = vld [vmem:[%s1 + $0x60] sm:$0xf]
  %v88 = vld [vmem:[%s1 + $0x64] sm:$0xf]
  %v89 = vld [vmem:[%s1 + $0x68] sm:$0xf]
  %v90 = vld [vmem:[%s1 + $0x6c] sm:$0xf]
  %v91 = vld [vmem:[%s1 + $0x70] sm:$0xf]
  %v92 = vld [vmem:[%s1 + $0x74] sm:$0xf]
  %v93 = vld [vmem:[%s1 + $0x78] sm:$0xf]
  %v94 = vld [vmem:[%s1 + $0x7c] sm:$0xf]
  %v95 = vld [vmem:[%s2] sm:$0x1]
  %v97 = vlaneseq
  %v98 = vshrl.u32 %v97, 7
  %v99 = vsub.s32 0, %v98
  %v100 = vrot.slane %v95, %v99
  %v134 = vunpack.c.l.b16 %v63
  %v135 = vunpack.c.l.b16 %v64
  %v136 = vunpack.c.l.b16 %v65
  %v137 = vunpack.c.l.b16 %v66
  %v138 = vunpack.c.l.b16 %v67
  %v139 = vunpack.c.l.b16 %v68
  %v140 = vunpack.c.l.b16 %v69
  %v141 = vunpack.c.l.b16 %v70
  %v142 = vunpack.c.l.b16 %v71
  %v143 = vunpack.c.l.b16 %v72
  %v144 = vunpack.c.l.b16 %v73
  %v145 = vunpack.c.l.b16 %v74
  %v146 = vunpack.c.l.b16 %v75
  %v147 = vunpack.c.l.b16 %v76
  %v148 = vunpack.c.l.b16 %v77
  %v149 = vunpack.c.l.b16 %v78
  %v150 = vunpack.c.l.b16 %v79
  %v151 = vunpack.c.l.b16 %v80
  %v152 = vunpack.c.l.b16 %v81
  %v153 = vunpack.c.l.b16 %v82
  %v154 = vunpack.c.l.b16 %v83
  %v155 = vunpack.c.l.b16 %v84
  %v156 = vunpack.c.l.b16 %v85
  %v157 = vunpack.c.l.b16 %v86
  %v158 = vunpack.c.l.b16 %v87
  %v159 = vunpack.c.l.b16 %v88
  %v160 = vunpack.c.l.b16 %v89
  %v161 = vunpack.c.l.b16 %v90
  %v162 = vunpack.c.l.b16 %v91
  %v163 = vunpack.c.l.b16 %v92
  %v164 = vunpack.c.l.b16 %v93
  %v165 = vunpack.c.l.b16 %v94
  %v166 = vpack.c.b16 %v135, %v134
  %v167 = vpack.c.b16 %v137, %v136
  %v168 = vpack.c.b16 %v139, %v138
  %v169 = vpack.c.b16 %v141, %v140
  %v170 = vpack.c.b16 %v143, %v142
  %v171 = vpack.c.b16 %v145, %v144
  %v172 = vpack.c.b16 %v147, %v146
  %v173 = vpack.c.b16 %v149, %v148
  %v174 = vpack.c.b16 %v151, %v150
  %v175 = vpack.c.b16 %v153, %v152
  %v176 = vpack.c.b16 %v155, %v154
  %v177 = vpack.c.b16 %v157, %v156
  %v178 = vpack.c.b16 %v159, %v158
  %v179 = vpack.c.b16 %v161, %v160
  %v180 = vpack.c.b16 %v163, %v162
  %v181 = vpack.c.b16 %v165, %v164
  %198 = vmatprep.subr.bf16.mxu0 0
  %199 = vmatpush1.bf16.msra.mxu0 %v173
  %200 = vmatprep.subr.bf16.mxu0 0
  %201 = vmatpush1.bf16.msra.mxu0 %v172
  %202 = vmatprep.subr.bf16.mxu0 0
  %203 = vmatpush1.bf16.msra.mxu0 %v171
  %204 = vmatprep.subr.bf16.mxu0 0
  %205 = vmatpush1.bf16.msra.mxu0 %v170
  %206 = vmatprep.subr.bf16.mxu0 0
  %207 = vmatpush1.bf16.msra.mxu0 %v169
  %208 = vmatprep.subr.bf16.mxu0 0
  %209 = vmatpush1.bf16.msra.mxu0 %v168
  %210 = vmatprep.subr.bf16.mxu0 0
  %211 = vmatpush1.bf16.msra.mxu0 %v167
  %212 = vmatprep.subr.bf16.mxu0 0
  %213 = vmatpush1.bf16.msra.mxu0 %v166
  %214 = vmatprep.subr.bf16.mxu0 0
  %215 = vmatpush2.bf16.msra.mxu0 %v181
  %216 = vmatprep.subr.bf16.mxu0 0
  %217 = vmatpush2.bf16.msra.mxu0 %v180
  %218 = vmatprep.subr.bf16.mxu0 0
  %219 = vmatpush2.bf16.msra.mxu0 %v179
  %220 = vmatprep.subr.bf16.mxu0 0
  %221 = vmatpush2.bf16.msra.mxu0 %v178
  %222 = vmatprep.subr.bf16.mxu0 0
  %223 = vmatpush2.bf16.msra.mxu0 %v177
  %224 = vmatprep.subr.bf16.mxu0 0
  %225 = vmatpush2.bf16.msra.mxu0 %v176
  %226 = vmatprep.subr.bf16.mxu0 0
  %227 = vmatpush2.bf16.msra.mxu0 %v175
  %228 = vmatprep.subr.bf16.mxu0 0
  %229 = vmatpush2.bf16.msra.mxu0 %v174
  %230 = vmatprep.mubr.bf16.mxu0 %v48
  %231 = vmatmul.mubr.bf16.gmra.mxu0 %v47
  %v232 = vpop.f32.mrf.mxu0
  %v233 = vadd.f32 %v100, %v232
  %v234 = vpop.f32.mrf.mxu0
  %v235 = vpop.f32.mrf.mxu0
  %v236 = vadd.f32 %v100, %v235
  %v237 = vpop.f32.mrf.mxu0
  %238 = vmatprep.mubr.bf16.mxu0 %v50
  %239 = vmatmul.mubr.bf16.gmra.mxu0 %v49
  %v240 = vpop.f32.mrf.mxu0
  %v241 = vadd.f32 %v100, %v240
  %v242 = vpop.f32.mrf.mxu0
  %v243 = vpop.f32.mrf.mxu0
  %v244 = vadd.f32 %v100, %v243
  %v245 = vpop.f32.mrf.mxu0
  %246 = vmatprep.mubr.bf16.mxu0 %v52
  %247 = vmatmul.mubr.bf16.gmra.mxu0 %v51
  %v248 = vpop.f32.mrf.mxu0
  %v249 = vadd.f32 %v100, %v248
  %v250 = vpop.f32.mrf.mxu0
  %v251 = vpop.f32.mrf.mxu0
  %v252 = vadd.f32 %v100, %v251
  %v253 = vpop.f32.mrf.mxu0
  %254 = vmatprep.mubr.bf16.mxu0 %v54
  %255 = vmatmul.mubr.bf16.gmra.mxu0 %v53
  %v256 = vpop.f32.mrf.mxu0
  %v257 = vadd.f32 %v100, %v256
  %v258 = vpop.f32.mrf.mxu0
  %v259 = vpop.f32.mrf.mxu0
  %v260 = vadd.f32 %v100, %v259
  %v261 = vpop.f32.mrf.mxu0
  %262 = vmatprep.mubr.bf16.mxu0 %v56
  %263 = vmatmul.mubr.bf16.gmra.mxu0 %v55
  %v264 = vpop.f32.mrf.mxu0
  %v265 = vadd.f32 %v100, %v264
  %v266 = vpop.f32.mrf.mxu0
  %v267 = vpop.f32.mrf.mxu0
  %v268 = vadd.f32 %v100, %v267
  %v269 = vpop.f32.mrf.mxu0
  %270 = vmatprep.mubr.bf16.mxu0 %v58
  %271 = vmatmul.mubr.bf16.gmra.mxu0 %v57
  %v272 = vpop.f32.mrf.mxu0
  %v273 = vadd.f32 %v100, %v272
  %v274 = vpop.f32.mrf.mxu0
  %v275 = vpop.f32.mrf.mxu0
  %v276 = vadd.f32 %v100, %v275
  %v277 = vpop.f32.mrf.mxu0
  %278 = vmatprep.mubr.bf16.mxu0 %v60
  %279 = vmatmul.mubr.bf16.gmra.mxu0 %v59
  %v280 = vpop.f32.mrf.mxu0
  %v281 = vadd.f32 %v100, %v280
  %v282 = vpop.f32.mrf.mxu0
  %v283 = vpop.f32.mrf.mxu0
  %v284 = vadd.f32 %v100, %v283
  %v285 = vpop.f32.mrf.mxu0
  %286 = vmatprep.mubr.bf16.mxu0 %v62
  %287 = vmatmul.mubr.bf16.gmra.mxu0 %v61
  %v288 = vpop.f32.mrf.mxu0
  %v289 = vadd.f32 %v100, %v288
  %v290 = vpop.f32.mrf.mxu0
  %v291 = vpop.f32.mrf.mxu0
  %v292 = vadd.f32 %v100, %v291
  %v293 = vpop.f32.mrf.mxu0
  %294 = vdwg.mxu0
  %295 = vst [vmem:[%s3] sm:$0xff] %v233
  %296 = vst [vmem:[%s3 + $0x8] sm:$0xff] %v236
  %297 = vst [vmem:[%s3 + $0x10] sm:$0xff] %v241
  %298 = vst [vmem:[%s3 + $0x18] sm:$0xff] %v244
  %299 = vst [vmem:[%s3 + $0x20] sm:$0xff] %v249
  %300 = vst [vmem:[%s3 + $0x28] sm:$0xff] %v252
  %301 = vst [vmem:[%s3 + $0x30] sm:$0xff] %v257
  %302 = vst [vmem:[%s3 + $0x38] sm:$0xff] %v260
  %303 = vst [vmem:[%s3 + $0x40] sm:$0xff] %v265
  %304 = vst [vmem:[%s3 + $0x48] sm:$0xff] %v268
  %305 = vst [vmem:[%s3 + $0x50] sm:$0xff] %v273
  %306 = vst [vmem:[%s3 + $0x58] sm:$0xff] %v276
  %307 = vst [vmem:[%s3 + $0x60] sm:$0xff] %v281
  %308 = vst [vmem:[%s3 + $0x68] sm:$0xff] %v284
  %309 = vst [vmem:[%s3 + $0x70] sm:$0xff] %v289
  %310 = vst [vmem:[%s3 + $0x78] sm:$0xff] %v292
  // Predicated region
  $region14: #{_lambda_.17} parent=0 // pred_check
    _
  $region15: #{_lambda_.17} parent=0 // pred_check_branch
    %312 = sbr.rel (0) target = $region17
  $region16: #{_lambda_.17} parent=0 // pred_region
    _
  $region17: #{_lambda_.17} parent=0 // pred_fallthru
    _
  // Predicated region
  $region18: #{_lambda_.17} parent=0 // pred_check
    _
  $region19: #{_lambda_.17} parent=0 // pred_check_branch
    %314 = sbr.rel (0) target = $region21
  $region20: #{_lambda_.17} parent=0 // pred_region
    _
  $region21: #{_lambda_.17} parent=0 // pred_fallthru
    _

// kernel: _lambda_.11
$region0: #{_lambda_.11}
  #allocation0 [shape = 'u32[]', space=smem, size = 0x4, offset = 0x4, fixed_abs, tag = 'smem constant byte address 0x4 - core index']
  #allocation1 [shape = 'u32[144,128]{1,0:T(1,128)}', space=vmem, size = 0x12000, scoped, tag = 'internal scratch']
  %s0 = inlined_call_operand.vmem [shape: f32[128,256], index: 0, kind: input, shape index: {}]
  %s1 = inlined_call_operand.vmem [shape: f32[1,256], index: 1, kind: input, shape index: {}]
  %s2 = inlined_call_operand.vmem [shape: f32[1,256], index: 2, kind: input, shape index: {}]
  %s3 = inlined_call_operand.vmem [shape: bf16[256,256], index: 3, kind: input, shape index: {}]
  %s4 = inlined_call_operand.vmem [shape: f32[1,256], index: 4, kind: input, shape index: {}]
  %s5 = inlined_call_operand.vmem [shape: bf16[256,256], index: 5, kind: input, shape index: {}]
  %s6 = inlined_call_operand.vmem [shape: f32[1,256], index: 6, kind: input, shape index: {}]
  %s7 = inlined_call_operand.vmem [shape: bf16[256,256], index: 7, kind: input, shape index: {}]
  %s8 = inlined_call_operand.vmem [shape: f32[1,256], index: 8, kind: input, shape index: {}]
  %s9 = inlined_call_operand.vmem [shape: bf16[128,256], index: 9, kind: output, shape index: {0}]
  %s10 = inlined_call_operand.vmem [shape: bf16[128,256], index: 10, kind: output, shape index: {1}]
  %s11 = inlined_call_operand.vmem [shape: bf16[128,256], index: 11, kind: output, shape index: {2}]
  %12 = xla_tuple %s9, %s10, %s11
  %s13 = sld [smem:[#allocation0]]
  $region62: #{_lambda_.11} parent=0
    _
  %s15 = ssub.s32 1, %s13
  %s16 = scalar_select 0, %s15, %s13
  // Predicated region
  $region2: #{_lambda_.11} parent=0 // pred_check
    _
  $region3: #{_lambda_.11} parent=0 // pred_check_branch
    %18 = sbr.rel (0) target = $region5
  $region4: #{_lambda_.11} parent=0 // pred_region
    _
  $region5: #{_lambda_.11} parent=0 // pred_fallthru
    _
  // Predicated region
  $region6: #{_lambda_.11} parent=0 // pred_check
    _
  $region7: #{_lambda_.11} parent=0 // pred_check_branch
    %20 = sbr.rel (0) target = $region9
  $region8: #{_lambda_.11} parent=0 // pred_region
    _
  $region9: #{_lambda_.11} parent=0 // pred_fallthru
    _
  // Predicated region
  $region10: #{_lambda_.11} parent=0 // pred_check
    _
  $region11: #{_lambda_.11} parent=0 // pred_check_branch
    %22 = sbr.rel (0) target = $region13
  $region12: #{_lambda_.11} parent=0 // pred_region
    _
  $region13: #{_lambda_.11} parent=0 // pred_fallthru
    _
  // Predicated region
  $region14: #{_lambda_.11} parent=0 // pred_check
    _
  $region15: #{_lambda_.11} parent=0 // pred_check_branch
    %24 = sbr.rel (0) target = $region17
  $region16: #{_lambda_.11} parent=0 // pred_region
    _
  $region17: #{_lambda_.11} parent=0 // pred_fallthru
    _
  // Predicated region
  $region18: #{_lambda_.11} parent=0 // pred_check
    _
  $region19: #{_lambda_.11} parent=0 // pred_check_branch
    %26 = sbr.rel (0) target = $region21
  $region20: #{_lambda_.11} parent=0 // pred_region
    _
  $region21: #{_lambda_.11} parent=0 // pred_fallthru
    _
  // Predicated region
  $region22: #{_lambda_.11} parent=0 // pred_check
    _
  $region23: #{_lambda_.11} parent=0 // pred_check_branch
    %28 = sbr.rel (0) target = $region25
  $region24: #{_lambda_.11} parent=0 // pred_region
    _
  $region25: #{_lambda_.11} parent=0 // pred_fallthru
    _
  // Predicated region
  $region26: #{_lambda_.11} parent=0 // pred_check
    _
  $region27: #{_lambda_.11} parent=0 // pred_check_branch
    %30 = sbr.rel (0) target = $region29
  $region28: #{_lambda_.11} parent=0 // pred_region
    _
  $region29: #{_lambda_.11} parent=0 // pred_fallthru
    _
  // Predicated region
  $region30: #{_lambda_.11} parent=0 // pred_check
    _
  $region31: #{_lambda_.11} parent=0 // pred_check_branch
    %32 = sbr.rel (0) target = $region33
  $region32: #{_lambda_.11} parent=0 // pred_region
    _
  $region33: #{_lambda_.11} parent=0 // pred_fallthru
    _
  // Predicated region
  $region34: #{_lambda_.11} parent=0 // pred_check
    _
  $region35: #{_lambda_.11} parent=0 // pred_check_branch
    %34 = sbr.rel (0) target = $region37
  $region36: #{_lambda_.11} parent=0 // pred_region
    _
  $region37: #{_lambda_.11} parent=0 // pred_fallthru
    _
  %v35 = vld [vmem:[%s0] sm:$0xff]
  %v36 = vld [vmem:[%s0 + $0x8] sm:$0xff]
  %v37 = vld [vmem:[%s0 + $0x10] sm:$0xff]
  %v38 = vld [vmem:[%s0 + $0x18] sm:$0xff]
  %v39 = vld [vmem:[%s0 + $0x20] sm:$0xff]
  %v40 = vld [vmem:[%s0 + $0x28] sm:$0xff]
  %v41 = vld [vmem:[%s0 + $0x30] sm:$0xff]
  %v42 = vld [vmem:[%s0 + $0x38] sm:$0xff]
  %v43 = vld [vmem:[%s0 + $0x40] sm:$0xff]
  %v44 = vld [vmem:[%s0 + $0x48] sm:$0xff]
  %v45 = vld [vmem:[%s0 + $0x50] sm:$0xff]
  %v46 = vld [vmem:[%s0 + $0x58] sm:$0xff]
  %v47 = vld [vmem:[%s0 + $0x60] sm:$0xff]
  %v48 = vld [vmem:[%s0 + $0x68] sm:$0xff]
  %v49 = vld [vmem:[%s0 + $0x70] sm:$0xff]
  %v50 = vld [vmem:[%s0 + $0x78] sm:$0xff]
  %v51 = vld [vmem:[%s0 + $0x80] sm:$0xff]
  %v52 = vld [vmem:[%s0 + $0x88] sm:$0xff]
  %v53 = vld [vmem:[%s0 + $0x90] sm:$0xff]
  %v54 = vld [vmem:[%s0 + $0x98] sm:$0xff]
  %v55 = vld [vmem:[%s0 + $0xa0] sm:$0xff]
  %v56 = vld [vmem:[%s0 + $0xa8] sm:$0xff]
  %v57 = vld [vmem:[%s0 + $0xb0] sm:$0xff]
  %v58 = vld [vmem:[%s0 + $0xb8] sm:$0xff]
  %v59 = vld [vmem:[%s0 + $0xc0] sm:$0xff]
  %v60 = vld [vmem:[%s0 + $0xc8] sm:$0xff]
  %v61 = vld [vmem:[%s0 + $0xd0] sm:$0xff]
  %v62 = vld [vmem:[%s0 + $0xd8] sm:$0xff]
  %v63 = vld [vmem:[%s0 + $0xe0] sm:$0xff]
  %v64 = vld [vmem:[%s0 + $0xe8] sm:$0xff]
  %v65 = vld [vmem:[%s0 + $0xf0] sm:$0xff]
  %v66 = vld [vmem:[%s0 + $0xf8] sm:$0xff]
  %v67 = vadd.f32 %v35, %v36
  %68 = vadd.xlane.f32.xlu0 %v67
  %v69 = vpop.xlane.xlu0 %68
  %v70 = vadd.f32 %v37, %v38
  %71 = vadd.xlane.f32.xlu0 %v70
  %v72 = vpop.xlane.xlu0 %71
  %v73 = vadd.f32 %v39, %v40
  %74 = vadd.xlane.f32.xlu0 %v73
  %v75 = vpop.xlane.xlu0 %74
  %v76 = vadd.f32 %v41, %v42
  %77 = vadd.xlane.f32.xlu0 %v76
  %v78 = vpop.xlane.xlu0 %77
  %v79 = vadd.f32 %v43, %v44
  %80 = vadd.xlane.f32.xlu0 %v79
  %v81 = vpop.xlane.xlu0 %80
  %v82 = vadd.f32 %v45, %v46
  %83 = vadd.xlane.f32.xlu0 %v82
  %v84 = vpop.xlane.xlu0 %83
  %v85 = vadd.f32 %v47, %v48
  %86 = vadd.xlane.f32.xlu0 %v85
  %v87 = vpop.xlane.xlu0 %86
  %v88 = vadd.f32 %v49, %v50
  %89 = vadd.xlane.f32.xlu0 %v88
  %v90 = vpop.xlane.xlu0 %89
  %v91 = vadd.f32 %v51, %v52
  %92 = vadd.xlane.f32.xlu0 %v91
  %v93 = vpop.xlane.xlu0 %92
  %v94 = vadd.f32 %v53, %v54
  %95 = vadd.xlane.f32.xlu0 %v94
  %v96 = vpop.xlane.xlu0 %95
  %v97 = vadd.f32 %v55, %v56
  %98 = vadd.xlane.f32.xlu0 %v97
  %v99 = vpop.xlane.xlu0 %98
  %v100 = vadd.f32 %v57, %v58
  %101 = vadd.xlane.f32.xlu0 %v100
  %v102 = vpop.xlane.xlu0 %101
  %v103 = vadd.f32 %v59, %v60
  %104 = vadd.xlane.f32.xlu0 %v103
  %v105 = vpop.xlane.xlu0 %104
  %v106 = vadd.f32 %v61, %v62
  %107 = vadd.xlane.f32.xlu0 %v106
  %v108 = vpop.xlane.xlu0 %107
  %v109 = vadd.f32 %v63, %v64
  %110 = vadd.xlane.f32.xlu0 %v109
  %v111 = vpop.xlane.xlu0 %110
  %v112 = vadd.f32 %v65, %v66
  %113 = vadd.xlane.f32.xlu0 %v112
  %v114 = vpop.xlane.xlu0 %113
  %v115 = vrcp.pop 256.0
  %v116 = vmul.f32 %v69, %v115
  %v117 = vmul.f32 %v72, %v115
  %v118 = vmul.f32 %v75, %v115
  %v119 = vmul.f32 %v78, %v115
  %v120 = vmul.f32 %v81, %v115
  %v121 = vmul.f32 %v84, %v115
  %v122 = vmul.f32 %v87, %v115
  %v123 = vmul.f32 %v90, %v115
  %v124 = vmul.f32 %v93, %v115
  %v125 = vmul.f32 %v96, %v115
  %v126 = vmul.f32 %v99, %v115
  %v127 = vmul.f32 %v102, %v115
  %v128 = vmul.f32 %v105, %v115
  %v129 = vmul.f32 %v108, %v115
  %v130 = vmul.f32 %v111, %v115
  %v131 = vmul.f32 %v114, %v115
  %v132 = vsub.f32 %v35, %v116
  %v133 = vsub.f32 %v36, %v116
  %v134 = vsub.f32 %v37, %v117
  %v135 = vsub.f32 %v38, %v117
  %v136 = vsub.f32 %v39, %v118
  %v137 = vsub.f32 %v40, %v118
  %v138 = vsub.f32 %v41, %v119
  %v139 = vsub.f32 %v42, %v119
  %v140 = vsub.f32 %v43, %v120
  %v141 = vsub.f32 %v44, %v120
  %v142 = vsub.f32 %v45, %v121
  %v143 = vsub.f32 %v46, %v121
  %v144 = vsub.f32 %v47, %v122
  %v145 = vsub.f32 %v48, %v122
  %v146 = vsub.f32 %v49, %v123
  %v147 = vsub.f32 %v50, %v123
  %v148 = vsub.f32 %v51, %v124
  %v149 = vsub.f32 %v52, %v124
  %v150 = vsub.f32 %v53, %v125
  %v151 = vsub.f32 %v54, %v125
  %v152 = vsub.f32 %v55, %v126
  %v153 = vsub.f32 %v56, %v126
  %v154 = vsub.f32 %v57, %v127
  %v155 = vsub.f32 %v58, %v127
  %v156 = vsub.f32 %v59, %v128
  %v157 = vsub.f32 %v60, %v128
  %v158 = vsub.f32 %v61, %v129
  %v159 = vsub.f32 %v62, %v129
  %v160 = vsub.f32 %v63, %v130
  %v161 = vsub.f32 %v64, %v130
  %v162 = vsub.f32 %v65, %v131
  %v163 = vsub.f32 %v66, %v131
  %v164 = vmul.f32 %v132, %v132
  %v165 = vmul.f32 %v133, %v133
  %v166 = vmul.f32 %v134, %v134
  %v167 = vmul.f32 %v135, %v135
  %v168 = vmul.f32 %v136, %v136
  %v169 = vmul.f32 %v137, %v137
  %v170 = vmul.f32 %v138, %v138
  %v171 = vmul.f32 %v139, %v139
  %v172 = vmul.f32 %v140, %v140
  %v173 = vmul.f32 %v141, %v141
  %v174 = vmul.f32 %v142, %v142
  %v175 = vmul.f32 %v143, %v143
  %v176 = vmul.f32 %v144, %v144
  %v177 = vmul.f32 %v145, %v145
  %v178 = vmul.f32 %v146, %v146
  %v179 = vmul.f32 %v147, %v147
  %v180 = vmul.f32 %v148, %v148
  %v181 = vmul.f32 %v149, %v149
  %v182 = vmul.f32 %v150, %v150
  %v183 = vmul.f32 %v151, %v151
  %v184 = vmul.f32 %v152, %v152
  %v185 = vmul.f32 %v153, %v153
  %v186 = vmul.f32 %v154, %v154
  %v187 = vmul.f32 %v155, %v155
  %v188 = vmul.f32 %v156, %v156
  %v189 = vmul.f32 %v157, %v157
  %v190 = vmul.f32 %v158, %v158
  %v191 = vmul.f32 %v159, %v159
  %v192 = vmul.f32 %v160, %v160
  %v193 = vmul.f32 %v161, %v161
  %v194 = vmul.f32 %v162, %v162
  %v195 = vmul.f32 %v163, %v163
  %v196 = vadd.f32 %v164, %v165
  %197 = vadd.xlane.f32.xlu0 %v196
  %v198 = vpop.xlane.xlu0 %197
  %v199 = vadd.f32 %v166, %v167
  %200 = vadd.xlane.f32.xlu0 %v199
  %v201 = vpop.xlane.xlu0 %200
  %v202 = vadd.f32 %v168, %v169
  %203 = vadd.xlane.f32.xlu0 %v202
  %v204 = vpop.xlane.xlu0 %203
  %v205 = vadd.f32 %v170, %v171
  %206 = vadd.xlane.f32.xlu0 %v205
  %v207 = vpop.xlane.xlu0 %206
  %v208 = vadd.f32 %v172, %v173
  %209 = vadd.xlane.f32.xlu0 %v208
  %v210 = vpop.xlane.xlu0 %209
  %v211 = vadd.f32 %v174, %v175
  %212 = vadd.xlane.f32.xlu0 %v211
  %v213 = vpop.xlane.xlu0 %212
  %v214 = vadd.f32 %v176, %v177
  %215 = vadd.xlane.f32.xlu0 %v214
  %v216 = vpop.xlane.xlu0 %215
  %v217 = vadd.f32 %v178, %v179
  %218 = vadd.xlane.f32.xlu0 %v217
  %v219 = vpop.xlane.xlu0 %218
  %v220 = vadd.f32 %v180, %v181
  %221 = vadd.xlane.f32.xlu0 %v220
  %v222 = vpop.xlane.xlu0 %221
  %v223 = vadd.f32 %v182, %v183
  %224 = vadd.xlane.f32.xlu0 %v223
  %v225 = vpop.xlane.xlu0 %224
  %v226 = vadd.f32 %v184, %v185
  %227 = vadd.xlane.f32.xlu0 %v226
  %v228 = vpop.xlane.xlu0 %227
  %v229 = vadd.f32 %v186, %v187
  %230 = vadd.xlane.f32.xlu0 %v229
  %v231 = vpop.xlane.xlu0 %230
  %v232 = vadd.f32 %v188, %v189
  %233 = vadd.xlane.f32.xlu0 %v232
  %v234 = vpop.xlane.xlu0 %233
  %v235 = vadd.f32 %v190, %v191
  %236 = vadd.xlane.f32.xlu0 %v235
  %v237 = vpop.xlane.xlu0 %236
  %v238 = vadd.f32 %v192, %v193
  %239 = vadd.xlane.f32.xlu0 %v238
  %v240 = vpop.xlane.xlu0 %239
  %v241 = vadd.f32 %v194, %v195
  %242 = vadd.xlane.f32.xlu0 %v241
  %v243 = vpop.xlane.xlu0 %242
  %v244 = vmul.f32 %v198, %v115
  %v245 = vmul.f32 %v201, %v115
  %v246 = vmul.f32 %v204, %v115
  %v247 = vmul.f32 %v207, %v115
  %v248 = vmul.f32 %v210, %v115
  %v249 = vmul.f32 %v213, %v115
  %v250 = vmul.f32 %v216, %v115
  %v251 = vmul.f32 %v219, %v115
  %v252 = vmul.f32 %v222, %v115
  %v253 = vmul.f32 %v225, %v115
  %v254 = vmul.f32 %v228, %v115
  %v255 = vmul.f32 %v231, %v115
  %v256 = vmul.f32 %v234, %v115
  %v257 = vmul.f32 %v237, %v115
  %v258 = vmul.f32 %v240, %v115
  %v259 = vmul.f32 %v243, %v115
  %v260 = vadd.f32 %v244, 1e-05
  %v261 = vadd.f32 %v245, 1e-05
  %v262 = vadd.f32 %v246, 1e-05
  %v263 = vadd.f32 %v247, 1e-05
  %v264 = vadd.f32 %v248, 1e-05
  %v265 = vadd.f32 %v249, 1e-05
  %v266 = vadd.f32 %v250, 1e-05
  %v267 = vadd.f32 %v251, 1e-05
  %v268 = vadd.f32 %v252, 1e-05
  %v269 = vadd.f32 %v253, 1e-05
  %v270 = vadd.f32 %v254, 1e-05
  %v271 = vadd.f32 %v255, 1e-05
  %v272 = vadd.f32 %v256, 1e-05
  %v273 = vadd.f32 %v257, 1e-05
  %v274 = vadd.f32 %v258, 1e-05
  %v275 = vadd.f32 %v259, 1e-05
  %v276 = vrsqrt.pop %v260
  %v277 = vrsqrt.pop %v261
  %v278 = vrsqrt.pop %v262
  %v279 = vrsqrt.pop %v263
  %v280 = vrsqrt.pop %v264
  %v281 = vrsqrt.pop %v265
  %v282 = vrsqrt.pop %v266
  %v283 = vrsqrt.pop %v267
  %v284 = vrsqrt.pop %v268
  %v285 = vrsqrt.pop %v269
  %v286 = vrsqrt.pop %v270
  %v287 = vrsqrt.pop %v271
  %v288 = vrsqrt.pop %v272
  %v289 = vrsqrt.pop %v273
  %v290 = vrsqrt.pop %v274
  %v291 = vrsqrt.pop %v275
  %v292 = vmul.f32 %v132, %v276
  %v293 = vmul.f32 %v133, %v276
  %v294 = vmul.f32 %v134, %v277
  %v295 = vmul.f32 %v135, %v277
  %v296 = vmul.f32 %v136, %v278
  %v297 = vmul.f32 %v137, %v278
  %v298 = vmul.f32 %v138, %v279
  %v299 = vmul.f32 %v139, %v279
  %v300 = vmul.f32 %v140, %v280
  %v301 = vmul.f32 %v141, %v280
  %v302 = vmul.f32 %v142, %v281
  %v303 = vmul.f32 %v143, %v281
  %v304 = vmul.f32 %v144, %v282
  %v305 = vmul.f32 %v145, %v282
  %v306 = vmul.f32 %v146, %v283
  %v307 = vmul.f32 %v147, %v283
  %v308 = vmul.f32 %v148, %v284
  %v309 = vmul.f32 %v149, %v284
  %v310 = vmul.f32 %v150, %v285
  %v311 = vmul.f32 %v151, %v285
  %v312 = vmul.f32 %v152, %v286
  %v313 = vmul.f32 %v153, %v286
  %v314 = vmul.f32 %v154, %v287
  %v315 = vmul.f32 %v155, %v287
  %v316 = vmul.f32 %v156, %v288
  %v317 = vmul.f32 %v157, %v288
  %v318 = vmul.f32 %v158, %v289
  %v319 = vmul.f32 %v159, %v289
  %v320 = vmul.f32 %v160, %v290
  %v321 = vmul.f32 %v161, %v290
  %v322 = vmul.f32 %v162, %v291
  %v323 = vmul.f32 %v163, %v291
  %v324 = vld [vmem:[%s1] sm:$0x3]
  %v326 = vlaneseq
  %v327 = vshrl.u32 %v326, 7
  %v328 = vsub.s32 0, %v327
  %v329 = vrot.slane %v324, %v328
  %v330 = vlaneseq
  %v331 = vshrl.u32 %v330, 7
  %v332 = vsub.s32 1, %v331
  %v333 = vrot.slane %v324, %v332
  %v336 = vmul.f32 %v292, %v329
  %v337 = vmul.f32 %v293, %v333
  %v338 = vmul.f32 %v294, %v329
  %v339 = vmul.f32 %v295, %v333
  %v340 = vmul.f32 %v296, %v329
  %v341 = vmul.f32 %v297, %v333
  %v342 = vmul.f32 %v298, %v329
  %v343 = vmul.f32 %v299, %v333
  %v344 = vmul.f32 %v300, %v329
  %v345 = vmul.f32 %v301, %v333
  %v346 = vmul.f32 %v302, %v329
  %v347 = vmul.f32 %v303, %v333
  %v348 = vmul.f32 %v304, %v329
  %v349 = vmul.f32 %v305, %v333
  %v350 = vmul.f32 %v306, %v329
  %v351 = vmul.f32 %v307, %v333
  %v352 = vmul.f32 %v308, %v329
  %v353 = vmul.f32 %v309, %v333
  %v354 = vmul.f32 %v310, %v329
  %v355 = vmul.f32 %v311, %v333
  %v356 = vmul.f32 %v312, %v329
  %v357 = vmul.f32 %v313, %v333
  %v358 = vmul.f32 %v314, %v329
  %v359 = vmul.f32 %v315, %v333
  %v360 = vmul.f32 %v316, %v329
  %v361 = vmul.f32 %v317, %v333
  %v362 = vmul.f32 %v318, %v329
  %v363 = vmul.f32 %v319, %v333
  %v364 = vmul.f32 %v320, %v329
  %v365 = vmul.f32 %v321, %v333
  %v366 = vmul.f32 %v322, %v329
  %v367 = vmul.f32 %v323, %v333
  %v368 = vld [vmem:[%s2] sm:$0x3]
  %v370 = vlaneseq
  %v371 = vshrl.u32 %v370, 7
  %v372 = vsub.s32 0, %v371
  %v373 = vrot.slane %v368, %v372
  %v374 = vlaneseq
  %v375 = vshrl.u32 %v374, 7
  %v376 = vsub.s32 1, %v375
  %v377 = vrot.slane %v368, %v376
  %v380 = vadd.f32 %v336, %v373
  %v381 = vadd.f32 %v337, %v377
  %v382 = vadd.f32 %v338, %v373
  %v383 = vadd.f32 %v339, %v377
  %v384 = vadd.f32 %v340, %v373
  %v385 = vadd.f32 %v341, %v377
  %v386 = vadd.f32 %v342, %v373
  %v387 = vadd.f32 %v343, %v377
  %v388 = vadd.f32 %v344, %v373
  %v389 = vadd.f32 %v345, %v377
  %v390 = vadd.f32 %v346, %v373
  %v391 = vadd.f32 %v347, %v377
  %v392 = vadd.f32 %v348, %v373
  %v393 = vadd.f32 %v349, %v377
  %v394 = vadd.f32 %v350, %v373
  %v395 = vadd.f32 %v351, %v377
  %v396 = vadd.f32 %v352, %v373
  %v397 = vadd.f32 %v353, %v377
  %v398 = vadd.f32 %v354, %v373
  %v399 = vadd.f32 %v355, %v377
  %v400 = vadd.f32 %v356, %v373
  %v401 = vadd.f32 %v357, %v377
  %v402 = vadd.f32 %v358, %v373
  %v403 = vadd.f32 %v359, %v377
  %v404 = vadd.f32 %v360, %v373
  %v405 = vadd.f32 %v361, %v377
  %v406 = vadd.f32 %v362, %v373
  %v407 = vadd.f32 %v363, %v377
  %v408 = vadd.f32 %v364, %v373
  %v409 = vadd.f32 %v365, %v377
  %v410 = vadd.f32 %v366, %v373
  %v411 = vadd.f32 %v367, %v377
  %v412 = vpack.c.bf16 %v382, %v380
  %v413 = vpack.c.bf16 %v383, %v381
  %v414 = vpack.c.bf16 %v386, %v384
  %v415 = vpack.c.bf16 %v387, %v385
  %v416 = vpack.c.bf16 %v390, %v388
  %v417 = vpack.c.bf16 %v391, %v389
  %v418 = vpack.c.bf16 %v394, %v392
  %v419 = vpack.c.bf16 %v395, %v393
  %v420 = vpack.c.bf16 %v398, %v396
  %v421 = vpack.c.bf16 %v399, %v397
  %v422 = vpack.c.bf16 %v402, %v400
  %v423 = vpack.c.bf16 %v403, %v401
  %v424 = vpack.c.bf16 %v406, %v404
  %v425 = vpack.c.bf16 %v407, %v405
  %v426 = vpack.c.bf16 %v410, %v408
  %v427 = vpack.c.bf16 %v411, %v409
  %v428 = vld [vmem:[%s3] sm:$0xff]
  %v429 = vld [vmem:[%s3 + $0x8] sm:$0xff]
  %v430 = vld [vmem:[%s3 + $0x10] sm:$0xff]
  %v431 = vld [vmem:[%s3 + $0x18] sm:$0xff]
  %v432 = vld [vmem:[%s3 + $0x20] sm:$0xff]
  %v433 = vld [vmem:[%s3 + $0x28] sm:$0xff]
  %v434 = vld [vmem:[%s3 + $0x30] sm:$0xff]
  %v435 = vld [vmem:[%s3 + $0x38] sm:$0xff]
  %v436 = vld [vmem:[%s3 + $0x40] sm:$0xff]
  %v437 = vld [vmem:[%s3 + $0x48] sm:$0xff]
  %v438 = vld [vmem:[%s3 + $0x50] sm:$0xff]
  %v439 = vld [vmem:[%s3 + $0x58] sm:$0xff]
  %v440 = vld [vmem:[%s3 + $0x60] sm:$0xff]
  %v441 = vld [vmem:[%s3 + $0x68] sm:$0xff]
  %v442 = vld [vmem:[%s3 + $0x70] sm:$0xff]
  %v443 = vld [vmem:[%s3 + $0x78] sm:$0xff]
  %v444 = vld [vmem:[%s3 + $0x80] sm:$0xff]
  %v445 = vld [vmem:[%s3 + $0x88] sm:$0xff]
  %v446 = vld [vmem:[%s3 + $0x90] sm:$0xff]
  %v447 = vld [vmem:[%s3 + $0x98] sm:$0xff]
  %v448 = vld [vmem:[%s3 + $0xa0] sm:$0xff]
  %v449 = vld [vmem:[%s3 + $0xa8] sm:$0xff]
  %v450 = vld [vmem:[%s3 + $0xb0] sm:$0xff]
  %v451 = vld [vmem:[%s3 + $0xb8] sm:$0xff]
  %v452 = vld [vmem:[%s3 + $0xc0] sm:$0xff]
  %v453 = vld [vmem:[%s3 + $0xc8] sm:$0xff]
  %v454 = vld [vmem:[%s3 + $0xd0] sm:$0xff]
  %v455 = vld [vmem:[%s3 + $0xd8] sm:$0xff]
  %v456 = vld [vmem:[%s3 + $0xe0] sm:$0xff]
  %v457 = vld [vmem:[%s3 + $0xe8] sm:$0xff]
  %v458 = vld [vmem:[%s3 + $0xf0] sm:$0xff]
  %v459 = vld [vmem:[%s3 + $0xf8] sm:$0xff]
  %v460 = vld [vmem:[%s4] sm:$0x3]
  %v462 = vlaneseq
  %v463 = vshrl.u32 %v462, 7
  %v464 = vsub.s32 0, %v463
  %v465 = vrot.slane %v460, %v464
  %v466 = vlaneseq
  %v467 = vshrl.u32 %v466, 7
  %v468 = vsub.s32 1, %v467
  %v469 = vrot.slane %v460, %v468
  %v504 = vunpack.c.l.b16 %v428
  %v505 = vunpack.c.h.b16 %v428
  %v506 = vunpack.c.l.b16 %v429
  %v507 = vunpack.c.h.b16 %v429
  %v508 = vunpack.c.l.b16 %v430
  %v509 = vunpack.c.h.b16 %v430
  %v510 = vunpack.c.l.b16 %v431
  %v511 = vunpack.c.h.b16 %v431
  %v512 = vunpack.c.l.b16 %v432
  %v513 = vunpack.c.h.b16 %v432
  %v514 = vunpack.c.l.b16 %v433
  %v515 = vunpack.c.h.b16 %v433
  %v516 = vunpack.c.l.b16 %v434
  %v517 = vunpack.c.h.b16 %v434
  %v518 = vunpack.c.l.b16 %v435
  %v519 = vunpack.c.h.b16 %v435
  %v520 = vunpack.c.l.b16 %v436
  %v521 = vunpack.c.h.b16 %v436
  %v522 = vunpack.c.l.b16 %v437
  %v523 = vunpack.c.h.b16 %v437
  %v524 = vunpack.c.l.b16 %v438
  %v525 = vunpack.c.h.b16 %v438
  %v526 = vunpack.c.l.b16 %v439
  %v527 = vunpack.c.h.b16 %v439
  %v528 = vunpack.c.l.b16 %v440
  %v529 = vunpack.c.h.b16 %v440
  %v530 = vunpack.c.l.b16 %v441
  %v531 = vunpack.c.h.b16 %v441
  %v532 = vunpack.c.l.b16 %v442
  %v533 = vunpack.c.h.b16 %v442
  %v534 = vunpack.c.l.b16 %v443
  %v535 = vunpack.c.h.b16 %v443
  %v536 = vunpack.c.l.b16 %v444
  %v537 = vunpack.c.h.b16 %v444
  %v538 = vunpack.c.l.b16 %v445
  %v539 = vunpack.c.h.b16 %v445
  %v540 = vunpack.c.l.b16 %v446
  %v541 = vunpack.c.h.b16 %v446
  %v542 = vunpack.c.l.b16 %v447
  %v543 = vunpack.c.h.b16 %v447
  %v544 = vunpack.c.l.b16 %v448
  %v545 = vunpack.c.h.b16 %v448
  %v546 = vunpack.c.l.b16 %v449
  %v547 = vunpack.c.h.b16 %v449
  %v548 = vunpack.c.l.b16 %v450
  %v549 = vunpack.c.h.b16 %v450
  %v550 = vunpack.c.l.b16 %v451
  %v551 = vunpack.c.h.b16 %v451
  %v552 = vunpack.c.l.b16 %v452
  %v553 = vunpack.c.h.b16 %v452
  %v554 = vunpack.c.l.b16 %v453
  %v555 = vunpack.c.h.b16 %v453
  %v556 = vunpack.c.l.b16 %v454
  %v557 = vunpack.c.h.b16 %v454
  %v558 = vunpack.c.l.b16 %v455
  %v559 = vunpack.c.h.b16 %v455
  %v560 = vunpack.c.l.b16 %v456
  %v561 = vunpack.c.h.b16 %v456
  %v562 = vunpack.c.l.b16 %v457
  %v563 = vunpack.c.h.b16 %v457
  %v564 = vunpack.c.l.b16 %v458
  %v565 = vunpack.c.h.b16 %v458
  %v566 = vunpack.c.l.b16 %v459
  %v567 = vunpack.c.h.b16 %v459
  %v568 = vpack.c.b16 %v506, %v504
  %v569 = vpack.c.b16 %v507, %v505
  %v570 = vpack.c.b16 %v510, %v508
  %v571 = vpack.c.b16 %v511, %v509
  %v572 = vpack.c.b16 %v514, %v512
  %v573 = vpack.c.b16 %v515, %v513
  %v574 = vpack.c.b16 %v518, %v516
  %v575 = vpack.c.b16 %v519, %v517
  %v576 = vpack.c.b16 %v522, %v520
  %v577 = vpack.c.b16 %v523, %v521
  %v578 = vpack.c.b16 %v526, %v524
  %v579 = vpack.c.b16 %v527, %v525
  %v580 = vpack.c.b16 %v530, %v528
  %v581 = vpack.c.b16 %v531, %v529
  %v582 = vpack.c.b16 %v534, %v532
  %v583 = vpack.c.b16 %v535, %v533
  %v584 = vpack.c.b16 %v538, %v536
  %v585 = vpack.c.b16 %v539, %v537
  %v586 = vpack.c.b16 %v542, %v540
  %v587 = vpack.c.b16 %v543, %v541
  %v588 = vpack.c.b16 %v546, %v544
  %v589 = vpack.c.b16 %v547, %v545
  %v590 = vpack.c.b16 %v550, %v548
  %v591 = vpack.c.b16 %v551, %v549
  %v592 = vpack.c.b16 %v554, %v552
  %v593 = vpack.c.b16 %v555, %v553
  %v594 = vpack.c.b16 %v558, %v556
  %v595 = vpack.c.b16 %v559, %v557
  %v596 = vpack.c.b16 %v562, %v560
  %v597 = vpack.c.b16 %v563, %v561
  %v598 = vpack.c.b16 %v566, %v564
  %v599 = vpack.c.b16 %v567, %v565
  %632 = vmatprep.subr.bf16.mxu0 %v583
  %633 = vmatpush1.bf16.msra.mxu0 %v582
  %634 = vmatprep.subr.bf16.mxu0 %v581
  %635 = vmatpush1.bf16.msra.mxu0 %v580
  %636 = vmatprep.subr.bf16.mxu0 %v579
  %637 = vmatpush1.bf16.msra.mxu0 %v578
  %638 = vmatprep.subr.bf16.mxu0 %v577
  %639 = vmatpush1.bf16.msra.mxu0 %v576
  %640 = vmatprep.subr.bf16.mxu0 %v575
  %641 = vmatpush1.bf16.msra.mxu0 %v574
  %642 = vmatprep.subr.bf16.mxu0 %v573
  %643 = vmatpush1.bf16.msra.mxu0 %v572
  %644 = vmatprep.subr.bf16.mxu0 %v571
  %645 = vmatpush1.bf16.msra.mxu0 %v570
  %646 = vmatprep.subr.bf16.mxu0 %v569
  %647 = vmatpush1.bf16.msra.mxu0 %v568
  %648 = vmatprep.subr.bf16.mxu0 %v599
  %649 = vmatpush2.bf16.msra.mxu0 %v598
  %650 = vmatprep.subr.bf16.mxu0 %v597
  %651 = vmatpush2.bf16.msra.mxu0 %v596
  %652 = vmatprep.subr.bf16.mxu0 %v595
  %653 = vmatpush2.bf16.msra.mxu0 %v594
  %654 = vmatprep.subr.bf16.mxu0 %v593
  %655 = vmatpush2.bf16.msra.mxu0 %v592
  %656 = vmatprep.subr.bf16.mxu0 %v591
  %657 = vmatpush2.bf16.msra.mxu0 %v590
  %658 = vmatprep.subr.bf16.mxu0 %v589
  %659 = vmatpush2.bf16.msra.mxu0 %v588
  %660 = vmatprep.subr.bf16.mxu0 %v587
  %661 = vmatpush2.bf16.msra.mxu0 %v586
  %662 = vmatprep.subr.bf16.mxu0 %v585
  %663 = vmatpush2.bf16.msra.mxu0 %v584
  %664 = vmatprep.mubr.bf16.mxu0 %v413
  %665 = vmatmul.mubr.bf16.gmra.mxu0 %v412
  %v666 = vpop.f32.mrf.mxu0
  %v667 = vadd.f32 %v465, %v666
  %v668 = vpop.f32.mrf.mxu0
  %v669 = vadd.f32 %v469, %v668
  %v670 = vpop.f32.mrf.mxu0
  %v671 = vadd.f32 %v465, %v670
  %v672 = vpop.f32.mrf.mxu0
  %v673 = vadd.f32 %v469, %v672
  %674 = vmatprep.mubr.bf16.mxu0 %v415
  %675 = vmatmul.mubr.bf16.gmra.mxu0 %v414
  %v676 = vpop.f32.mrf.mxu0
  %v677 = vadd.f32 %v465, %v676
  %v678 = vpop.f32.mrf.mxu0
  %v679 = vadd.f32 %v469, %v678
  %v680 = vpop.f32.mrf.mxu0
  %v681 = vadd.f32 %v465, %v680
  %v682 = vpop.f32.mrf.mxu0
  %v683 = vadd.f32 %v469, %v682
  %684 = vmatprep.mubr.bf16.mxu0 %v417
  %685 = vmatmul.mubr.bf16.gmra.mxu0 %v416
  %v686 = vpop.f32.mrf.mxu0
  %v687 = vadd.f32 %v465, %v686
  %v688 = vpop.f32.mrf.mxu0
  %v689 = vadd.f32 %v469, %v688
  %v690 = vpop.f32.mrf.mxu0
  %v691 = vadd.f32 %v465, %v690
  %v692 = vpop.f32.mrf.mxu0
  %v693 = vadd.f32 %v469, %v692
  %694 = vmatprep.mubr.bf16.mxu0 %v419
  %695 = vmatmul.mubr.bf16.gmra.mxu0 %v418
  %v696 = vpop.f32.mrf.mxu0
  %v697 = vadd.f32 %v465, %v696
  %v698 = vpop.f32.mrf.mxu0
  %v699 = vadd.f32 %v469, %v698
  %v700 = vpop.f32.mrf.mxu0
  %v701 = vadd.f32 %v465, %v700
  %v702 = vpop.f32.mrf.mxu0
  %v703 = vadd.f32 %v469, %v702
  %704 = vmatprep.mubr.bf16.mxu0 %v421
  %705 = vmatmul.mubr.bf16.gmra.mxu0 %v420
  %v706 = vpop.f32.mrf.mxu0
  %v707 = vadd.f32 %v465, %v706
  %v708 = vpop.f32.mrf.mxu0
  %v709 = vadd.f32 %v469, %v708
  %v710 = vpop.f32.mrf.mxu0
  %v711 = vadd.f32 %v465, %v710
  %v712 = vpop.f32.mrf.mxu0
  %v713 = vadd.f32 %v469, %v712
  %714 = vmatprep.mubr.bf16.mxu0 %v423
  %715 = vmatmul.mubr.bf16.gmra.mxu0 %v422
  %v716 = vpop.f32.mrf.mxu0
  %v717 = vadd.f32 %v465, %v716
  %v718 = vpop.f32.mrf.mxu0
  %v719 = vadd.f32 %v469, %v718
  %v720 = vpop.f32.mrf.mxu0
  %v721 = vadd.f32 %v465, %v720
  %v722 = vpop.f32.mrf.mxu0
  %v723 = vadd.f32 %v469, %v722
  %724 = vmatprep.mubr.bf16.mxu0 %v425
  %725 = vmatmul.mubr.bf16.gmra.mxu0 %v424
  %v726 = vpop.f32.mrf.mxu0
  %v727 = vadd.f32 %v465, %v726
  %v728 = vpop.f32.mrf.mxu0
  %v729 = vadd.f32 %v469, %v728
  %v730 = vpop.f32.mrf.mxu0
  %v731 = vadd.f32 %v465, %v730
  %v732 = vpop.f32.mrf.mxu0
  %v733 = vadd.f32 %v469, %v732
  %734 = vmatprep.mubr.bf16.mxu0 %v427
  %735 = vmatmul.mubr.bf16.gmra.mxu0 %v426
  %v736 = vpop.f32.mrf.mxu0
  %v737 = vadd.f32 %v465, %v736
  %v738 = vpop.f32.mrf.mxu0
  %v739 = vadd.f32 %v469, %v738
  %v740 = vpop.f32.mrf.mxu0
  %v741 = vadd.f32 %v465, %v740
  %v742 = vpop.f32.mrf.mxu0
  %v743 = vadd.f32 %v469, %v742
  %744 = vdwg.mxu0
  %v745 = vpack.c.bf16 %v671, %v667
  %v746 = vpack.c.bf16 %v673, %v669
  %v747 = vpack.c.bf16 %v681, %v677
  %v748 = vpack.c.bf16 %v683, %v679
  %v749 = vpack.c.bf16 %v691, %v687
  %v750 = vpack.c.bf16 %v693, %v689
  %v751 = vpack.c.bf16 %v701, %v697
  %v752 = vpack.c.bf16 %v703, %v699
  %v753 = vpack.c.bf16 %v711, %v707
  %v754 = vpack.c.bf16 %v713, %v709
  %v755 = vpack.c.bf16 %v721, %v717
  %v756 = vpack.c.bf16 %v723, %v719
  %v757 = vpack.c.bf16 %v731, %v727
  %v758 = vpack.c.bf16 %v733, %v729
  %v759 = vpack.c.bf16 %v741, %v737
  %v760 = vpack.c.bf16 %v743, %v739
  %v777 = vunpack.c.l.b16 %v745
  %v778 = vunpack.c.l.b16 %v746
  %v779 = vunpack.c.h.b16 %v745
  %v780 = vunpack.c.h.b16 %v746
  %v781 = vunpack.c.l.b16 %v747
  %v782 = vunpack.c.l.b16 %v748
  %v783 = vunpack.c.h.b16 %v747
  %v784 = vunpack.c.h.b16 %v748
  %v785 = vunpack.c.l.b16 %v749
  %v786 = vunpack.c.l.b16 %v750
  %v787 = vunpack.c.h.b16 %v749
  %v788 = vunpack.c.h.b16 %v750
  %v789 = vunpack.c.l.b16 %v751
  %v790 = vunpack.c.l.b16 %v752
  %v791 = vunpack.c.h.b16 %v751
  %v792 = vunpack.c.h.b16 %v752
  %v793 = vunpack.c.l.b16 %v753
  %v794 = vunpack.c.l.b16 %v754
  %v795 = vunpack.c.h.b16 %v753
  %v796 = vunpack.c.h.b16 %v754
  %v797 = vunpack.c.l.b16 %v755
  %v798 = vunpack.c.l.b16 %v756
  %v799 = vunpack.c.h.b16 %v755
  %v800 = vunpack.c.h.b16 %v756
  %v801 = vunpack.c.l.b16 %v757
  %v802 = vunpack.c.l.b16 %v758
  %v803 = vunpack.c.h.b16 %v757
  %v804 = vunpack.c.h.b16 %v758
  %v805 = vunpack.c.l.b16 %v759
  %v806 = vunpack.c.l.b16 %v760
  %v807 = vunpack.c.h.b16 %v759
  %v808 = vunpack.c.h.b16 %v760
  %v809 = vpack.c.b16 %v778, %v777
  %v810 = vpack.c.b16 %v780, %v779
  %v811 = vpack.c.b16 %v782, %v781
  %v812 = vpack.c.b16 %v784, %v783
  %v813 = vpack.c.b16 %v786, %v785
  %v814 = vpack.c.b16 %v788, %v787
  %v815 = vpack.c.b16 %v790, %v789
  %v816 = vpack.c.b16 %v792, %v791
  %v817 = vpack.c.b16 %v794, %v793
  %v818 = vpack.c.b16 %v796, %v795
  %v819 = vpack.c.b16 %v798, %v797
  %v820 = vpack.c.b16 %v800, %v799
  %v821 = vpack.c.b16 %v802, %v801
  %v822 = vpack.c.b16 %v804, %v803
  %v823 = vpack.c.b16 %v806, %v805
  %v824 = vpack.c.b16 %v808, %v807
  %841 = vst [vmem:[%s9] sm:$0xff] %v809
  %842 = vst [vmem:[%s9 + $0x8] sm:$0xff] %v810
  %843 = vst [vmem:[%s9 + $0x10] sm:$0xff] %v811
  %844 = vst [vmem:[%s9 + $0x18] sm:$0xff] %v812
  %845 = vst [vmem:[%s9 + $0x20] sm:$0xff] %v813
  %846 = vst [vmem:[%s9 + $0x28] sm:$0xff] %v814
  %847 = vst [vmem:[%s9 + $0x30] sm:$0xff] %v815
  %848 = vst [vmem:[%s9 + $0x38] sm:$0xff] %v816
  %849 = vst [vmem:[%s9 + $0x40] sm:$0xff] %v817
  %850 = vst [vmem:[%s9 + $0x48] sm:$0xff] %v818
  %851 = vst [vmem:[%s9 + $0x50] sm:$0xff] %v819
  %852 = vst [vmem:[%s9 + $0x58] sm:$0xff] %v820
  %853 = vst [vmem:[%s9 + $0x60] sm:$0xff] %v821
  %854 = vst [vmem:[%s9 + $0x68] sm:$0xff] %v822
  %855 = vst [vmem:[%s9 + $0x70] sm:$0xff] %v823
  %856 = vst [vmem:[%s9 + $0x78] sm:$0xff] %v824
  %v857 = vld [vmem:[%s5] sm:$0xff]
  %v858 = vld [vmem:[%s5 + $0x8] sm:$0xff]
  %v859 = vld [vmem:[%s5 + $0x10] sm:$0xff]
  %v860 = vld [vmem:[%s5 + $0x18] sm:$0xff]
  %v861 = vld [vmem:[%s5 + $0x20] sm:$0xff]
  %v862 = vld [vmem:[%s5 + $0x28] sm:$0xff]
  %v863 = vld [vmem:[%s5 + $0x30] sm:$0xff]
  %v864 = vld [vmem:[%s5 + $0x38] sm:$0xff]
  %v865 = vld [vmem:[%s5 + $0x40] sm:$0xff]
  %v866 = vld [vmem:[%s5 + $0x48] sm:$0xff]
  %v867 = vld [vmem:[%s5 + $0x50] sm:$0xff]
  %v868 = vld [vmem:[%s5 + $0x58] sm:$0xff]
  %v869 = vld [vmem:[%s5 + $0x60] sm:$0xff]
  %v870 = vld [vmem:[%s5 + $0x68] sm:$0xff]
  %v871 = vld [vmem:[%s5 + $0x70] sm:$0xff]
  %v872 = vld [vmem:[%s5 + $0x78] sm:$0xff]
  %v873 = vld [vmem:[%s5 + $0x80] sm:$0xff]
  %v874 = vld [vmem:[%s5 + $0x88] sm:$0xff]
  %v875 = vld [vmem:[%s5 + $0x90] sm:$0xff]
  %v876 = vld [vmem:[%s5 + $0x98] sm:$0xff]
  %v877 = vld [vmem:[%s5 + $0xa0] sm:$0xff]
  %v878 = vld [vmem:[%s5 + $0xa8] sm:$0xff]
  %v879 = vld [vmem:[%s5 + $0xb0] sm:$0xff]
  %v880 = vld [vmem:[%s5 + $0xb8] sm:$0xff]
  %v881 = vld [vmem:[%s5 + $0xc0] sm:$0xff]
  %v882 = vld [vmem:[%s5 + $0xc8] sm:$0xff]
  %v883 = vld [vmem:[%s5 + $0xd0] sm:$0xff]
  %v884 = vld [vmem:[%s5 + $0xd8] sm:$0xff]
  %v885 = vld [vmem:[%s5 + $0xe0] sm:$0xff]
  %v886 = vld [vmem:[%s5 + $0xe8] sm:$0xff]
  %v887 = vld [vmem:[%s5 + $0xf0] sm:$0xff]
  %v888 = vld [vmem:[%s5 + $0xf8] sm:$0xff]
  %v889 = vld [vmem:[%s6] sm:$0x3]
  %v891 = vlaneseq
  %v892 = vshrl.u32 %v891, 7
  %v893 = vsub.s32 0, %v892
  %v894 = vrot.slane %v889, %v893
  %v895 = vlaneseq
  %v896 = vshrl.u32 %v895, 7
  %v897 = vsub.s32 1, %v896
  %v898 = vrot.slane %v889, %v897
  %v933 = vunpack.c.l.b16 %v857
  %v934 = vunpack.c.h.b16 %v857
  %v935 = vunpack.c.l.b16 %v858
  %v936 = vunpack.c.h.b16 %v858
  %v937 = vunpack.c.l.b16 %v859
  %v938 = vunpack.c.h.b16 %v859
  %v939 = vunpack.c.l.b16 %v860
  %v940 = vunpack.c.h.b16 %v860
  %v941 = vunpack.c.l.b16 %v861
  %v942 = vunpack.c.h.b16 %v861
  %v943 = vunpack.c.l.b16 %v862
  %v944 = vunpack.c.h.b16 %v862
  %v945 = vunpack.c.l.b16 %v863
  %v946 = vunpack.c.h.b16 %v863
  %v947 = vunpack.c.l.b16 %v864
  %v948 = vunpack.c.h.b16 %v864
  %v949 = vunpack.c.l.b16 %v865
  %v950 = vunpack.c.h.b16 %v865
  %v951 = vunpack.c.l.b16 %v866
  %v952 = vunpack.c.h.b16 %v866
  %v953 = vunpack.c.l.b16 %v867
  %v954 = vunpack.c.h.b16 %v867
  %v955 = vunpack.c.l.b16 %v868
  %v956 = vunpack.c.h.b16 %v868
  %v957 = vunpack.c.l.b16 %v869
  %v958 = vunpack.c.h.b16 %v869
  %v959 = vunpack.c.l.b16 %v870
  %v960 = vunpack.c.h.b16 %v870
  %v961 = vunpack.c.l.b16 %v871
  %v962 = vunpack.c.h.b16 %v871
  %v963 = vunpack.c.l.b16 %v872
  %v964 = vunpack.c.h.b16 %v872
  %v965 = vunpack.c.l.b16 %v873
  %v966 = vunpack.c.h.b16 %v873
  %v967 = vunpack.c.l.b16 %v874
  %v968 = vunpack.c.h.b16 %v874
  %v969 = vunpack.c.l.b16 %v875
  %v970 = vunpack.c.h.b16 %v875
  %v971 = vunpack.c.l.b16 %v876
  %v972 = vunpack.c.h.b16 %v876
  %v973 = vunpack.c.l.b16 %v877
  %v974 = vunpack.c.h.b16 %v877
  %v975 = vunpack.c.l.b16 %v878
  %v976 = vunpack.c.h.b16 %v878
  %v977 = vunpack.c.l.b16 %v879
  %v978 = vunpack.c.h.b16 %v879
  %v979 = vunpack.c.l.b16 %v880
  %v980 = vunpack.c.h.b16 %v880
  %v981 = vunpack.c.l.b16 %v881
  %v982 = vunpack.c.h.b16 %v881
  %v983 = vunpack.c.l.b16 %v882
  %v984 = vunpack.c.h.b16 %v882
  %v985 = vunpack.c.l.b16 %v883
  %v986 = vunpack.c.h.b16 %v883
  %v987 = vunpack.c.l.b16 %v884
  %v988 = vunpack.c.h.b16 %v884
  %v989 = vunpack.c.l.b16 %v885
  %v990 = vunpack.c.h.b16 %v885
  %v991 = vunpack.c.l.b16 %v886
  %v992 = vunpack.c.h.b16 %v886
  %v993 = vunpack.c.l.b16 %v887
  %v994 = vunpack.c.h.b16 %v887
  %v995 = vunpack.c.l.b16 %v888
  %v996 = vunpack.c.h.b16 %v888
  %v997 = vpack.c.b16 %v935, %v933
  %v998 = vpack.c.b16 %v936, %v934
  %v999 = vpack.c.b16 %v939, %v937
  %v1000 = vpack.c.b16 %v940, %v938
  %v1001 = vpack.c.b16 %v943, %v941
  %v1002 = vpack.c.b16 %v944, %v942
  %v1003 = vpack.c.b16 %v947, %v945
  %v1004 = vpack.c.b16 %v948, %v946
  %v1005 = vpack.c.b16 %v951, %v949
  %v1006 = vpack.c.b16 %v952, %v950
  %v1007 = vpack.c.b16 %v955, %v953
  %v1008 = vpack.c.b16 %v956, %v954
  %v1009 = vpack.c.b16 %v959, %v957
  %v1010 = vpack.c.b16 %v960, %v958
  %v1011 = vpack.c.b16 %v963, %v961
  %v1012 = vpack.c.b16 %v964, %v962
  %v1013 = vpack.c.b16 %v967, %v965
  %v1014 = vpack.c.b16 %v968, %v966
  %v1015 = vpack.c.b16 %v971, %v969
  %v1016 = vpack.c.b16 %v972, %v970
  %v1017 = vpack.c.b16 %v975, %v973
  %v1018 = vpack.c.b16 %v976, %v974
  %v1019 = vpack.c.b16 %v979, %v977
  %v1020 = vpack.c.b16 %v980, %v978
  %v1021 = vpack.c.b16 %v983, %v981
  %v1022 = vpack.c.b16 %v984, %v982
  %v1023 = vpack.c.b16 %v987, %v985
  %v1024 = vpack.c.b16 %v988, %v986
  %v1025 = vpack.c.b16 %v991, %v989
  %v1026 = vpack.c.b16 %v992, %v990
  %v1027 = vpack.c.b16 %v995, %v993
  %v1028 = vpack.c.b16 %v996, %v994
  %1061 = vmatprep.subr.bf16.mxu0 %v1012
  %1062 = vmatpush1.bf16.msra.mxu0 %v1011
  %1063 = vmatprep.subr.bf16.mxu0 %v1010
  %1064 = vmatpush1.bf16.msra.mxu0 %v1009
  %1065 = vmatprep.subr.bf16.mxu0 %v1008
  %1066 = vmatpush1.bf16.msra.mxu0 %v1007
  %1067 = vmatprep.subr.bf16.mxu0 %v1006
  %1068 = vmatpush1.bf16.msra.mxu0 %v1005
  %1069 = vmatprep.subr.bf16.mxu0 %v1004
  %1070 = vmatpush1.bf16.msra.mxu0 %v1003
  %1071 = vmatprep.subr.bf16.mxu0 %v1002
  %1072 = vmatpush1.bf16.msra.mxu0 %v1001
  %1073 = vmatprep.subr.bf16.mxu0 %v1000
  %1074 = vmatpush1.bf16.msra.mxu0 %v999
  %1075 = vmatprep.subr.bf16.mxu0 %v998
  %1076 = vmatpush1.bf16.msra.mxu0 %v997
  %1077 = vmatprep.subr.bf16.mxu0 %v1028
  %1078 = vmatpush2.bf16.msra.mxu0 %v1027
  %1079 = vmatprep.subr.bf16.mxu0 %v1026
  %1080 = vmatpush2.bf16.msra.mxu0 %v1025
  %1081 = vmatprep.subr.bf16.mxu0 %v1024
  %1082 = vmatpush2.bf16.msra.mxu0 %v1023
  %1083 = vmatprep.subr.bf16.mxu0 %v1022
  %1084 = vmatpush2.bf16.msra.mxu0 %v1021
  %1085 = vmatprep.subr.bf16.mxu0 %v1020
  %1086 = vmatpush2.bf16.msra.mxu0 %v1019
  %1087 = vmatprep.subr.bf16.mxu0 %v1018
  %1088 = vmatpush2.bf16.msra.mxu0 %v1017
  %1089 = vmatprep.subr.bf16.mxu0 %v1016
  %1090 = vmatpush2.bf16.msra.mxu0 %v1015
  %1091 = vmatprep.subr.bf16.mxu0 %v1014
  %1092 = vmatpush2.bf16.msra.mxu0 %v1013
  %1093 = vmatprep.mubr.bf16.mxu0 %v413
  %1094 = vmatmul.mubr.bf16.gmra.mxu0 %v412
  %v1095 = vpop.f32.mrf.mxu0
  %v1096 = vadd.f32 %v894, %v1095
  %v1097 = vpop.f32.mrf.mxu0
  %v1098 = vadd.f32 %v898, %v1097
  %v1099 = vpop.f32.mrf.mxu0
  %v1100 = vadd.f32 %v894, %v1099
  %v1101 = vpop.f32.mrf.mxu0
  %v1102 = vadd.f32 %v898, %v1101
  %1103 = vmatprep.mubr.bf16.mxu0 %v415
  %1104 = vmatmul.mubr.bf16.gmra.mxu0 %v414
  %v1105 = vpop.f32.mrf.mxu0
  %v1106 = vadd.f32 %v894, %v1105
  %v1107 = vpop.f32.mrf.mxu0
  %v1108 = vadd.f32 %v898, %v1107
  %v1109 = vpop.f32.mrf.mxu0
  %v1110 = vadd.f32 %v894, %v1109
  %v1111 = vpop.f32.mrf.mxu0
  %v1112 = vadd.f32 %v898, %v1111
  %1113 = vmatprep.mubr.bf16.mxu0 %v417
  %1114 = vmatmul.mubr.bf16.gmra.mxu0 %v416
  %v1115 = vpop.f32.mrf.mxu0
  %v1116 = vadd.f32 %v894, %v1115
  %v1117 = vpop.f32.mrf.mxu0
  %v1118 = vadd.f32 %v898, %v1117
  %v1119 = vpop.f32.mrf.mxu0
  %v1120 = vadd.f32 %v894, %v1119
  %v1121 = vpop.f32.mrf.mxu0
  %v1122 = vadd.f32 %v898, %v1121
  %1123 = vmatprep.mubr.bf16.mxu0 %v419
  %1124 = vmatmul.mubr.bf16.gmra.mxu0 %v418
  %v1125 = vpop.f32.mrf.mxu0
  %v1126 = vadd.f32 %v894, %v1125
  %v1127 = vpop.f32.mrf.mxu0
  %v1128 = vadd.f32 %v898, %v1127
  %v1129 = vpop.f32.mrf.mxu0
  %v1130 = vadd.f32 %v894, %v1129
  %v1131 = vpop.f32.mrf.mxu0
  %v1132 = vadd.f32 %v898, %v1131
  %1133 = vmatprep.mubr.bf16.mxu0 %v421
  %1134 = vmatmul.mubr.bf16.gmra.mxu0 %v420
  %v1135 = vpop.f32.mrf.mxu0
  %v1136 = vadd.f32 %v894, %v1135
  %v1137 = vpop.f32.mrf.mxu0
  %v1138 = vadd.f32 %v898, %v1137
  %v1139 = vpop.f32.mrf.mxu0
  %v1140 = vadd.f32 %v894, %v1139
  %v1141 = vpop.f32.mrf.mxu0
  %v1142 = vadd.f32 %v898, %v1141
  %1143 = vmatprep.mubr.bf16.mxu0 %v423
  %1144 = vmatmul.mubr.bf16.gmra.mxu0 %v422
  %v1145 = vpop.f32.mrf.mxu0
  %v1146 = vadd.f32 %v894, %v1145
  %v1147 = vpop.f32.mrf.mxu0
  %v1148 = vadd.f32 %v898, %v1147
  %v1149 = vpop.f32.mrf.mxu0
  %v1150 = vadd.f32 %v894, %v1149
  %v1151 = vpop.f32.mrf.mxu0
  %v1152 = vadd.f32 %v898, %v1151
  %1153 = vmatprep.mubr.bf16.mxu0 %v425
  %1154 = vmatmul.mubr.bf16.gmra.mxu0 %v424
  %v1155 = vpop.f32.mrf.mxu0
  %v1156 = vadd.f32 %v894, %v1155
  %v1157 = vpop.f32.mrf.mxu0
  %v1158 = vadd.f32 %v898, %v1157
  %v1159 = vpop.f32.mrf.mxu0
  %v1160 = vadd.f32 %v894, %v1159
  %v1161 = vpop.f32.mrf.mxu0
  %v1162 = vadd.f32 %v898, %v1161
  %1163 = vmatprep.mubr.bf16.mxu0 %v427
  %1164 = vmatmul.mubr.bf16.gmra.mxu0 %v426
  %v1165 = vpop.f32.mrf.mxu0
  %v1166 = vadd.f32 %v894, %v1165
  %v1167 = vpop.f32.mrf.mxu0
  %v1168 = vadd.f32 %v898, %v1167
  %v1169 = vpop.f32.mrf.mxu0
  %v1170 = vadd.f32 %v894, %v1169
  %v1171 = vpop.f32.mrf.mxu0
  %v1172 = vadd.f32 %v898, %v1171
  %1173 = vdwg.mxu0
  %v1174 = vpack.c.bf16 %v1100, %v1096
  %v1175 = vpack.c.bf16 %v1102, %v1098
  %v1176 = vpack.c.bf16 %v1110, %v1106
  %v1177 = vpack.c.bf16 %v1112, %v1108
  %v1178 = vpack.c.bf16 %v1120, %v1116
  %v1179 = vpack.c.bf16 %v1122, %v1118
  %v1180 = vpack.c.bf16 %v1130, %v1126
  %v1181 = vpack.c.bf16 %v1132, %v1128
  %v1182 = vpack.c.bf16 %v1140, %v1136
  %v1183 = vpack.c.bf16 %v1142, %v1138
  %v1184 = vpack.c.bf16 %v1150, %v1146
  %v1185 = vpack.c.bf16 %v1152, %v1148
  %v1186 = vpack.c.bf16 %v1160, %v1156
  %v1187 = vpack.c.bf16 %v1162, %v1158
  %v1188 = vpack.c.bf16 %v1170, %v1166
  %v1189 = vpack.c.bf16 %v1172, %v1168
  %v1206 = vunpack.c.l.b16 %v1174
  %v1207 = vunpack.c.l.b16 %v1175
  %v1208 = vunpack.c.h.b16 %v1174
  %v1209 = vunpack.c.h.b16 %v1175
  %v1210 = vunpack.c.l.b16 %v1176
  %v1211 = vunpack.c.l.b16 %v1177
  %v1212 = vunpack.c.h.b16 %v1176
  %v1213 = vunpack.c.h.b16 %v1177
  %v1214 = vunpack.c.l.b16 %v1178
  %v1215 = vunpack.c.l.b16 %v1179
  %v1216 = vunpack.c.h.b16 %v1178
  %v1217 = vunpack.c.h.b16 %v1179
  %v1218 = vunpack.c.l.b16 %v1180
  %v1219 = vunpack.c.l.b16 %v1181
  %v1220 = vunpack.c.h.b16 %v1180
  %v1221 = vunpack.c.h.b16 %v1181
  %v1222 = vunpack.c.l.b16 %v1182
  %v1223 = vunpack.c.l.b16 %v1183
  %v1224 = vunpack.c.h.b16 %v1182
  %v1225 = vunpack.c.h.b16 %v1183
  %v1226 = vunpack.c.l.b16 %v1184
  %v1227 = vunpack.c.l.b16 %v1185
  %v1228 = vunpack.c.h.b16 %v1184
  %v1229 = vunpack.c.h.b16 %v1185
  %v1230 = vunpack.c.l.b16 %v1186
  %v1231 = vunpack.c.l.b16 %v1187
  %v1232 = vunpack.c.h.b16 %v1186
  %v1233 = vunpack.c.h.b16 %v1187
  %v1234 = vunpack.c.l.b16 %v1188
  %v1235 = vunpack.c.l.b16 %v1189
  %v1236 = vunpack.c.h.b16 %v1188
  %v1237 = vunpack.c.h.b16 %v1189
  %v1238 = vpack.c.b16 %v1207, %v1206
  %v1239 = vpack.c.b16 %v1209, %v1208
  %v1240 = vpack.c.b16 %v1211, %v1210
  %v1241 = vpack.c.b16 %v1213, %v1212
  %v1242 = vpack.c.b16 %v1215, %v1214
  %v1243 = vpack.c.b16 %v1217, %v1216
  %v1244 = vpack.c.b16 %v1219, %v1218
  %v1245 = vpack.c.b16 %v1221, %v1220
  %v1246 = vpack.c.b16 %v1223, %v1222
  %v1247 = vpack.c.b16 %v1225, %v1224
  %v1248 = vpack.c.b16 %v1227, %v1226
  %v1249 = vpack.c.b16 %v1229, %v1228
  %v1250 = vpack.c.b16 %v1231, %v1230
  %v1251 = vpack.c.b16 %v1233, %v1232
  %v1252 = vpack.c.b16 %v1235, %v1234
  %v1253 = vpack.c.b16 %v1237, %v1236
  %1270 = vst [vmem:[%s10] sm:$0xff] %v1238
  %1271 = vst [vmem:[%s10 + $0x8] sm:$0xff] %v1239
  %1272 = vst [vmem:[%s10 + $0x10] sm:$0xff] %v1240
  %1273 = vst [vmem:[%s10 + $0x18] sm:$0xff] %v1241
  %1274 = vst [vmem:[%s10 + $0x20] sm:$0xff] %v1242
  %1275 = vst [vmem:[%s10 + $0x28] sm:$0xff] %v1243
  %1276 = vst [vmem:[%s10 + $0x30] sm:$0xff] %v1244
  %1277 = vst [vmem:[%s10 + $0x38] sm:$0xff] %v1245
  %1278 = vst [vmem:[%s10 + $0x40] sm:$0xff] %v1246
  %1279 = vst [vmem:[%s10 + $0x48] sm:$0xff] %v1247
  %1280 = vst [vmem:[%s10 + $0x50] sm:$0xff] %v1248
  %1281 = vst [vmem:[%s10 + $0x58] sm:$0xff] %v1249
  %1282 = vst [vmem:[%s10 + $0x60] sm:$0xff] %v1250
  %1283 = vst [vmem:[%s10 + $0x68] sm:$0xff] %v1251
  %1284 = vst [vmem:[%s10 + $0x70] sm:$0xff] %v1252
  %1285 = vst [vmem:[%s10 + $0x78] sm:$0xff] %v1253
  %v1286 = vld [vmem:[%s7] sm:$0xff]
  %v1287 = vld [vmem:[%s7 + $0x8] sm:$0xff]
  %v1288 = vld [vmem:[%s7 + $0x10] sm:$0xff]
  %v1289 = vld [vmem:[%s7 + $0x18] sm:$0xff]
  %v1290 = vld [vmem:[%s7 + $0x20] sm:$0xff]
  %v1291 = vld [vmem:[%s7 + $0x28] sm:$0xff]
  %v1292 = vld [vmem:[%s7 + $0x30] sm:$0xff]
  %v1293 = vld [vmem:[%s7 + $0x38] sm:$0xff]
  %v1294 = vld [vmem:[%s7 + $0x40] sm:$0xff]
  %v1295 = vld [vmem:[%s7 + $0x48] sm:$0xff]
  %v1296 = vld [vmem:[%s7 + $0x50] sm:$0xff]
  %v1297 = vld [vmem:[%s7 + $0x58] sm:$0xff]
  %v1298 = vld [vmem:[%s7 + $0x60] sm:$0xff]
  %v1299 = vld [vmem:[%s7 + $0x68] sm:$0xff]
  %v1300 = vld [vmem:[%s7 + $0x70] sm:$0xff]
  %v1301 = vld [vmem:[%s7 + $0x78] sm:$0xff]
  %v1302 = vld [vmem:[%s7 + $0x80] sm:$0xff]
  %v1303 = vld [vmem:[%s7 + $0x88] sm:$0xff]
  %v1304 = vld [vmem:[%s7 + $0x90] sm:$0xff]
  %v1305 = vld [vmem:[%s7 + $0x98] sm:$0xff]
  %v1306 = vld [vmem:[%s7 + $0xa0] sm:$0xff]
  %v1307 = vld [vmem:[%s7 + $0xa8] sm:$0xff]
  %v1308 = vld [vmem:[%s7 + $0xb0] sm:$0xff]
  %v1309 = vld [vmem:[%s7 + $0xb8] sm:$0xff]
  %v1310 = vld [vmem:[%s7 + $0xc0] sm:$0xff]
  %v1311 = vld [vmem:[%s7 + $0xc8] sm:$0xff]
  %v1312 = vld [vmem:[%s7 + $0xd0] sm:$0xff]
  %v1313 = vld [vmem:[%s7 + $0xd8] sm:$0xff]
  %v1314 = vld [vmem:[%s7 + $0xe0] sm:$0xff]
  %v1315 = vld [vmem:[%s7 + $0xe8] sm:$0xff]
  %v1316 = vld [vmem:[%s7 + $0xf0] sm:$0xff]
  %v1317 = vld [vmem:[%s7 + $0xf8] sm:$0xff]
  %v1318 = vld [vmem:[%s8] sm:$0x3]
  %v1320 = vlaneseq
  %v1321 = vshrl.u32 %v1320, 7
  %v1322 = vsub.s32 0, %v1321
  %v1323 = vrot.slane %v1318, %v1322
  %v1324 = vlaneseq
  %v1325 = vshrl.u32 %v1324, 7
  %v1326 = vsub.s32 1, %v1325
  %v1327 = vrot.slane %v1318, %v1326
  %v1362 = vunpack.c.l.b16 %v1286
  %v1363 = vunpack.c.h.b16 %v1286
  %v1364 = vunpack.c.l.b16 %v1287
  %v1365 = vunpack.c.h.b16 %v1287
  %v1366 = vunpack.c.l.b16 %v1288
  %v1367 = vunpack.c.h.b16 %v1288
  %v1368 = vunpack.c.l.b16 %v1289
  %v1369 = vunpack.c.h.b16 %v1289
  %v1370 = vunpack.c.l.b16 %v1290
  %v1371 = vunpack.c.h.b16 %v1290
  %v1372 = vunpack.c.l.b16 %v1291
  %v1373 = vunpack.c.h.b16 %v1291
  %v1374 = vunpack.c.l.b16 %v1292
  %v1375 = vunpack.c.h.b16 %v1292
  %v1376 = vunpack.c.l.b16 %v1293
  %v1377 = vunpack.c.h.b16 %v1293
  %v1378 = vunpack.c.l.b16 %v1294
  %v1379 = vunpack.c.h.b16 %v1294
  %v1380 = vunpack.c.l.b16 %v1295
  %v1381 = vunpack.c.h.b16 %v1295
  %v1382 = vunpack.c.l.b16 %v1296
  %v1383 = vunpack.c.h.b16 %v1296
  %v1384 = vunpack.c.l.b16 %v1297
  %v1385 = vunpack.c.h.b16 %v1297
  %v1386 = vunpack.c.l.b16 %v1298
  %v1387 = vunpack.c.h.b16 %v1298
  %v1388 = vunpack.c.l.b16 %v1299
  %v1389 = vunpack.c.h.b16 %v1299
  %v1390 = vunpack.c.l.b16 %v1300
  %v1391 = vunpack.c.h.b16 %v1300
  %v1392 = vunpack.c.l.b16 %v1301
  %v1393 = vunpack.c.h.b16 %v1301
  %v1394 = vunpack.c.l.b16 %v1302
  %v1395 = vunpack.c.h.b16 %v1302
  %v1396 = vunpack.c.l.b16 %v1303
  %v1397 = vunpack.c.h.b16 %v1303
  %v1398 = vunpack.c.l.b16 %v1304
  %v1399 = vunpack.c.h.b16 %v1304
  %v1400 = vunpack.c.l.b16 %v1305
  %v1401 = vunpack.c.h.b16 %v1305
  %v1402 = vunpack.c.l.b16 %v1306
  %v1403 = vunpack.c.h.b16 %v1306
  %v1404 = vunpack.c.l.b16 %v1307
  %v1405 = vunpack.c.h.b16 %v1307
  %v1406 = vunpack.c.l.b16 %v1308
  %v1407 = vunpack.c.h.b16 %v1308
  %v1408 = vunpack.c.l.b16 %v1309
  %v1409 = vunpack.c.h.b16 %v1309
  %v1410 = vunpack.c.l.b16 %v1310
  %v1411 = vunpack.c.h.b16 %v1310
  %v1412 = vunpack.c.l.b16 %v1311
  %v1413 = vunpack.c.h.b16 %v1311
  %v1414 = vunpack.c.l.b16 %v1312
  %v1415 = vunpack.c.h.b16 %v1312
  %v1416 = vunpack.c.l.b16 %v1313
  %v1417 = vunpack.c.h.b16 %v1313
  %v1418 = vunpack.c.l.b16 %v1314
  %v1419 = vunpack.c.h.b16 %v1314
  %v1420 = vunpack.c.l.b16 %v1315
  %v1421 = vunpack.c.h.b16 %v1315
  %v1422 = vunpack.c.l.b16 %v1316
  %v1423 = vunpack.c.h.b16 %v1316
  %v1424 = vunpack.c.l.b16 %v1317
  %v1425 = vunpack.c.h.b16 %v1317
  %v1426 = vpack.c.b16 %v1364, %v1362
  %v1427 = vpack.c.b16 %v1365, %v1363
  %v1428 = vpack.c.b16 %v1368, %v1366
  %v1429 = vpack.c.b16 %v1369, %v1367
  %v1430 = vpack.c.b16 %v1372, %v1370
  %v1431 = vpack.c.b16 %v1373, %v1371
  %v1432 = vpack.c.b16 %v1376, %v1374
  %v1433 = vpack.c.b16 %v1377, %v1375
  %v1434 = vpack.c.b16 %v1380, %v1378
  %v1435 = vpack.c.b16 %v1381, %v1379
  %v1436 = vpack.c.b16 %v1384, %v1382
  %v1437 = vpack.c.b16 %v1385, %v1383
  %v1438 = vpack.c.b16 %v1388, %v1386
  %v1439 = vpack.c.b16 %v1389, %v1387
  %v1440 = vpack.c.b16 %v1392, %v1390
  %v1441 = vpack.c.b16 %v1393, %v1391
  %v1442 = vpack.c.b16 %v1396, %v1394
  %v1443 = vpack.c.b16 %v1397, %v1395
  %v1444 = vpack.c.b16 %v1400, %v1398
  %v1445 = vpack.c.b16 %v1401, %v1399
  %v1446 = vpack.c.b16 %v1404, %v1402
  %v1447 = vpack.c.b16 %v1405, %v1403
  %v1448 = vpack.c.b16 %v1408, %v1406
  %v1449 = vpack.c.b16 %v1409, %v1407
  %v1450 = vpack.c.b16 %v1412, %v1410
  %v1451 = vpack.c.b16 %v1413, %v1411
  %v1452 = vpack.c.b16 %v1416, %v1414
  %v1453 = vpack.c.b16 %v1417, %v1415
  %v1454 = vpack.c.b16 %v1420, %v1418
  %v1455 = vpack.c.b16 %v1421, %v1419
  %v1456 = vpack.c.b16 %v1424, %v1422
  %v1457 = vpack.c.b16 %v1425, %v1423
  %1490 = vmatprep.subr.bf16.mxu0 %v1441
  %1491 = vmatpush1.bf16.msra.mxu0 %v1440
  %1492 = vmatprep.subr.bf16.mxu0 %v1439
  %1493 = vmatpush1.bf16.msra.mxu0 %v1438
  %1494 = vmatprep.subr.bf16.mxu0 %v1437
  %1495 = vmatpush1.bf16.msra.mxu0 %v1436
  %1496 = vmatprep.subr.bf16.mxu0 %v1435
  %1497 = vmatpush1.bf16.msra.mxu0 %v1434
  %1498 = vmatprep.subr.bf16.mxu0 %v1433
  %1499 = vmatpush1.bf16.msra.mxu0 %v1432
  %1500 = vmatprep.subr.bf16.mxu0 %v1431
  %1501 = vmatpush1.bf16.msra.mxu0 %v1430
  %1502 = vmatprep.subr.bf16.mxu0 %v1429
  %1503 = vmatpush1.bf16.msra.mxu0 %v1428
  %1504 = vmatprep.subr.bf16.mxu0 %v1427
  %1505 = vmatpush1.bf16.msra.mxu0 %v1426
  %1506 = vmatprep.subr.bf16.mxu0 %v1457
  %1507 = vmatpush2.bf16.msra.mxu0 %v1456
  %1508 = vmatprep.subr.bf16.mxu0 %v1455
  %1509 = vmatpush2.bf16.msra.mxu0 %v1454
  %1510 = vmatprep.subr.bf16.mxu0 %v1453
  %1511 = vmatpush2.bf16.msra.mxu0 %v1452
  %1512 = vmatprep.subr.bf16.mxu0 %v1451
  %1513 = vmatpush2.bf16.msra.mxu0 %v1450
  %1514 = vmatprep.subr.bf16.mxu0 %v1449
  %1515 = vmatpush2.bf16.msra.mxu0 %v1448
  %1516 = vmatprep.subr.bf16.mxu0 %v1447
  %1517 = vmatpush2.bf16.msra.mxu0 %v1446
  %1518 = vmatprep.subr.bf16.mxu0 %v1445
  %1519 = vmatpush2.bf16.msra.mxu0 %v1444
  %1520 = vmatprep.subr.bf16.mxu0 %v1443
  %1521 = vmatpush2.bf16.msra.mxu0 %v1442
  %1522 = vmatprep.mubr.bf16.mxu0 %v413
  %1523 = vmatmul.mubr.bf16.gmra.mxu0 %v412
  %v1524 = vpop.f32.mrf.mxu0
  %v1525 = vadd.f32 %v1323, %v1524
  %v1526 = vpop.f32.mrf.mxu0
  %v1527 = vadd.f32 %v1327, %v1526
  %v1528 = vpop.f32.mrf.mxu0
  %v1529 = vadd.f32 %v1323, %v1528
  %v1530 = vpop.f32.mrf.mxu0
  %v1531 = vadd.f32 %v1327, %v1530
  %1532 = vmatprep.mubr.bf16.mxu0 %v415
  %1533 = vmatmul.mubr.bf16.gmra.mxu0 %v414
  %v1534 = vpop.f32.mrf.mxu0
  %v1535 = vadd.f32 %v1323, %v1534
  %v1536 = vpop.f32.mrf.mxu0
  %v1537 = vadd.f32 %v1327, %v1536
  %v1538 = vpop.f32.mrf.mxu0
  %v1539 = vadd.f32 %v1323, %v1538
  %v1540 = vpop.f32.mrf.mxu0
  %v1541 = vadd.f32 %v1327, %v1540
  %1542 = vmatprep.mubr.bf16.mxu0 %v417
  %1543 = vmatmul.mubr.bf16.gmra.mxu0 %v416
  %v1544 = vpop.f32.mrf.mxu0
  %v1545 = vadd.f32 %v1323, %v1544
  %v1546 = vpop.f32.mrf.mxu0
  %v1547 = vadd.f32 %v1327, %v1546
  %v1548 = vpop.f32.mrf.mxu0
  %v1549 = vadd.f32 %v1323, %v1548
  %v1550 = vpop.f32.mrf.mxu0
  %v1551 = vadd.f32 %v1327, %v1550
  %1552 = vmatprep.mubr.bf16.mxu0 %v419
  %1553 = vmatmul.mubr.bf16.gmra.mxu0 %v418
  %v1554 = vpop.f32.mrf.mxu0
  %v1555 = vadd.f32 %v1323, %v1554
  %v1556 = vpop.f32.mrf.mxu0
  %v1557 = vadd.f32 %v1327, %v1556
  %v1558 = vpop.f32.mrf.mxu0
  %v1559 = vadd.f32 %v1323, %v1558
  %v1560 = vpop.f32.mrf.mxu0
  %v1561 = vadd.f32 %v1327, %v1560
  %1562 = vmatprep.mubr.bf16.mxu0 %v421
  %1563 = vmatmul.mubr.bf16.gmra.mxu0 %v420
  %v1564 = vpop.f32.mrf.mxu0
  %v1565 = vadd.f32 %v1323, %v1564
  %v1566 = vpop.f32.mrf.mxu0
  %v1567 = vadd.f32 %v1327, %v1566
  %v1568 = vpop.f32.mrf.mxu0
  %v1569 = vadd.f32 %v1323, %v1568
  %v1570 = vpop.f32.mrf.mxu0
  %v1571 = vadd.f32 %v1327, %v1570
  %1572 = vmatprep.mubr.bf16.mxu0 %v423
  %1573 = vmatmul.mubr.bf16.gmra.mxu0 %v422
  %v1574 = vpop.f32.mrf.mxu0
  %v1575 = vadd.f32 %v1323, %v1574
  %v1576 = vpop.f32.mrf.mxu0
  %v1577 = vadd.f32 %v1327, %v1576
  %v1578 = vpop.f32.mrf.mxu0
  %v1579 = vadd.f32 %v1323, %v1578
  %v1580 = vpop.f32.mrf.mxu0
  %v1581 = vadd.f32 %v1327, %v1580
  %1582 = vmatprep.mubr.bf16.mxu0 %v425
  %1583 = vmatmul.mubr.bf16.gmra.mxu0 %v424
  %v1584 = vpop.f32.mrf.mxu0
  %v1585 = vadd.f32 %v1323, %v1584
  %v1586 = vpop.f32.mrf.mxu0
  %v1587 = vadd.f32 %v1327, %v1586
  %v1588 = vpop.f32.mrf.mxu0
  %v1589 = vadd.f32 %v1323, %v1588
  %v1590 = vpop.f32.mrf.mxu0
  %v1591 = vadd.f32 %v1327, %v1590
  %1592 = vmatprep.mubr.bf16.mxu0 %v427
  %1593 = vmatmul.mubr.bf16.gmra.mxu0 %v426
  %v1594 = vpop.f32.mrf.mxu0
  %v1595 = vadd.f32 %v1323, %v1594
  %v1596 = vpop.f32.mrf.mxu0
  %v1597 = vadd.f32 %v1327, %v1596
  %v1598 = vpop.f32.mrf.mxu0
  %v1599 = vadd.f32 %v1323, %v1598
  %v1600 = vpop.f32.mrf.mxu0
  %v1601 = vadd.f32 %v1327, %v1600
  %1602 = vdwg.mxu0
  %v1603 = vpack.c.bf16 %v1529, %v1525
  %v1604 = vpack.c.bf16 %v1531, %v1527
  %v1605 = vpack.c.bf16 %v1539, %v1535
  %v1606 = vpack.c.bf16 %v1541, %v1537
  %v1607 = vpack.c.bf16 %v1549, %v1545
  %v1608 = vpack.c.bf16 %v1551, %v1547
  %v1609 = vpack.c.bf16 %v1559, %v1555
  %v1610 = vpack.c.bf16 %v1561, %v1557
  %v1611 = vpack.c.bf16 %v1569, %v1565
  %v1612 = vpack.c.bf16 %v1571, %v1567
  %v1613 = vpack.c.bf16 %v1579, %v1575
  %v1614 = vpack.c.bf16 %v1581, %v1577
  %v1615 = vpack.c.bf16 %v1589, %v1585
  %v1616 = vpack.c.bf16 %v1591, %v1587
  %v1617 = vpack.c.bf16 %v1599, %v1595
  %v1618 = vpack.c.bf16 %v1601, %v1597
  %v1635 = vunpack.c.l.b16 %v1603
  %v1636 = vunpack.c.l.b16 %v1604
  %v1637 = vunpack.c.h.b16 %v1603
  %v1638 = vunpack.c.h.b16 %v1604
  %v1639 = vunpack.c.l.b16 %v1605
  %v1640 = vunpack.c.l.b16 %v1606
  %v1641 = vunpack.c.h.b16 %v1605
  %v1642 = vunpack.c.h.b16 %v1606
  %v1643 = vunpack.c.l.b16 %v1607
  %v1644 = vunpack.c.l.b16 %v1608
  %v1645 = vunpack.c.h.b16 %v1607
  %v1646 = vunpack.c.h.b16 %v1608
  %v1647 = vunpack.c.l.b16 %v1609
  %v1648 = vunpack.c.l.b16 %v1610
  %v1649 = vunpack.c.h.b16 %v1609
  %v1650 = vunpack.c.h.b16 %v1610
  %v1651 = vunpack.c.l.b16 %v1611
  %v1652 = vunpack.c.l.b16 %v1612
  %v1653 = vunpack.c.h.b16 %v1611
  %v1654 = vunpack.c.h.b16 %v1612
  %v1655 = vunpack.c.l.b16 %v1613
  %v1656 = vunpack.c.l.b16 %v1614
  %v1657 = vunpack.c.h.b16 %v1613
  %v1658 = vunpack.c.h.b16 %v1614
  %v1659 = vunpack.c.l.b16 %v1615
  %v1660 = vunpack.c.l.b16 %v1616
  %v1661 = vunpack.c.h.b16 %v1615
  %v1662 = vunpack.c.h.b16 %v1616
  %v1663 = vunpack.c.l.b16 %v1617
  %v1664 = vunpack.c.l.b16 %v1618
  %v1665 = vunpack.c.h.b16 %v1617
  %v1666 = vunpack.c.h.b16 %v1618
  %v1667 = vpack.c.b16 %v1636, %v1635
  %v1668 = vpack.c.b16 %v1638, %v1637
  %v1669 = vpack.c.b16 %v1640, %v1639
  %v1670 = vpack.c.b16 %v1642, %v1641
  %v1671 = vpack.c.b16 %v1644, %v1643
  %v1672 = vpack.c.b16 %v1646, %v1645
  %v1673 = vpack.c.b16 %v1648, %v1647
  %v1674 = vpack.c.b16 %v1650, %v1649
  %v1675 = vpack.c.b16 %v1652, %v1651
  %v1676 = vpack.c.b16 %v1654, %v1653
  %v1677 = vpack.c.b16 %v1656, %v1655
  %v1678 = vpack.c.b16 %v1658, %v1657
  %v1679 = vpack.c.b16 %v1660, %v1659
  %v1680 = vpack.c.b16 %v1662, %v1661
  %v1681 = vpack.c.b16 %v1664, %v1663
  %v1682 = vpack.c.b16 %v1666, %v1665
  %1699 = vst [vmem:[%s11] sm:$0xff] %v1667
  %1700 = vst [vmem:[%s11 + $0x8] sm:$0xff] %v1668
  %1701 = vst [vmem:[%s11 + $0x10] sm:$0xff] %v1669
  %1702 = vst [vmem:[%s11 + $0x18] sm:$0xff] %v1670
  %1703 = vst [vmem:[%s11 + $0x20] sm:$0xff] %v1671
  %1704 = vst [vmem:[%s11 + $0x28] sm:$0xff] %v1672
  %1705 = vst [vmem:[%s11 + $0x30] sm:$0xff] %v1673
  %1706 = vst [vmem:[%s11 + $0x38] sm:$0xff] %v1674
  %1707 = vst [vmem:[%s11 + $0x40] sm:$0xff] %v1675
  %1708 = vst [vmem:[%s11 + $0x48] sm:$0xff] %v1676
  %1709 = vst [vmem:[%s11 + $0x50] sm:$0xff] %v1677
  %1710 = vst [vmem:[%s11 + $0x58] sm:$0xff] %v1678
  %1711 = vst [vmem:[%s11 + $0x60] sm:$0xff] %v1679
  %1712 = vst [vmem:[%s11 + $0x68] sm:$0xff] %v1680
  %1713 = vst [vmem:[%s11 + $0x70] sm:$0xff] %v1681
  %1714 = vst [vmem:[%s11 + $0x78] sm:$0xff] %v1682
  // Predicated region
  $region38: #{_lambda_.11} parent=0 // pred_check
    _
  $region39: #{_lambda_.11} parent=0 // pred_check_branch
    %1716 = sbr.rel (0) target = $region41
  $region40: #{_lambda_.11} parent=0 // pred_region
    _
  $region41: #{_lambda_.11} parent=0 // pred_fallthru
    _
  // Predicated region
  $region42: #{_lambda_.11} parent=0 // pred_check
    _
  $region43: #{_lambda_.11} parent=0 // pred_check_branch
    %1718 = sbr.rel (0) target = $region45
  $region44: #{_lambda_.11} parent=0 // pred_region
    _
  $region45: #{_lambda_.11} parent=0 // pred_fallthru
    _
  // Predicated region
  $region46: #{_lambda_.11} parent=0 // pred_check
    _
  $region47: #{_lambda_.11} parent=0 // pred_check_branch
    %1720 = sbr.rel (0) target = $region49
  $region48: #{_lambda_.11} parent=0 // pred_region
    _
  $region49: #{_lambda_.11} parent=0 // pred_fallthru
    _
  // Predicated region
  $region50: #{_lambda_.11} parent=0 // pred_check
    _
  $region51: #{_lambda_.11} parent=0 // pred_check_branch
    %1722 = sbr.rel (0) target = $region53
  $region52: #{_lambda_.11} parent=0 // pred_region
    _
  $region53: #{_lambda_.11} parent=0 // pred_fallthru
    _
  // Predicated region
  $region54: #{_lambda_.11} parent=0 // pred_check
    _
  $region55: #{_lambda_.11} parent=0 // pred_check_branch
    %1724 = sbr.rel (0) target = $region57
  $region56: #{_lambda_.11} parent=0 // pred_region
    _
  $region57: #{_lambda_.11} parent=0 // pred_fallthru
    _
  // Predicated region
  $region58: #{_lambda_.11} parent=0 // pred_check
    _
  $region59: #{_lambda_.11} parent=0 // pred_check_branch
    %1726 = sbr.rel (0) target = $region61
  $region60: #{_lambda_.11} parent=0 // pred_region
    _
  $region61: #{_lambda_.11} parent=0 // pred_fallthru
    _

// kernel: _lambda_.12
$region0: #{_lambda_.12}
  #allocation0 [shape = 'u32[]', space=smem, size = 0x4, offset = 0x4, fixed_abs, tag = 'smem constant byte address 0x4 - core index']
  #allocation1 [shape = 'u32[144,128]{1,0:T(1,128)}', space=vmem, size = 0x12000, scoped, tag = 'internal scratch']
  #allocation2 [shape = 'f32[2,128,1]{2,1,0:T(8,128)}', space=vmem, size = 0x20000, scoped, tag = 'scratch operand']
  #allocation3 [shape = 'f32[2,128,1]{2,1,0:T(8,128)}', space=vmem, size = 0x20000, scoped, tag = 'scratch operand']
  #allocation4 [shape = 'f32[2,128,128]{2,1,0:T(8,128)}', space=vmem, size = 0x20000, scoped, tag = 'scratch operand']
  %s0 = inlined_call_operand.vmem [shape: bf16[128,256], index: 0, kind: input, shape index: {}]
  %s1 = inlined_call_operand.vmem [shape: bf16[128,256], index: 1, kind: input, shape index: {}]
  %s2 = inlined_call_operand.vmem [shape: bf16[128,256], index: 2, kind: input, shape index: {}]
  %s3 = inlined_call_operand.vmem [shape: bf16[128,128], index: 3, kind: input, shape index: {}]
  %s4 = inlined_call_operand.vmem [shape: bf16[128,256], index: 4, kind: output, shape index: {}]
  %s5 = sld [smem:[#allocation0]]
  $region34: #{_lambda_.12} parent=0
    _
  %s7 = ssub.s32 1, %s5
  %s8 = scalar_select 0, %s7, %s5
  // Predicated region
  $region2: #{_lambda_.12} parent=0 // pred_check
    _
  $region3: #{_lambda_.12} parent=0 // pred_check_branch
    %10 = sbr.rel (0) target = $region5
  $region4: #{_lambda_.12} parent=0 // pred_region
    _
  $region5: #{_lambda_.12} parent=0 // pred_fallthru
    _
  // Predicated region
  $region6: #{_lambda_.12} parent=0 // pred_check
    _
  $region7: #{_lambda_.12} parent=0 // pred_check_branch
    %12 = sbr.rel (0) target = $region9
  $region8: #{_lambda_.12} parent=0 // pred_region
    _
  $region9: #{_lambda_.12} parent=0 // pred_fallthru
    _
  // Predicated region
  $region10: #{_lambda_.12} parent=0 // pred_check
    _
  $region11: #{_lambda_.12} parent=0 // pred_check_branch
    %14 = sbr.rel (0) target = $region13
  $region12: #{_lambda_.12} parent=0 // pred_region
    _
  $region13: #{_lambda_.12} parent=0 // pred_fallthru
    _
  // Predicated region
  $region14: #{_lambda_.12} parent=0 // pred_check
    _
  $region15: #{_lambda_.12} parent=0 // pred_check_branch
    %16 = sbr.rel (0) target = $region17
  $region16: #{_lambda_.12} parent=0 // pred_region
    _
  $region17: #{_lambda_.12} parent=0 // pred_fallthru
    _
  %p18 = scmp.eq.s32.totalorder 0, 0
  // Predicated region
  $region18: #{_lambda_.12} parent=0 // pred_check
    %p19 = pneg %p18
  $region19: #{_lambda_.12} parent=0 // pred_check_branch
    %21 = sbr.rel (%p19) target = $region21
  $region20: #{_lambda_.12} parent=0 // pred_region
    %vm22 = vcmask 7168
    %23 = vst.msk [vmem:[#allocation2] sm:$0xff] %vm22, -inf
    %24 = vst.msk [vmem:[#allocation2 + $0x8] sm:$0xff] %vm22, -inf
    %25 = vst.msk [vmem:[#allocation2 + $0x10] sm:$0xff] %vm22, -inf
    %26 = vst.msk [vmem:[#allocation2 + $0x18] sm:$0xff] %vm22, -inf
    %27 = vst.msk [vmem:[#allocation2 + $0x20] sm:$0xff] %vm22, -inf
    %28 = vst.msk [vmem:[#allocation2 + $0x28] sm:$0xff] %vm22, -inf
    %29 = vst.msk [vmem:[#allocation2 + $0x30] sm:$0xff] %vm22, -inf
    %30 = vst.msk [vmem:[#allocation2 + $0x38] sm:$0xff] %vm22, -inf
    %31 = vst.msk [vmem:[#allocation2 + $0x40] sm:$0xff] %vm22, -inf
    %32 = vst.msk [vmem:[#allocation2 + $0x48] sm:$0xff] %vm22, -inf
    %33 = vst.msk [vmem:[#allocation2 + $0x50] sm:$0xff] %vm22, -inf
    %34 = vst.msk [vmem:[#allocation2 + $0x58] sm:$0xff] %vm22, -inf
    %35 = vst.msk [vmem:[#allocation2 + $0x60] sm:$0xff] %vm22, -inf
    %36 = vst.msk [vmem:[#allocation2 + $0x68] sm:$0xff] %vm22, -inf
    %37 = vst.msk [vmem:[#allocation2 + $0x70] sm:$0xff] %vm22, -inf
    %38 = vst.msk [vmem:[#allocation2 + $0x78] sm:$0xff] %vm22, -inf
    %39 = vst.msk [vmem:[#allocation2 + $0x80] sm:$0xff] %vm22, -inf
    %40 = vst.msk [vmem:[#allocation2 + $0x88] sm:$0xff] %vm22, -inf
    %41 = vst.msk [vmem:[#allocation2 + $0x90] sm:$0xff] %vm22, -inf
    %42 = vst.msk [vmem:[#allocation2 + $0x98] sm:$0xff] %vm22, -inf
    %43 = vst.msk [vmem:[#allocation2 + $0xa0] sm:$0xff] %vm22, -inf
    %44 = vst.msk [vmem:[#allocation2 + $0xa8] sm:$0xff] %vm22, -inf
    %45 = vst.msk [vmem:[#allocation2 + $0xb0] sm:$0xff] %vm22, -inf
    %46 = vst.msk [vmem:[#allocation2 + $0xb8] sm:$0xff] %vm22, -inf
    %47 = vst.msk [vmem:[#allocation2 + $0xc0] sm:$0xff] %vm22, -inf
    %48 = vst.msk [vmem:[#allocation2 + $0xc8] sm:$0xff] %vm22, -inf
    %49 = vst.msk [vmem:[#allocation2 + $0xd0] sm:$0xff] %vm22, -inf
    %50 = vst.msk [vmem:[#allocation2 + $0xd8] sm:$0xff] %vm22, -inf
    %51 = vst.msk [vmem:[#allocation2 + $0xe0] sm:$0xff] %vm22, -inf
    %52 = vst.msk [vmem:[#allocation2 + $0xe8] sm:$0xff] %vm22, -inf
    %53 = vst.msk [vmem:[#allocation2 + $0xf0] sm:$0xff] %vm22, -inf
    %54 = vst.msk [vmem:[#allocation2 + $0xf8] sm:$0xff] %vm22, -inf
    %55 = vst.msk [vmem:[#allocation3] sm:$0xff] %vm22, 0.0
    %56 = vst.msk [vmem:[#allocation3 + $0x8] sm:$0xff] %vm22, 0.0
    %57 = vst.msk [vmem:[#allocation3 + $0x10] sm:$0xff] %vm22, 0.0
    %58 = vst.msk [vmem:[#allocation3 + $0x18] sm:$0xff] %vm22, 0.0
    %59 = vst.msk [vmem:[#allocation3 + $0x20] sm:$0xff] %vm22, 0.0
    %60 = vst.msk [vmem:[#allocation3 + $0x28] sm:$0xff] %vm22, 0.0
    %61 = vst.msk [vmem:[#allocation3 + $0x30] sm:$0xff] %vm22, 0.0
    %62 = vst.msk [vmem:[#allocation3 + $0x38] sm:$0xff] %vm22, 0.0
    %63 = vst.msk [vmem:[#allocation3 + $0x40] sm:$0xff] %vm22, 0.0
    %64 = vst.msk [vmem:[#allocation3 + $0x48] sm:$0xff] %vm22, 0.0
    %65 = vst.msk [vmem:[#allocation3 + $0x50] sm:$0xff] %vm22, 0.0
    %66 = vst.msk [vmem:[#allocation3 + $0x58] sm:$0xff] %vm22, 0.0
    %67 = vst.msk [vmem:[#allocation3 + $0x60] sm:$0xff] %vm22, 0.0
    %68 = vst.msk [vmem:[#allocation3 + $0x68] sm:$0xff] %vm22, 0.0
    %69 = vst.msk [vmem:[#allocation3 + $0x70] sm:$0xff] %vm22, 0.0
    %70 = vst.msk [vmem:[#allocation3 + $0x78] sm:$0xff] %vm22, 0.0
    %71 = vst.msk [vmem:[#allocation3 + $0x80] sm:$0xff] %vm22, 0.0
    %72 = vst.msk [vmem:[#allocation3 + $0x88] sm:$0xff] %vm22, 0.0
    %73 = vst.msk [vmem:[#allocation3 + $0x90] sm:$0xff] %vm22, 0.0
    %74 = vst.msk [vmem:[#allocation3 + $0x98] sm:$0xff] %vm22, 0.0
    %75 = vst.msk [vmem:[#allocation3 + $0xa0] sm:$0xff] %vm22, 0.0
    %76 = vst.msk [vmem:[#allocation3 + $0xa8] sm:$0xff] %vm22, 0.0
    %77 = vst.msk [vmem:[#allocation3 + $0xb0] sm:$0xff] %vm22, 0.0
    %78 = vst.msk [vmem:[#allocation3 + $0xb8] sm:$0xff] %vm22, 0.0
    %79 = vst.msk [vmem:[#allocation3 + $0xc0] sm:$0xff] %vm22, 0.0
    %80 = vst.msk [vmem:[#allocation3 + $0xc8] sm:$0xff] %vm22, 0.0
    %81 = vst.msk [vmem:[#allocation3 + $0xd0] sm:$0xff] %vm22, 0.0
    %82 = vst.msk [vmem:[#allocation3 + $0xd8] sm:$0xff] %vm22, 0.0
    %83 = vst.msk [vmem:[#allocation3 + $0xe0] sm:$0xff] %vm22, 0.0
    %84 = vst.msk [vmem:[#allocation3 + $0xe8] sm:$0xff] %vm22, 0.0
    %85 = vst.msk [vmem:[#allocation3 + $0xf0] sm:$0xff] %vm22, 0.0
    %86 = vst.msk [vmem:[#allocation3 + $0xf8] sm:$0xff] %vm22, 0.0
    %87 = vst [vmem:[#allocation4] sm:$0xff] 0.0
    %88 = vst [vmem:[#allocation4 + $0x8] sm:$0xff] 0.0
    %89 = vst [vmem:[#allocation4 + $0x10] sm:$0xff] 0.0
    %90 = vst [vmem:[#allocation4 + $0x18] sm:$0xff] 0.0
    %91 = vst [vmem:[#allocation4 + $0x20] sm:$0xff] 0.0
    %92 = vst [vmem:[#allocation4 + $0x28] sm:$0xff] 0.0
    %93 = vst [vmem:[#allocation4 + $0x30] sm:$0xff] 0.0
    %94 = vst [vmem:[#allocation4 + $0x38] sm:$0xff] 0.0
    %95 = vst [vmem:[#allocation4 + $0x40] sm:$0xff] 0.0
    %96 = vst [vmem:[#allocation4 + $0x48] sm:$0xff] 0.0
    %97 = vst [vmem:[#allocation4 + $0x50] sm:$0xff] 0.0
    %98 = vst [vmem:[#allocation4 + $0x58] sm:$0xff] 0.0
    %99 = vst [vmem:[#allocation4 + $0x60] sm:$0xff] 0.0
    %100 = vst [vmem:[#allocation4 + $0x68] sm:$0xff] 0.0
    %101 = vst [vmem:[#allocation4 + $0x70] sm:$0xff] 0.0
    %102 = vst [vmem:[#allocation4 + $0x78] sm:$0xff] 0.0
    %103 = vst [vmem:[#allocation4 + $0x80] sm:$0xff] 0.0
    %104 = vst [vmem:[#allocation4 + $0x88] sm:$0xff] 0.0
    %105 = vst [vmem:[#allocation4 + $0x90] sm:$0xff] 0.0
    %106 = vst [vmem:[#allocation4 + $0x98] sm:$0xff] 0.0
    %107 = vst [vmem:[#allocation4 + $0xa0] sm:$0xff] 0.0
    %108 = vst [vmem:[#allocation4 + $0xa8] sm:$0xff] 0.0
    %109 = vst [vmem:[#allocation4 + $0xb0] sm:$0xff] 0.0
    %110 = vst [vmem:[#allocation4 + $0xb8] sm:$0xff] 0.0
    %111 = vst [vmem:[#allocation4 + $0xc0] sm:$0xff] 0.0
    %112 = vst [vmem:[#allocation4 + $0xc8] sm:$0xff] 0.0
    %113 = vst [vmem:[#allocation4 + $0xd0] sm:$0xff] 0.0
    %114 = vst [vmem:[#allocation4 + $0xd8] sm:$0xff] 0.0
    %115 = vst [vmem:[#allocation4 + $0xe0] sm:$0xff] 0.0
    %116 = vst [vmem:[#allocation4 + $0xe8] sm:$0xff] 0.0
    %117 = vst [vmem:[#allocation4 + $0xf0] sm:$0xff] 0.0
    %118 = vst [vmem:[#allocation4 + $0xf8] sm:$0xff] 0.0
  $region21: #{_lambda_.12} parent=0 // pred_fallthru
    _
  %v119 = vld [vmem:[%s3] sm:$0xf]
  %v120 = vld [vmem:[%s3 + $0x4] sm:$0xf]
  %v121 = vld [vmem:[%s3 + $0x8] sm:$0xf]
  %v122 = vld [vmem:[%s3 + $0xc] sm:$0xf]
  %v123 = vld [vmem:[%s3 + $0x10] sm:$0xf]
  %v124 = vld [vmem:[%s3 + $0x14] sm:$0xf]
  %v125 = vld [vmem:[%s3 + $0x18] sm:$0xf]
  %v126 = vld [vmem:[%s3 + $0x1c] sm:$0xf]
  %v127 = vld [vmem:[%s3 + $0x20] sm:$0xf]
  %v128 = vld [vmem:[%s3 + $0x24] sm:$0xf]
  %v129 = vld [vmem:[%s3 + $0x28] sm:$0xf]
  %v130 = vld [vmem:[%s3 + $0x2c] sm:$0xf]
  %v131 = vld [vmem:[%s3 + $0x30] sm:$0xf]
  %v132 = vld [vmem:[%s3 + $0x34] sm:$0xf]
  %v133 = vld [vmem:[%s3 + $0x38] sm:$0xf]
  %v134 = vld [vmem:[%s3 + $0x3c] sm:$0xf]
  %v135 = vunpack.c.l.bf16 %v119
  %v136 = vunpack.c.l.bf16 %v120
  %v137 = vunpack.c.l.bf16 %v121
  %v138 = vunpack.c.l.bf16 %v122
  %v139 = vunpack.c.l.bf16 %v123
  %v140 = vunpack.c.l.bf16 %v124
  %v141 = vunpack.c.l.bf16 %v125
  %v142 = vunpack.c.l.bf16 %v126
  %v143 = vunpack.c.l.bf16 %v127
  %v144 = vunpack.c.l.bf16 %v128
  %v145 = vunpack.c.l.bf16 %v129
  %v146 = vunpack.c.l.bf16 %v130
  %v147 = vunpack.c.l.bf16 %v131
  %v148 = vunpack.c.l.bf16 %v132
  %v149 = vunpack.c.l.bf16 %v133
  %v150 = vunpack.c.l.bf16 %v134
  %v151 = vld [vmem:[%s0] sm:$0xff]
  %v152 = vld [vmem:[%s0 + $0x8] sm:$0xff]
  %v153 = vld [vmem:[%s0 + $0x10] sm:$0xff]
  %v154 = vld [vmem:[%s0 + $0x18] sm:$0xff]
  %v155 = vld [vmem:[%s0 + $0x20] sm:$0xff]
  %v156 = vld [vmem:[%s0 + $0x28] sm:$0xff]
  %v157 = vld [vmem:[%s0 + $0x30] sm:$0xff]
  %v158 = vld [vmem:[%s0 + $0x38] sm:$0xff]
  %v159 = vld [vmem:[%s0 + $0x40] sm:$0xff]
  %v160 = vld [vmem:[%s0 + $0x48] sm:$0xff]
  %v161 = vld [vmem:[%s0 + $0x50] sm:$0xff]
  %v162 = vld [vmem:[%s0 + $0x58] sm:$0xff]
  %v163 = vld [vmem:[%s0 + $0x60] sm:$0xff]
  %v164 = vld [vmem:[%s0 + $0x68] sm:$0xff]
  %v165 = vld [vmem:[%s0 + $0x70] sm:$0xff]
  %v166 = vld [vmem:[%s0 + $0x78] sm:$0xff]
  %v167 = vld [vmem:[%s1] sm:$0xff]
  %v168 = vld [vmem:[%s1 + $0x8] sm:$0xff]
  %v169 = vld [vmem:[%s1 + $0x10] sm:$0xff]
  %v170 = vld [vmem:[%s1 + $0x18] sm:$0xff]
  %v171 = vld [vmem:[%s1 + $0x20] sm:$0xff]
  %v172 = vld [vmem:[%s1 + $0x28] sm:$0xff]
  %v173 = vld [vmem:[%s1 + $0x30] sm:$0xff]
  %v174 = vld [vmem:[%s1 + $0x38] sm:$0xff]
  %v175 = vld [vmem:[%s1 + $0x40] sm:$0xff]
  %v176 = vld [vmem:[%s1 + $0x48] sm:$0xff]
  %v177 = vld [vmem:[%s1 + $0x50] sm:$0xff]
  %v178 = vld [vmem:[%s1 + $0x58] sm:$0xff]
  %v179 = vld [vmem:[%s1 + $0x60] sm:$0xff]
  %v180 = vld [vmem:[%s1 + $0x68] sm:$0xff]
  %v181 = vld [vmem:[%s1 + $0x70] sm:$0xff]
  %v182 = vld [vmem:[%s1 + $0x78] sm:$0xff]
  %v183 = vld [vmem:[%s2] sm:$0xff]
  %v184 = vld [vmem:[%s2 + $0x8] sm:$0xff]
  %v185 = vld [vmem:[%s2 + $0x10] sm:$0xff]
  %v186 = vld [vmem:[%s2 + $0x18] sm:$0xff]
  %v187 = vld [vmem:[%s2 + $0x20] sm:$0xff]
  %v188 = vld [vmem:[%s2 + $0x28] sm:$0xff]
  %v189 = vld [vmem:[%s2 + $0x30] sm:$0xff]
  %v190 = vld [vmem:[%s2 + $0x38] sm:$0xff]
  %v191 = vld [vmem:[%s2 + $0x40] sm:$0xff]
  %v192 = vld [vmem:[%s2 + $0x48] sm:$0xff]
  %v193 = vld [vmem:[%s2 + $0x50] sm:$0xff]
  %v194 = vld [vmem:[%s2 + $0x58] sm:$0xff]
  %v195 = vld [vmem:[%s2 + $0x60] sm:$0xff]
  %v196 = vld [vmem:[%s2 + $0x68] sm:$0xff]
  %v197 = vld [vmem:[%s2 + $0x70] sm:$0xff]
  %v198 = vld [vmem:[%s2 + $0x78] sm:$0xff]
  %v215 = vunpack.c.l.b16 %v151
  %v216 = vunpack.c.l.b16 %v152
  %v217 = vunpack.c.l.b16 %v153
  %v218 = vunpack.c.l.b16 %v154
  %v219 = vunpack.c.l.b16 %v155
  %v220 = vunpack.c.l.b16 %v156
  %v221 = vunpack.c.l.b16 %v157
  %v222 = vunpack.c.l.b16 %v158
  %v223 = vunpack.c.l.b16 %v159
  %v224 = vunpack.c.l.b16 %v160
  %v225 = vunpack.c.l.b16 %v161
  %v226 = vunpack.c.l.b16 %v162
  %v227 = vunpack.c.l.b16 %v163
  %v228 = vunpack.c.l.b16 %v164
  %v229 = vunpack.c.l.b16 %v165
  %v230 = vunpack.c.l.b16 %v166
  %v231 = vpack.c.b16 %v216, %v215
  %v232 = vpack.c.b16 %v218, %v217
  %v233 = vpack.c.b16 %v220, %v219
  %v234 = vpack.c.b16 %v222, %v221
  %v235 = vpack.c.b16 %v224, %v223
  %v236 = vpack.c.b16 %v226, %v225
  %v237 = vpack.c.b16 %v228, %v227
  %v238 = vpack.c.b16 %v230, %v229
  %v263 = vunpack.c.l.b16 %v167
  %v264 = vunpack.c.l.b16 %v168
  %v265 = vunpack.c.l.b16 %v169
  %v266 = vunpack.c.l.b16 %v170
  %v267 = vunpack.c.l.b16 %v171
  %v268 = vunpack.c.l.b16 %v172
  %v269 = vunpack.c.l.b16 %v173
  %v270 = vunpack.c.l.b16 %v174
  %v271 = vunpack.c.l.b16 %v175
  %v272 = vunpack.c.l.b16 %v176
  %v273 = vunpack.c.l.b16 %v177
  %v274 = vunpack.c.l.b16 %v178
  %v275 = vunpack.c.l.b16 %v179
  %v276 = vunpack.c.l.b16 %v180
  %v277 = vunpack.c.l.b16 %v181
  %v278 = vunpack.c.l.b16 %v182
  %v279 = vpack.c.b16 %v264, %v263
  %v280 = vpack.c.b16 %v266, %v265
  %v281 = vpack.c.b16 %v268, %v267
  %v282 = vpack.c.b16 %v270, %v269
  %v283 = vpack.c.b16 %v272, %v271
  %v284 = vpack.c.b16 %v274, %v273
  %v285 = vpack.c.b16 %v276, %v275
  %v286 = vpack.c.b16 %v278, %v277
  %295 = vmatprep.subr.bf16.mxu0 0
  %296 = vmatpush1.bf16.xpose.msra.mxu0 %v286
  %297 = vmatprep.subr.bf16.mxu0 0
  %298 = vmatpush1.bf16.xpose.msra.mxu0 %v285
  %299 = vmatprep.subr.bf16.mxu0 0
  %300 = vmatpush1.bf16.xpose.msra.mxu0 %v284
  %301 = vmatprep.subr.bf16.mxu0 0
  %302 = vmatpush1.bf16.xpose.msra.mxu0 %v283
  %303 = vmatprep.subr.bf16.mxu0 0
  %304 = vmatpush1.bf16.xpose.msra.mxu0 %v282
  %305 = vmatprep.subr.bf16.mxu0 0
  %306 = vmatpush1.bf16.xpose.msra.mxu0 %v281
  %307 = vmatprep.subr.bf16.mxu0 0
  %308 = vmatpush1.bf16.xpose.msra.mxu0 %v280
  %309 = vmatprep.subr.bf16.mxu0 0
  %310 = vmatpush1.bf16.xpose.msra.mxu0 %v279
  %311 = vmatprep.subr.bf16.mxu0 0
  %312 = vmatpush2.bf16.xpose.msra.mxu0 0
  %313 = vmatprep.subr.bf16.mxu0 0
  %314 = vmatpush2.bf16.xpose.msra.mxu0 0
  %315 = vmatprep.subr.bf16.mxu0 0
  %316 = vmatpush2.bf16.xpose.msra.mxu0 0
  %317 = vmatprep.subr.bf16.mxu0 0
  %318 = vmatpush2.bf16.xpose.msra.mxu0 0
  %319 = vmatprep.subr.bf16.mxu0 0
  %320 = vmatpush2.bf16.xpose.msra.mxu0 0
  %321 = vmatprep.subr.bf16.mxu0 0
  %322 = vmatpush2.bf16.xpose.msra.mxu0 0
  %323 = vmatprep.subr.bf16.mxu0 0
  %324 = vmatpush2.bf16.xpose.msra.mxu0 0
  %325 = vmatprep.subr.bf16.mxu0 0
  %326 = vmatpush2.bf16.xpose.msra.mxu0 0
  %327 = vmatprep.mubr.bf16.mxu0 0
  %328 = vmatmul.mubr.bf16.gmra.mxu0 %v231
  %v329 = vpop.f32.mrf.mxu0
  %v330 = vadd.f32 0.0, %v329
  %v331 = vpop.f32.mrf.mxu0
  %v332 = vpop.f32.mrf.mxu0
  %v333 = vadd.f32 0.0, %v332
  %v334 = vpop.f32.mrf.mxu0
  %335 = vmatprep.mubr.bf16.mxu0 0
  %336 = vmatmul.mubr.bf16.gmra.mxu0 %v232
  %v337 = vpop.f32.mrf.mxu0
  %v338 = vadd.f32 0.0, %v337
  %v339 = vpop.f32.mrf.mxu0
  %v340 = vpop.f32.mrf.mxu0
  %v341 = vadd.f32 0.0, %v340
  %v342 = vpop.f32.mrf.mxu0
  %343 = vmatprep.mubr.bf16.mxu0 0
  %344 = vmatmul.mubr.bf16.gmra.mxu0 %v233
  %v345 = vpop.f32.mrf.mxu0
  %v346 = vadd.f32 0.0, %v345
  %v347 = vpop.f32.mrf.mxu0
  %v348 = vpop.f32.mrf.mxu0
  %v349 = vadd.f32 0.0, %v348
  %v350 = vpop.f32.mrf.mxu0
  %351 = vmatprep.mubr.bf16.mxu0 0
  %352 = vmatmul.mubr.bf16.gmra.mxu0 %v234
  %v353 = vpop.f32.mrf.mxu0
  %v354 = vadd.f32 0.0, %v353
  %v355 = vpop.f32.mrf.mxu0
  %v356 = vpop.f32.mrf.mxu0
  %v357 = vadd.f32 0.0, %v356
  %v358 = vpop.f32.mrf.mxu0
  %359 = vmatprep.mubr.bf16.mxu0 0
  %360 = vmatmul.mubr.bf16.gmra.mxu0 %v235
  %v361 = vpop.f32.mrf.mxu0
  %v362 = vadd.f32 0.0, %v361
  %v363 = vpop.f32.mrf.mxu0
  %v364 = vpop.f32.mrf.mxu0
  %v365 = vadd.f32 0.0, %v364
  %v366 = vpop.f32.mrf.mxu0
  %367 = vmatprep.mubr.bf16.mxu0 0
  %368 = vmatmul.mubr.bf16.gmra.mxu0 %v236
  %v369 = vpop.f32.mrf.mxu0
  %v370 = vadd.f32 0.0, %v369
  %v371 = vpop.f32.mrf.mxu0
  %v372 = vpop.f32.mrf.mxu0
  %v373 = vadd.f32 0.0, %v372
  %v374 = vpop.f32.mrf.mxu0
  %375 = vmatprep.mubr.bf16.mxu0 0
  %376 = vmatmul.mubr.bf16.gmra.mxu0 %v237
  %v377 = vpop.f32.mrf.mxu0
  %v378 = vadd.f32 0.0, %v377
  %v379 = vpop.f32.mrf.mxu0
  %v380 = vpop.f32.mrf.mxu0
  %v381 = vadd.f32 0.0, %v380
  %v382 = vpop.f32.mrf.mxu0
  %383 = vmatprep.mubr.bf16.mxu0 0
  %384 = vmatmul.mubr.bf16.gmra.mxu0 %v238
  %v385 = vpop.f32.mrf.mxu0
  %v386 = vadd.f32 0.0, %v385
  %v387 = vpop.f32.mrf.mxu0
  %v388 = vpop.f32.mrf.mxu0
  %v389 = vadd.f32 0.0, %v388
  %v390 = vpop.f32.mrf.mxu0
  %391 = vdwg.mxu0
  %v392 = vmul.f32 %v330, 0.088388346
  %v393 = vmul.f32 %v333, 0.088388346
  %v394 = vmul.f32 %v338, 0.088388346
  %v395 = vmul.f32 %v341, 0.088388346
  %v396 = vmul.f32 %v346, 0.088388346
  %v397 = vmul.f32 %v349, 0.088388346
  %v398 = vmul.f32 %v354, 0.088388346
  %v399 = vmul.f32 %v357, 0.088388346
  %v400 = vmul.f32 %v362, 0.088388346
  %v401 = vmul.f32 %v365, 0.088388346
  %v402 = vmul.f32 %v370, 0.088388346
  %v403 = vmul.f32 %v373, 0.088388346
  %v404 = vmul.f32 %v378, 0.088388346
  %v405 = vmul.f32 %v381, 0.088388346
  %v406 = vmul.f32 %v386, 0.088388346
  %v407 = vmul.f32 %v389, 0.088388346
  %v408 = vadd.f32 %v392, %v135
  %v409 = vadd.f32 %v393, %v136
  %v410 = vadd.f32 %v394, %v137
  %v411 = vadd.f32 %v395, %v138
  %v412 = vadd.f32 %v396, %v139
  %v413 = vadd.f32 %v397, %v140
  %v414 = vadd.f32 %v398, %v141
  %v415 = vadd.f32 %v399, %v142
  %v416 = vadd.f32 %v400, %v143
  %v417 = vadd.f32 %v401, %v144
  %v418 = vadd.f32 %v402, %v145
  %v419 = vadd.f32 %v403, %v146
  %v420 = vadd.f32 %v404, %v147
  %v421 = vadd.f32 %v405, %v148
  %v422 = vadd.f32 %v406, %v149
  %v423 = vadd.f32 %v407, %v150
  %v424 = vld [vmem:[#allocation2] sm:$0xff]
  %v425 = vld [vmem:[#allocation2 + $0x8] sm:$0xff]
  %v426 = vld [vmem:[#allocation2 + $0x10] sm:$0xff]
  %v427 = vld [vmem:[#allocation2 + $0x18] sm:$0xff]
  %v428 = vld [vmem:[#allocation2 + $0x20] sm:$0xff]
  %v429 = vld [vmem:[#allocation2 + $0x28] sm:$0xff]
  %v430 = vld [vmem:[#allocation2 + $0x30] sm:$0xff]
  %v431 = vld [vmem:[#allocation2 + $0x38] sm:$0xff]
  %v432 = vld [vmem:[#allocation2 + $0x40] sm:$0xff]
  %v433 = vld [vmem:[#allocation2 + $0x48] sm:$0xff]
  %v434 = vld [vmem:[#allocation2 + $0x50] sm:$0xff]
  %v435 = vld [vmem:[#allocation2 + $0x58] sm:$0xff]
  %v436 = vld [vmem:[#allocation2 + $0x60] sm:$0xff]
  %v437 = vld [vmem:[#allocation2 + $0x68] sm:$0xff]
  %v438 = vld [vmem:[#allocation2 + $0x70] sm:$0xff]
  %v439 = vld [vmem:[#allocation2 + $0x78] sm:$0xff]
  %440 = vmax.xlane.f32.xlu0 %v408
  %v441 = vpop.xlane.xlu0 %440
  %442 = vmax.xlane.f32.xlu0 %v409
  %v443 = vpop.xlane.xlu0 %442
  %444 = vmax.xlane.f32.xlu0 %v410
  %v445 = vpop.xlane.xlu0 %444
  %446 = vmax.xlane.f32.xlu0 %v411
  %v447 = vpop.xlane.xlu0 %446
  %448 = vmax.xlane.f32.xlu0 %v412
  %v449 = vpop.xlane.xlu0 %448
  %450 = vmax.xlane.f32.xlu0 %v413
  %v451 = vpop.xlane.xlu0 %450
  %452 = vmax.xlane.f32.xlu0 %v414
  %v453 = vpop.xlane.xlu0 %452
  %454 = vmax.xlane.f32.xlu0 %v415
  %v455 = vpop.xlane.xlu0 %454
  %456 = vmax.xlane.f32.xlu0 %v416
  %v457 = vpop.xlane.xlu0 %456
  %458 = vmax.xlane.f32.xlu0 %v417
  %v459 = vpop.xlane.xlu0 %458
  %460 = vmax.xlane.f32.xlu0 %v418
  %v461 = vpop.xlane.xlu0 %460
  %462 = vmax.xlane.f32.xlu0 %v419
  %v463 = vpop.xlane.xlu0 %462
  %464 = vmax.xlane.f32.xlu0 %v420
  %v465 = vpop.xlane.xlu0 %464
  %466 = vmax.xlane.f32.xlu0 %v421
  %v467 = vpop.xlane.xlu0 %466
  %468 = vmax.xlane.f32.xlu0 %v422
  %v469 = vpop.xlane.xlu0 %468
  %470 = vmax.xlane.f32.xlu0 %v423
  %v471 = vpop.xlane.xlu0 %470
  %v472 = vmax.f32 %v424, %v441
  %v473 = vmax.f32 %v425, %v443
  %v474 = vmax.f32 %v426, %v445
  %v475 = vmax.f32 %v427, %v447
  %v476 = vmax.f32 %v428, %v449
  %v477 = vmax.f32 %v429, %v451
  %v478 = vmax.f32 %v430, %v453
  %v479 = vmax.f32 %v431, %v455
  %v480 = vmax.f32 %v432, %v457
  %v481 = vmax.f32 %v433, %v459
  %v482 = vmax.f32 %v434, %v461
  %v483 = vmax.f32 %v435, %v463
  %v484 = vmax.f32 %v436, %v465
  %v485 = vmax.f32 %v437, %v467
  %v486 = vmax.f32 %v438, %v469
  %v487 = vmax.f32 %v439, %v471
  %v488 = vsub.f32 %v424, %v472
  %v489 = vsub.f32 %v425, %v473
  %v490 = vsub.f32 %v426, %v474
  %v491 = vsub.f32 %v427, %v475
  %v492 = vsub.f32 %v428, %v476
  %v493 = vsub.f32 %v429, %v477
  %v494 = vsub.f32 %v430, %v478
  %v495 = vsub.f32 %v431, %v479
  %v496 = vsub.f32 %v432, %v480
  %v497 = vsub.f32 %v433, %v481
  %v498 = vsub.f32 %v434, %v482
  %v499 = vsub.f32 %v435, %v483
  %v500 = vsub.f32 %v436, %v484
  %v501 = vsub.f32 %v437, %v485
  %v502 = vsub.f32 %v438, %v486
  %v503 = vsub.f32 %v439, %v487
  %v504 = vmul.f32 %v488, 1.442695
  %v505 = vpow.pop %v504
  %v506 = vmul.f32 %v489, 1.442695
  %v507 = vpow.pop %v506
  %v508 = vmul.f32 %v490, 1.442695
  %v509 = vpow.pop %v508
  %v510 = vmul.f32 %v491, 1.442695
  %v511 = vpow.pop %v510
  %v512 = vmul.f32 %v492, 1.442695
  %v513 = vpow.pop %v512
  %v514 = vmul.f32 %v493, 1.442695
  %v515 = vpow.pop %v514
  %v516 = vmul.f32 %v494, 1.442695
  %v517 = vpow.pop %v516
  %v518 = vmul.f32 %v495, 1.442695
  %v519 = vpow.pop %v518
  %v520 = vmul.f32 %v496, 1.442695
  %v521 = vpow.pop %v520
  %v522 = vmul.f32 %v497, 1.442695
  %v523 = vpow.pop %v522
  %v524 = vmul.f32 %v498, 1.442695
  %v525 = vpow.pop %v524
  %v526 = vmul.f32 %v499, 1.442695
  %v527 = vpow.pop %v526
  %v528 = vmul.f32 %v500, 1.442695
  %v529 = vpow.pop %v528
  %v530 = vmul.f32 %v501, 1.442695
  %v531 = vpow.pop %v530
  %v532 = vmul.f32 %v502, 1.442695
  %v533 = vpow.pop %v532
  %v534 = vmul.f32 %v503, 1.442695
  %v535 = vpow.pop %v534
  %537 = vset.pattern.permute.xlu0 0
  %538 = vperm.xlu0 %537, %v472
  %v539 = vpop.permute.xlu0 %538
  %542 = vset.pattern.permute.xlu0 0
  %543 = vperm.xlu0 %542, %v473
  %v544 = vpop.permute.xlu0 %543
  %547 = vset.pattern.permute.xlu0 0
  %548 = vperm.xlu0 %547, %v474
  %v549 = vpop.permute.xlu0 %548
  %552 = vset.pattern.permute.xlu0 0
  %553 = vperm.xlu0 %552, %v475
  %v554 = vpop.permute.xlu0 %553
  %557 = vset.pattern.permute.xlu0 0
  %558 = vperm.xlu0 %557, %v476
  %v559 = vpop.permute.xlu0 %558
  %562 = vset.pattern.permute.xlu0 0
  %563 = vperm.xlu0 %562, %v477
  %v564 = vpop.permute.xlu0 %563
  %567 = vset.pattern.permute.xlu0 0
  %568 = vperm.xlu0 %567, %v478
  %v569 = vpop.permute.xlu0 %568
  %572 = vset.pattern.permute.xlu0 0
  %573 = vperm.xlu0 %572, %v479
  %v574 = vpop.permute.xlu0 %573
  %577 = vset.pattern.permute.xlu0 0
  %578 = vperm.xlu0 %577, %v480
  %v579 = vpop.permute.xlu0 %578
  %582 = vset.pattern.permute.xlu0 0
  %583 = vperm.xlu0 %582, %v481
  %v584 = vpop.permute.xlu0 %583
  %587 = vset.pattern.permute.xlu0 0
  %588 = vperm.xlu0 %587, %v482
  %v589 = vpop.permute.xlu0 %588
  %592 = vset.pattern.permute.xlu0 0
  %593 = vperm.xlu0 %592, %v483
  %v594 = vpop.permute.xlu0 %593
  %597 = vset.pattern.permute.xlu0 0
  %598 = vperm.xlu0 %597, %v484
  %v599 = vpop.permute.xlu0 %598
  %602 = vset.pattern.permute.xlu0 0
  %603 = vperm.xlu0 %602, %v485
  %v604 = vpop.permute.xlu0 %603
  %607 = vset.pattern.permute.xlu0 0
  %608 = vperm.xlu0 %607, %v486
  %v609 = vpop.permute.xlu0 %608
  %612 = vset.pattern.permute.xlu0 0
  %613 = vperm.xlu0 %612, %v487
  %v614 = vpop.permute.xlu0 %613
  %v616 = vsub.f32 %v408, %v539
  %v617 = vsub.f32 %v409, %v544
  %v618 = vsub.f32 %v410, %v549
  %v619 = vsub.f32 %v411, %v554
  %v620 = vsub.f32 %v412, %v559
  %v621 = vsub.f32 %v413, %v564
  %v622 = vsub.f32 %v414, %v569
  %v623 = vsub.f32 %v415, %v574
  %v624 = vsub.f32 %v416, %v579
  %v625 = vsub.f32 %v417, %v584
  %v626 = vsub.f32 %v418, %v589
  %v627 = vsub.f32 %v419, %v594
  %v628 = vsub.f32 %v420, %v599
  %v629 = vsub.f32 %v421, %v604
  %v630 = vsub.f32 %v422, %v609
  %v631 = vsub.f32 %v423, %v614
  %v632 = vmul.f32 %v616, 1.442695
  %v633 = vpow.pop %v632
  %v634 = vmul.f32 %v617, 1.442695
  %v635 = vpow.pop %v634
  %v636 = vmul.f32 %v618, 1.442695
  %v637 = vpow.pop %v636
  %v638 = vmul.f32 %v619, 1.442695
  %v639 = vpow.pop %v638
  %v640 = vmul.f32 %v620, 1.442695
  %v641 = vpow.pop %v640
  %v642 = vmul.f32 %v621, 1.442695
  %v643 = vpow.pop %v642
  %v644 = vmul.f32 %v622, 1.442695
  %v645 = vpow.pop %v644
  %v646 = vmul.f32 %v623, 1.442695
  %v647 = vpow.pop %v646
  %v648 = vmul.f32 %v624, 1.442695
  %v649 = vpow.pop %v648
  %v650 = vmul.f32 %v625, 1.442695
  %v651 = vpow.pop %v650
  %v652 = vmul.f32 %v626, 1.442695
  %v653 = vpow.pop %v652
  %v654 = vmul.f32 %v627, 1.442695
  %v655 = vpow.pop %v654
  %v656 = vmul.f32 %v628, 1.442695
  %v657 = vpow.pop %v656
  %v658 = vmul.f32 %v629, 1.442695
  %v659 = vpow.pop %v658
  %v660 = vmul.f32 %v630, 1.442695
  %v661 = vpow.pop %v660
  %v662 = vmul.f32 %v631, 1.442695
  %v663 = vpow.pop %v662
  %v664 = vld [vmem:[#allocation3] sm:$0xff]
  %v665 = vld [vmem:[#allocation3 + $0x8] sm:$0xff]
  %v666 = vld [vmem:[#allocation3 + $0x10] sm:$0xff]
  %v667 = vld [vmem:[#allocation3 + $0x18] sm:$0xff]
  %v668 = vld [vmem:[#allocation3 + $0x20] sm:$0xff]
  %v669 = vld [vmem:[#allocation3 + $0x28] sm:$0xff]
  %v670 = vld [vmem:[#allocation3 + $0x30] sm:$0xff]
  %v671 = vld [vmem:[#allocation3 + $0x38] sm:$0xff]
  %v672 = vld [vmem:[#allocation3 + $0x40] sm:$0xff]
  %v673 = vld [vmem:[#allocation3 + $0x48] sm:$0xff]
  %v674 = vld [vmem:[#allocation3 + $0x50] sm:$0xff]
  %v675 = vld [vmem:[#allocation3 + $0x58] sm:$0xff]
  %v676 = vld [vmem:[#allocation3 + $0x60] sm:$0xff]
  %v677 = vld [vmem:[#allocation3 + $0x68] sm:$0xff]
  %v678 = vld [vmem:[#allocation3 + $0x70] sm:$0xff]
  %v679 = vld [vmem:[#allocation3 + $0x78] sm:$0xff]
  %v680 = vmul.f32 %v505, %v664
  %v681 = vmul.f32 %v507, %v665
  %v682 = vmul.f32 %v509, %v666
  %v683 = vmul.f32 %v511, %v667
  %v684 = vmul.f32 %v513, %v668
  %v685 = vmul.f32 %v515, %v669
  %v686 = vmul.f32 %v517, %v670
  %v687 = vmul.f32 %v519, %v671
  %v688 = vmul.f32 %v521, %v672
  %v689 = vmul.f32 %v523, %v673
  %v690 = vmul.f32 %v525, %v674
  %v691 = vmul.f32 %v527, %v675
  %v692 = vmul.f32 %v529, %v676
  %v693 = vmul.f32 %v531, %v677
  %v694 = vmul.f32 %v533, %v678
  %v695 = vmul.f32 %v535, %v679
  %696 = vadd.xlane.f32.xlu0 %v633
  %v697 = vpop.xlane.xlu0 %696
  %698 = vadd.xlane.f32.xlu0 %v635
  %v699 = vpop.xlane.xlu0 %698
  %700 = vadd.xlane.f32.xlu0 %v637
  %v701 = vpop.xlane.xlu0 %700
  %702 = vadd.xlane.f32.xlu0 %v639
  %v703 = vpop.xlane.xlu0 %702
  %704 = vadd.xlane.f32.xlu0 %v641
  %v705 = vpop.xlane.xlu0 %704
  %706 = vadd.xlane.f32.xlu0 %v643
  %v707 = vpop.xlane.xlu0 %706
  %708 = vadd.xlane.f32.xlu0 %v645
  %v709 = vpop.xlane.xlu0 %708
  %710 = vadd.xlane.f32.xlu0 %v647
  %v711 = vpop.xlane.xlu0 %710
  %712 = vadd.xlane.f32.xlu0 %v649
  %v713 = vpop.xlane.xlu0 %712
  %714 = vadd.xlane.f32.xlu0 %v651
  %v715 = vpop.xlane.xlu0 %714
  %716 = vadd.xlane.f32.xlu0 %v653
  %v717 = vpop.xlane.xlu0 %716
  %718 = vadd.xlane.f32.xlu0 %v655
  %v719 = vpop.xlane.xlu0 %718
  %720 = vadd.xlane.f32.xlu0 %v657
  %v721 = vpop.xlane.xlu0 %720
  %722 = vadd.xlane.f32.xlu0 %v659
  %v723 = vpop.xlane.xlu0 %722
  %724 = vadd.xlane.f32.xlu0 %v661
  %v725 = vpop.xlane.xlu0 %724
  %726 = vadd.xlane.f32.xlu0 %v663
  %v727 = vpop.xlane.xlu0 %726
  %v728 = vadd.f32 %v680, %v697
  %v729 = vadd.f32 %v681, %v699
  %v730 = vadd.f32 %v682, %v701
  %v731 = vadd.f32 %v683, %v703
  %v732 = vadd.f32 %v684, %v705
  %v733 = vadd.f32 %v685, %v707
  %v734 = vadd.f32 %v686, %v709
  %v735 = vadd.f32 %v687, %v711
  %v736 = vadd.f32 %v688, %v713
  %v737 = vadd.f32 %v689, %v715
  %v738 = vadd.f32 %v690, %v717
  %v739 = vadd.f32 %v691, %v719
  %v740 = vadd.f32 %v692, %v721
  %v741 = vadd.f32 %v693, %v723
  %v742 = vadd.f32 %v694, %v725
  %v743 = vadd.f32 %v695, %v727
  %vm744 = vcmask 7168
  %745 = vst.msk [vmem:[#allocation3] sm:$0xff] %vm744, %v728
  %746 = vst.msk [vmem:[#allocation3 + $0x8] sm:$0xff] %vm744, %v729
  %747 = vst.msk [vmem:[#allocation3 + $0x10] sm:$0xff] %vm744, %v730
  %748 = vst.msk [vmem:[#allocation3 + $0x18] sm:$0xff] %vm744, %v731
  %749 = vst.msk [vmem:[#allocation3 + $0x20] sm:$0xff] %vm744, %v732
  %750 = vst.msk [vmem:[#allocation3 + $0x28] sm:$0xff] %vm744, %v733
  %751 = vst.msk [vmem:[#allocation3 + $0x30] sm:$0xff] %vm744, %v734
  %752 = vst.msk [vmem:[#allocation3 + $0x38] sm:$0xff] %vm744, %v735
  %753 = vst.msk [vmem:[#allocation3 + $0x40] sm:$0xff] %vm744, %v736
  %754 = vst.msk [vmem:[#allocation3 + $0x48] sm:$0xff] %vm744, %v737
  %755 = vst.msk [vmem:[#allocation3 + $0x50] sm:$0xff] %vm744, %v738
  %756 = vst.msk [vmem:[#allocation3 + $0x58] sm:$0xff] %vm744, %v739
  %757 = vst.msk [vmem:[#allocation3 + $0x60] sm:$0xff] %vm744, %v740
  %758 = vst.msk [vmem:[#allocation3 + $0x68] sm:$0xff] %vm744, %v741
  %759 = vst.msk [vmem:[#allocation3 + $0x70] sm:$0xff] %vm744, %v742
  %760 = vst.msk [vmem:[#allocation3 + $0x78] sm:$0xff] %vm744, %v743
  %v761 = vld [vmem:[#allocation4] sm:$0xff]
  %v762 = vld [vmem:[#allocation4 + $0x8] sm:$0xff]
  %v763 = vld [vmem:[#allocation4 + $0x10] sm:$0xff]
  %v764 = vld [vmem:[#allocation4 + $0x18] sm:$0xff]
  %v765 = vld [vmem:[#allocation4 + $0x20] sm:$0xff]
  %v766 = vld [vmem:[#allocation4 + $0x28] sm:$0xff]
  %v767 = vld [vmem:[#allocation4 + $0x30] sm:$0xff]
  %v768 = vld [vmem:[#allocation4 + $0x38] sm:$0xff]
  %v769 = vld [vmem:[#allocation4 + $0x40] sm:$0xff]
  %v770 = vld [vmem:[#allocation4 + $0x48] sm:$0xff]
  %v771 = vld [vmem:[#allocation4 + $0x50] sm:$0xff]
  %v772 = vld [vmem:[#allocation4 + $0x58] sm:$0xff]
  %v773 = vld [vmem:[#allocation4 + $0x60] sm:$0xff]
  %v774 = vld [vmem:[#allocation4 + $0x68] sm:$0xff]
  %v775 = vld [vmem:[#allocation4 + $0x70] sm:$0xff]
  %v776 = vld [vmem:[#allocation4 + $0x78] sm:$0xff]
  %778 = vset.pattern.permute.xlu0 0
  %779 = vperm.xlu0 %778, %v505
  %v780 = vpop.permute.xlu0 %779
  %783 = vset.pattern.permute.xlu0 0
  %784 = vperm.xlu0 %783, %v507
  %v785 = vpop.permute.xlu0 %784
  %788 = vset.pattern.permute.xlu0 0
  %789 = vperm.xlu0 %788, %v509
  %v790 = vpop.permute.xlu0 %789
  %793 = vset.pattern.permute.xlu0 0
  %794 = vperm.xlu0 %793, %v511
  %v795 = vpop.permute.xlu0 %794
  %798 = vset.pattern.permute.xlu0 0
  %799 = vperm.xlu0 %798, %v513
  %v800 = vpop.permute.xlu0 %799
  %803 = vset.pattern.permute.xlu0 0
  %804 = vperm.xlu0 %803, %v515
  %v805 = vpop.permute.xlu0 %804
  %808 = vset.pattern.permute.xlu0 0
  %809 = vperm.xlu0 %808, %v517
  %v810 = vpop.permute.xlu0 %809
  %813 = vset.pattern.permute.xlu0 0
  %814 = vperm.xlu0 %813, %v519
  %v815 = vpop.permute.xlu0 %814
  %818 = vset.pattern.permute.xlu0 0
  %819 = vperm.xlu0 %818, %v521
  %v820 = vpop.permute.xlu0 %819
  %823 = vset.pattern.permute.xlu0 0
  %824 = vperm.xlu0 %823, %v523
  %v825 = vpop.permute.xlu0 %824
  %828 = vset.pattern.permute.xlu0 0
  %829 = vperm.xlu0 %828, %v525
  %v830 = vpop.permute.xlu0 %829
  %833 = vset.pattern.permute.xlu0 0
  %834 = vperm.xlu0 %833, %v527
  %v835 = vpop.permute.xlu0 %834
  %838 = vset.pattern.permute.xlu0 0
  %839 = vperm.xlu0 %838, %v529
  %v840 = vpop.permute.xlu0 %839
  %843 = vset.pattern.permute.xlu0 0
  %844 = vperm.xlu0 %843, %v531
  %v845 = vpop.permute.xlu0 %844
  %848 = vset.pattern.permute.xlu0 0
  %849 = vperm.xlu0 %848, %v533
  %v850 = vpop.permute.xlu0 %849
  %853 = vset.pattern.permute.xlu0 0
  %854 = vperm.xlu0 %853, %v535
  %v855 = vpop.permute.xlu0 %854
  %v857 = vmul.f32 %v780, %v761
  %v858 = vmul.f32 %v785, %v762
  %v859 = vmul.f32 %v790, %v763
  %v860 = vmul.f32 %v795, %v764
  %v861 = vmul.f32 %v800, %v765
  %v862 = vmul.f32 %v805, %v766
  %v863 = vmul.f32 %v810, %v767
  %v864 = vmul.f32 %v815, %v768
  %v865 = vmul.f32 %v820, %v769
  %v866 = vmul.f32 %v825, %v770
  %v867 = vmul.f32 %v830, %v771
  %v868 = vmul.f32 %v835, %v772
  %v869 = vmul.f32 %v840, %v773
  %v870 = vmul.f32 %v845, %v774
  %v871 = vmul.f32 %v850, %v775
  %v872 = vmul.f32 %v855, %v776
  %v873 = vpack.c.bf16 %v635, %v633
  %v874 = vpack.c.bf16 %v639, %v637
  %v875 = vpack.c.bf16 %v643, %v641
  %v876 = vpack.c.bf16 %v647, %v645
  %v877 = vpack.c.bf16 %v651, %v649
  %v878 = vpack.c.bf16 %v655, %v653
  %v879 = vpack.c.bf16 %v659, %v657
  %v880 = vpack.c.bf16 %v663, %v661
  %v897 = vunpack.c.l.b16 %v183
  %v898 = vunpack.c.l.b16 %v184
  %v899 = vunpack.c.l.b16 %v185
  %v900 = vunpack.c.l.b16 %v186
  %v901 = vunpack.c.l.b16 %v187
  %v902 = vunpack.c.l.b16 %v188
  %v903 = vunpack.c.l.b16 %v189
  %v904 = vunpack.c.l.b16 %v190
  %v905 = vunpack.c.l.b16 %v191
  %v906 = vunpack.c.l.b16 %v192
  %v907 = vunpack.c.l.b16 %v193
  %v908 = vunpack.c.l.b16 %v194
  %v909 = vunpack.c.l.b16 %v195
  %v910 = vunpack.c.l.b16 %v196
  %v911 = vunpack.c.l.b16 %v197
  %v912 = vunpack.c.l.b16 %v198
  %v913 = vpack.c.b16 %v898, %v897
  %v914 = vpack.c.b16 %v900, %v899
  %v915 = vpack.c.b16 %v902, %v901
  %v916 = vpack.c.b16 %v904, %v903
  %v917 = vpack.c.b16 %v906, %v905
  %v918 = vpack.c.b16 %v908, %v907
  %v919 = vpack.c.b16 %v910, %v909
  %v920 = vpack.c.b16 %v912, %v911
  %929 = vmatprep.subr.bf16.mxu0 0
  %930 = vmatpush1.bf16.msra.mxu0 %v920
  %931 = vmatprep.subr.bf16.mxu0 0
  %932 = vmatpush1.bf16.msra.mxu0 %v919
  %933 = vmatprep.subr.bf16.mxu0 0
  %934 = vmatpush1.bf16.msra.mxu0 %v918
  %935 = vmatprep.subr.bf16.mxu0 0
  %936 = vmatpush1.bf16.msra.mxu0 %v917
  %937 = vmatprep.subr.bf16.mxu0 0
  %938 = vmatpush1.bf16.msra.mxu0 %v916
  %939 = vmatprep.subr.bf16.mxu0 0
  %940 = vmatpush1.bf16.msra.mxu0 %v915
  %941 = vmatprep.subr.bf16.mxu0 0
  %942 = vmatpush1.bf16.msra.mxu0 %v914
  %943 = vmatprep.subr.bf16.mxu0 0
  %944 = vmatpush1.bf16.msra.mxu0 %v913
  %945 = vmatprep.subr.bf16.mxu0 0
  %946 = vmatpush2.bf16.msra.mxu0 0
  %947 = vmatprep.subr.bf16.mxu0 0
  %948 = vmatpush2.bf16.msra.mxu0 0
  %949 = vmatprep.subr.bf16.mxu0 0
  %950 = vmatpush2.bf16.msra.mxu0 0
  %951 = vmatprep.subr.bf16.mxu0 0
  %952 = vmatpush2.bf16.msra.mxu0 0
  %953 = vmatprep.subr.bf16.mxu0 0
  %954 = vmatpush2.bf16.msra.mxu0 0
  %955 = vmatprep.subr.bf16.mxu0 0
  %956 = vmatpush2.bf16.msra.mxu0 0
  %957 = vmatprep.subr.bf16.mxu0 0
  %958 = vmatpush2.bf16.msra.mxu0 0
  %959 = vmatprep.subr.bf16.mxu0 0
  %960 = vmatpush2.bf16.msra.mxu0 0
  %961 = vmatprep.mubr.bf16.mxu0 0
  %962 = vmatmul.mubr.bf16.gmra.mxu0 %v873
  %v963 = vpop.f32.mrf.mxu0
  %v964 = vadd.f32 0.0, %v963
  %v965 = vpop.f32.mrf.mxu0
  %v966 = vpop.f32.mrf.mxu0
  %v967 = vadd.f32 0.0, %v966
  %v968 = vpop.f32.mrf.mxu0
  %969 = vmatprep.mubr.bf16.mxu0 0
  %970 = vmatmul.mubr.bf16.gmra.mxu0 %v874
  %v971 = vpop.f32.mrf.mxu0
  %v972 = vadd.f32 0.0, %v971
  %v973 = vpop.f32.mrf.mxu0
  %v974 = vpop.f32.mrf.mxu0
  %v975 = vadd.f32 0.0, %v974
  %v976 = vpop.f32.mrf.mxu0
  %977 = vmatprep.mubr.bf16.mxu0 0
  %978 = vmatmul.mubr.bf16.gmra.mxu0 %v875
  %v979 = vpop.f32.mrf.mxu0
  %v980 = vadd.f32 0.0, %v979
  %v981 = vpop.f32.mrf.mxu0
  %v982 = vpop.f32.mrf.mxu0
  %v983 = vadd.f32 0.0, %v982
  %v984 = vpop.f32.mrf.mxu0
  %985 = vmatprep.mubr.bf16.mxu0 0
  %986 = vmatmul.mubr.bf16.gmra.mxu0 %v876
  %v987 = vpop.f32.mrf.mxu0
  %v988 = vadd.f32 0.0, %v987
  %v989 = vpop.f32.mrf.mxu0
  %v990 = vpop.f32.mrf.mxu0
  %v991 = vadd.f32 0.0, %v990
  %v992 = vpop.f32.mrf.mxu0
  %993 = vmatprep.mubr.bf16.mxu0 0
  %994 = vmatmul.mubr.bf16.gmra.mxu0 %v877
  %v995 = vpop.f32.mrf.mxu0
  %v996 = vadd.f32 0.0, %v995
  %v997 = vpop.f32.mrf.mxu0
  %v998 = vpop.f32.mrf.mxu0
  %v999 = vadd.f32 0.0, %v998
  %v1000 = vpop.f32.mrf.mxu0
  %1001 = vmatprep.mubr.bf16.mxu0 0
  %1002 = vmatmul.mubr.bf16.gmra.mxu0 %v878
  %v1003 = vpop.f32.mrf.mxu0
  %v1004 = vadd.f32 0.0, %v1003
  %v1005 = vpop.f32.mrf.mxu0
  %v1006 = vpop.f32.mrf.mxu0
  %v1007 = vadd.f32 0.0, %v1006
  %v1008 = vpop.f32.mrf.mxu0
  %1009 = vmatprep.mubr.bf16.mxu0 0
  %1010 = vmatmul.mubr.bf16.gmra.mxu0 %v879
  %v1011 = vpop.f32.mrf.mxu0
  %v1012 = vadd.f32 0.0, %v1011
  %v1013 = vpop.f32.mrf.mxu0
  %v1014 = vpop.f32.mrf.mxu0
  %v1015 = vadd.f32 0.0, %v1014
  %v1016 = vpop.f32.mrf.mxu0
  %1017 = vmatprep.mubr.bf16.mxu0 0
  %1018 = vmatmul.mubr.bf16.gmra.mxu0 %v880
  %v1019 = vpop.f32.mrf.mxu0
  %v1020 = vadd.f32 0.0, %v1019
  %v1021 = vpop.f32.mrf.mxu0
  %v1022 = vpop.f32.mrf.mxu0
  %v1023 = vadd.f32 0.0, %v1022
  %v1024 = vpop.f32.mrf.mxu0
  %1025 = vdwg.mxu0
  %v1026 = vadd.f32 %v857, %v964
  %v1027 = vadd.f32 %v858, %v967
  %v1028 = vadd.f32 %v859, %v972
  %v1029 = vadd.f32 %v860, %v975
  %v1030 = vadd.f32 %v861, %v980
  %v1031 = vadd.f32 %v862, %v983
  %v1032 = vadd.f32 %v863, %v988
  %v1033 = vadd.f32 %v864, %v991
  %v1034 = vadd.f32 %v865, %v996
  %v1035 = vadd.f32 %v866, %v999
  %v1036 = vadd.f32 %v867, %v1004
  %v1037 = vadd.f32 %v868, %v1007
  %v1038 = vadd.f32 %v869, %v1012
  %v1039 = vadd.f32 %v870, %v1015
  %v1040 = vadd.f32 %v871, %v1020
  %v1041 = vadd.f32 %v872, %v1023
  %1042 = vst [vmem:[#allocation4] sm:$0xff] %v1026
  %1043 = vst [vmem:[#allocation4 + $0x8] sm:$0xff] %v1027
  %1044 = vst [vmem:[#allocation4 + $0x10] sm:$0xff] %v1028
  %1045 = vst [vmem:[#allocation4 + $0x18] sm:$0xff] %v1029
  %1046 = vst [vmem:[#allocation4 + $0x20] sm:$0xff] %v1030
  %1047 = vst [vmem:[#allocation4 + $0x28] sm:$0xff] %v1031
  %1048 = vst [vmem:[#allocation4 + $0x30] sm:$0xff] %v1032
  %1049 = vst [vmem:[#allocation4 + $0x38] sm:$0xff] %v1033
  %1050 = vst [vmem:[#allocation4 + $0x40] sm:$0xff] %v1034
  %1051 = vst [vmem:[#allocation4 + $0x48] sm:$0xff] %v1035
  %1052 = vst [vmem:[#allocation4 + $0x50] sm:$0xff] %v1036
  %1053 = vst [vmem:[#allocation4 + $0x58] sm:$0xff] %v1037
  %1054 = vst [vmem:[#allocation4 + $0x60] sm:$0xff] %v1038
  %1055 = vst [vmem:[#allocation4 + $0x68] sm:$0xff] %v1039
  %1056 = vst [vmem:[#allocation4 + $0x70] sm:$0xff] %v1040
  %1057 = vst [vmem:[#allocation4 + $0x78] sm:$0xff] %v1041
  %1058 = vst.msk [vmem:[#allocation2] sm:$0xff] %vm744, %v472
  %1059 = vst.msk [vmem:[#allocation2 + $0x8] sm:$0xff] %vm744, %v473
  %1060 = vst.msk [vmem:[#allocation2 + $0x10] sm:$0xff] %vm744, %v474
  %1061 = vst.msk [vmem:[#allocation2 + $0x18] sm:$0xff] %vm744, %v475
  %1062 = vst.msk [vmem:[#allocation2 + $0x20] sm:$0xff] %vm744, %v476
  %1063 = vst.msk [vmem:[#allocation2 + $0x28] sm:$0xff] %vm744, %v477
  %1064 = vst.msk [vmem:[#allocation2 + $0x30] sm:$0xff] %vm744, %v478
  %1065 = vst.msk [vmem:[#allocation2 + $0x38] sm:$0xff] %vm744, %v479
  %1066 = vst.msk [vmem:[#allocation2 + $0x40] sm:$0xff] %vm744, %v480
  %1067 = vst.msk [vmem:[#allocation2 + $0x48] sm:$0xff] %vm744, %v481
  %1068 = vst.msk [vmem:[#allocation2 + $0x50] sm:$0xff] %vm744, %v482
  %1069 = vst.msk [vmem:[#allocation2 + $0x58] sm:$0xff] %vm744, %v483
  %1070 = vst.msk [vmem:[#allocation2 + $0x60] sm:$0xff] %vm744, %v484
  %1071 = vst.msk [vmem:[#allocation2 + $0x68] sm:$0xff] %vm744, %v485
  %1072 = vst.msk [vmem:[#allocation2 + $0x70] sm:$0xff] %vm744, %v486
  %1073 = vst.msk [vmem:[#allocation2 + $0x78] sm:$0xff] %vm744, %v487
  %v1074 = vunpack.c.h.b16 %v151
  %v1075 = vunpack.c.h.b16 %v152
  %v1076 = vunpack.c.h.b16 %v153
  %v1077 = vunpack.c.h.b16 %v154
  %v1078 = vunpack.c.h.b16 %v155
  %v1079 = vunpack.c.h.b16 %v156
  %v1080 = vunpack.c.h.b16 %v157
  %v1081 = vunpack.c.h.b16 %v158
  %v1082 = vunpack.c.h.b16 %v159
  %v1083 = vunpack.c.h.b16 %v160
  %v1084 = vunpack.c.h.b16 %v161
  %v1085 = vunpack.c.h.b16 %v162
  %v1086 = vunpack.c.h.b16 %v163
  %v1087 = vunpack.c.h.b16 %v164
  %v1088 = vunpack.c.h.b16 %v165
  %v1089 = vunpack.c.h.b16 %v166
  %v1090 = vpack.c.b16 %v1075, %v1074
  %v1091 = vpack.c.b16 %v1077, %v1076
  %v1092 = vpack.c.b16 %v1079, %v1078
  %v1093 = vpack.c.b16 %v1081, %v1080
  %v1094 = vpack.c.b16 %v1083, %v1082
  %v1095 = vpack.c.b16 %v1085, %v1084
  %v1096 = vpack.c.b16 %v1087, %v1086
  %v1097 = vpack.c.b16 %v1089, %v1088
  %v1106 = vunpack.c.h.b16 %v167
  %v1107 = vunpack.c.h.b16 %v168
  %v1108 = vunpack.c.h.b16 %v169
  %v1109 = vunpack.c.h.b16 %v170
  %v1110 = vunpack.c.h.b16 %v171
  %v1111 = vunpack.c.h.b16 %v172
  %v1112 = vunpack.c.h.b16 %v173
  %v1113 = vunpack.c.h.b16 %v174
  %v1114 = vunpack.c.h.b16 %v175
  %v1115 = vunpack.c.h.b16 %v176
  %v1116 = vunpack.c.h.b16 %v177
  %v1117 = vunpack.c.h.b16 %v178
  %v1118 = vunpack.c.h.b16 %v179
  %v1119 = vunpack.c.h.b16 %v180
  %v1120 = vunpack.c.h.b16 %v181
  %v1121 = vunpack.c.h.b16 %v182
  %v1122 = vpack.c.b16 %v1107, %v1106
  %v1123 = vpack.c.b16 %v1109, %v1108
  %v1124 = vpack.c.b16 %v1111, %v1110
  %v1125 = vpack.c.b16 %v1113, %v1112
  %v1126 = vpack.c.b16 %v1115, %v1114
  %v1127 = vpack.c.b16 %v1117, %v1116
  %v1128 = vpack.c.b16 %v1119, %v1118
  %v1129 = vpack.c.b16 %v1121, %v1120
  %1138 = vmatprep.subr.bf16.mxu0 0
  %1139 = vmatpush1.bf16.xpose.msra.mxu0 %v1129
  %1140 = vmatprep.subr.bf16.mxu0 0
  %1141 = vmatpush1.bf16.xpose.msra.mxu0 %v1128
  %1142 = vmatprep.subr.bf16.mxu0 0
  %1143 = vmatpush1.bf16.xpose.msra.mxu0 %v1127
  %1144 = vmatprep.subr.bf16.mxu0 0
  %1145 = vmatpush1.bf16.xpose.msra.mxu0 %v1126
  %1146 = vmatprep.subr.bf16.mxu0 0
  %1147 = vmatpush1.bf16.xpose.msra.mxu0 %v1125
  %1148 = vmatprep.subr.bf16.mxu0 0
  %1149 = vmatpush1.bf16.xpose.msra.mxu0 %v1124
  %1150 = vmatprep.subr.bf16.mxu0 0
  %1151 = vmatpush1.bf16.xpose.msra.mxu0 %v1123
  %1152 = vmatprep.subr.bf16.mxu0 0
  %1153 = vmatpush1.bf16.xpose.msra.mxu0 %v1122
  %1154 = vmatprep.subr.bf16.mxu0 0
  %1155 = vmatpush2.bf16.xpose.msra.mxu0 0
  %1156 = vmatprep.subr.bf16.mxu0 0
  %1157 = vmatpush2.bf16.xpose.msra.mxu0 0
  %1158 = vmatprep.subr.bf16.mxu0 0
  %1159 = vmatpush2.bf16.xpose.msra.mxu0 0
  %1160 = vmatprep.subr.bf16.mxu0 0
  %1161 = vmatpush2.bf16.xpose.msra.mxu0 0
  %1162 = vmatprep.subr.bf16.mxu0 0
  %1163 = vmatpush2.bf16.xpose.msra.mxu0 0
  %1164 = vmatprep.subr.bf16.mxu0 0
  %1165 = vmatpush2.bf16.xpose.msra.mxu0 0
  %1166 = vmatprep.subr.bf16.mxu0 0
  %1167 = vmatpush2.bf16.xpose.msra.mxu0 0
  %1168 = vmatprep.subr.bf16.mxu0 0
  %1169 = vmatpush2.bf16.xpose.msra.mxu0 0
  %1170 = vmatprep.mubr.bf16.mxu0 0
  %1171 = vmatmul.mubr.bf16.gmra.mxu0 %v1090
  %v1172 = vpop.f32.mrf.mxu0
  %v1173 = vadd.f32 0.0, %v1172
  %v1174 = vpop.f32.mrf.mxu0
  %v1175 = vpop.f32.mrf.mxu0
  %v1176 = vadd.f32 0.0, %v1175
  %v1177 = vpop.f32.mrf.mxu0
  %1178 = vmatprep.mubr.bf16.mxu0 0
  %1179 = vmatmul.mubr.bf16.gmra.mxu0 %v1091
  %v1180 = vpop.f32.mrf.mxu0
  %v1181 = vadd.f32 0.0, %v1180
  %v1182 = vpop.f32.mrf.mxu0
  %v1183 = vpop.f32.mrf.mxu0
  %v1184 = vadd.f32 0.0, %v1183
  %v1185 = vpop.f32.mrf.mxu0
  %1186 = vmatprep.mubr.bf16.mxu0 0
  %1187 = vmatmul.mubr.bf16.gmra.mxu0 %v1092
  %v1188 = vpop.f32.mrf.mxu0
  %v1189 = vadd.f32 0.0, %v1188
  %v1190 = vpop.f32.mrf.mxu0
  %v1191 = vpop.f32.mrf.mxu0
  %v1192 = vadd.f32 0.0, %v1191
  %v1193 = vpop.f32.mrf.mxu0
  %1194 = vmatprep.mubr.bf16.mxu0 0
  %1195 = vmatmul.mubr.bf16.gmra.mxu0 %v1093
  %v1196 = vpop.f32.mrf.mxu0
  %v1197 = vadd.f32 0.0, %v1196
  %v1198 = vpop.f32.mrf.mxu0
  %v1199 = vpop.f32.mrf.mxu0
  %v1200 = vadd.f32 0.0, %v1199
  %v1201 = vpop.f32.mrf.mxu0
  %1202 = vmatprep.mubr.bf16.mxu0 0
  %1203 = vmatmul.mubr.bf16.gmra.mxu0 %v1094
  %v1204 = vpop.f32.mrf.mxu0
  %v1205 = vadd.f32 0.0, %v1204
  %v1206 = vpop.f32.mrf.mxu0
  %v1207 = vpop.f32.mrf.mxu0
  %v1208 = vadd.f32 0.0, %v1207
  %v1209 = vpop.f32.mrf.mxu0
  %1210 = vmatprep.mubr.bf16.mxu0 0
  %1211 = vmatmul.mubr.bf16.gmra.mxu0 %v1095
  %v1212 = vpop.f32.mrf.mxu0
  %v1213 = vadd.f32 0.0, %v1212
  %v1214 = vpop.f32.mrf.mxu0
  %v1215 = vpop.f32.mrf.mxu0
  %v1216 = vadd.f32 0.0, %v1215
  %v1217 = vpop.f32.mrf.mxu0
  %1218 = vmatprep.mubr.bf16.mxu0 0
  %1219 = vmatmul.mubr.bf16.gmra.mxu0 %v1096
  %v1220 = vpop.f32.mrf.mxu0
  %v1221 = vadd.f32 0.0, %v1220
  %v1222 = vpop.f32.mrf.mxu0
  %v1223 = vpop.f32.mrf.mxu0
  %v1224 = vadd.f32 0.0, %v1223
  %v1225 = vpop.f32.mrf.mxu0
  %1226 = vmatprep.mubr.bf16.mxu0 0
  %1227 = vmatmul.mubr.bf16.gmra.mxu0 %v1097
  %v1228 = vpop.f32.mrf.mxu0
  %v1229 = vadd.f32 0.0, %v1228
  %v1230 = vpop.f32.mrf.mxu0
  %v1231 = vpop.f32.mrf.mxu0
  %v1232 = vadd.f32 0.0, %v1231
  %v1233 = vpop.f32.mrf.mxu0
  %1234 = vdwg.mxu0
  %v1235 = vmul.f32 %v1173, 0.088388346
  %v1236 = vmul.f32 %v1176, 0.088388346
  %v1237 = vmul.f32 %v1181, 0.088388346
  %v1238 = vmul.f32 %v1184, 0.088388346
  %v1239 = vmul.f32 %v1189, 0.088388346
  %v1240 = vmul.f32 %v1192, 0.088388346
  %v1241 = vmul.f32 %v1197, 0.088388346
  %v1242 = vmul.f32 %v1200, 0.088388346
  %v1243 = vmul.f32 %v1205, 0.088388346
  %v1244 = vmul.f32 %v1208, 0.088388346
  %v1245 = vmul.f32 %v1213, 0.088388346
  %v1246 = vmul.f32 %v1216, 0.088388346
  %v1247 = vmul.f32 %v1221, 0.088388346
  %v1248 = vmul.f32 %v1224, 0.088388346
  %v1249 = vmul.f32 %v1229, 0.088388346
  %v1250 = vmul.f32 %v1232, 0.088388346
  %v1251 = vadd.f32 %v1235, %v135
  %v1252 = vadd.f32 %v1236, %v136
  %v1253 = vadd.f32 %v1237, %v137
  %v1254 = vadd.f32 %v1238, %v138
  %v1255 = vadd.f32 %v1239, %v139
  %v1256 = vadd.f32 %v1240, %v140
  %v1257 = vadd.f32 %v1241, %v141
  %v1258 = vadd.f32 %v1242, %v142
  %v1259 = vadd.f32 %v1243, %v143
  %v1260 = vadd.f32 %v1244, %v144
  %v1261 = vadd.f32 %v1245, %v145
  %v1262 = vadd.f32 %v1246, %v146
  %v1263 = vadd.f32 %v1247, %v147
  %v1264 = vadd.f32 %v1248, %v148
  %v1265 = vadd.f32 %v1249, %v149
  %v1266 = vadd.f32 %v1250, %v150
  %s1267 = scalar_lea.vmem [#allocation2], 128
  %v1268 = vld [vmem:[%s1267] sm:$0xff]
  %v1269 = vld [vmem:[%s1267 + $0x8] sm:$0xff]
  %v1270 = vld [vmem:[%s1267 + $0x10] sm:$0xff]
  %v1271 = vld [vmem:[%s1267 + $0x18] sm:$0xff]
  %v1272 = vld [vmem:[%s1267 + $0x20] sm:$0xff]
  %v1273 = vld [vmem:[%s1267 + $0x28] sm:$0xff]
  %v1274 = vld [vmem:[%s1267 + $0x30] sm:$0xff]
  %v1275 = vld [vmem:[%s1267 + $0x38] sm:$0xff]
  %v1276 = vld [vmem:[%s1267 + $0x40] sm:$0xff]
  %v1277 = vld [vmem:[%s1267 + $0x48] sm:$0xff]
  %v1278 = vld [vmem:[%s1267 + $0x50] sm:$0xff]
  %v1279 = vld [vmem:[%s1267 + $0x58] sm:$0xff]
  %v1280 = vld [vmem:[%s1267 + $0x60] sm:$0xff]
  %v1281 = vld [vmem:[%s1267 + $0x68] sm:$0xff]
  %v1282 = vld [vmem:[%s1267 + $0x70] sm:$0xff]
  %v1283 = vld [vmem:[%s1267 + $0x78] sm:$0xff]
  %1284 = vmax.xlane.f32.xlu0 %v1251
  %v1285 = vpop.xlane.xlu0 %1284
  %1286 = vmax.xlane.f32.xlu0 %v1252
  %v1287 = vpop.xlane.xlu0 %1286
  %1288 = vmax.xlane.f32.xlu0 %v1253
  %v1289 = vpop.xlane.xlu0 %1288
  %1290 = vmax.xlane.f32.xlu0 %v1254
  %v1291 = vpop.xlane.xlu0 %1290
  %1292 = vmax.xlane.f32.xlu0 %v1255
  %v1293 = vpop.xlane.xlu0 %1292
  %1294 = vmax.xlane.f32.xlu0 %v1256
  %v1295 = vpop.xlane.xlu0 %1294
  %1296 = vmax.xlane.f32.xlu0 %v1257
  %v1297 = vpop.xlane.xlu0 %1296
  %1298 = vmax.xlane.f32.xlu0 %v1258
  %v1299 = vpop.xlane.xlu0 %1298
  %1300 = vmax.xlane.f32.xlu0 %v1259
  %v1301 = vpop.xlane.xlu0 %1300
  %1302 = vmax.xlane.f32.xlu0 %v1260
  %v1303 = vpop.xlane.xlu0 %1302
  %1304 = vmax.xlane.f32.xlu0 %v1261
  %v1305 = vpop.xlane.xlu0 %1304
  %1306 = vmax.xlane.f32.xlu0 %v1262
  %v1307 = vpop.xlane.xlu0 %1306
  %1308 = vmax.xlane.f32.xlu0 %v1263
  %v1309 = vpop.xlane.xlu0 %1308
  %1310 = vmax.xlane.f32.xlu0 %v1264
  %v1311 = vpop.xlane.xlu0 %1310
  %1312 = vmax.xlane.f32.xlu0 %v1265
  %v1313 = vpop.xlane.xlu0 %1312
  %1314 = vmax.xlane.f32.xlu0 %v1266
  %v1315 = vpop.xlane.xlu0 %1314
  %v1316 = vmax.f32 %v1268, %v1285
  %v1317 = vmax.f32 %v1269, %v1287
  %v1318 = vmax.f32 %v1270, %v1289
  %v1319 = vmax.f32 %v1271, %v1291
  %v1320 = vmax.f32 %v1272, %v1293
  %v1321 = vmax.f32 %v1273, %v1295
  %v1322 = vmax.f32 %v1274, %v1297
  %v1323 = vmax.f32 %v1275, %v1299
  %v1324 = vmax.f32 %v1276, %v1301
  %v1325 = vmax.f32 %v1277, %v1303
  %v1326 = vmax.f32 %v1278, %v1305
  %v1327 = vmax.f32 %v1279, %v1307
  %v1328 = vmax.f32 %v1280, %v1309
  %v1329 = vmax.f32 %v1281, %v1311
  %v1330 = vmax.f32 %v1282, %v1313
  %v1331 = vmax.f32 %v1283, %v1315
  %v1332 = vsub.f32 %v1268, %v1316
  %v1333 = vsub.f32 %v1269, %v1317
  %v1334 = vsub.f32 %v1270, %v1318
  %v1335 = vsub.f32 %v1271, %v1319
  %v1336 = vsub.f32 %v1272, %v1320
  %v1337 = vsub.f32 %v1273, %v1321
  %v1338 = vsub.f32 %v1274, %v1322
  %v1339 = vsub.f32 %v1275, %v1323
  %v1340 = vsub.f32 %v1276, %v1324
  %v1341 = vsub.f32 %v1277, %v1325
  %v1342 = vsub.f32 %v1278, %v1326
  %v1343 = vsub.f32 %v1279, %v1327
  %v1344 = vsub.f32 %v1280, %v1328
  %v1345 = vsub.f32 %v1281, %v1329
  %v1346 = vsub.f32 %v1282, %v1330
  %v1347 = vsub.f32 %v1283, %v1331
  %v1348 = vmul.f32 %v1332, 1.442695
  %v1349 = vpow.pop %v1348
  %v1350 = vmul.f32 %v1333, 1.442695
  %v1351 = vpow.pop %v1350
  %v1352 = vmul.f32 %v1334, 1.442695
  %v1353 = vpow.pop %v1352
  %v1354 = vmul.f32 %v1335, 1.442695
  %v1355 = vpow.pop %v1354
  %v1356 = vmul.f32 %v1336, 1.442695
  %v1357 = vpow.pop %v1356
  %v1358 = vmul.f32 %v1337, 1.442695
  %v1359 = vpow.pop %v1358
  %v1360 = vmul.f32 %v1338, 1.442695
  %v1361 = vpow.pop %v1360
  %v1362 = vmul.f32 %v1339, 1.442695
  %v1363 = vpow.pop %v1362
  %v1364 = vmul.f32 %v1340, 1.442695
  %v1365 = vpow.pop %v1364
  %v1366 = vmul.f32 %v1341, 1.442695
  %v1367 = vpow.pop %v1366
  %v1368 = vmul.f32 %v1342, 1.442695
  %v1369 = vpow.pop %v1368
  %v1370 = vmul.f32 %v1343, 1.442695
  %v1371 = vpow.pop %v1370
  %v1372 = vmul.f32 %v1344, 1.442695
  %v1373 = vpow.pop %v1372
  %v1374 = vmul.f32 %v1345, 1.442695
  %v1375 = vpow.pop %v1374
  %v1376 = vmul.f32 %v1346, 1.442695
  %v1377 = vpow.pop %v1376
  %v1378 = vmul.f32 %v1347, 1.442695
  %v1379 = vpow.pop %v1378
  %1381 = vset.pattern.permute.xlu0 0
  %1382 = vperm.xlu0 %1381, %v1316
  %v1383 = vpop.permute.xlu0 %1382
  %1386 = vset.pattern.permute.xlu0 0
  %1387 = vperm.xlu0 %1386, %v1317
  %v1388 = vpop.permute.xlu0 %1387
  %1391 = vset.pattern.permute.xlu0 0
  %1392 = vperm.xlu0 %1391, %v1318
  %v1393 = vpop.permute.xlu0 %1392
  %1396 = vset.pattern.permute.xlu0 0
  %1397 = vperm.xlu0 %1396, %v1319
  %v1398 = vpop.permute.xlu0 %1397
  %1401 = vset.pattern.permute.xlu0 0
  %1402 = vperm.xlu0 %1401, %v1320
  %v1403 = vpop.permute.xlu0 %1402
  %1406 = vset.pattern.permute.xlu0 0
  %1407 = vperm.xlu0 %1406, %v1321
  %v1408 = vpop.permute.xlu0 %1407
  %1411 = vset.pattern.permute.xlu0 0
  %1412 = vperm.xlu0 %1411, %v1322
  %v1413 = vpop.permute.xlu0 %1412
  %1416 = vset.pattern.permute.xlu0 0
  %1417 = vperm.xlu0 %1416, %v1323
  %v1418 = vpop.permute.xlu0 %1417
  %1421 = vset.pattern.permute.xlu0 0
  %1422 = vperm.xlu0 %1421, %v1324
  %v1423 = vpop.permute.xlu0 %1422
  %1426 = vset.pattern.permute.xlu0 0
  %1427 = vperm.xlu0 %1426, %v1325
  %v1428 = vpop.permute.xlu0 %1427
  %1431 = vset.pattern.permute.xlu0 0
  %1432 = vperm.xlu0 %1431, %v1326
  %v1433 = vpop.permute.xlu0 %1432
  %1436 = vset.pattern.permute.xlu0 0
  %1437 = vperm.xlu0 %1436, %v1327
  %v1438 = vpop.permute.xlu0 %1437
  %1441 = vset.pattern.permute.xlu0 0
  %1442 = vperm.xlu0 %1441, %v1328
  %v1443 = vpop.permute.xlu0 %1442
  %1446 = vset.pattern.permute.xlu0 0
  %1447 = vperm.xlu0 %1446, %v1329
  %v1448 = vpop.permute.xlu0 %1447
  %1451 = vset.pattern.permute.xlu0 0
  %1452 = vperm.xlu0 %1451, %v1330
  %v1453 = vpop.permute.xlu0 %1452
  %1456 = vset.pattern.permute.xlu0 0
  %1457 = vperm.xlu0 %1456, %v1331
  %v1458 = vpop.permute.xlu0 %1457
  %v1460 = vsub.f32 %v1251, %v1383
  %v1461 = vsub.f32 %v1252, %v1388
  %v1462 = vsub.f32 %v1253, %v1393
  %v1463 = vsub.f32 %v1254, %v1398
  %v1464 = vsub.f32 %v1255, %v1403
  %v1465 = vsub.f32 %v1256, %v1408
  %v1466 = vsub.f32 %v1257, %v1413
  %v1467 = vsub.f32 %v1258, %v1418
  %v1468 = vsub.f32 %v1259, %v1423
  %v1469 = vsub.f32 %v1260, %v1428
  %v1470 = vsub.f32 %v1261, %v1433
  %v1471 = vsub.f32 %v1262, %v1438
  %v1472 = vsub.f32 %v1263, %v1443
  %v1473 = vsub.f32 %v1264, %v1448
  %v1474 = vsub.f32 %v1265, %v1453
  %v1475 = vsub.f32 %v1266, %v1458
  %v1476 = vmul.f32 %v1460, 1.442695
  %v1477 = vpow.pop %v1476
  %v1478 = vmul.f32 %v1461, 1.442695
  %v1479 = vpow.pop %v1478
  %v1480 = vmul.f32 %v1462, 1.442695
  %v1481 = vpow.pop %v1480
  %v1482 = vmul.f32 %v1463, 1.442695
  %v1483 = vpow.pop %v1482
  %v1484 = vmul.f32 %v1464, 1.442695
  %v1485 = vpow.pop %v1484
  %v1486 = vmul.f32 %v1465, 1.442695
  %v1487 = vpow.pop %v1486
  %v1488 = vmul.f32 %v1466, 1.442695
  %v1489 = vpow.pop %v1488
  %v1490 = vmul.f32 %v1467, 1.442695
  %v1491 = vpow.pop %v1490
  %v1492 = vmul.f32 %v1468, 1.442695
  %v1493 = vpow.pop %v1492
  %v1494 = vmul.f32 %v1469, 1.442695
  %v1495 = vpow.pop %v1494
  %v1496 = vmul.f32 %v1470, 1.442695
  %v1497 = vpow.pop %v1496
  %v1498 = vmul.f32 %v1471, 1.442695
  %v1499 = vpow.pop %v1498
  %v1500 = vmul.f32 %v1472, 1.442695
  %v1501 = vpow.pop %v1500
  %v1502 = vmul.f32 %v1473, 1.442695
  %v1503 = vpow.pop %v1502
  %v1504 = vmul.f32 %v1474, 1.442695
  %v1505 = vpow.pop %v1504
  %v1506 = vmul.f32 %v1475, 1.442695
  %v1507 = vpow.pop %v1506
  %s1508 = scalar_lea.vmem [#allocation3], 128
  %v1509 = vld [vmem:[%s1508] sm:$0xff]
  %v1510 = vld [vmem:[%s1508 + $0x8] sm:$0xff]
  %v1511 = vld [vmem:[%s1508 + $0x10] sm:$0xff]
  %v1512 = vld [vmem:[%s1508 + $0x18] sm:$0xff]
  %v1513 = vld [vmem:[%s1508 + $0x20] sm:$0xff]
  %v1514 = vld [vmem:[%s1508 + $0x28] sm:$0xff]
  %v1515 = vld [vmem:[%s1508 + $0x30] sm:$0xff]
  %v1516 = vld [vmem:[%s1508 + $0x38] sm:$0xff]
  %v1517 = vld [vmem:[%s1508 + $0x40] sm:$0xff]
  %v1518 = vld [vmem:[%s1508 + $0x48] sm:$0xff]
  %v1519 = vld [vmem:[%s1508 + $0x50] sm:$0xff]
  %v1520 = vld [vmem:[%s1508 + $0x58] sm:$0xff]
  %v1521 = vld [vmem:[%s1508 + $0x60] sm:$0xff]
  %v1522 = vld [vmem:[%s1508 + $0x68] sm:$0xff]
  %v1523 = vld [vmem:[%s1508 + $0x70] sm:$0xff]
  %v1524 = vld [vmem:[%s1508 + $0x78] sm:$0xff]
  %v1525 = vmul.f32 %v1349, %v1509
  %v1526 = vmul.f32 %v1351, %v1510
  %v1527 = vmul.f32 %v1353, %v1511
  %v1528 = vmul.f32 %v1355, %v1512
  %v1529 = vmul.f32 %v1357, %v1513
  %v1530 = vmul.f32 %v1359, %v1514
  %v1531 = vmul.f32 %v1361, %v1515
  %v1532 = vmul.f32 %v1363, %v1516
  %v1533 = vmul.f32 %v1365, %v1517
  %v1534 = vmul.f32 %v1367, %v1518
  %v1535 = vmul.f32 %v1369, %v1519
  %v1536 = vmul.f32 %v1371, %v1520
  %v1537 = vmul.f32 %v1373, %v1521
  %v1538 = vmul.f32 %v1375, %v1522
  %v1539 = vmul.f32 %v1377, %v1523
  %v1540 = vmul.f32 %v1379, %v1524
  %1541 = vadd.xlane.f32.xlu0 %v1477
  %v1542 = vpop.xlane.xlu0 %1541
  %1543 = vadd.xlane.f32.xlu0 %v1479
  %v1544 = vpop.xlane.xlu0 %1543
  %1545 = vadd.xlane.f32.xlu0 %v1481
  %v1546 = vpop.xlane.xlu0 %1545
  %1547 = vadd.xlane.f32.xlu0 %v1483
  %v1548 = vpop.xlane.xlu0 %1547
  %1549 = vadd.xlane.f32.xlu0 %v1485
  %v1550 = vpop.xlane.xlu0 %1549
  %1551 = vadd.xlane.f32.xlu0 %v1487
  %v1552 = vpop.xlane.xlu0 %1551
  %1553 = vadd.xlane.f32.xlu0 %v1489
  %v1554 = vpop.xlane.xlu0 %1553
  %1555 = vadd.xlane.f32.xlu0 %v1491
  %v1556 = vpop.xlane.xlu0 %1555
  %1557 = vadd.xlane.f32.xlu0 %v1493
  %v1558 = vpop.xlane.xlu0 %1557
  %1559 = vadd.xlane.f32.xlu0 %v1495
  %v1560 = vpop.xlane.xlu0 %1559
  %1561 = vadd.xlane.f32.xlu0 %v1497
  %v1562 = vpop.xlane.xlu0 %1561
  %1563 = vadd.xlane.f32.xlu0 %v1499
  %v1564 = vpop.xlane.xlu0 %1563
  %1565 = vadd.xlane.f32.xlu0 %v1501
  %v1566 = vpop.xlane.xlu0 %1565
  %1567 = vadd.xlane.f32.xlu0 %v1503
  %v1568 = vpop.xlane.xlu0 %1567
  %1569 = vadd.xlane.f32.xlu0 %v1505
  %v1570 = vpop.xlane.xlu0 %1569
  %1571 = vadd.xlane.f32.xlu0 %v1507
  %v1572 = vpop.xlane.xlu0 %1571
  %v1573 = vadd.f32 %v1525, %v1542
  %v1574 = vadd.f32 %v1526, %v1544
  %v1575 = vadd.f32 %v1527, %v1546
  %v1576 = vadd.f32 %v1528, %v1548
  %v1577 = vadd.f32 %v1529, %v1550
  %v1578 = vadd.f32 %v1530, %v1552
  %v1579 = vadd.f32 %v1531, %v1554
  %v1580 = vadd.f32 %v1532, %v1556
  %v1581 = vadd.f32 %v1533, %v1558
  %v1582 = vadd.f32 %v1534, %v1560
  %v1583 = vadd.f32 %v1535, %v1562
  %v1584 = vadd.f32 %v1536, %v1564
  %v1585 = vadd.f32 %v1537, %v1566
  %v1586 = vadd.f32 %v1538, %v1568
  %v1587 = vadd.f32 %v1539, %v1570
  %v1588 = vadd.f32 %v1540, %v1572
  %1589 = vst.msk [vmem:[%s1508] sm:$0xff] %vm744, %v1573
  %1590 = vst.msk [vmem:[%s1508 + $0x8] sm:$0xff] %vm744, %v1574
  %1591 = vst.msk [vmem:[%s1508 + $0x10] sm:$0xff] %vm744, %v1575
  %1592 = vst.msk [vmem:[%s1508 + $0x18] sm:$0xff] %vm744, %v1576
  %1593 = vst.msk [vmem:[%s1508 + $0x20] sm:$0xff] %vm744, %v1577
  %1594 = vst.msk [vmem:[%s1508 + $0x28] sm:$0xff] %vm744, %v1578
  %1595 = vst.msk [vmem:[%s1508 + $0x30] sm:$0xff] %vm744, %v1579
  %1596 = vst.msk [vmem:[%s1508 + $0x38] sm:$0xff] %vm744, %v1580
  %1597 = vst.msk [vmem:[%s1508 + $0x40] sm:$0xff] %vm744, %v1581
  %1598 = vst.msk [vmem:[%s1508 + $0x48] sm:$0xff] %vm744, %v1582
  %1599 = vst.msk [vmem:[%s1508 + $0x50] sm:$0xff] %vm744, %v1583
  %1600 = vst.msk [vmem:[%s1508 + $0x58] sm:$0xff] %vm744, %v1584
  %1601 = vst.msk [vmem:[%s1508 + $0x60] sm:$0xff] %vm744, %v1585
  %1602 = vst.msk [vmem:[%s1508 + $0x68] sm:$0xff] %vm744, %v1586
  %1603 = vst.msk [vmem:[%s1508 + $0x70] sm:$0xff] %vm744, %v1587
  %1604 = vst.msk [vmem:[%s1508 + $0x78] sm:$0xff] %vm744, %v1588
  %s1605 = scalar_lea.vmem [#allocation4], 128
  %v1606 = vld [vmem:[%s1605] sm:$0xff]
  %v1607 = vld [vmem:[%s1605 + $0x8] sm:$0xff]
  %v1608 = vld [vmem:[%s1605 + $0x10] sm:$0xff]
  %v1609 = vld [vmem:[%s1605 + $0x18] sm:$0xff]
  %v1610 = vld [vmem:[%s1605 + $0x20] sm:$0xff]
  %v1611 = vld [vmem:[%s1605 + $0x28] sm:$0xff]
  %v1612 = vld [vmem:[%s1605 + $0x30] sm:$0xff]
  %v1613 = vld [vmem:[%s1605 + $0x38] sm:$0xff]
  %v1614 = vld [vmem:[%s1605 + $0x40] sm:$0xff]
  %v1615 = vld [vmem:[%s1605 + $0x48] sm:$0xff]
  %v1616 = vld [vmem:[%s1605 + $0x50] sm:$0xff]
  %v1617 = vld [vmem:[%s1605 + $0x58] sm:$0xff]
  %v1618 = vld [vmem:[%s1605 + $0x60] sm:$0xff]
  %v1619 = vld [vmem:[%s1605 + $0x68] sm:$0xff]
  %v1620 = vld [vmem:[%s1605 + $0x70] sm:$0xff]
  %v1621 = vld [vmem:[%s1605 + $0x78] sm:$0xff]
  %1623 = vset.pattern.permute.xlu0 0
  %1624 = vperm.xlu0 %1623, %v1349
  %v1625 = vpop.permute.xlu0 %1624
  %1628 = vset.pattern.permute.xlu0 0
  %1629 = vperm.xlu0 %1628, %v1351
  %v1630 = vpop.permute.xlu0 %1629
  %1633 = vset.pattern.permute.xlu0 0
  %1634 = vperm.xlu0 %1633, %v1353
  %v1635 = vpop.permute.xlu0 %1634
  %1638 = vset.pattern.permute.xlu0 0
  %1639 = vperm.xlu0 %1638, %v1355
  %v1640 = vpop.permute.xlu0 %1639
  %1643 = vset.pattern.permute.xlu0 0
  %1644 = vperm.xlu0 %1643, %v1357
  %v1645 = vpop.permute.xlu0 %1644
  %1648 = vset.pattern.permute.xlu0 0
  %1649 = vperm.xlu0 %1648, %v1359
  %v1650 = vpop.permute.xlu0 %1649
  %1653 = vset.pattern.permute.xlu0 0
  %1654 = vperm.xlu0 %1653, %v1361
  %v1655 = vpop.permute.xlu0 %1654
  %1658 = vset.pattern.permute.xlu0 0
  %1659 = vperm.xlu0 %1658, %v1363
  %v1660 = vpop.permute.xlu0 %1659
  %1663 = vset.pattern.permute.xlu0 0
  %1664 = vperm.xlu0 %1663, %v1365
  %v1665 = vpop.permute.xlu0 %1664
  %1668 = vset.pattern.permute.xlu0 0
  %1669 = vperm.xlu0 %1668, %v1367
  %v1670 = vpop.permute.xlu0 %1669
  %1673 = vset.pattern.permute.xlu0 0
  %1674 = vperm.xlu0 %1673, %v1369
  %v1675 = vpop.permute.xlu0 %1674
  %1678 = vset.pattern.permute.xlu0 0
  %1679 = vperm.xlu0 %1678, %v1371
  %v1680 = vpop.permute.xlu0 %1679
  %1683 = vset.pattern.permute.xlu0 0
  %1684 = vperm.xlu0 %1683, %v1373
  %v1685 = vpop.permute.xlu0 %1684
  %1688 = vset.pattern.permute.xlu0 0
  %1689 = vperm.xlu0 %1688, %v1375
  %v1690 = vpop.permute.xlu0 %1689
  %1693 = vset.pattern.permute.xlu0 0
  %1694 = vperm.xlu0 %1693, %v1377
  %v1695 = vpop.permute.xlu0 %1694
  %1698 = vset.pattern.permute.xlu0 0
  %1699 = vperm.xlu0 %1698, %v1379
  %v1700 = vpop.permute.xlu0 %1699
  %v1702 = vmul.f32 %v1625, %v1606
  %v1703 = vmul.f32 %v1630, %v1607
  %v1704 = vmul.f32 %v1635, %v1608
  %v1705 = vmul.f32 %v1640, %v1609
  %v1706 = vmul.f32 %v1645, %v1610
  %v1707 = vmul.f32 %v1650, %v1611
  %v1708 = vmul.f32 %v1655, %v1612
  %v1709 = vmul.f32 %v1660, %v1613
  %v1710 = vmul.f32 %v1665, %v1614
  %v1711 = vmul.f32 %v1670, %v1615
  %v1712 = vmul.f32 %v1675, %v1616
  %v1713 = vmul.f32 %v1680, %v1617
  %v1714 = vmul.f32 %v1685, %v1618
  %v1715 = vmul.f32 %v1690, %v1619
  %v1716 = vmul.f32 %v1695, %v1620
  %v1717 = vmul.f32 %v1700, %v1621
  %v1718 = vpack.c.bf16 %v1479, %v1477
  %v1719 = vpack.c.bf16 %v1483, %v1481
  %v1720 = vpack.c.bf16 %v1487, %v1485
  %v1721 = vpack.c.bf16 %v1491, %v1489
  %v1722 = vpack.c.bf16 %v1495, %v1493
  %v1723 = vpack.c.bf16 %v1499, %v1497
  %v1724 = vpack.c.bf16 %v1503, %v1501
  %v1725 = vpack.c.bf16 %v1507, %v1505
  %v1726 = vunpack.c.h.b16 %v183
  %v1727 = vunpack.c.h.b16 %v184
  %v1728 = vunpack.c.h.b16 %v185
  %v1729 = vunpack.c.h.b16 %v186
  %v1730 = vunpack.c.h.b16 %v187
  %v1731 = vunpack.c.h.b16 %v188
  %v1732 = vunpack.c.h.b16 %v189
  %v1733 = vunpack.c.h.b16 %v190
  %v1734 = vunpack.c.h.b16 %v191
  %v1735 = vunpack.c.h.b16 %v192
  %v1736 = vunpack.c.h.b16 %v193
  %v1737 = vunpack.c.h.b16 %v194
  %v1738 = vunpack.c.h.b16 %v195
  %v1739 = vunpack.c.h.b16 %v196
  %v1740 = vunpack.c.h.b16 %v197
  %v1741 = vunpack.c.h.b16 %v198
  %v1742 = vpack.c.b16 %v1727, %v1726
  %v1743 = vpack.c.b16 %v1729, %v1728
  %v1744 = vpack.c.b16 %v1731, %v1730
  %v1745 = vpack.c.b16 %v1733, %v1732
  %v1746 = vpack.c.b16 %v1735, %v1734
  %v1747 = vpack.c.b16 %v1737, %v1736
  %v1748 = vpack.c.b16 %v1739, %v1738
  %v1749 = vpack.c.b16 %v1741, %v1740
  %1758 = vmatprep.subr.bf16.mxu0 0
  %1759 = vmatpush1.bf16.msra.mxu0 %v1749
  %1760 = vmatprep.subr.bf16.mxu0 0
  %1761 = vmatpush1.bf16.msra.mxu0 %v1748
  %1762 = vmatprep.subr.bf16.mxu0 0
  %1763 = vmatpush1.bf16.msra.mxu0 %v1747
  %1764 = vmatprep.subr.bf16.mxu0 0
  %1765 = vmatpush1.bf16.msra.mxu0 %v1746
  %1766 = vmatprep.subr.bf16.mxu0 0
  %1767 = vmatpush1.bf16.msra.mxu0 %v1745
  %1768 = vmatprep.subr.bf16.mxu0 0
  %1769 = vmatpush1.bf16.msra.mxu0 %v1744
  %1770 = vmatprep.subr.bf16.mxu0 0
  %1771 = vmatpush1.bf16.msra.mxu0 %v1743
  %1772 = vmatprep.subr.bf16.mxu0 0
  %1773 = vmatpush1.bf16.msra.mxu0 %v1742
  %1774 = vmatprep.subr.bf16.mxu0 0
  %1775 = vmatpush2.bf16.msra.mxu0 0
  %1776 = vmatprep.subr.bf16.mxu0 0
  %1777 = vmatpush2.bf16.msra.mxu0 0
  %1778 = vmatprep.subr.bf16.mxu0 0
  %1779 = vmatpush2.bf16.msra.mxu0 0
  %1780 = vmatprep.subr.bf16.mxu0 0
  %1781 = vmatpush2.bf16.msra.mxu0 0
  %1782 = vmatprep.subr.bf16.mxu0 0
  %1783 = vmatpush2.bf16.msra.mxu0 0
  %1784 = vmatprep.subr.bf16.mxu0 0
  %1785 = vmatpush2.bf16.msra.mxu0 0
  %1786 = vmatprep.subr.bf16.mxu0 0
  %1787 = vmatpush2.bf16.msra.mxu0 0
  %1788 = vmatprep.subr.bf16.mxu0 0
  %1789 = vmatpush2.bf16.msra.mxu0 0
  %1790 = vmatprep.mubr.bf16.mxu0 0
  %1791 = vmatmul.mubr.bf16.gmra.mxu0 %v1718
  %v1792 = vpop.f32.mrf.mxu0
  %v1793 = vadd.f32 0.0, %v1792
  %v1794 = vpop.f32.mrf.mxu0
  %v1795 = vpop.f32.mrf.mxu0
  %v1796 = vadd.f32 0.0, %v1795
  %v1797 = vpop.f32.mrf.mxu0
  %1798 = vmatprep.mubr.bf16.mxu0 0
  %1799 = vmatmul.mubr.bf16.gmra.mxu0 %v1719
  %v1800 = vpop.f32.mrf.mxu0
  %v1801 = vadd.f32 0.0, %v1800
  %v1802 = vpop.f32.mrf.mxu0
  %v1803 = vpop.f32.mrf.mxu0
  %v1804 = vadd.f32 0.0, %v1803
  %v1805 = vpop.f32.mrf.mxu0
  %1806 = vmatprep.mubr.bf16.mxu0 0
  %1807 = vmatmul.mubr.bf16.gmra.mxu0 %v1720
  %v1808 = vpop.f32.mrf.mxu0
  %v1809 = vadd.f32 0.0, %v1808
  %v1810 = vpop.f32.mrf.mxu0
  %v1811 = vpop.f32.mrf.mxu0
  %v1812 = vadd.f32 0.0, %v1811
  %v1813 = vpop.f32.mrf.mxu0
  %1814 = vmatprep.mubr.bf16.mxu0 0
  %1815 = vmatmul.mubr.bf16.gmra.mxu0 %v1721
  %v1816 = vpop.f32.mrf.mxu0
  %v1817 = vadd.f32 0.0, %v1816
  %v1818 = vpop.f32.mrf.mxu0
  %v1819 = vpop.f32.mrf.mxu0
  %v1820 = vadd.f32 0.0, %v1819
  %v1821 = vpop.f32.mrf.mxu0
  %1822 = vmatprep.mubr.bf16.mxu0 0
  %1823 = vmatmul.mubr.bf16.gmra.mxu0 %v1722
  %v1824 = vpop.f32.mrf.mxu0
  %v1825 = vadd.f32 0.0, %v1824
  %v1826 = vpop.f32.mrf.mxu0
  %v1827 = vpop.f32.mrf.mxu0
  %v1828 = vadd.f32 0.0, %v1827
  %v1829 = vpop.f32.mrf.mxu0
  %1830 = vmatprep.mubr.bf16.mxu0 0
  %1831 = vmatmul.mubr.bf16.gmra.mxu0 %v1723
  %v1832 = vpop.f32.mrf.mxu0
  %v1833 = vadd.f32 0.0, %v1832
  %v1834 = vpop.f32.mrf.mxu0
  %v1835 = vpop.f32.mrf.mxu0
  %v1836 = vadd.f32 0.0, %v1835
  %v1837 = vpop.f32.mrf.mxu0
  %1838 = vmatprep.mubr.bf16.mxu0 0
  %1839 = vmatmul.mubr.bf16.gmra.mxu0 %v1724
  %v1840 = vpop.f32.mrf.mxu0
  %v1841 = vadd.f32 0.0, %v1840
  %v1842 = vpop.f32.mrf.mxu0
  %v1843 = vpop.f32.mrf.mxu0
  %v1844 = vadd.f32 0.0, %v1843
  %v1845 = vpop.f32.mrf.mxu0
  %1846 = vmatprep.mubr.bf16.mxu0 0
  %1847 = vmatmul.mubr.bf16.gmra.mxu0 %v1725
  %v1848 = vpop.f32.mrf.mxu0
  %v1849 = vadd.f32 0.0, %v1848
  %v1850 = vpop.f32.mrf.mxu0
  %v1851 = vpop.f32.mrf.mxu0
  %v1852 = vadd.f32 0.0, %v1851
  %v1853 = vpop.f32.mrf.mxu0
  %1854 = vdwg.mxu0
  %v1855 = vadd.f32 %v1702, %v1793
  %v1856 = vadd.f32 %v1703, %v1796
  %v1857 = vadd.f32 %v1704, %v1801
  %v1858 = vadd.f32 %v1705, %v1804
  %v1859 = vadd.f32 %v1706, %v1809
  %v1860 = vadd.f32 %v1707, %v1812
  %v1861 = vadd.f32 %v1708, %v1817
  %v1862 = vadd.f32 %v1709, %v1820
  %v1863 = vadd.f32 %v1710, %v1825
  %v1864 = vadd.f32 %v1711, %v1828
  %v1865 = vadd.f32 %v1712, %v1833
  %v1866 = vadd.f32 %v1713, %v1836
  %v1867 = vadd.f32 %v1714, %v1841
  %v1868 = vadd.f32 %v1715, %v1844
  %v1869 = vadd.f32 %v1716, %v1849
  %v1870 = vadd.f32 %v1717, %v1852
  %1871 = vst [vmem:[%s1605] sm:$0xff] %v1855
  %1872 = vst [vmem:[%s1605 + $0x8] sm:$0xff] %v1856
  %1873 = vst [vmem:[%s1605 + $0x10] sm:$0xff] %v1857
  %1874 = vst [vmem:[%s1605 + $0x18] sm:$0xff] %v1858
  %1875 = vst [vmem:[%s1605 + $0x20] sm:$0xff] %v1859
  %1876 = vst [vmem:[%s1605 + $0x28] sm:$0xff] %v1860
  %1877 = vst [vmem:[%s1605 + $0x30] sm:$0xff] %v1861
  %1878 = vst [vmem:[%s1605 + $0x38] sm:$0xff] %v1862
  %1879 = vst [vmem:[%s1605 + $0x40] sm:$0xff] %v1863
  %1880 = vst [vmem:[%s1605 + $0x48] sm:$0xff] %v1864
  %1881 = vst [vmem:[%s1605 + $0x50] sm:$0xff] %v1865
  %1882 = vst [vmem:[%s1605 + $0x58] sm:$0xff] %v1866
  %1883 = vst [vmem:[%s1605 + $0x60] sm:$0xff] %v1867
  %1884 = vst [vmem:[%s1605 + $0x68] sm:$0xff] %v1868
  %1885 = vst [vmem:[%s1605 + $0x70] sm:$0xff] %v1869
  %1886 = vst [vmem:[%s1605 + $0x78] sm:$0xff] %v1870
  %1887 = vst.msk [vmem:[%s1267] sm:$0xff] %vm744, %v1316
  %1888 = vst.msk [vmem:[%s1267 + $0x8] sm:$0xff] %vm744, %v1317
  %1889 = vst.msk [vmem:[%s1267 + $0x10] sm:$0xff] %vm744, %v1318
  %1890 = vst.msk [vmem:[%s1267 + $0x18] sm:$0xff] %vm744, %v1319
  %1891 = vst.msk [vmem:[%s1267 + $0x20] sm:$0xff] %vm744, %v1320
  %1892 = vst.msk [vmem:[%s1267 + $0x28] sm:$0xff] %vm744, %v1321
  %1893 = vst.msk [vmem:[%s1267 + $0x30] sm:$0xff] %vm744, %v1322
  %1894 = vst.msk [vmem:[%s1267 + $0x38] sm:$0xff] %vm744, %v1323
  %1895 = vst.msk [vmem:[%s1267 + $0x40] sm:$0xff] %vm744, %v1324
  %1896 = vst.msk [vmem:[%s1267 + $0x48] sm:$0xff] %vm744, %v1325
  %1897 = vst.msk [vmem:[%s1267 + $0x50] sm:$0xff] %vm744, %v1326
  %1898 = vst.msk [vmem:[%s1267 + $0x58] sm:$0xff] %vm744, %v1327
  %1899 = vst.msk [vmem:[%s1267 + $0x60] sm:$0xff] %vm744, %v1328
  %1900 = vst.msk [vmem:[%s1267 + $0x68] sm:$0xff] %vm744, %v1329
  %1901 = vst.msk [vmem:[%s1267 + $0x70] sm:$0xff] %vm744, %v1330
  %1902 = vst.msk [vmem:[%s1267 + $0x78] sm:$0xff] %vm744, %v1331
  // Predicated region
  $region22: #{_lambda_.12} parent=0 // pred_check
    %p1903 = pneg %p18
  $region23: #{_lambda_.12} parent=0 // pred_check_branch
    %1905 = sbr.rel (%p1903) target = $region25
  $region24: #{_lambda_.12} parent=0 // pred_region
    %v1906 = vld [vmem:[#allocation4] sm:$0xff]
    %v1907 = vld [vmem:[#allocation4 + $0x8] sm:$0xff]
    %v1908 = vld [vmem:[#allocation4 + $0x10] sm:$0xff]
    %v1909 = vld [vmem:[#allocation4 + $0x18] sm:$0xff]
    %v1910 = vld [vmem:[#allocation4 + $0x20] sm:$0xff]
    %v1911 = vld [vmem:[#allocation4 + $0x28] sm:$0xff]
    %v1912 = vld [vmem:[#allocation4 + $0x30] sm:$0xff]
    %v1913 = vld [vmem:[#allocation4 + $0x38] sm:$0xff]
    %v1914 = vld [vmem:[#allocation4 + $0x40] sm:$0xff]
    %v1915 = vld [vmem:[#allocation4 + $0x48] sm:$0xff]
    %v1916 = vld [vmem:[#allocation4 + $0x50] sm:$0xff]
    %v1917 = vld [vmem:[#allocation4 + $0x58] sm:$0xff]
    %v1918 = vld [vmem:[#allocation4 + $0x60] sm:$0xff]
    %v1919 = vld [vmem:[#allocation4 + $0x68] sm:$0xff]
    %v1920 = vld [vmem:[#allocation4 + $0x70] sm:$0xff]
    %v1921 = vld [vmem:[#allocation4 + $0x78] sm:$0xff]
    %v1922 = vld [vmem:[#allocation3] sm:$0xff]
    %v1923 = vld [vmem:[#allocation3 + $0x8] sm:$0xff]
    %v1924 = vld [vmem:[#allocation3 + $0x10] sm:$0xff]
    %v1925 = vld [vmem:[#allocation3 + $0x18] sm:$0xff]
    %v1926 = vld [vmem:[#allocation3 + $0x20] sm:$0xff]
    %v1927 = vld [vmem:[#allocation3 + $0x28] sm:$0xff]
    %v1928 = vld [vmem:[#allocation3 + $0x30] sm:$0xff]
    %v1929 = vld [vmem:[#allocation3 + $0x38] sm:$0xff]
    %v1930 = vld [vmem:[#allocation3 + $0x40] sm:$0xff]
    %v1931 = vld [vmem:[#allocation3 + $0x48] sm:$0xff]
    %v1932 = vld [vmem:[#allocation3 + $0x50] sm:$0xff]
    %v1933 = vld [vmem:[#allocation3 + $0x58] sm:$0xff]
    %v1934 = vld [vmem:[#allocation3 + $0x60] sm:$0xff]
    %v1935 = vld [vmem:[#allocation3 + $0x68] sm:$0xff]
    %v1936 = vld [vmem:[#allocation3 + $0x70] sm:$0xff]
    %v1937 = vld [vmem:[#allocation3 + $0x78] sm:$0xff]
    %v1938 = vrcp.pop %v1922
    %v1939 = vrcp.pop %v1923
    %v1940 = vrcp.pop %v1924
    %v1941 = vrcp.pop %v1925
    %v1942 = vrcp.pop %v1926
    %v1943 = vrcp.pop %v1927
    %v1944 = vrcp.pop %v1928
    %v1945 = vrcp.pop %v1929
    %v1946 = vrcp.pop %v1930
    %v1947 = vrcp.pop %v1931
    %v1948 = vrcp.pop %v1932
    %v1949 = vrcp.pop %v1933
    %v1950 = vrcp.pop %v1934
    %v1951 = vrcp.pop %v1935
    %v1952 = vrcp.pop %v1936
    %v1953 = vrcp.pop %v1937
    %1955 = vset.pattern.permute.xlu0 0
    %1956 = vperm.xlu0 %1955, %v1938
    %v1957 = vpop.permute.xlu0 %1956
    %1960 = vset.pattern.permute.xlu0 0
    %1961 = vperm.xlu0 %1960, %v1939
    %v1962 = vpop.permute.xlu0 %1961
    %1965 = vset.pattern.permute.xlu0 0
    %1966 = vperm.xlu0 %1965, %v1940
    %v1967 = vpop.permute.xlu0 %1966
    %1970 = vset.pattern.permute.xlu0 0
    %1971 = vperm.xlu0 %1970, %v1941
    %v1972 = vpop.permute.xlu0 %1971
    %1975 = vset.pattern.permute.xlu0 0
    %1976 = vperm.xlu0 %1975, %v1942
    %v1977 = vpop.permute.xlu0 %1976
    %1980 = vset.pattern.permute.xlu0 0
    %1981 = vperm.xlu0 %1980, %v1943
    %v1982 = vpop.permute.xlu0 %1981
    %1985 = vset.pattern.permute.xlu0 0
    %1986 = vperm.xlu0 %1985, %v1944
    %v1987 = vpop.permute.xlu0 %1986
    %1990 = vset.pattern.permute.xlu0 0
    %1991 = vperm.xlu0 %1990, %v1945
    %v1992 = vpop.permute.xlu0 %1991
    %1995 = vset.pattern.permute.xlu0 0
    %1996 = vperm.xlu0 %1995, %v1946
    %v1997 = vpop.permute.xlu0 %1996
    %2000 = vset.pattern.permute.xlu0 0
    %2001 = vperm.xlu0 %2000, %v1947
    %v2002 = vpop.permute.xlu0 %2001
    %2005 = vset.pattern.permute.xlu0 0
    %2006 = vperm.xlu0 %2005, %v1948
    %v2007 = vpop.permute.xlu0 %2006
    %2010 = vset.pattern.permute.xlu0 0
    %2011 = vperm.xlu0 %2010, %v1949
    %v2012 = vpop.permute.xlu0 %2011
    %2015 = vset.pattern.permute.xlu0 0
    %2016 = vperm.xlu0 %2015, %v1950
    %v2017 = vpop.permute.xlu0 %2016
    %2020 = vset.pattern.permute.xlu0 0
    %2021 = vperm.xlu0 %2020, %v1951
    %v2022 = vpop.permute.xlu0 %2021
    %2025 = vset.pattern.permute.xlu0 0
    %2026 = vperm.xlu0 %2025, %v1952
    %v2027 = vpop.permute.xlu0 %2026
    %2030 = vset.pattern.permute.xlu0 0
    %2031 = vperm.xlu0 %2030, %v1953
    %v2032 = vpop.permute.xlu0 %2031
    %v2034 = vmul.f32 %v1906, %v1957
    %v2035 = vmul.f32 %v1907, %v1962
    %v2036 = vmul.f32 %v1908, %v1967
    %v2037 = vmul.f32 %v1909, %v1972
    %v2038 = vmul.f32 %v1910, %v1977
    %v2039 = vmul.f32 %v1911, %v1982
    %v2040 = vmul.f32 %v1912, %v1987
    %v2041 = vmul.f32 %v1913, %v1992
    %v2042 = vmul.f32 %v1914, %v1997
    %v2043 = vmul.f32 %v1915, %v2002
    %v2044 = vmul.f32 %v1916, %v2007
    %v2045 = vmul.f32 %v1917, %v2012
    %v2046 = vmul.f32 %v1918, %v2017
    %v2047 = vmul.f32 %v1919, %v2022
    %v2048 = vmul.f32 %v1920, %v2027
    %v2049 = vmul.f32 %v1921, %v2032
    %v2050 = vpack.c.bf16 %v2035, %v2034
    %v2051 = vpack.c.bf16 %v2037, %v2036
    %v2052 = vpack.c.bf16 %v2039, %v2038
    %v2053 = vpack.c.bf16 %v2041, %v2040
    %v2054 = vpack.c.bf16 %v2043, %v2042
    %v2055 = vpack.c.bf16 %v2045, %v2044
    %v2056 = vpack.c.bf16 %v2047, %v2046
    %v2057 = vpack.c.bf16 %v2049, %v2048
    %v2066 = vunpack.c.l.b16 %v2050
    %v2067 = vunpack.c.h.b16 %v2050
    %v2068 = vunpack.c.l.b16 %v2051
    %v2069 = vunpack.c.h.b16 %v2051
    %v2070 = vunpack.c.l.b16 %v2052
    %v2071 = vunpack.c.h.b16 %v2052
    %v2072 = vunpack.c.l.b16 %v2053
    %v2073 = vunpack.c.h.b16 %v2053
    %v2074 = vunpack.c.l.b16 %v2054
    %v2075 = vunpack.c.h.b16 %v2054
    %v2076 = vunpack.c.l.b16 %v2055
    %v2077 = vunpack.c.h.b16 %v2055
    %v2078 = vunpack.c.l.b16 %v2056
    %v2079 = vunpack.c.h.b16 %v2056
    %v2080 = vunpack.c.l.b16 %v2057
    %v2081 = vunpack.c.h.b16 %v2057
    %v2082 = vpack.c.b16 %v2066, %v2066
    %v2083 = vpack.c.b16 %v2067, %v2067
    %v2084 = vpack.c.b16 %v2068, %v2068
    %v2085 = vpack.c.b16 %v2069, %v2069
    %v2086 = vpack.c.b16 %v2070, %v2070
    %v2087 = vpack.c.b16 %v2071, %v2071
    %v2088 = vpack.c.b16 %v2072, %v2072
    %v2089 = vpack.c.b16 %v2073, %v2073
    %v2090 = vpack.c.b16 %v2074, %v2074
    %v2091 = vpack.c.b16 %v2075, %v2075
    %v2092 = vpack.c.b16 %v2076, %v2076
    %v2093 = vpack.c.b16 %v2077, %v2077
    %v2094 = vpack.c.b16 %v2078, %v2078
    %v2095 = vpack.c.b16 %v2079, %v2079
    %v2096 = vpack.c.b16 %v2080, %v2080
    %v2097 = vpack.c.b16 %v2081, %v2081
    %2114 = vst [vmem:[%s4] sm:$0xf] %v2082
    %2115 = vst [vmem:[%s4 + $0x8] sm:$0xf] %v2083
    %2116 = vst [vmem:[%s4 + $0x10] sm:$0xf] %v2084
    %2117 = vst [vmem:[%s4 + $0x18] sm:$0xf] %v2085
    %2118 = vst [vmem:[%s4 + $0x20] sm:$0xf] %v2086
    %2119 = vst [vmem:[%s4 + $0x28] sm:$0xf] %v2087
    %2120 = vst [vmem:[%s4 + $0x30] sm:$0xf] %v2088
    %2121 = vst [vmem:[%s4 + $0x38] sm:$0xf] %v2089
    %2122 = vst [vmem:[%s4 + $0x40] sm:$0xf] %v2090
    %2123 = vst [vmem:[%s4 + $0x48] sm:$0xf] %v2091
    %2124 = vst [vmem:[%s4 + $0x50] sm:$0xf] %v2092
    %2125 = vst [vmem:[%s4 + $0x58] sm:$0xf] %v2093
    %2126 = vst [vmem:[%s4 + $0x60] sm:$0xf] %v2094
    %2127 = vst [vmem:[%s4 + $0x68] sm:$0xf] %v2095
    %2128 = vst [vmem:[%s4 + $0x70] sm:$0xf] %v2096
    %2129 = vst [vmem:[%s4 + $0x78] sm:$0xf] %v2097
    %v2130 = vld [vmem:[%s1605] sm:$0xff]
    %v2131 = vld [vmem:[%s1605 + $0x8] sm:$0xff]
    %v2132 = vld [vmem:[%s1605 + $0x10] sm:$0xff]
    %v2133 = vld [vmem:[%s1605 + $0x18] sm:$0xff]
    %v2134 = vld [vmem:[%s1605 + $0x20] sm:$0xff]
    %v2135 = vld [vmem:[%s1605 + $0x28] sm:$0xff]
    %v2136 = vld [vmem:[%s1605 + $0x30] sm:$0xff]
    %v2137 = vld [vmem:[%s1605 + $0x38] sm:$0xff]
    %v2138 = vld [vmem:[%s1605 + $0x40] sm:$0xff]
    %v2139 = vld [vmem:[%s1605 + $0x48] sm:$0xff]
    %v2140 = vld [vmem:[%s1605 + $0x50] sm:$0xff]
    %v2141 = vld [vmem:[%s1605 + $0x58] sm:$0xff]
    %v2142 = vld [vmem:[%s1605 + $0x60] sm:$0xff]
    %v2143 = vld [vmem:[%s1605 + $0x68] sm:$0xff]
    %v2144 = vld [vmem:[%s1605 + $0x70] sm:$0xff]
    %v2145 = vld [vmem:[%s1605 + $0x78] sm:$0xff]
    %v2146 = vld [vmem:[%s1508] sm:$0xff]
    %v2147 = vld [vmem:[%s1508 + $0x8] sm:$0xff]
    %v2148 = vld [vmem:[%s1508 + $0x10] sm:$0xff]
    %v2149 = vld [vmem:[%s1508 + $0x18] sm:$0xff]
    %v2150 = vld [vmem:[%s1508 + $0x20] sm:$0xff]
    %v2151 = vld [vmem:[%s1508 + $0x28] sm:$0xff]
    %v2152 = vld [vmem:[%s1508 + $0x30] sm:$0xff]
    %v2153 = vld [vmem:[%s1508 + $0x38] sm:$0xff]
    %v2154 = vld [vmem:[%s1508 + $0x40] sm:$0xff]
    %v2155 = vld [vmem:[%s1508 + $0x48] sm:$0xff]
    %v2156 = vld [vmem:[%s1508 + $0x50] sm:$0xff]
    %v2157 = vld [vmem:[%s1508 + $0x58] sm:$0xff]
    %v2158 = vld [vmem:[%s1508 + $0x60] sm:$0xff]
    %v2159 = vld [vmem:[%s1508 + $0x68] sm:$0xff]
    %v2160 = vld [vmem:[%s1508 + $0x70] sm:$0xff]
    %v2161 = vld [vmem:[%s1508 + $0x78] sm:$0xff]
    %v2162 = vrcp.pop %v2146
    %v2163 = vrcp.pop %v2147
    %v2164 = vrcp.pop %v2148
    %v2165 = vrcp.pop %v2149
    %v2166 = vrcp.pop %v2150
    %v2167 = vrcp.pop %v2151
    %v2168 = vrcp.pop %v2152
    %v2169 = vrcp.pop %v2153
    %v2170 = vrcp.pop %v2154
    %v2171 = vrcp.pop %v2155
    %v2172 = vrcp.pop %v2156
    %v2173 = vrcp.pop %v2157
    %v2174 = vrcp.pop %v2158
    %v2175 = vrcp.pop %v2159
    %v2176 = vrcp.pop %v2160
    %v2177 = vrcp.pop %v2161
    %2179 = vset.pattern.permute.xlu0 0
    %2180 = vperm.xlu0 %2179, %v2162
    %v2181 = vpop.permute.xlu0 %2180
    %2184 = vset.pattern.permute.xlu0 0
    %2185 = vperm.xlu0 %2184, %v2163
    %v2186 = vpop.permute.xlu0 %2185
    %2189 = vset.pattern.permute.xlu0 0
    %2190 = vperm.xlu0 %2189, %v2164
    %v2191 = vpop.permute.xlu0 %2190
    %2194 = vset.pattern.permute.xlu0 0
    %2195 = vperm.xlu0 %2194, %v2165
    %v2196 = vpop.permute.xlu0 %2195
    %2199 = vset.pattern.permute.xlu0 0
    %2200 = vperm.xlu0 %2199, %v2166
    %v2201 = vpop.permute.xlu0 %2200
    %2204 = vset.pattern.permute.xlu0 0
    %2205 = vperm.xlu0 %2204, %v2167
    %v2206 = vpop.permute.xlu0 %2205
    %2209 = vset.pattern.permute.xlu0 0
    %2210 = vperm.xlu0 %2209, %v2168
    %v2211 = vpop.permute.xlu0 %2210
    %2214 = vset.pattern.permute.xlu0 0
    %2215 = vperm.xlu0 %2214, %v2169
    %v2216 = vpop.permute.xlu0 %2215
    %2219 = vset.pattern.permute.xlu0 0
    %2220 = vperm.xlu0 %2219, %v2170
    %v2221 = vpop.permute.xlu0 %2220
    %2224 = vset.pattern.permute.xlu0 0
    %2225 = vperm.xlu0 %2224, %v2171
    %v2226 = vpop.permute.xlu0 %2225
    %2229 = vset.pattern.permute.xlu0 0
    %2230 = vperm.xlu0 %2229, %v2172
    %v2231 = vpop.permute.xlu0 %2230
    %2234 = vset.pattern.permute.xlu0 0
    %2235 = vperm.xlu0 %2234, %v2173
    %v2236 = vpop.permute.xlu0 %2235
    %2239 = vset.pattern.permute.xlu0 0
    %2240 = vperm.xlu0 %2239, %v2174
    %v2241 = vpop.permute.xlu0 %2240
    %2244 = vset.pattern.permute.xlu0 0
    %2245 = vperm.xlu0 %2244, %v2175
    %v2246 = vpop.permute.xlu0 %2245
    %2249 = vset.pattern.permute.xlu0 0
    %2250 = vperm.xlu0 %2249, %v2176
    %v2251 = vpop.permute.xlu0 %2250
    %2254 = vset.pattern.permute.xlu0 0
    %2255 = vperm.xlu0 %2254, %v2177
    %v2256 = vpop.permute.xlu0 %2255
    %v2258 = vmul.f32 %v2130, %v2181
    %v2259 = vmul.f32 %v2131, %v2186
    %v2260 = vmul.f32 %v2132, %v2191
    %v2261 = vmul.f32 %v2133, %v2196
    %v2262 = vmul.f32 %v2134, %v2201
    %v2263 = vmul.f32 %v2135, %v2206
    %v2264 = vmul.f32 %v2136, %v2211
    %v2265 = vmul.f32 %v2137, %v2216
    %v2266 = vmul.f32 %v2138, %v2221
    %v2267 = vmul.f32 %v2139, %v2226
    %v2268 = vmul.f32 %v2140, %v2231
    %v2269 = vmul.f32 %v2141, %v2236
    %v2270 = vmul.f32 %v2142, %v2241
    %v2271 = vmul.f32 %v2143, %v2246
    %v2272 = vmul.f32 %v2144, %v2251
    %v2273 = vmul.f32 %v2145, %v2256
    %v2274 = vpack.c.bf16 %v2259, %v2258
    %v2275 = vpack.c.bf16 %v2261, %v2260
    %v2276 = vpack.c.bf16 %v2263, %v2262
    %v2277 = vpack.c.bf16 %v2265, %v2264
    %v2278 = vpack.c.bf16 %v2267, %v2266
    %v2279 = vpack.c.bf16 %v2269, %v2268
    %v2280 = vpack.c.bf16 %v2271, %v2270
    %v2281 = vpack.c.bf16 %v2273, %v2272
    %v2290 = vunpack.c.l.b16 %v2274
    %v2291 = vunpack.c.h.b16 %v2274
    %v2292 = vunpack.c.l.b16 %v2275
    %v2293 = vunpack.c.h.b16 %v2275
    %v2294 = vunpack.c.l.b16 %v2276
    %v2295 = vunpack.c.h.b16 %v2276
    %v2296 = vunpack.c.l.b16 %v2277
    %v2297 = vunpack.c.h.b16 %v2277
    %v2298 = vunpack.c.l.b16 %v2278
    %v2299 = vunpack.c.h.b16 %v2278
    %v2300 = vunpack.c.l.b16 %v2279
    %v2301 = vunpack.c.h.b16 %v2279
    %v2302 = vunpack.c.l.b16 %v2280
    %v2303 = vunpack.c.h.b16 %v2280
    %v2304 = vunpack.c.l.b16 %v2281
    %v2305 = vunpack.c.h.b16 %v2281
    %v2306 = vpack.c.b16 %v2290, %v2290
    %v2307 = vpack.c.b16 %v2291, %v2291
    %v2308 = vpack.c.b16 %v2292, %v2292
    %v2309 = vpack.c.b16 %v2293, %v2293
    %v2310 = vpack.c.b16 %v2294, %v2294
    %v2311 = vpack.c.b16 %v2295, %v2295
    %v2312 = vpack.c.b16 %v2296, %v2296
    %v2313 = vpack.c.b16 %v2297, %v2297
    %v2314 = vpack.c.b16 %v2298, %v2298
    %v2315 = vpack.c.b16 %v2299, %v2299
    %v2316 = vpack.c.b16 %v2300, %v2300
    %v2317 = vpack.c.b16 %v2301, %v2301
    %v2318 = vpack.c.b16 %v2302, %v2302
    %v2319 = vpack.c.b16 %v2303, %v2303
    %v2320 = vpack.c.b16 %v2304, %v2304
    %v2321 = vpack.c.b16 %v2305, %v2305
    %2338 = vst [vmem:[%s4 + $0x4] sm:$0xf] %v2306
    %2339 = vst [vmem:[%s4 + $0xc] sm:$0xf] %v2307
    %2340 = vst [vmem:[%s4 + $0x14] sm:$0xf] %v2308
    %2341 = vst [vmem:[%s4 + $0x1c] sm:$0xf] %v2309
    %2342 = vst [vmem:[%s4 + $0x24] sm:$0xf] %v2310
    %2343 = vst [vmem:[%s4 + $0x2c] sm:$0xf] %v2311
    %2344 = vst [vmem:[%s4 + $0x34] sm:$0xf] %v2312
    %2345 = vst [vmem:[%s4 + $0x3c] sm:$0xf] %v2313
    %2346 = vst [vmem:[%s4 + $0x44] sm:$0xf] %v2314
    %2347 = vst [vmem:[%s4 + $0x4c] sm:$0xf] %v2315
    %2348 = vst [vmem:[%s4 + $0x54] sm:$0xf] %v2316
    %2349 = vst [vmem:[%s4 + $0x5c] sm:$0xf] %v2317
    %2350 = vst [vmem:[%s4 + $0x64] sm:$0xf] %v2318
    %2351 = vst [vmem:[%s4 + $0x6c] sm:$0xf] %v2319
    %2352 = vst [vmem:[%s4 + $0x74] sm:$0xf] %v2320
    %2353 = vst [vmem:[%s4 + $0x7c] sm:$0xf] %v2321
  $region25: #{_lambda_.12} parent=0 // pred_fallthru
    _
  // Predicated region
  $region26: #{_lambda_.12} parent=0 // pred_check
    _
  $region27: #{_lambda_.12} parent=0 // pred_check_branch
    %2355 = sbr.rel (0) target = $region29
  $region28: #{_lambda_.12} parent=0 // pred_region
    _
  $region29: #{_lambda_.12} parent=0 // pred_fallthru
    _
  // Predicated region
  $region30: #{_lambda_.12} parent=0 // pred_check
    _
  $region31: #{_lambda_.12} parent=0 // pred_check_branch
    %2357 = sbr.rel (0) target = $region33
  $region32: #{_lambda_.12} parent=0 // pred_region
    _
  $region33: #{_lambda_.12} parent=0 // pred_fallthru
    _

// kernel: _lambda_.13
$region0: #{_lambda_.13}
  #allocation0 [shape = 'u32[]', space=smem, size = 0x4, offset = 0x4, fixed_abs, tag = 'smem constant byte address 0x4 - core index']
  #allocation1 [shape = 'u32[144,128]{1,0:T(1,128)}', space=vmem, size = 0x12000, scoped, tag = 'internal scratch']
  %s0 = inlined_call_operand.vmem [shape: bf16[128,256], index: 0, kind: input, shape index: {}]
  %s1 = inlined_call_operand.vmem [shape: f32[128,256], index: 1, kind: input, shape index: {}]
  %s2 = inlined_call_operand.vmem [shape: bf16[256,256], index: 2, kind: input, shape index: {}]
  %s3 = inlined_call_operand.vmem [shape: f32[1,256], index: 3, kind: input, shape index: {}]
  %s4 = inlined_call_operand.vmem [shape: f32[1,256], index: 4, kind: input, shape index: {}]
  %s5 = inlined_call_operand.vmem [shape: f32[1,256], index: 5, kind: input, shape index: {}]
  %s6 = inlined_call_operand.vmem [shape: bf16[256,256], index: 6, kind: input, shape index: {}]
  %s7 = inlined_call_operand.vmem [shape: f32[1,256], index: 7, kind: input, shape index: {}]
  %s8 = inlined_call_operand.vmem [shape: bf16[256,256], index: 8, kind: input, shape index: {}]
  %s9 = inlined_call_operand.vmem [shape: f32[1,256], index: 9, kind: input, shape index: {}]
  %s10 = inlined_call_operand.vmem [shape: f32[128,256], index: 10, kind: output, shape index: {}]
  %s11 = sld [smem:[#allocation0]]
  $region50: #{_lambda_.13} parent=0
    _
  %s13 = ssub.s32 1, %s11
  %s14 = scalar_select 0, %s13, %s11
  // Predicated region
  $region2: #{_lambda_.13} parent=0 // pred_check
    _
  $region3: #{_lambda_.13} parent=0 // pred_check_branch
    %16 = sbr.rel (0) target = $region5
  $region4: #{_lambda_.13} parent=0 // pred_region
    _
  $region5: #{_lambda_.13} parent=0 // pred_fallthru
    _
  // Predicated region
  $region6: #{_lambda_.13} parent=0 // pred_check
    _
  $region7: #{_lambda_.13} parent=0 // pred_check_branch
    %18 = sbr.rel (0) target = $region9
  $region8: #{_lambda_.13} parent=0 // pred_region
    _
  $region9: #{_lambda_.13} parent=0 // pred_fallthru
    _
  // Predicated region
  $region10: #{_lambda_.13} parent=0 // pred_check
    _
  $region11: #{_lambda_.13} parent=0 // pred_check_branch
    %20 = sbr.rel (0) target = $region13
  $region12: #{_lambda_.13} parent=0 // pred_region
    _
  $region13: #{_lambda_.13} parent=0 // pred_fallthru
    _
  // Predicated region
  $region14: #{_lambda_.13} parent=0 // pred_check
    _
  $region15: #{_lambda_.13} parent=0 // pred_check_branch
    %22 = sbr.rel (0) target = $region17
  $region16: #{_lambda_.13} parent=0 // pred_region
    _
  $region17: #{_lambda_.13} parent=0 // pred_fallthru
    _
  // Predicated region
  $region18: #{_lambda_.13} parent=0 // pred_check
    _
  $region19: #{_lambda_.13} parent=0 // pred_check_branch
    %24 = sbr.rel (0) target = $region21
  $region20: #{_lambda_.13} parent=0 // pred_region
    _
  $region21: #{_lambda_.13} parent=0 // pred_fallthru
    _
  // Predicated region
  $region22: #{_lambda_.13} parent=0 // pred_check
    _
  $region23: #{_lambda_.13} parent=0 // pred_check_branch
    %26 = sbr.rel (0) target = $region25
  $region24: #{_lambda_.13} parent=0 // pred_region
    _
  $region25: #{_lambda_.13} parent=0 // pred_fallthru
    _
  // Predicated region
  $region26: #{_lambda_.13} parent=0 // pred_check
    _
  $region27: #{_lambda_.13} parent=0 // pred_check_branch
    %28 = sbr.rel (0) target = $region29
  $region28: #{_lambda_.13} parent=0 // pred_region
    _
  $region29: #{_lambda_.13} parent=0 // pred_fallthru
    _
  // Predicated region
  $region30: #{_lambda_.13} parent=0 // pred_check
    _
  $region31: #{_lambda_.13} parent=0 // pred_check_branch
    %30 = sbr.rel (0) target = $region33
  $region32: #{_lambda_.13} parent=0 // pred_region
    _
  $region33: #{_lambda_.13} parent=0 // pred_fallthru
    _
  // Predicated region
  $region34: #{_lambda_.13} parent=0 // pred_check
    _
  $region35: #{_lambda_.13} parent=0 // pred_check_branch
    %32 = sbr.rel (0) target = $region37
  $region36: #{_lambda_.13} parent=0 // pred_region
    _
  $region37: #{_lambda_.13} parent=0 // pred_fallthru
    _
  // Predicated region
  $region38: #{_lambda_.13} parent=0 // pred_check
    _
  $region39: #{_lambda_.13} parent=0 // pred_check_branch
    %34 = sbr.rel (0) target = $region41
  $region40: #{_lambda_.13} parent=0 // pred_region
    _
  $region41: #{_lambda_.13} parent=0 // pred_fallthru
    _
  %v35 = vld [vmem:[%s0] sm:$0xff]
  %v36 = vld [vmem:[%s0 + $0x8] sm:$0xff]
  %v37 = vld [vmem:[%s0 + $0x10] sm:$0xff]
  %v38 = vld [vmem:[%s0 + $0x18] sm:$0xff]
  %v39 = vld [vmem:[%s0 + $0x20] sm:$0xff]
  %v40 = vld [vmem:[%s0 + $0x28] sm:$0xff]
  %v41 = vld [vmem:[%s0 + $0x30] sm:$0xff]
  %v42 = vld [vmem:[%s0 + $0x38] sm:$0xff]
  %v43 = vld [vmem:[%s0 + $0x40] sm:$0xff]
  %v44 = vld [vmem:[%s0 + $0x48] sm:$0xff]
  %v45 = vld [vmem:[%s0 + $0x50] sm:$0xff]
  %v46 = vld [vmem:[%s0 + $0x58] sm:$0xff]
  %v47 = vld [vmem:[%s0 + $0x60] sm:$0xff]
  %v48 = vld [vmem:[%s0 + $0x68] sm:$0xff]
  %v49 = vld [vmem:[%s0 + $0x70] sm:$0xff]
  %v50 = vld [vmem:[%s0 + $0x78] sm:$0xff]
  %v51 = vld [vmem:[%s2] sm:$0xff]
  %v52 = vld [vmem:[%s2 + $0x8] sm:$0xff]
  %v53 = vld [vmem:[%s2 + $0x10] sm:$0xff]
  %v54 = vld [vmem:[%s2 + $0x18] sm:$0xff]
  %v55 = vld [vmem:[%s2 + $0x20] sm:$0xff]
  %v56 = vld [vmem:[%s2 + $0x28] sm:$0xff]
  %v57 = vld [vmem:[%s2 + $0x30] sm:$0xff]
  %v58 = vld [vmem:[%s2 + $0x38] sm:$0xff]
  %v59 = vld [vmem:[%s2 + $0x40] sm:$0xff]
  %v60 = vld [vmem:[%s2 + $0x48] sm:$0xff]
  %v61 = vld [vmem:[%s2 + $0x50] sm:$0xff]
  %v62 = vld [vmem:[%s2 + $0x58] sm:$0xff]
  %v63 = vld [vmem:[%s2 + $0x60] sm:$0xff]
  %v64 = vld [vmem:[%s2 + $0x68] sm:$0xff]
  %v65 = vld [vmem:[%s2 + $0x70] sm:$0xff]
  %v66 = vld [vmem:[%s2 + $0x78] sm:$0xff]
  %v67 = vld [vmem:[%s2 + $0x80] sm:$0xff]
  %v68 = vld [vmem:[%s2 + $0x88] sm:$0xff]
  %v69 = vld [vmem:[%s2 + $0x90] sm:$0xff]
  %v70 = vld [vmem:[%s2 + $0x98] sm:$0xff]
  %v71 = vld [vmem:[%s2 + $0xa0] sm:$0xff]
  %v72 = vld [vmem:[%s2 + $0xa8] sm:$0xff]
  %v73 = vld [vmem:[%s2 + $0xb0] sm:$0xff]
  %v74 = vld [vmem:[%s2 + $0xb8] sm:$0xff]
  %v75 = vld [vmem:[%s2 + $0xc0] sm:$0xff]
  %v76 = vld [vmem:[%s2 + $0xc8] sm:$0xff]
  %v77 = vld [vmem:[%s2 + $0xd0] sm:$0xff]
  %v78 = vld [vmem:[%s2 + $0xd8] sm:$0xff]
  %v79 = vld [vmem:[%s2 + $0xe0] sm:$0xff]
  %v80 = vld [vmem:[%s2 + $0xe8] sm:$0xff]
  %v81 = vld [vmem:[%s2 + $0xf0] sm:$0xff]
  %v82 = vld [vmem:[%s2 + $0xf8] sm:$0xff]
  %v83 = vld [vmem:[%s3] sm:$0x3]
  %v85 = vlaneseq
  %v86 = vshrl.u32 %v85, 7
  %v87 = vsub.s32 0, %v86
  %v88 = vrot.slane %v83, %v87
  %v89 = vlaneseq
  %v90 = vshrl.u32 %v89, 7
  %v91 = vsub.s32 1, %v90
  %v92 = vrot.slane %v83, %v91
  %v111 = vunpack.c.l.b16 %v35
  %v112 = vunpack.c.h.b16 %v35
  %v113 = vunpack.c.l.b16 %v36
  %v114 = vunpack.c.h.b16 %v36
  %v115 = vunpack.c.l.b16 %v37
  %v116 = vunpack.c.h.b16 %v37
  %v117 = vunpack.c.l.b16 %v38
  %v118 = vunpack.c.h.b16 %v38
  %v119 = vunpack.c.l.b16 %v39
  %v120 = vunpack.c.h.b16 %v39
  %v121 = vunpack.c.l.b16 %v40
  %v122 = vunpack.c.h.b16 %v40
  %v123 = vunpack.c.l.b16 %v41
  %v124 = vunpack.c.h.b16 %v41
  %v125 = vunpack.c.l.b16 %v42
  %v126 = vunpack.c.h.b16 %v42
  %v127 = vunpack.c.l.b16 %v43
  %v128 = vunpack.c.h.b16 %v43
  %v129 = vunpack.c.l.b16 %v44
  %v130 = vunpack.c.h.b16 %v44
  %v131 = vunpack.c.l.b16 %v45
  %v132 = vunpack.c.h.b16 %v45
  %v133 = vunpack.c.l.b16 %v46
  %v134 = vunpack.c.h.b16 %v46
  %v135 = vunpack.c.l.b16 %v47
  %v136 = vunpack.c.h.b16 %v47
  %v137 = vunpack.c.l.b16 %v48
  %v138 = vunpack.c.h.b16 %v48
  %v139 = vunpack.c.l.b16 %v49
  %v140 = vunpack.c.h.b16 %v49
  %v141 = vunpack.c.l.b16 %v50
  %v142 = vunpack.c.h.b16 %v50
  %v143 = vpack.c.b16 %v113, %v111
  %v144 = vpack.c.b16 %v114, %v112
  %v145 = vpack.c.b16 %v117, %v115
  %v146 = vpack.c.b16 %v118, %v116
  %v147 = vpack.c.b16 %v121, %v119
  %v148 = vpack.c.b16 %v122, %v120
  %v149 = vpack.c.b16 %v125, %v123
  %v150 = vpack.c.b16 %v126, %v124
  %v151 = vpack.c.b16 %v129, %v127
  %v152 = vpack.c.b16 %v130, %v128
  %v153 = vpack.c.b16 %v133, %v131
  %v154 = vpack.c.b16 %v134, %v132
  %v155 = vpack.c.b16 %v137, %v135
  %v156 = vpack.c.b16 %v138, %v136
  %v157 = vpack.c.b16 %v141, %v139
  %v158 = vpack.c.b16 %v142, %v140
  %v207 = vunpack.c.l.b16 %v51
  %v208 = vunpack.c.h.b16 %v51
  %v209 = vunpack.c.l.b16 %v52
  %v210 = vunpack.c.h.b16 %v52
  %v211 = vunpack.c.l.b16 %v53
  %v212 = vunpack.c.h.b16 %v53
  %v213 = vunpack.c.l.b16 %v54
  %v214 = vunpack.c.h.b16 %v54
  %v215 = vunpack.c.l.b16 %v55
  %v216 = vunpack.c.h.b16 %v55
  %v217 = vunpack.c.l.b16 %v56
  %v218 = vunpack.c.h.b16 %v56
  %v219 = vunpack.c.l.b16 %v57
  %v220 = vunpack.c.h.b16 %v57
  %v221 = vunpack.c.l.b16 %v58
  %v222 = vunpack.c.h.b16 %v58
  %v223 = vunpack.c.l.b16 %v59
  %v224 = vunpack.c.h.b16 %v59
  %v225 = vunpack.c.l.b16 %v60
  %v226 = vunpack.c.h.b16 %v60
  %v227 = vunpack.c.l.b16 %v61
  %v228 = vunpack.c.h.b16 %v61
  %v229 = vunpack.c.l.b16 %v62
  %v230 = vunpack.c.h.b16 %v62
  %v231 = vunpack.c.l.b16 %v63
  %v232 = vunpack.c.h.b16 %v63
  %v233 = vunpack.c.l.b16 %v64
  %v234 = vunpack.c.h.b16 %v64
  %v235 = vunpack.c.l.b16 %v65
  %v236 = vunpack.c.h.b16 %v65
  %v237 = vunpack.c.l.b16 %v66
  %v238 = vunpack.c.h.b16 %v66
  %v239 = vunpack.c.l.b16 %v67
  %v240 = vunpack.c.h.b16 %v67
  %v241 = vunpack.c.l.b16 %v68
  %v242 = vunpack.c.h.b16 %v68
  %v243 = vunpack.c.l.b16 %v69
  %v244 = vunpack.c.h.b16 %v69
  %v245 = vunpack.c.l.b16 %v70
  %v246 = vunpack.c.h.b16 %v70
  %v247 = vunpack.c.l.b16 %v71
  %v248 = vunpack.c.h.b16 %v71
  %v249 = vunpack.c.l.b16 %v72
  %v250 = vunpack.c.h.b16 %v72
  %v251 = vunpack.c.l.b16 %v73
  %v252 = vunpack.c.h.b16 %v73
  %v253 = vunpack.c.l.b16 %v74
  %v254 = vunpack.c.h.b16 %v74
  %v255 = vunpack.c.l.b16 %v75
  %v256 = vunpack.c.h.b16 %v75
  %v257 = vunpack.c.l.b16 %v76
  %v258 = vunpack.c.h.b16 %v76
  %v259 = vunpack.c.l.b16 %v77
  %v260 = vunpack.c.h.b16 %v77
  %v261 = vunpack.c.l.b16 %v78
  %v262 = vunpack.c.h.b16 %v78
  %v263 = vunpack.c.l.b16 %v79
  %v264 = vunpack.c.h.b16 %v79
  %v265 = vunpack.c.l.b16 %v80
  %v266 = vunpack.c.h.b16 %v80
  %v267 = vunpack.c.l.b16 %v81
  %v268 = vunpack.c.h.b16 %v81
  %v269 = vunpack.c.l.b16 %v82
  %v270 = vunpack.c.h.b16 %v82
  %v271 = vpack.c.b16 %v209, %v207
  %v272 = vpack.c.b16 %v210, %v208
  %v273 = vpack.c.b16 %v213, %v211
  %v274 = vpack.c.b16 %v214, %v212
  %v275 = vpack.c.b16 %v217, %v215
  %v276 = vpack.c.b16 %v218, %v216
  %v277 = vpack.c.b16 %v221, %v219
  %v278 = vpack.c.b16 %v222, %v220
  %v279 = vpack.c.b16 %v225, %v223
  %v280 = vpack.c.b16 %v226, %v224
  %v281 = vpack.c.b16 %v229, %v227
  %v282 = vpack.c.b16 %v230, %v228
  %v283 = vpack.c.b16 %v233, %v231
  %v284 = vpack.c.b16 %v234, %v232
  %v285 = vpack.c.b16 %v237, %v235
  %v286 = vpack.c.b16 %v238, %v236
  %v287 = vpack.c.b16 %v241, %v239
  %v288 = vpack.c.b16 %v242, %v240
  %v289 = vpack.c.b16 %v245, %v243
  %v290 = vpack.c.b16 %v246, %v244
  %v291 = vpack.c.b16 %v249, %v247
  %v292 = vpack.c.b16 %v250, %v248
  %v293 = vpack.c.b16 %v253, %v251
  %v294 = vpack.c.b16 %v254, %v252
  %v295 = vpack.c.b16 %v257, %v255
  %v296 = vpack.c.b16 %v258, %v256
  %v297 = vpack.c.b16 %v261, %v259
  %v298 = vpack.c.b16 %v262, %v260
  %v299 = vpack.c.b16 %v265, %v263
  %v300 = vpack.c.b16 %v266, %v264
  %v301 = vpack.c.b16 %v269, %v267
  %v302 = vpack.c.b16 %v270, %v268
  %335 = vmatprep.subr.bf16.mxu0 %v286
  %336 = vmatpush1.bf16.msra.mxu0 %v285
  %337 = vmatprep.subr.bf16.mxu0 %v284
  %338 = vmatpush1.bf16.msra.mxu0 %v283
  %339 = vmatprep.subr.bf16.mxu0 %v282
  %340 = vmatpush1.bf16.msra.mxu0 %v281
  %341 = vmatprep.subr.bf16.mxu0 %v280
  %342 = vmatpush1.bf16.msra.mxu0 %v279
  %343 = vmatprep.subr.bf16.mxu0 %v278
  %344 = vmatpush1.bf16.msra.mxu0 %v277
  %345 = vmatprep.subr.bf16.mxu0 %v276
  %346 = vmatpush1.bf16.msra.mxu0 %v275
  %347 = vmatprep.subr.bf16.mxu0 %v274
  %348 = vmatpush1.bf16.msra.mxu0 %v273
  %349 = vmatprep.subr.bf16.mxu0 %v272
  %350 = vmatpush1.bf16.msra.mxu0 %v271
  %351 = vmatprep.subr.bf16.mxu0 %v302
  %352 = vmatpush2.bf16.msra.mxu0 %v301
  %353 = vmatprep.subr.bf16.mxu0 %v300
  %354 = vmatpush2.bf16.msra.mxu0 %v299
  %355 = vmatprep.subr.bf16.mxu0 %v298
  %356 = vmatpush2.bf16.msra.mxu0 %v297
  %357 = vmatprep.subr.bf16.mxu0 %v296
  %358 = vmatpush2.bf16.msra.mxu0 %v295
  %359 = vmatprep.subr.bf16.mxu0 %v294
  %360 = vmatpush2.bf16.msra.mxu0 %v293
  %361 = vmatprep.subr.bf16.mxu0 %v292
  %362 = vmatpush2.bf16.msra.mxu0 %v291
  %363 = vmatprep.subr.bf16.mxu0 %v290
  %364 = vmatpush2.bf16.msra.mxu0 %v289
  %365 = vmatprep.subr.bf16.mxu0 %v288
  %366 = vmatpush2.bf16.msra.mxu0 %v287
  %367 = vmatprep.mubr.bf16.mxu0 %v144
  %368 = vmatmul.mubr.bf16.gmra.mxu0 %v143
  %v369 = vpop.f32.mrf.mxu0
  %v370 = vadd.f32 %v88, %v369
  %v371 = vpop.f32.mrf.mxu0
  %v372 = vadd.f32 %v92, %v371
  %v373 = vpop.f32.mrf.mxu0
  %v374 = vadd.f32 %v88, %v373
  %v375 = vpop.f32.mrf.mxu0
  %v376 = vadd.f32 %v92, %v375
  %377 = vmatprep.mubr.bf16.mxu0 %v146
  %378 = vmatmul.mubr.bf16.gmra.mxu0 %v145
  %v379 = vpop.f32.mrf.mxu0
  %v380 = vadd.f32 %v88, %v379
  %v381 = vpop.f32.mrf.mxu0
  %v382 = vadd.f32 %v92, %v381
  %v383 = vpop.f32.mrf.mxu0
  %v384 = vadd.f32 %v88, %v383
  %v385 = vpop.f32.mrf.mxu0
  %v386 = vadd.f32 %v92, %v385
  %387 = vmatprep.mubr.bf16.mxu0 %v148
  %388 = vmatmul.mubr.bf16.gmra.mxu0 %v147
  %v389 = vpop.f32.mrf.mxu0
  %v390 = vadd.f32 %v88, %v389
  %v391 = vpop.f32.mrf.mxu0
  %v392 = vadd.f32 %v92, %v391
  %v393 = vpop.f32.mrf.mxu0
  %v394 = vadd.f32 %v88, %v393
  %v395 = vpop.f32.mrf.mxu0
  %v396 = vadd.f32 %v92, %v395
  %397 = vmatprep.mubr.bf16.mxu0 %v150
  %398 = vmatmul.mubr.bf16.gmra.mxu0 %v149
  %v399 = vpop.f32.mrf.mxu0
  %v400 = vadd.f32 %v88, %v399
  %v401 = vpop.f32.mrf.mxu0
  %v402 = vadd.f32 %v92, %v401
  %v403 = vpop.f32.mrf.mxu0
  %v404 = vadd.f32 %v88, %v403
  %v405 = vpop.f32.mrf.mxu0
  %v406 = vadd.f32 %v92, %v405
  %407 = vmatprep.mubr.bf16.mxu0 %v152
  %408 = vmatmul.mubr.bf16.gmra.mxu0 %v151
  %v409 = vpop.f32.mrf.mxu0
  %v410 = vadd.f32 %v88, %v409
  %v411 = vpop.f32.mrf.mxu0
  %v412 = vadd.f32 %v92, %v411
  %v413 = vpop.f32.mrf.mxu0
  %v414 = vadd.f32 %v88, %v413
  %v415 = vpop.f32.mrf.mxu0
  %v416 = vadd.f32 %v92, %v415
  %417 = vmatprep.mubr.bf16.mxu0 %v154
  %418 = vmatmul.mubr.bf16.gmra.mxu0 %v153
  %v419 = vpop.f32.mrf.mxu0
  %v420 = vadd.f32 %v88, %v419
  %v421 = vpop.f32.mrf.mxu0
  %v422 = vadd.f32 %v92, %v421
  %v423 = vpop.f32.mrf.mxu0
  %v424 = vadd.f32 %v88, %v423
  %v425 = vpop.f32.mrf.mxu0
  %v426 = vadd.f32 %v92, %v425
  %427 = vmatprep.mubr.bf16.mxu0 %v156
  %428 = vmatmul.mubr.bf16.gmra.mxu0 %v155
  %v429 = vpop.f32.mrf.mxu0
  %v430 = vadd.f32 %v88, %v429
  %v431 = vpop.f32.mrf.mxu0
  %v432 = vadd.f32 %v92, %v431
  %v433 = vpop.f32.mrf.mxu0
  %v434 = vadd.f32 %v88, %v433
  %v435 = vpop.f32.mrf.mxu0
  %v436 = vadd.f32 %v92, %v435
  %437 = vmatprep.mubr.bf16.mxu0 %v158
  %438 = vmatmul.mubr.bf16.gmra.mxu0 %v157
  %v439 = vpop.f32.mrf.mxu0
  %v440 = vadd.f32 %v88, %v439
  %v441 = vpop.f32.mrf.mxu0
  %v442 = vadd.f32 %v92, %v441
  %v443 = vpop.f32.mrf.mxu0
  %v444 = vadd.f32 %v88, %v443
  %v445 = vpop.f32.mrf.mxu0
  %v446 = vadd.f32 %v92, %v445
  %447 = vdwg.mxu0
  %v448 = vld [vmem:[%s1] sm:$0xff]
  %v449 = vld [vmem:[%s1 + $0x8] sm:$0xff]
  %v450 = vld [vmem:[%s1 + $0x10] sm:$0xff]
  %v451 = vld [vmem:[%s1 + $0x18] sm:$0xff]
  %v452 = vld [vmem:[%s1 + $0x20] sm:$0xff]
  %v453 = vld [vmem:[%s1 + $0x28] sm:$0xff]
  %v454 = vld [vmem:[%s1 + $0x30] sm:$0xff]
  %v455 = vld [vmem:[%s1 + $0x38] sm:$0xff]
  %v456 = vld [vmem:[%s1 + $0x40] sm:$0xff]
  %v457 = vld [vmem:[%s1 + $0x48] sm:$0xff]
  %v458 = vld [vmem:[%s1 + $0x50] sm:$0xff]
  %v459 = vld [vmem:[%s1 + $0x58] sm:$0xff]
  %v460 = vld [vmem:[%s1 + $0x60] sm:$0xff]
  %v461 = vld [vmem:[%s1 + $0x68] sm:$0xff]
  %v462 = vld [vmem:[%s1 + $0x70] sm:$0xff]
  %v463 = vld [vmem:[%s1 + $0x78] sm:$0xff]
  %v464 = vld [vmem:[%s1 + $0x80] sm:$0xff]
  %v465 = vld [vmem:[%s1 + $0x88] sm:$0xff]
  %v466 = vld [vmem:[%s1 + $0x90] sm:$0xff]
  %v467 = vld [vmem:[%s1 + $0x98] sm:$0xff]
  %v468 = vld [vmem:[%s1 + $0xa0] sm:$0xff]
  %v469 = vld [vmem:[%s1 + $0xa8] sm:$0xff]
  %v470 = vld [vmem:[%s1 + $0xb0] sm:$0xff]
  %v471 = vld [vmem:[%s1 + $0xb8] sm:$0xff]
  %v472 = vld [vmem:[%s1 + $0xc0] sm:$0xff]
  %v473 = vld [vmem:[%s1 + $0xc8] sm:$0xff]
  %v474 = vld [vmem:[%s1 + $0xd0] sm:$0xff]
  %v475 = vld [vmem:[%s1 + $0xd8] sm:$0xff]
  %v476 = vld [vmem:[%s1 + $0xe0] sm:$0xff]
  %v477 = vld [vmem:[%s1 + $0xe8] sm:$0xff]
  %v478 = vld [vmem:[%s1 + $0xf0] sm:$0xff]
  %v479 = vld [vmem:[%s1 + $0xf8] sm:$0xff]
  %v480 = vadd.f32 %v370, %v448
  %v481 = vadd.f32 %v372, %v449
  %v482 = vadd.f32 %v374, %v450
  %v483 = vadd.f32 %v376, %v451
  %v484 = vadd.f32 %v380, %v452
  %v485 = vadd.f32 %v382, %v453
  %v486 = vadd.f32 %v384, %v454
  %v487 = vadd.f32 %v386, %v455
  %v488 = vadd.f32 %v390, %v456
  %v489 = vadd.f32 %v392, %v457
  %v490 = vadd.f32 %v394, %v458
  %v491 = vadd.f32 %v396, %v459
  %v492 = vadd.f32 %v400, %v460
  %v493 = vadd.f32 %v402, %v461
  %v494 = vadd.f32 %v404, %v462
  %v495 = vadd.f32 %v406, %v463
  %v496 = vadd.f32 %v410, %v464
  %v497 = vadd.f32 %v412, %v465
  %v498 = vadd.f32 %v414, %v466
  %v499 = vadd.f32 %v416, %v467
  %v500 = vadd.f32 %v420, %v468
  %v501 = vadd.f32 %v422, %v469
  %v502 = vadd.f32 %v424, %v470
  %v503 = vadd.f32 %v426, %v471
  %v504 = vadd.f32 %v430, %v472
  %v505 = vadd.f32 %v432, %v473
  %v506 = vadd.f32 %v434, %v474
  %v507 = vadd.f32 %v436, %v475
  %v508 = vadd.f32 %v440, %v476
  %v509 = vadd.f32 %v442, %v477
  %v510 = vadd.f32 %v444, %v478
  %v511 = vadd.f32 %v446, %v479
  %v512 = vadd.f32 %v480, %v481
  %513 = vadd.xlane.f32.xlu0 %v512
  %v514 = vpop.xlane.xlu0 %513
  %v515 = vadd.f32 %v482, %v483
  %516 = vadd.xlane.f32.xlu0 %v515
  %v517 = vpop.xlane.xlu0 %516
  %v518 = vadd.f32 %v484, %v485
  %519 = vadd.xlane.f32.xlu0 %v518
  %v520 = vpop.xlane.xlu0 %519
  %v521 = vadd.f32 %v486, %v487
  %522 = vadd.xlane.f32.xlu0 %v521
  %v523 = vpop.xlane.xlu0 %522
  %v524 = vadd.f32 %v488, %v489
  %525 = vadd.xlane.f32.xlu0 %v524
  %v526 = vpop.xlane.xlu0 %525
  %v527 = vadd.f32 %v490, %v491
  %528 = vadd.xlane.f32.xlu0 %v527
  %v529 = vpop.xlane.xlu0 %528
  %v530 = vadd.f32 %v492, %v493
  %531 = vadd.xlane.f32.xlu0 %v530
  %v532 = vpop.xlane.xlu0 %531
  %v533 = vadd.f32 %v494, %v495
  %534 = vadd.xlane.f32.xlu0 %v533
  %v535 = vpop.xlane.xlu0 %534
  %v536 = vadd.f32 %v496, %v497
  %537 = vadd.xlane.f32.xlu0 %v536
  %v538 = vpop.xlane.xlu0 %537
  %v539 = vadd.f32 %v498, %v499
  %540 = vadd.xlane.f32.xlu0 %v539
  %v541 = vpop.xlane.xlu0 %540
  %v542 = vadd.f32 %v500, %v501
  %543 = vadd.xlane.f32.xlu0 %v542
  %v544 = vpop.xlane.xlu0 %543
  %v545 = vadd.f32 %v502, %v503
  %546 = vadd.xlane.f32.xlu0 %v545
  %v547 = vpop.xlane.xlu0 %546
  %v548 = vadd.f32 %v504, %v505
  %549 = vadd.xlane.f32.xlu0 %v548
  %v550 = vpop.xlane.xlu0 %549
  %v551 = vadd.f32 %v506, %v507
  %552 = vadd.xlane.f32.xlu0 %v551
  %v553 = vpop.xlane.xlu0 %552
  %v554 = vadd.f32 %v508, %v509
  %555 = vadd.xlane.f32.xlu0 %v554
  %v556 = vpop.xlane.xlu0 %555
  %v557 = vadd.f32 %v510, %v511
  %558 = vadd.xlane.f32.xlu0 %v557
  %v559 = vpop.xlane.xlu0 %558
  %v560 = vrcp.pop 256.0
  %v561 = vmul.f32 %v514, %v560
  %v562 = vmul.f32 %v517, %v560
  %v563 = vmul.f32 %v520, %v560
  %v564 = vmul.f32 %v523, %v560
  %v565 = vmul.f32 %v526, %v560
  %v566 = vmul.f32 %v529, %v560
  %v567 = vmul.f32 %v532, %v560
  %v568 = vmul.f32 %v535, %v560
  %v569 = vmul.f32 %v538, %v560
  %v570 = vmul.f32 %v541, %v560
  %v571 = vmul.f32 %v544, %v560
  %v572 = vmul.f32 %v547, %v560
  %v573 = vmul.f32 %v550, %v560
  %v574 = vmul.f32 %v553, %v560
  %v575 = vmul.f32 %v556, %v560
  %v576 = vmul.f32 %v559, %v560
  %v577 = vsub.f32 %v480, %v561
  %v578 = vsub.f32 %v481, %v561
  %v579 = vsub.f32 %v482, %v562
  %v580 = vsub.f32 %v483, %v562
  %v581 = vsub.f32 %v484, %v563
  %v582 = vsub.f32 %v485, %v563
  %v583 = vsub.f32 %v486, %v564
  %v584 = vsub.f32 %v487, %v564
  %v585 = vsub.f32 %v488, %v565
  %v586 = vsub.f32 %v489, %v565
  %v587 = vsub.f32 %v490, %v566
  %v588 = vsub.f32 %v491, %v566
  %v589 = vsub.f32 %v492, %v567
  %v590 = vsub.f32 %v493, %v567
  %v591 = vsub.f32 %v494, %v568
  %v592 = vsub.f32 %v495, %v568
  %v593 = vsub.f32 %v496, %v569
  %v594 = vsub.f32 %v497, %v569
  %v595 = vsub.f32 %v498, %v570
  %v596 = vsub.f32 %v499, %v570
  %v597 = vsub.f32 %v500, %v571
  %v598 = vsub.f32 %v501, %v571
  %v599 = vsub.f32 %v502, %v572
  %v600 = vsub.f32 %v503, %v572
  %v601 = vsub.f32 %v504, %v573
  %v602 = vsub.f32 %v505, %v573
  %v603 = vsub.f32 %v506, %v574
  %v604 = vsub.f32 %v507, %v574
  %v605 = vsub.f32 %v508, %v575
  %v606 = vsub.f32 %v509, %v575
  %v607 = vsub.f32 %v510, %v576
  %v608 = vsub.f32 %v511, %v576
  %v609 = vmul.f32 %v577, %v577
  %v610 = vmul.f32 %v578, %v578
  %v611 = vmul.f32 %v579, %v579
  %v612 = vmul.f32 %v580, %v580
  %v613 = vmul.f32 %v581, %v581
  %v614 = vmul.f32 %v582, %v582
  %v615 = vmul.f32 %v583, %v583
  %v616 = vmul.f32 %v584, %v584
  %v617 = vmul.f32 %v585, %v585
  %v618 = vmul.f32 %v586, %v586
  %v619 = vmul.f32 %v587, %v587
  %v620 = vmul.f32 %v588, %v588
  %v621 = vmul.f32 %v589, %v589
  %v622 = vmul.f32 %v590, %v590
  %v623 = vmul.f32 %v591, %v591
  %v624 = vmul.f32 %v592, %v592
  %v625 = vmul.f32 %v593, %v593
  %v626 = vmul.f32 %v594, %v594
  %v627 = vmul.f32 %v595, %v595
  %v628 = vmul.f32 %v596, %v596
  %v629 = vmul.f32 %v597, %v597
  %v630 = vmul.f32 %v598, %v598
  %v631 = vmul.f32 %v599, %v599
  %v632 = vmul.f32 %v600, %v600
  %v633 = vmul.f32 %v601, %v601
  %v634 = vmul.f32 %v602, %v602
  %v635 = vmul.f32 %v603, %v603
  %v636 = vmul.f32 %v604, %v604
  %v637 = vmul.f32 %v605, %v605
  %v638 = vmul.f32 %v606, %v606
  %v639 = vmul.f32 %v607, %v607
  %v640 = vmul.f32 %v608, %v608
  %v641 = vadd.f32 %v609, %v610
  %642 = vadd.xlane.f32.xlu0 %v641
  %v643 = vpop.xlane.xlu0 %642
  %v644 = vadd.f32 %v611, %v612
  %645 = vadd.xlane.f32.xlu0 %v644
  %v646 = vpop.xlane.xlu0 %645
  %v647 = vadd.f32 %v613, %v614
  %648 = vadd.xlane.f32.xlu0 %v647
  %v649 = vpop.xlane.xlu0 %648
  %v650 = vadd.f32 %v615, %v616
  %651 = vadd.xlane.f32.xlu0 %v650
  %v652 = vpop.xlane.xlu0 %651
  %v653 = vadd.f32 %v617, %v618
  %654 = vadd.xlane.f32.xlu0 %v653
  %v655 = vpop.xlane.xlu0 %654
  %v656 = vadd.f32 %v619, %v620
  %657 = vadd.xlane.f32.xlu0 %v656
  %v658 = vpop.xlane.xlu0 %657
  %v659 = vadd.f32 %v621, %v622
  %660 = vadd.xlane.f32.xlu0 %v659
  %v661 = vpop.xlane.xlu0 %660
  %v662 = vadd.f32 %v623, %v624
  %663 = vadd.xlane.f32.xlu0 %v662
  %v664 = vpop.xlane.xlu0 %663
  %v665 = vadd.f32 %v625, %v626
  %666 = vadd.xlane.f32.xlu0 %v665
  %v667 = vpop.xlane.xlu0 %666
  %v668 = vadd.f32 %v627, %v628
  %669 = vadd.xlane.f32.xlu0 %v668
  %v670 = vpop.xlane.xlu0 %669
  %v671 = vadd.f32 %v629, %v630
  %672 = vadd.xlane.f32.xlu0 %v671
  %v673 = vpop.xlane.xlu0 %672
  %v674 = vadd.f32 %v631, %v632
  %675 = vadd.xlane.f32.xlu0 %v674
  %v676 = vpop.xlane.xlu0 %675
  %v677 = vadd.f32 %v633, %v634
  %678 = vadd.xlane.f32.xlu0 %v677
  %v679 = vpop.xlane.xlu0 %678
  %v680 = vadd.f32 %v635, %v636
  %681 = vadd.xlane.f32.xlu0 %v680
  %v682 = vpop.xlane.xlu0 %681
  %v683 = vadd.f32 %v637, %v638
  %684 = vadd.xlane.f32.xlu0 %v683
  %v685 = vpop.xlane.xlu0 %684
  %v686 = vadd.f32 %v639, %v640
  %687 = vadd.xlane.f32.xlu0 %v686
  %v688 = vpop.xlane.xlu0 %687
  %v689 = vmul.f32 %v643, %v560
  %v690 = vmul.f32 %v646, %v560
  %v691 = vmul.f32 %v649, %v560
  %v692 = vmul.f32 %v652, %v560
  %v693 = vmul.f32 %v655, %v560
  %v694 = vmul.f32 %v658, %v560
  %v695 = vmul.f32 %v661, %v560
  %v696 = vmul.f32 %v664, %v560
  %v697 = vmul.f32 %v667, %v560
  %v698 = vmul.f32 %v670, %v560
  %v699 = vmul.f32 %v673, %v560
  %v700 = vmul.f32 %v676, %v560
  %v701 = vmul.f32 %v679, %v560
  %v702 = vmul.f32 %v682, %v560
  %v703 = vmul.f32 %v685, %v560
  %v704 = vmul.f32 %v688, %v560
  %v705 = vadd.f32 %v689, 1e-05
  %v706 = vadd.f32 %v690, 1e-05
  %v707 = vadd.f32 %v691, 1e-05
  %v708 = vadd.f32 %v692, 1e-05
  %v709 = vadd.f32 %v693, 1e-05
  %v710 = vadd.f32 %v694, 1e-05
  %v711 = vadd.f32 %v695, 1e-05
  %v712 = vadd.f32 %v696, 1e-05
  %v713 = vadd.f32 %v697, 1e-05
  %v714 = vadd.f32 %v698, 1e-05
  %v715 = vadd.f32 %v699, 1e-05
  %v716 = vadd.f32 %v700, 1e-05
  %v717 = vadd.f32 %v701, 1e-05
  %v718 = vadd.f32 %v702, 1e-05
  %v719 = vadd.f32 %v703, 1e-05
  %v720 = vadd.f32 %v704, 1e-05
  %v721 = vrsqrt.pop %v705
  %v722 = vrsqrt.pop %v706
  %v723 = vrsqrt.pop %v707
  %v724 = vrsqrt.pop %v708
  %v725 = vrsqrt.pop %v709
  %v726 = vrsqrt.pop %v710
  %v727 = vrsqrt.pop %v711
  %v728 = vrsqrt.pop %v712
  %v729 = vrsqrt.pop %v713
  %v730 = vrsqrt.pop %v714
  %v731 = vrsqrt.pop %v715
  %v732 = vrsqrt.pop %v716
  %v733 = vrsqrt.pop %v717
  %v734 = vrsqrt.pop %v718
  %v735 = vrsqrt.pop %v719
  %v736 = vrsqrt.pop %v720
  %v737 = vmul.f32 %v577, %v721
  %v738 = vmul.f32 %v578, %v721
  %v739 = vmul.f32 %v579, %v722
  %v740 = vmul.f32 %v580, %v722
  %v741 = vmul.f32 %v581, %v723
  %v742 = vmul.f32 %v582, %v723
  %v743 = vmul.f32 %v583, %v724
  %v744 = vmul.f32 %v584, %v724
  %v745 = vmul.f32 %v585, %v725
  %v746 = vmul.f32 %v586, %v725
  %v747 = vmul.f32 %v587, %v726
  %v748 = vmul.f32 %v588, %v726
  %v749 = vmul.f32 %v589, %v727
  %v750 = vmul.f32 %v590, %v727
  %v751 = vmul.f32 %v591, %v728
  %v752 = vmul.f32 %v592, %v728
  %v753 = vmul.f32 %v593, %v729
  %v754 = vmul.f32 %v594, %v729
  %v755 = vmul.f32 %v595, %v730
  %v756 = vmul.f32 %v596, %v730
  %v757 = vmul.f32 %v597, %v731
  %v758 = vmul.f32 %v598, %v731
  %v759 = vmul.f32 %v599, %v732
  %v760 = vmul.f32 %v600, %v732
  %v761 = vmul.f32 %v601, %v733
  %v762 = vmul.f32 %v602, %v733
  %v763 = vmul.f32 %v603, %v734
  %v764 = vmul.f32 %v604, %v734
  %v765 = vmul.f32 %v605, %v735
  %v766 = vmul.f32 %v606, %v735
  %v767 = vmul.f32 %v607, %v736
  %v768 = vmul.f32 %v608, %v736
  %v769 = vld [vmem:[%s4] sm:$0x3]
  %v771 = vlaneseq
  %v772 = vshrl.u32 %v771, 7
  %v773 = vsub.s32 0, %v772
  %v774 = vrot.slane %v769, %v773
  %v775 = vlaneseq
  %v776 = vshrl.u32 %v775, 7
  %v777 = vsub.s32 1, %v776
  %v778 = vrot.slane %v769, %v777
  %v781 = vmul.f32 %v737, %v774
  %v782 = vmul.f32 %v738, %v778
  %v783 = vmul.f32 %v739, %v774
  %v784 = vmul.f32 %v740, %v778
  %v785 = vmul.f32 %v741, %v774
  %v786 = vmul.f32 %v742, %v778
  %v787 = vmul.f32 %v743, %v774
  %v788 = vmul.f32 %v744, %v778
  %v789 = vmul.f32 %v745, %v774
  %v790 = vmul.f32 %v746, %v778
  %v791 = vmul.f32 %v747, %v774
  %v792 = vmul.f32 %v748, %v778
  %v793 = vmul.f32 %v749, %v774
  %v794 = vmul.f32 %v750, %v778
  %v795 = vmul.f32 %v751, %v774
  %v796 = vmul.f32 %v752, %v778
  %v797 = vmul.f32 %v753, %v774
  %v798 = vmul.f32 %v754, %v778
  %v799 = vmul.f32 %v755, %v774
  %v800 = vmul.f32 %v756, %v778
  %v801 = vmul.f32 %v757, %v774
  %v802 = vmul.f32 %v758, %v778
  %v803 = vmul.f32 %v759, %v774
  %v804 = vmul.f32 %v760, %v778
  %v805 = vmul.f32 %v761, %v774
  %v806 = vmul.f32 %v762, %v778
  %v807 = vmul.f32 %v763, %v774
  %v808 = vmul.f32 %v764, %v778
  %v809 = vmul.f32 %v765, %v774
  %v810 = vmul.f32 %v766, %v778
  %v811 = vmul.f32 %v767, %v774
  %v812 = vmul.f32 %v768, %v778
  %v813 = vld [vmem:[%s5] sm:$0x3]
  %v815 = vlaneseq
  %v816 = vshrl.u32 %v815, 7
  %v817 = vsub.s32 0, %v816
  %v818 = vrot.slane %v813, %v817
  %v819 = vlaneseq
  %v820 = vshrl.u32 %v819, 7
  %v821 = vsub.s32 1, %v820
  %v822 = vrot.slane %v813, %v821
  %v825 = vadd.f32 %v781, %v818
  %v826 = vadd.f32 %v782, %v822
  %v827 = vadd.f32 %v783, %v818
  %v828 = vadd.f32 %v784, %v822
  %v829 = vadd.f32 %v785, %v818
  %v830 = vadd.f32 %v786, %v822
  %v831 = vadd.f32 %v787, %v818
  %v832 = vadd.f32 %v788, %v822
  %v833 = vadd.f32 %v789, %v818
  %v834 = vadd.f32 %v790, %v822
  %v835 = vadd.f32 %v791, %v818
  %v836 = vadd.f32 %v792, %v822
  %v837 = vadd.f32 %v793, %v818
  %v838 = vadd.f32 %v794, %v822
  %v839 = vadd.f32 %v795, %v818
  %v840 = vadd.f32 %v796, %v822
  %v841 = vadd.f32 %v797, %v818
  %v842 = vadd.f32 %v798, %v822
  %v843 = vadd.f32 %v799, %v818
  %v844 = vadd.f32 %v800, %v822
  %v845 = vadd.f32 %v801, %v818
  %v846 = vadd.f32 %v802, %v822
  %v847 = vadd.f32 %v803, %v818
  %v848 = vadd.f32 %v804, %v822
  %v849 = vadd.f32 %v805, %v818
  %v850 = vadd.f32 %v806, %v822
  %v851 = vadd.f32 %v807, %v818
  %v852 = vadd.f32 %v808, %v822
  %v853 = vadd.f32 %v809, %v818
  %v854 = vadd.f32 %v810, %v822
  %v855 = vadd.f32 %v811, %v818
  %v856 = vadd.f32 %v812, %v822
  %v857 = vpack.c.bf16 %v827, %v825
  %v858 = vpack.c.bf16 %v828, %v826
  %v859 = vpack.c.bf16 %v831, %v829
  %v860 = vpack.c.bf16 %v832, %v830
  %v861 = vpack.c.bf16 %v835, %v833
  %v862 = vpack.c.bf16 %v836, %v834
  %v863 = vpack.c.bf16 %v839, %v837
  %v864 = vpack.c.bf16 %v840, %v838
  %v865 = vpack.c.bf16 %v843, %v841
  %v866 = vpack.c.bf16 %v844, %v842
  %v867 = vpack.c.bf16 %v847, %v845
  %v868 = vpack.c.bf16 %v848, %v846
  %v869 = vpack.c.bf16 %v851, %v849
  %v870 = vpack.c.bf16 %v852, %v850
  %v871 = vpack.c.bf16 %v855, %v853
  %v872 = vpack.c.bf16 %v856, %v854
  %v873 = vld [vmem:[%s6] sm:$0xff]
  %v874 = vld [vmem:[%s6 + $0x8] sm:$0xff]
  %v875 = vld [vmem:[%s6 + $0x10] sm:$0xff]
  %v876 = vld [vmem:[%s6 + $0x18] sm:$0xff]
  %v877 = vld [vmem:[%s6 + $0x20] sm:$0xff]
  %v878 = vld [vmem:[%s6 + $0x28] sm:$0xff]
  %v879 = vld [vmem:[%s6 + $0x30] sm:$0xff]
  %v880 = vld [vmem:[%s6 + $0x38] sm:$0xff]
  %v881 = vld [vmem:[%s6 + $0x40] sm:$0xff]
  %v882 = vld [vmem:[%s6 + $0x48] sm:$0xff]
  %v883 = vld [vmem:[%s6 + $0x50] sm:$0xff]
  %v884 = vld [vmem:[%s6 + $0x58] sm:$0xff]
  %v885 = vld [vmem:[%s6 + $0x60] sm:$0xff]
  %v886 = vld [vmem:[%s6 + $0x68] sm:$0xff]
  %v887 = vld [vmem:[%s6 + $0x70] sm:$0xff]
  %v888 = vld [vmem:[%s6 + $0x78] sm:$0xff]
  %v889 = vld [vmem:[%s6 + $0x80] sm:$0xff]
  %v890 = vld [vmem:[%s6 + $0x88] sm:$0xff]
  %v891 = vld [vmem:[%s6 + $0x90] sm:$0xff]
  %v892 = vld [vmem:[%s6 + $0x98] sm:$0xff]
  %v893 = vld [vmem:[%s6 + $0xa0] sm:$0xff]
  %v894 = vld [vmem:[%s6 + $0xa8] sm:$0xff]
  %v895 = vld [vmem:[%s6 + $0xb0] sm:$0xff]
  %v896 = vld [vmem:[%s6 + $0xb8] sm:$0xff]
  %v897 = vld [vmem:[%s6 + $0xc0] sm:$0xff]
  %v898 = vld [vmem:[%s6 + $0xc8] sm:$0xff]
  %v899 = vld [vmem:[%s6 + $0xd0] sm:$0xff]
  %v900 = vld [vmem:[%s6 + $0xd8] sm:$0xff]
  %v901 = vld [vmem:[%s6 + $0xe0] sm:$0xff]
  %v902 = vld [vmem:[%s6 + $0xe8] sm:$0xff]
  %v903 = vld [vmem:[%s6 + $0xf0] sm:$0xff]
  %v904 = vld [vmem:[%s6 + $0xf8] sm:$0xff]
  %v905 = vld [vmem:[%s7] sm:$0x3]
  %v907 = vlaneseq
  %v908 = vshrl.u32 %v907, 7
  %v909 = vsub.s32 0, %v908
  %v910 = vrot.slane %v905, %v909
  %v911 = vlaneseq
  %v912 = vshrl.u32 %v911, 7
  %v913 = vsub.s32 1, %v912
  %v914 = vrot.slane %v905, %v913
  %v949 = vunpack.c.l.b16 %v873
  %v950 = vunpack.c.h.b16 %v873
  %v951 = vunpack.c.l.b16 %v874
  %v952 = vunpack.c.h.b16 %v874
  %v953 = vunpack.c.l.b16 %v875
  %v954 = vunpack.c.h.b16 %v875
  %v955 = vunpack.c.l.b16 %v876
  %v956 = vunpack.c.h.b16 %v876
  %v957 = vunpack.c.l.b16 %v877
  %v958 = vunpack.c.h.b16 %v877
  %v959 = vunpack.c.l.b16 %v878
  %v960 = vunpack.c.h.b16 %v878
  %v961 = vunpack.c.l.b16 %v879
  %v962 = vunpack.c.h.b16 %v879
  %v963 = vunpack.c.l.b16 %v880
  %v964 = vunpack.c.h.b16 %v880
  %v965 = vunpack.c.l.b16 %v881
  %v966 = vunpack.c.h.b16 %v881
  %v967 = vunpack.c.l.b16 %v882
  %v968 = vunpack.c.h.b16 %v882
  %v969 = vunpack.c.l.b16 %v883
  %v970 = vunpack.c.h.b16 %v883
  %v971 = vunpack.c.l.b16 %v884
  %v972 = vunpack.c.h.b16 %v884
  %v973 = vunpack.c.l.b16 %v885
  %v974 = vunpack.c.h.b16 %v885
  %v975 = vunpack.c.l.b16 %v886
  %v976 = vunpack.c.h.b16 %v886
  %v977 = vunpack.c.l.b16 %v887
  %v978 = vunpack.c.h.b16 %v887
  %v979 = vunpack.c.l.b16 %v888
  %v980 = vunpack.c.h.b16 %v888
  %v981 = vunpack.c.l.b16 %v889
  %v982 = vunpack.c.h.b16 %v889
  %v983 = vunpack.c.l.b16 %v890
  %v984 = vunpack.c.h.b16 %v890
  %v985 = vunpack.c.l.b16 %v891
  %v986 = vunpack.c.h.b16 %v891
  %v987 = vunpack.c.l.b16 %v892
  %v988 = vunpack.c.h.b16 %v892
  %v989 = vunpack.c.l.b16 %v893
  %v990 = vunpack.c.h.b16 %v893
  %v991 = vunpack.c.l.b16 %v894
  %v992 = vunpack.c.h.b16 %v894
  %v993 = vunpack.c.l.b16 %v895
  %v994 = vunpack.c.h.b16 %v895
  %v995 = vunpack.c.l.b16 %v896
  %v996 = vunpack.c.h.b16 %v896
  %v997 = vunpack.c.l.b16 %v897
  %v998 = vunpack.c.h.b16 %v897
  %v999 = vunpack.c.l.b16 %v898
  %v1000 = vunpack.c.h.b16 %v898
  %v1001 = vunpack.c.l.b16 %v899
  %v1002 = vunpack.c.h.b16 %v899
  %v1003 = vunpack.c.l.b16 %v900
  %v1004 = vunpack.c.h.b16 %v900
  %v1005 = vunpack.c.l.b16 %v901
  %v1006 = vunpack.c.h.b16 %v901
  %v1007 = vunpack.c.l.b16 %v902
  %v1008 = vunpack.c.h.b16 %v902
  %v1009 = vunpack.c.l.b16 %v903
  %v1010 = vunpack.c.h.b16 %v903
  %v1011 = vunpack.c.l.b16 %v904
  %v1012 = vunpack.c.h.b16 %v904
  %v1013 = vpack.c.b16 %v951, %v949
  %v1014 = vpack.c.b16 %v952, %v950
  %v1015 = vpack.c.b16 %v955, %v953
  %v1016 = vpack.c.b16 %v956, %v954
  %v1017 = vpack.c.b16 %v959, %v957
  %v1018 = vpack.c.b16 %v960, %v958
  %v1019 = vpack.c.b16 %v963, %v961
  %v1020 = vpack.c.b16 %v964, %v962
  %v1021 = vpack.c.b16 %v967, %v965
  %v1022 = vpack.c.b16 %v968, %v966
  %v1023 = vpack.c.b16 %v971, %v969
  %v1024 = vpack.c.b16 %v972, %v970
  %v1025 = vpack.c.b16 %v975, %v973
  %v1026 = vpack.c.b16 %v976, %v974
  %v1027 = vpack.c.b16 %v979, %v977
  %v1028 = vpack.c.b16 %v980, %v978
  %v1029 = vpack.c.b16 %v983, %v981
  %v1030 = vpack.c.b16 %v984, %v982
  %v1031 = vpack.c.b16 %v987, %v985
  %v1032 = vpack.c.b16 %v988, %v986
  %v1033 = vpack.c.b16 %v991, %v989
  %v1034 = vpack.c.b16 %v992, %v990
  %v1035 = vpack.c.b16 %v995, %v993
  %v1036 = vpack.c.b16 %v996, %v994
  %v1037 = vpack.c.b16 %v999, %v997
  %v1038 = vpack.c.b16 %v1000, %v998
  %v1039 = vpack.c.b16 %v1003, %v1001
  %v1040 = vpack.c.b16 %v1004, %v1002
  %v1041 = vpack.c.b16 %v1007, %v1005
  %v1042 = vpack.c.b16 %v1008, %v1006
  %v1043 = vpack.c.b16 %v1011, %v1009
  %v1044 = vpack.c.b16 %v1012, %v1010
  %1077 = vmatprep.subr.bf16.mxu0 %v1028
  %1078 = vmatpush1.bf16.msra.mxu0 %v1027
  %1079 = vmatprep.subr.bf16.mxu0 %v1026
  %1080 = vmatpush1.bf16.msra.mxu0 %v1025
  %1081 = vmatprep.subr.bf16.mxu0 %v1024
  %1082 = vmatpush1.bf16.msra.mxu0 %v1023
  %1083 = vmatprep.subr.bf16.mxu0 %v1022
  %1084 = vmatpush1.bf16.msra.mxu0 %v1021
  %1085 = vmatprep.subr.bf16.mxu0 %v1020
  %1086 = vmatpush1.bf16.msra.mxu0 %v1019
  %1087 = vmatprep.subr.bf16.mxu0 %v1018
  %1088 = vmatpush1.bf16.msra.mxu0 %v1017
  %1089 = vmatprep.subr.bf16.mxu0 %v1016
  %1090 = vmatpush1.bf16.msra.mxu0 %v1015
  %1091 = vmatprep.subr.bf16.mxu0 %v1014
  %1092 = vmatpush1.bf16.msra.mxu0 %v1013
  %1093 = vmatprep.subr.bf16.mxu0 %v1044
  %1094 = vmatpush2.bf16.msra.mxu0 %v1043
  %1095 = vmatprep.subr.bf16.mxu0 %v1042
  %1096 = vmatpush2.bf16.msra.mxu0 %v1041
  %1097 = vmatprep.subr.bf16.mxu0 %v1040
  %1098 = vmatpush2.bf16.msra.mxu0 %v1039
  %1099 = vmatprep.subr.bf16.mxu0 %v1038
  %1100 = vmatpush2.bf16.msra.mxu0 %v1037
  %1101 = vmatprep.subr.bf16.mxu0 %v1036
  %1102 = vmatpush2.bf16.msra.mxu0 %v1035
  %1103 = vmatprep.subr.bf16.mxu0 %v1034
  %1104 = vmatpush2.bf16.msra.mxu0 %v1033
  %1105 = vmatprep.subr.bf16.mxu0 %v1032
  %1106 = vmatpush2.bf16.msra.mxu0 %v1031
  %1107 = vmatprep.subr.bf16.mxu0 %v1030
  %1108 = vmatpush2.bf16.msra.mxu0 %v1029
  %1109 = vmatprep.mubr.bf16.mxu0 %v858
  %1110 = vmatmul.mubr.bf16.gmra.mxu0 %v857
  %v1111 = vpop.f32.mrf.mxu0
  %v1112 = vadd.f32 %v910, %v1111
  %v1113 = vpop.f32.mrf.mxu0
  %v1114 = vadd.f32 %v914, %v1113
  %v1115 = vpop.f32.mrf.mxu0
  %v1116 = vadd.f32 %v910, %v1115
  %v1117 = vpop.f32.mrf.mxu0
  %v1118 = vadd.f32 %v914, %v1117
  %1119 = vmatprep.mubr.bf16.mxu0 %v860
  %1120 = vmatmul.mubr.bf16.gmra.mxu0 %v859
  %v1121 = vpop.f32.mrf.mxu0
  %v1122 = vadd.f32 %v910, %v1121
  %v1123 = vpop.f32.mrf.mxu0
  %v1124 = vadd.f32 %v914, %v1123
  %v1125 = vpop.f32.mrf.mxu0
  %v1126 = vadd.f32 %v910, %v1125
  %v1127 = vpop.f32.mrf.mxu0
  %v1128 = vadd.f32 %v914, %v1127
  %1129 = vmatprep.mubr.bf16.mxu0 %v862
  %1130 = vmatmul.mubr.bf16.gmra.mxu0 %v861
  %v1131 = vpop.f32.mrf.mxu0
  %v1132 = vadd.f32 %v910, %v1131
  %v1133 = vpop.f32.mrf.mxu0
  %v1134 = vadd.f32 %v914, %v1133
  %v1135 = vpop.f32.mrf.mxu0
  %v1136 = vadd.f32 %v910, %v1135
  %v1137 = vpop.f32.mrf.mxu0
  %v1138 = vadd.f32 %v914, %v1137
  %1139 = vmatprep.mubr.bf16.mxu0 %v864
  %1140 = vmatmul.mubr.bf16.gmra.mxu0 %v863
  %v1141 = vpop.f32.mrf.mxu0
  %v1142 = vadd.f32 %v910, %v1141
  %v1143 = vpop.f32.mrf.mxu0
  %v1144 = vadd.f32 %v914, %v1143
  %v1145 = vpop.f32.mrf.mxu0
  %v1146 = vadd.f32 %v910, %v1145
  %v1147 = vpop.f32.mrf.mxu0
  %v1148 = vadd.f32 %v914, %v1147
  %1149 = vmatprep.mubr.bf16.mxu0 %v866
  %1150 = vmatmul.mubr.bf16.gmra.mxu0 %v865
  %v1151 = vpop.f32.mrf.mxu0
  %v1152 = vadd.f32 %v910, %v1151
  %v1153 = vpop.f32.mrf.mxu0
  %v1154 = vadd.f32 %v914, %v1153
  %v1155 = vpop.f32.mrf.mxu0
  %v1156 = vadd.f32 %v910, %v1155
  %v1157 = vpop.f32.mrf.mxu0
  %v1158 = vadd.f32 %v914, %v1157
  %1159 = vmatprep.mubr.bf16.mxu0 %v868
  %1160 = vmatmul.mubr.bf16.gmra.mxu0 %v867
  %v1161 = vpop.f32.mrf.mxu0
  %v1162 = vadd.f32 %v910, %v1161
  %v1163 = vpop.f32.mrf.mxu0
  %v1164 = vadd.f32 %v914, %v1163
  %v1165 = vpop.f32.mrf.mxu0
  %v1166 = vadd.f32 %v910, %v1165
  %v1167 = vpop.f32.mrf.mxu0
  %v1168 = vadd.f32 %v914, %v1167
  %1169 = vmatprep.mubr.bf16.mxu0 %v870
  %1170 = vmatmul.mubr.bf16.gmra.mxu0 %v869
  %v1171 = vpop.f32.mrf.mxu0
  %v1172 = vadd.f32 %v910, %v1171
  %v1173 = vpop.f32.mrf.mxu0
  %v1174 = vadd.f32 %v914, %v1173
  %v1175 = vpop.f32.mrf.mxu0
  %v1176 = vadd.f32 %v910, %v1175
  %v1177 = vpop.f32.mrf.mxu0
  %v1178 = vadd.f32 %v914, %v1177
  %1179 = vmatprep.mubr.bf16.mxu0 %v872
  %1180 = vmatmul.mubr.bf16.gmra.mxu0 %v871
  %v1181 = vpop.f32.mrf.mxu0
  %v1182 = vadd.f32 %v910, %v1181
  %v1183 = vpop.f32.mrf.mxu0
  %v1184 = vadd.f32 %v914, %v1183
  %v1185 = vpop.f32.mrf.mxu0
  %v1186 = vadd.f32 %v910, %v1185
  %v1187 = vpop.f32.mrf.mxu0
  %v1188 = vadd.f32 %v914, %v1187
  %1189 = vdwg.mxu0
  %v1190 = vmul.f32 %v1112, %v1112
  %v1191 = vmul.f32 %v1114, %v1114
  %v1192 = vmul.f32 %v1116, %v1116
  %v1193 = vmul.f32 %v1118, %v1118
  %v1194 = vmul.f32 %v1122, %v1122
  %v1195 = vmul.f32 %v1124, %v1124
  %v1196 = vmul.f32 %v1126, %v1126
  %v1197 = vmul.f32 %v1128, %v1128
  %v1198 = vmul.f32 %v1132, %v1132
  %v1199 = vmul.f32 %v1134, %v1134
  %v1200 = vmul.f32 %v1136, %v1136
  %v1201 = vmul.f32 %v1138, %v1138
  %v1202 = vmul.f32 %v1142, %v1142
  %v1203 = vmul.f32 %v1144, %v1144
  %v1204 = vmul.f32 %v1146, %v1146
  %v1205 = vmul.f32 %v1148, %v1148
  %v1206 = vmul.f32 %v1152, %v1152
  %v1207 = vmul.f32 %v1154, %v1154
  %v1208 = vmul.f32 %v1156, %v1156
  %v1209 = vmul.f32 %v1158, %v1158
  %v1210 = vmul.f32 %v1162, %v1162
  %v1211 = vmul.f32 %v1164, %v1164
  %v1212 = vmul.f32 %v1166, %v1166
  %v1213 = vmul.f32 %v1168, %v1168
  %v1214 = vmul.f32 %v1172, %v1172
  %v1215 = vmul.f32 %v1174, %v1174
  %v1216 = vmul.f32 %v1176, %v1176
  %v1217 = vmul.f32 %v1178, %v1178
  %v1218 = vmul.f32 %v1182, %v1182
  %v1219 = vmul.f32 %v1184, %v1184
  %v1220 = vmul.f32 %v1186, %v1186
  %v1221 = vmul.f32 %v1188, %v1188
  %v1222 = vmul.f32 %v1112, %v1190
  %v1223 = vmul.f32 %v1114, %v1191
  %v1224 = vmul.f32 %v1116, %v1192
  %v1225 = vmul.f32 %v1118, %v1193
  %v1226 = vmul.f32 %v1122, %v1194
  %v1227 = vmul.f32 %v1124, %v1195
  %v1228 = vmul.f32 %v1126, %v1196
  %v1229 = vmul.f32 %v1128, %v1197
  %v1230 = vmul.f32 %v1132, %v1198
  %v1231 = vmul.f32 %v1134, %v1199
  %v1232 = vmul.f32 %v1136, %v1200
  %v1233 = vmul.f32 %v1138, %v1201
  %v1234 = vmul.f32 %v1142, %v1202
  %v1235 = vmul.f32 %v1144, %v1203
  %v1236 = vmul.f32 %v1146, %v1204
  %v1237 = vmul.f32 %v1148, %v1205
  %v1238 = vmul.f32 %v1152, %v1206
  %v1239 = vmul.f32 %v1154, %v1207
  %v1240 = vmul.f32 %v1156, %v1208
  %v1241 = vmul.f32 %v1158, %v1209
  %v1242 = vmul.f32 %v1162, %v1210
  %v1243 = vmul.f32 %v1164, %v1211
  %v1244 = vmul.f32 %v1166, %v1212
  %v1245 = vmul.f32 %v1168, %v1213
  %v1246 = vmul.f32 %v1172, %v1214
  %v1247 = vmul.f32 %v1174, %v1215
  %v1248 = vmul.f32 %v1176, %v1216
  %v1249 = vmul.f32 %v1178, %v1217
  %v1250 = vmul.f32 %v1182, %v1218
  %v1251 = vmul.f32 %v1184, %v1219
  %v1252 = vmul.f32 %v1186, %v1220
  %v1253 = vmul.f32 %v1188, %v1221
  %v1254 = vmul.f32 %v1222, 0.044715
  %v1255 = vmul.f32 %v1223, 0.044715
  %v1256 = vmul.f32 %v1224, 0.044715
  %v1257 = vmul.f32 %v1225, 0.044715
  %v1258 = vmul.f32 %v1226, 0.044715
  %v1259 = vmul.f32 %v1227, 0.044715
  %v1260 = vmul.f32 %v1228, 0.044715
  %v1261 = vmul.f32 %v1229, 0.044715
  %v1262 = vmul.f32 %v1230, 0.044715
  %v1263 = vmul.f32 %v1231, 0.044715
  %v1264 = vmul.f32 %v1232, 0.044715
  %v1265 = vmul.f32 %v1233, 0.044715
  %v1266 = vmul.f32 %v1234, 0.044715
  %v1267 = vmul.f32 %v1235, 0.044715
  %v1268 = vmul.f32 %v1236, 0.044715
  %v1269 = vmul.f32 %v1237, 0.044715
  %v1270 = vmul.f32 %v1238, 0.044715
  %v1271 = vmul.f32 %v1239, 0.044715
  %v1272 = vmul.f32 %v1240, 0.044715
  %v1273 = vmul.f32 %v1241, 0.044715
  %v1274 = vmul.f32 %v1242, 0.044715
  %v1275 = vmul.f32 %v1243, 0.044715
  %v1276 = vmul.f32 %v1244, 0.044715
  %v1277 = vmul.f32 %v1245, 0.044715
  %v1278 = vmul.f32 %v1246, 0.044715
  %v1279 = vmul.f32 %v1247, 0.044715
  %v1280 = vmul.f32 %v1248, 0.044715
  %v1281 = vmul.f32 %v1249, 0.044715
  %v1282 = vmul.f32 %v1250, 0.044715
  %v1283 = vmul.f32 %v1251, 0.044715
  %v1284 = vmul.f32 %v1252, 0.044715
  %v1285 = vmul.f32 %v1253, 0.044715
  %v1286 = vadd.f32 %v1112, %v1254
  %v1287 = vadd.f32 %v1114, %v1255
  %v1288 = vadd.f32 %v1116, %v1256
  %v1289 = vadd.f32 %v1118, %v1257
  %v1290 = vadd.f32 %v1122, %v1258
  %v1291 = vadd.f32 %v1124, %v1259
  %v1292 = vadd.f32 %v1126, %v1260
  %v1293 = vadd.f32 %v1128, %v1261
  %v1294 = vadd.f32 %v1132, %v1262
  %v1295 = vadd.f32 %v1134, %v1263
  %v1296 = vadd.f32 %v1136, %v1264
  %v1297 = vadd.f32 %v1138, %v1265
  %v1298 = vadd.f32 %v1142, %v1266
  %v1299 = vadd.f32 %v1144, %v1267
  %v1300 = vadd.f32 %v1146, %v1268
  %v1301 = vadd.f32 %v1148, %v1269
  %v1302 = vadd.f32 %v1152, %v1270
  %v1303 = vadd.f32 %v1154, %v1271
  %v1304 = vadd.f32 %v1156, %v1272
  %v1305 = vadd.f32 %v1158, %v1273
  %v1306 = vadd.f32 %v1162, %v1274
  %v1307 = vadd.f32 %v1164, %v1275
  %v1308 = vadd.f32 %v1166, %v1276
  %v1309 = vadd.f32 %v1168, %v1277
  %v1310 = vadd.f32 %v1172, %v1278
  %v1311 = vadd.f32 %v1174, %v1279
  %v1312 = vadd.f32 %v1176, %v1280
  %v1313 = vadd.f32 %v1178, %v1281
  %v1314 = vadd.f32 %v1182, %v1282
  %v1315 = vadd.f32 %v1184, %v1283
  %v1316 = vadd.f32 %v1186, %v1284
  %v1317 = vadd.f32 %v1188, %v1285
  %v1318 = vmul.f32 %v1286, 0.7978846
  %v1319 = vmul.f32 %v1287, 0.7978846
  %v1320 = vmul.f32 %v1288, 0.7978846
  %v1321 = vmul.f32 %v1289, 0.7978846
  %v1322 = vmul.f32 %v1290, 0.7978846
  %v1323 = vmul.f32 %v1291, 0.7978846
  %v1324 = vmul.f32 %v1292, 0.7978846
  %v1325 = vmul.f32 %v1293, 0.7978846
  %v1326 = vmul.f32 %v1294, 0.7978846
  %v1327 = vmul.f32 %v1295, 0.7978846
  %v1328 = vmul.f32 %v1296, 0.7978846
  %v1329 = vmul.f32 %v1297, 0.7978846
  %v1330 = vmul.f32 %v1298, 0.7978846
  %v1331 = vmul.f32 %v1299, 0.7978846
  %v1332 = vmul.f32 %v1300, 0.7978846
  %v1333 = vmul.f32 %v1301, 0.7978846
  %v1334 = vmul.f32 %v1302, 0.7978846
  %v1335 = vmul.f32 %v1303, 0.7978846
  %v1336 = vmul.f32 %v1304, 0.7978846
  %v1337 = vmul.f32 %v1305, 0.7978846
  %v1338 = vmul.f32 %v1306, 0.7978846
  %v1339 = vmul.f32 %v1307, 0.7978846
  %v1340 = vmul.f32 %v1308, 0.7978846
  %v1341 = vmul.f32 %v1309, 0.7978846
  %v1342 = vmul.f32 %v1310, 0.7978846
  %v1343 = vmul.f32 %v1311, 0.7978846
  %v1344 = vmul.f32 %v1312, 0.7978846
  %v1345 = vmul.f32 %v1313, 0.7978846
  %v1346 = vmul.f32 %v1314, 0.7978846
  %v1347 = vmul.f32 %v1315, 0.7978846
  %v1348 = vmul.f32 %v1316, 0.7978846
  %v1349 = vmul.f32 %v1317, 0.7978846
  %v1350 = vtanh.pop %v1318
  %v1351 = vtanh.pop %v1319
  %v1352 = vtanh.pop %v1320
  %v1353 = vtanh.pop %v1321
  %v1354 = vtanh.pop %v1322
  %v1355 = vtanh.pop %v1323
  %v1356 = vtanh.pop %v1324
  %v1357 = vtanh.pop %v1325
  %v1358 = vtanh.pop %v1326
  %v1359 = vtanh.pop %v1327
  %v1360 = vtanh.pop %v1328
  %v1361 = vtanh.pop %v1329
  %v1362 = vtanh.pop %v1330
  %v1363 = vtanh.pop %v1331
  %v1364 = vtanh.pop %v1332
  %v1365 = vtanh.pop %v1333
  %v1366 = vtanh.pop %v1334
  %v1367 = vtanh.pop %v1335
  %v1368 = vtanh.pop %v1336
  %v1369 = vtanh.pop %v1337
  %v1370 = vtanh.pop %v1338
  %v1371 = vtanh.pop %v1339
  %v1372 = vtanh.pop %v1340
  %v1373 = vtanh.pop %v1341
  %v1374 = vtanh.pop %v1342
  %v1375 = vtanh.pop %v1343
  %v1376 = vtanh.pop %v1344
  %v1377 = vtanh.pop %v1345
  %v1378 = vtanh.pop %v1346
  %v1379 = vtanh.pop %v1347
  %v1380 = vtanh.pop %v1348
  %v1381 = vtanh.pop %v1349
  %v1382 = vadd.f32 %v1350, 1.0
  %v1383 = vadd.f32 %v1351, 1.0
  %v1384 = vadd.f32 %v1352, 1.0
  %v1385 = vadd.f32 %v1353, 1.0
  %v1386 = vadd.f32 %v1354, 1.0
  %v1387 = vadd.f32 %v1355, 1.0
  %v1388 = vadd.f32 %v1356, 1.0
  %v1389 = vadd.f32 %v1357, 1.0
  %v1390 = vadd.f32 %v1358, 1.0
  %v1391 = vadd.f32 %v1359, 1.0
  %v1392 = vadd.f32 %v1360, 1.0
  %v1393 = vadd.f32 %v1361, 1.0
  %v1394 = vadd.f32 %v1362, 1.0
  %v1395 = vadd.f32 %v1363, 1.0
  %v1396 = vadd.f32 %v1364, 1.0
  %v1397 = vadd.f32 %v1365, 1.0
  %v1398 = vadd.f32 %v1366, 1.0
  %v1399 = vadd.f32 %v1367, 1.0
  %v1400 = vadd.f32 %v1368, 1.0
  %v1401 = vadd.f32 %v1369, 1.0
  %v1402 = vadd.f32 %v1370, 1.0
  %v1403 = vadd.f32 %v1371, 1.0
  %v1404 = vadd.f32 %v1372, 1.0
  %v1405 = vadd.f32 %v1373, 1.0
  %v1406 = vadd.f32 %v1374, 1.0
  %v1407 = vadd.f32 %v1375, 1.0
  %v1408 = vadd.f32 %v1376, 1.0
  %v1409 = vadd.f32 %v1377, 1.0
  %v1410 = vadd.f32 %v1378, 1.0
  %v1411 = vadd.f32 %v1379, 1.0
  %v1412 = vadd.f32 %v1380, 1.0
  %v1413 = vadd.f32 %v1381, 1.0
  %v1414 = vmul.f32 %v1382, 0.5
  %v1415 = vmul.f32 %v1383, 0.5
  %v1416 = vmul.f32 %v1384, 0.5
  %v1417 = vmul.f32 %v1385, 0.5
  %v1418 = vmul.f32 %v1386, 0.5
  %v1419 = vmul.f32 %v1387, 0.5
  %v1420 = vmul.f32 %v1388, 0.5
  %v1421 = vmul.f32 %v1389, 0.5
  %v1422 = vmul.f32 %v1390, 0.5
  %v1423 = vmul.f32 %v1391, 0.5
  %v1424 = vmul.f32 %v1392, 0.5
  %v1425 = vmul.f32 %v1393, 0.5
  %v1426 = vmul.f32 %v1394, 0.5
  %v1427 = vmul.f32 %v1395, 0.5
  %v1428 = vmul.f32 %v1396, 0.5
  %v1429 = vmul.f32 %v1397, 0.5
  %v1430 = vmul.f32 %v1398, 0.5
  %v1431 = vmul.f32 %v1399, 0.5
  %v1432 = vmul.f32 %v1400, 0.5
  %v1433 = vmul.f32 %v1401, 0.5
  %v1434 = vmul.f32 %v1402, 0.5
  %v1435 = vmul.f32 %v1403, 0.5
  %v1436 = vmul.f32 %v1404, 0.5
  %v1437 = vmul.f32 %v1405, 0.5
  %v1438 = vmul.f32 %v1406, 0.5
  %v1439 = vmul.f32 %v1407, 0.5
  %v1440 = vmul.f32 %v1408, 0.5
  %v1441 = vmul.f32 %v1409, 0.5
  %v1442 = vmul.f32 %v1410, 0.5
  %v1443 = vmul.f32 %v1411, 0.5
  %v1444 = vmul.f32 %v1412, 0.5
  %v1445 = vmul.f32 %v1413, 0.5
  %v1446 = vmul.f32 %v1112, %v1414
  %v1447 = vmul.f32 %v1114, %v1415
  %v1448 = vmul.f32 %v1116, %v1416
  %v1449 = vmul.f32 %v1118, %v1417
  %v1450 = vmul.f32 %v1122, %v1418
  %v1451 = vmul.f32 %v1124, %v1419
  %v1452 = vmul.f32 %v1126, %v1420
  %v1453 = vmul.f32 %v1128, %v1421
  %v1454 = vmul.f32 %v1132, %v1422
  %v1455 = vmul.f32 %v1134, %v1423
  %v1456 = vmul.f32 %v1136, %v1424
  %v1457 = vmul.f32 %v1138, %v1425
  %v1458 = vmul.f32 %v1142, %v1426
  %v1459 = vmul.f32 %v1144, %v1427
  %v1460 = vmul.f32 %v1146, %v1428
  %v1461 = vmul.f32 %v1148, %v1429
  %v1462 = vmul.f32 %v1152, %v1430
  %v1463 = vmul.f32 %v1154, %v1431
  %v1464 = vmul.f32 %v1156, %v1432
  %v1465 = vmul.f32 %v1158, %v1433
  %v1466 = vmul.f32 %v1162, %v1434
  %v1467 = vmul.f32 %v1164, %v1435
  %v1468 = vmul.f32 %v1166, %v1436
  %v1469 = vmul.f32 %v1168, %v1437
  %v1470 = vmul.f32 %v1172, %v1438
  %v1471 = vmul.f32 %v1174, %v1439
  %v1472 = vmul.f32 %v1176, %v1440
  %v1473 = vmul.f32 %v1178, %v1441
  %v1474 = vmul.f32 %v1182, %v1442
  %v1475 = vmul.f32 %v1184, %v1443
  %v1476 = vmul.f32 %v1186, %v1444
  %v1477 = vmul.f32 %v1188, %v1445
  %v1478 = vpack.c.bf16 %v1448, %v1446
  %v1479 = vpack.c.bf16 %v1449, %v1447
  %v1480 = vpack.c.bf16 %v1452, %v1450
  %v1481 = vpack.c.bf16 %v1453, %v1451
  %v1482 = vpack.c.bf16 %v1456, %v1454
  %v1483 = vpack.c.bf16 %v1457, %v1455
  %v1484 = vpack.c.bf16 %v1460, %v1458
  %v1485 = vpack.c.bf16 %v1461, %v1459
  %v1486 = vpack.c.bf16 %v1464, %v1462
  %v1487 = vpack.c.bf16 %v1465, %v1463
  %v1488 = vpack.c.bf16 %v1468, %v1466
  %v1489 = vpack.c.bf16 %v1469, %v1467
  %v1490 = vpack.c.bf16 %v1472, %v1470
  %v1491 = vpack.c.bf16 %v1473, %v1471
  %v1492 = vpack.c.bf16 %v1476, %v1474
  %v1493 = vpack.c.bf16 %v1477, %v1475
  %v1494 = vld [vmem:[%s8] sm:$0xff]
  %v1495 = vld [vmem:[%s8 + $0x8] sm:$0xff]
  %v1496 = vld [vmem:[%s8 + $0x10] sm:$0xff]
  %v1497 = vld [vmem:[%s8 + $0x18] sm:$0xff]
  %v1498 = vld [vmem:[%s8 + $0x20] sm:$0xff]
  %v1499 = vld [vmem:[%s8 + $0x28] sm:$0xff]
  %v1500 = vld [vmem:[%s8 + $0x30] sm:$0xff]
  %v1501 = vld [vmem:[%s8 + $0x38] sm:$0xff]
  %v1502 = vld [vmem:[%s8 + $0x40] sm:$0xff]
  %v1503 = vld [vmem:[%s8 + $0x48] sm:$0xff]
  %v1504 = vld [vmem:[%s8 + $0x50] sm:$0xff]
  %v1505 = vld [vmem:[%s8 + $0x58] sm:$0xff]
  %v1506 = vld [vmem:[%s8 + $0x60] sm:$0xff]
  %v1507 = vld [vmem:[%s8 + $0x68] sm:$0xff]
  %v1508 = vld [vmem:[%s8 + $0x70] sm:$0xff]
  %v1509 = vld [vmem:[%s8 + $0x78] sm:$0xff]
  %v1510 = vld [vmem:[%s8 + $0x80] sm:$0xff]
  %v1511 = vld [vmem:[%s8 + $0x88] sm:$0xff]
  %v1512 = vld [vmem:[%s8 + $0x90] sm:$0xff]
  %v1513 = vld [vmem:[%s8 + $0x98] sm:$0xff]
  %v1514 = vld [vmem:[%s8 + $0xa0] sm:$0xff]
  %v1515 = vld [vmem:[%s8 + $0xa8] sm:$0xff]
  %v1516 = vld [vmem:[%s8 + $0xb0] sm:$0xff]
  %v1517 = vld [vmem:[%s8 + $0xb8] sm:$0xff]
  %v1518 = vld [vmem:[%s8 + $0xc0] sm:$0xff]
  %v1519 = vld [vmem:[%s8 + $0xc8] sm:$0xff]
  %v1520 = vld [vmem:[%s8 + $0xd0] sm:$0xff]
  %v1521 = vld [vmem:[%s8 + $0xd8] sm:$0xff]
  %v1522 = vld [vmem:[%s8 + $0xe0] sm:$0xff]
  %v1523 = vld [vmem:[%s8 + $0xe8] sm:$0xff]
  %v1524 = vld [vmem:[%s8 + $0xf0] sm:$0xff]
  %v1525 = vld [vmem:[%s8 + $0xf8] sm:$0xff]
  %v1526 = vld [vmem:[%s9] sm:$0x3]
  %v1528 = vlaneseq
  %v1529 = vshrl.u32 %v1528, 7
  %v1530 = vsub.s32 0, %v1529
  %v1531 = vrot.slane %v1526, %v1530
  %v1532 = vlaneseq
  %v1533 = vshrl.u32 %v1532, 7
  %v1534 = vsub.s32 1, %v1533
  %v1535 = vrot.slane %v1526, %v1534
  %v1570 = vunpack.c.l.b16 %v1494
  %v1571 = vunpack.c.h.b16 %v1494
  %v1572 = vunpack.c.l.b16 %v1495
  %v1573 = vunpack.c.h.b16 %v1495
  %v1574 = vunpack.c.l.b16 %v1496
  %v1575 = vunpack.c.h.b16 %v1496
  %v1576 = vunpack.c.l.b16 %v1497
  %v1577 = vunpack.c.h.b16 %v1497
  %v1578 = vunpack.c.l.b16 %v1498
  %v1579 = vunpack.c.h.b16 %v1498
  %v1580 = vunpack.c.l.b16 %v1499
  %v1581 = vunpack.c.h.b16 %v1499
  %v1582 = vunpack.c.l.b16 %v1500
  %v1583 = vunpack.c.h.b16 %v1500
  %v1584 = vunpack.c.l.b16 %v1501
  %v1585 = vunpack.c.h.b16 %v1501
  %v1586 = vunpack.c.l.b16 %v1502
  %v1587 = vunpack.c.h.b16 %v1502
  %v1588 = vunpack.c.l.b16 %v1503
  %v1589 = vunpack.c.h.b16 %v1503
  %v1590 = vunpack.c.l.b16 %v1504
  %v1591 = vunpack.c.h.b16 %v1504
  %v1592 = vunpack.c.l.b16 %v1505
  %v1593 = vunpack.c.h.b16 %v1505
  %v1594 = vunpack.c.l.b16 %v1506
  %v1595 = vunpack.c.h.b16 %v1506
  %v1596 = vunpack.c.l.b16 %v1507
  %v1597 = vunpack.c.h.b16 %v1507
  %v1598 = vunpack.c.l.b16 %v1508
  %v1599 = vunpack.c.h.b16 %v1508
  %v1600 = vunpack.c.l.b16 %v1509
  %v1601 = vunpack.c.h.b16 %v1509
  %v1602 = vunpack.c.l.b16 %v1510
  %v1603 = vunpack.c.h.b16 %v1510
  %v1604 = vunpack.c.l.b16 %v1511
  %v1605 = vunpack.c.h.b16 %v1511
  %v1606 = vunpack.c.l.b16 %v1512
  %v1607 = vunpack.c.h.b16 %v1512
  %v1608 = vunpack.c.l.b16 %v1513
  %v1609 = vunpack.c.h.b16 %v1513
  %v1610 = vunpack.c.l.b16 %v1514
  %v1611 = vunpack.c.h.b16 %v1514
  %v1612 = vunpack.c.l.b16 %v1515
  %v1613 = vunpack.c.h.b16 %v1515
  %v1614 = vunpack.c.l.b16 %v1516
  %v1615 = vunpack.c.h.b16 %v1516
  %v1616 = vunpack.c.l.b16 %v1517
  %v1617 = vunpack.c.h.b16 %v1517
  %v1618 = vunpack.c.l.b16 %v1518
  %v1619 = vunpack.c.h.b16 %v1518
  %v1620 = vunpack.c.l.b16 %v1519
  %v1621 = vunpack.c.h.b16 %v1519
  %v1622 = vunpack.c.l.b16 %v1520
  %v1623 = vunpack.c.h.b16 %v1520
  %v1624 = vunpack.c.l.b16 %v1521
  %v1625 = vunpack.c.h.b16 %v1521
  %v1626 = vunpack.c.l.b16 %v1522
  %v1627 = vunpack.c.h.b16 %v1522
  %v1628 = vunpack.c.l.b16 %v1523
  %v1629 = vunpack.c.h.b16 %v1523
  %v1630 = vunpack.c.l.b16 %v1524
  %v1631 = vunpack.c.h.b16 %v1524
  %v1632 = vunpack.c.l.b16 %v1525
  %v1633 = vunpack.c.h.b16 %v1525
  %v1634 = vpack.c.b16 %v1572, %v1570
  %v1635 = vpack.c.b16 %v1573, %v1571
  %v1636 = vpack.c.b16 %v1576, %v1574
  %v1637 = vpack.c.b16 %v1577, %v1575
  %v1638 = vpack.c.b16 %v1580, %v1578
  %v1639 = vpack.c.b16 %v1581, %v1579
  %v1640 = vpack.c.b16 %v1584, %v1582
  %v1641 = vpack.c.b16 %v1585, %v1583
  %v1642 = vpack.c.b16 %v1588, %v1586
  %v1643 = vpack.c.b16 %v1589, %v1587
  %v1644 = vpack.c.b16 %v1592, %v1590
  %v1645 = vpack.c.b16 %v1593, %v1591
  %v1646 = vpack.c.b16 %v1596, %v1594
  %v1647 = vpack.c.b16 %v1597, %v1595
  %v1648 = vpack.c.b16 %v1600, %v1598
  %v1649 = vpack.c.b16 %v1601, %v1599
  %v1650 = vpack.c.b16 %v1604, %v1602
  %v1651 = vpack.c.b16 %v1605, %v1603
  %v1652 = vpack.c.b16 %v1608, %v1606
  %v1653 = vpack.c.b16 %v1609, %v1607
  %v1654 = vpack.c.b16 %v1612, %v1610
  %v1655 = vpack.c.b16 %v1613, %v1611
  %v1656 = vpack.c.b16 %v1616, %v1614
  %v1657 = vpack.c.b16 %v1617, %v1615
  %v1658 = vpack.c.b16 %v1620, %v1618
  %v1659 = vpack.c.b16 %v1621, %v1619
  %v1660 = vpack.c.b16 %v1624, %v1622
  %v1661 = vpack.c.b16 %v1625, %v1623
  %v1662 = vpack.c.b16 %v1628, %v1626
  %v1663 = vpack.c.b16 %v1629, %v1627
  %v1664 = vpack.c.b16 %v1632, %v1630
  %v1665 = vpack.c.b16 %v1633, %v1631
  %1698 = vmatprep.subr.bf16.mxu0 %v1649
  %1699 = vmatpush1.bf16.msra.mxu0 %v1648
  %1700 = vmatprep.subr.bf16.mxu0 %v1647
  %1701 = vmatpush1.bf16.msra.mxu0 %v1646
  %1702 = vmatprep.subr.bf16.mxu0 %v1645
  %1703 = vmatpush1.bf16.msra.mxu0 %v1644
  %1704 = vmatprep.subr.bf16.mxu0 %v1643
  %1705 = vmatpush1.bf16.msra.mxu0 %v1642
  %1706 = vmatprep.subr.bf16.mxu0 %v1641
  %1707 = vmatpush1.bf16.msra.mxu0 %v1640
  %1708 = vmatprep.subr.bf16.mxu0 %v1639
  %1709 = vmatpush1.bf16.msra.mxu0 %v1638
  %1710 = vmatprep.subr.bf16.mxu0 %v1637
  %1711 = vmatpush1.bf16.msra.mxu0 %v1636
  %1712 = vmatprep.subr.bf16.mxu0 %v1635
  %1713 = vmatpush1.bf16.msra.mxu0 %v1634
  %1714 = vmatprep.subr.bf16.mxu0 %v1665
  %1715 = vmatpush2.bf16.msra.mxu0 %v1664
  %1716 = vmatprep.subr.bf16.mxu0 %v1663
  %1717 = vmatpush2.bf16.msra.mxu0 %v1662
  %1718 = vmatprep.subr.bf16.mxu0 %v1661
  %1719 = vmatpush2.bf16.msra.mxu0 %v1660
  %1720 = vmatprep.subr.bf16.mxu0 %v1659
  %1721 = vmatpush2.bf16.msra.mxu0 %v1658
  %1722 = vmatprep.subr.bf16.mxu0 %v1657
  %1723 = vmatpush2.bf16.msra.mxu0 %v1656
  %1724 = vmatprep.subr.bf16.mxu0 %v1655
  %1725 = vmatpush2.bf16.msra.mxu0 %v1654
  %1726 = vmatprep.subr.bf16.mxu0 %v1653
  %1727 = vmatpush2.bf16.msra.mxu0 %v1652
  %1728 = vmatprep.subr.bf16.mxu0 %v1651
  %1729 = vmatpush2.bf16.msra.mxu0 %v1650
  %1730 = vmatprep.mubr.bf16.mxu0 %v1479
  %1731 = vmatmul.mubr.bf16.gmra.mxu0 %v1478
  %v1732 = vpop.f32.mrf.mxu0
  %v1733 = vadd.f32 %v1531, %v1732
  %v1734 = vpop.f32.mrf.mxu0
  %v1735 = vadd.f32 %v1535, %v1734
  %v1736 = vpop.f32.mrf.mxu0
  %v1737 = vadd.f32 %v1531, %v1736
  %v1738 = vpop.f32.mrf.mxu0
  %v1739 = vadd.f32 %v1535, %v1738
  %1740 = vmatprep.mubr.bf16.mxu0 %v1481
  %1741 = vmatmul.mubr.bf16.gmra.mxu0 %v1480
  %v1742 = vpop.f32.mrf.mxu0
  %v1743 = vadd.f32 %v1531, %v1742
  %v1744 = vpop.f32.mrf.mxu0
  %v1745 = vadd.f32 %v1535, %v1744
  %v1746 = vpop.f32.mrf.mxu0
  %v1747 = vadd.f32 %v1531, %v1746
  %v1748 = vpop.f32.mrf.mxu0
  %v1749 = vadd.f32 %v1535, %v1748
  %1750 = vmatprep.mubr.bf16.mxu0 %v1483
  %1751 = vmatmul.mubr.bf16.gmra.mxu0 %v1482
  %v1752 = vpop.f32.mrf.mxu0
  %v1753 = vadd.f32 %v1531, %v1752
  %v1754 = vpop.f32.mrf.mxu0
  %v1755 = vadd.f32 %v1535, %v1754
  %v1756 = vpop.f32.mrf.mxu0
  %v1757 = vadd.f32 %v1531, %v1756
  %v1758 = vpop.f32.mrf.mxu0
  %v1759 = vadd.f32 %v1535, %v1758
  %1760 = vmatprep.mubr.bf16.mxu0 %v1485
  %1761 = vmatmul.mubr.bf16.gmra.mxu0 %v1484
  %v1762 = vpop.f32.mrf.mxu0
  %v1763 = vadd.f32 %v1531, %v1762
  %v1764 = vpop.f32.mrf.mxu0
  %v1765 = vadd.f32 %v1535, %v1764
  %v1766 = vpop.f32.mrf.mxu0
  %v1767 = vadd.f32 %v1531, %v1766
  %v1768 = vpop.f32.mrf.mxu0
  %v1769 = vadd.f32 %v1535, %v1768
  %1770 = vmatprep.mubr.bf16.mxu0 %v1487
  %1771 = vmatmul.mubr.bf16.gmra.mxu0 %v1486
  %v1772 = vpop.f32.mrf.mxu0
  %v1773 = vadd.f32 %v1531, %v1772
  %v1774 = vpop.f32.mrf.mxu0
  %v1775 = vadd.f32 %v1535, %v1774
  %v1776 = vpop.f32.mrf.mxu0
  %v1777 = vadd.f32 %v1531, %v1776
  %v1778 = vpop.f32.mrf.mxu0
  %v1779 = vadd.f32 %v1535, %v1778
  %1780 = vmatprep.mubr.bf16.mxu0 %v1489
  %1781 = vmatmul.mubr.bf16.gmra.mxu0 %v1488
  %v1782 = vpop.f32.mrf.mxu0
  %v1783 = vadd.f32 %v1531, %v1782
  %v1784 = vpop.f32.mrf.mxu0
  %v1785 = vadd.f32 %v1535, %v1784
  %v1786 = vpop.f32.mrf.mxu0
  %v1787 = vadd.f32 %v1531, %v1786
  %v1788 = vpop.f32.mrf.mxu0
  %v1789 = vadd.f32 %v1535, %v1788
  %1790 = vmatprep.mubr.bf16.mxu0 %v1491
  %1791 = vmatmul.mubr.bf16.gmra.mxu0 %v1490
  %v1792 = vpop.f32.mrf.mxu0
  %v1793 = vadd.f32 %v1531, %v1792
  %v1794 = vpop.f32.mrf.mxu0
  %v1795 = vadd.f32 %v1535, %v1794
  %v1796 = vpop.f32.mrf.mxu0
  %v1797 = vadd.f32 %v1531, %v1796
  %v1798 = vpop.f32.mrf.mxu0
  %v1799 = vadd.f32 %v1535, %v1798
  %1800 = vmatprep.mubr.bf16.mxu0 %v1493
  %1801 = vmatmul.mubr.bf16.gmra.mxu0 %v1492
  %v1802 = vpop.f32.mrf.mxu0
  %v1803 = vadd.f32 %v1531, %v1802
  %v1804 = vpop.f32.mrf.mxu0
  %v1805 = vadd.f32 %v1535, %v1804
  %v1806 = vpop.f32.mrf.mxu0
  %v1807 = vadd.f32 %v1531, %v1806
  %v1808 = vpop.f32.mrf.mxu0
  %v1809 = vadd.f32 %v1535, %v1808
  %1810 = vdwg.mxu0
  %v1811 = vadd.f32 %v1733, %v480
  %v1812 = vadd.f32 %v1735, %v481
  %v1813 = vadd.f32 %v1737, %v482
  %v1814 = vadd.f32 %v1739, %v483
  %v1815 = vadd.f32 %v1743, %v484
  %v1816 = vadd.f32 %v1745, %v485
  %v1817 = vadd.f32 %v1747, %v486
  %v1818 = vadd.f32 %v1749, %v487
  %v1819 = vadd.f32 %v1753, %v488
  %v1820 = vadd.f32 %v1755, %v489
  %v1821 = vadd.f32 %v1757, %v490
  %v1822 = vadd.f32 %v1759, %v491
  %v1823 = vadd.f32 %v1763, %v492
  %v1824 = vadd.f32 %v1765, %v493
  %v1825 = vadd.f32 %v1767, %v494
  %v1826 = vadd.f32 %v1769, %v495
  %v1827 = vadd.f32 %v1773, %v496
  %v1828 = vadd.f32 %v1775, %v497
  %v1829 = vadd.f32 %v1777, %v498
  %v1830 = vadd.f32 %v1779, %v499
  %v1831 = vadd.f32 %v1783, %v500
  %v1832 = vadd.f32 %v1785, %v501
  %v1833 = vadd.f32 %v1787, %v502
  %v1834 = vadd.f32 %v1789, %v503
  %v1835 = vadd.f32 %v1793, %v504
  %v1836 = vadd.f32 %v1795, %v505
  %v1837 = vadd.f32 %v1797, %v506
  %v1838 = vadd.f32 %v1799, %v507
  %v1839 = vadd.f32 %v1803, %v508
  %v1840 = vadd.f32 %v1805, %v509
  %v1841 = vadd.f32 %v1807, %v510
  %v1842 = vadd.f32 %v1809, %v511
  %1843 = vst [vmem:[%s10] sm:$0xff] %v1811
  %1844 = vst [vmem:[%s10 + $0x8] sm:$0xff] %v1812
  %1845 = vst [vmem:[%s10 + $0x10] sm:$0xff] %v1813
  %1846 = vst [vmem:[%s10 + $0x18] sm:$0xff] %v1814
  %1847 = vst [vmem:[%s10 + $0x20] sm:$0xff] %v1815
  %1848 = vst [vmem:[%s10 + $0x28] sm:$0xff] %v1816
  %1849 = vst [vmem:[%s10 + $0x30] sm:$0xff] %v1817
  %1850 = vst [vmem:[%s10 + $0x38] sm:$0xff] %v1818
  %1851 = vst [vmem:[%s10 + $0x40] sm:$0xff] %v1819
  %1852 = vst [vmem:[%s10 + $0x48] sm:$0xff] %v1820
  %1853 = vst [vmem:[%s10 + $0x50] sm:$0xff] %v1821
  %1854 = vst [vmem:[%s10 + $0x58] sm:$0xff] %v1822
  %1855 = vst [vmem:[%s10 + $0x60] sm:$0xff] %v1823
  %1856 = vst [vmem:[%s10 + $0x68] sm:$0xff] %v1824
  %1857 = vst [vmem:[%s10 + $0x70] sm:$0xff] %v1825
  %1858 = vst [vmem:[%s10 + $0x78] sm:$0xff] %v1826
  %1859 = vst [vmem:[%s10 + $0x80] sm:$0xff] %v1827
  %1860 = vst [vmem:[%s10 + $0x88] sm:$0xff] %v1828
  %1861 = vst [vmem:[%s10 + $0x90] sm:$0xff] %v1829
  %1862 = vst [vmem:[%s10 + $0x98] sm:$0xff] %v1830
  %1863 = vst [vmem:[%s10 + $0xa0] sm:$0xff] %v1831
  %1864 = vst [vmem:[%s10 + $0xa8] sm:$0xff] %v1832
  %1865 = vst [vmem:[%s10 + $0xb0] sm:$0xff] %v1833
  %1866 = vst [vmem:[%s10 + $0xb8] sm:$0xff] %v1834
  %1867 = vst [vmem:[%s10 + $0xc0] sm:$0xff] %v1835
  %1868 = vst [vmem:[%s10 + $0xc8] sm:$0xff] %v1836
  %1869 = vst [vmem:[%s10 + $0xd0] sm:$0xff] %v1837
  %1870 = vst [vmem:[%s10 + $0xd8] sm:$0xff] %v1838
  %1871 = vst [vmem:[%s10 + $0xe0] sm:$0xff] %v1839
  %1872 = vst [vmem:[%s10 + $0xe8] sm:$0xff] %v1840
  %1873 = vst [vmem:[%s10 + $0xf0] sm:$0xff] %v1841
  %1874 = vst [vmem:[%s10 + $0xf8] sm:$0xff] %v1842
  // Predicated region
  $region42: #{_lambda_.13} parent=0 // pred_check
    _
  $region43: #{_lambda_.13} parent=0 // pred_check_branch
    %1876 = sbr.rel (0) target = $region45
  $region44: #{_lambda_.13} parent=0 // pred_region
    _
  $region45: #{_lambda_.13} parent=0 // pred_fallthru
    _
  // Predicated region
  $region46: #{_lambda_.13} parent=0 // pred_check
    _
  $region47: #{_lambda_.13} parent=0 // pred_check_branch
    %1878 = sbr.rel (0) target = $region49
  $region48: #{_lambda_.13} parent=0 // pred_region
    _
  $region49: #{_lambda_.13} parent=0 // pred_fallthru
    _

</llo_original>
